<compile_context>
chip_gen: v6e
topology: v6e:2x2x1
jax: 0.10.0
libtpu: 0.0.40
codegen_flags: <defaults>
</compile_context>

<pallas_src>
import math
import jax
import jax.numpy as jnp
from jax import lax
from jax.experimental import pallas as pl
from jax.experimental.pallas import tpu as pltpu

# ---- model hyper-parameters (small, consistent with the module defaults) ----
D_MODEL = 32
N_LAYER = 2
VOCAB = 16
N_SEG = 3
BATCH = 2
SEQ = 8
EXPAND = 2
D_INNER = EXPAND * D_MODEL            # 64
D_STATE = 16
D_CONV = 4
DT_RANK = math.ceil(D_MODEL / 16)     # 2
EPS = 1e-5

# Packed "small parameter" buffer rows (per layer, per direction):
#   0: norm_w (first D cols)   1: norm_b (first D cols)
#   2: conv_b                  3: dt_proj bias            4: D (skip) param
#   5..5+K-1: conv_w taps      9..9+DT_RANK-1: dt_proj weight rows
SMALL_ROWS = 16


# ----------------------------- in-kernel helpers -----------------------------
def _sigmoid(x):
    return 1.0 / (1.0 + jnp.exp(-x))


def _softplus(x):
    return jnp.where(x > 20.0, x, jnp.log1p(jnp.exp(jnp.minimum(x, 20.0))))


def _layer_norm(x, w, b):
    mean = jnp.mean(x, axis=-1, keepdims=True)
    c = x - mean
    var = jnp.mean(c * c, axis=-1, keepdims=True)
    return c * lax.rsqrt(var + EPS) * w + b


# ----------------------------- fused model kernel ----------------------------
def _model_kernel(pos_ref, emb_ref, embn_ref, fnorm_ref, small_ref, win_ref,
                  wx_ref, alog_ref, wout_ref, fcw_ref, fcb_ref, out_ref):
    B, L, D = emb_ref.shape
    di, ds, dtr, K = D_INNER, D_STATE, DT_RANK, D_CONV

    # ---- per-batch flip+shift permutation, built ONCE.
    # shift_pad(x.flip(1), pos)[b, t] = x[b, pos[b]-1-t] for t < pos[b], else 0.
    # It is an involution (up to zeroing padded rows), so the same matrix
    # handles both the input flip and the output un-flip on every layer.
    t_idx = lax.broadcasted_iota(jnp.int32, (L, L), 0)
    s_idx = lax.broadcasted_iota(jnp.int32, (L, L), 1)
    perms = []
    for b in range(B):                         # B is tiny and static
        p = pos_ref[b]
        perms.append(jnp.where((s_idx == p - 1 - t_idx) & (t_idx < p),
                               1.0, 0.0).astype(jnp.float32))

    def flip_shift(x):                         # (B, L, F) -> (B, L, F)
        return jnp.stack(
            [jnp.dot(perms[b], x[b], preferred_element_type=jnp.float32)
             for b in range(B)], axis=0)

    def mamba_block(hs, res, small, w_in, w_x, a_logT, w_out):
        """One mamba_ssm Block (prenorm add + LayerNorm + Mamba mixer,
        slow-path semantics).  Returns (hidden_out, residual_out)."""
        # ---- prenorm residual add + LayerNorm ----
        res_out = hs + res
        normed = _layer_norm(res_out, small[0:1, :D], small[1:2, :D])

        # ---- in_proj: (B*L, D) @ (D, 2*d_inner) -> x, z ----
        xz = jnp.dot(normed.reshape(B * L, D), w_in,
                     preferred_element_type=jnp.float32).reshape(B, L, 2 * di)
        x = xz[:, :, :di]
        z = xz[:, :, di:]

        # ---- depthwise causal conv1d: one zero pad + K static slices ----
        xp = jnp.concatenate(
            [jnp.zeros((B, K - 1, di), jnp.float32), x], axis=1)
        xconv = small[2:3, :]                          # conv bias
        for k in range(K):                             # static unroll, K == 4
            xconv = xconv + xp[:, k:k + L, :] * small[5 + k:6 + k, :]
        xconv = xconv * _sigmoid(xconv)                # SiLU

        # ---- x_proj -> (dt, B, C), dt_proj + softplus ----
        xdb = jnp.dot(xconv.reshape(B * L, di), w_x,
                      preferred_element_type=jnp.float32)  # (B*L, dtr+2*ds)
        Bmat = xdb[:, dtr:dtr + ds].reshape(B, L, ds)
        Cmat = xdb[:, dtr + ds:].reshape(B, L, ds)
        delta = _softplus(
            jnp.dot(xdb[:, :dtr], small[9:9 + dtr, :],
                    preferred_element_type=jnp.float32)
            + small[3:4, :]).reshape(B, L, di)

        # ---- hoisted discretization, (state, channel) layout: channels on
        #      lanes (64 of 128) instead of states (16 of 128) ----
        A = -jnp.exp(a_logT)                                       # (ds, di)
        dA = jnp.exp(delta[:, :, None, :] * A[None, None, :, :])   # (B,L,ds,di)
        dBu = (delta * xconv)[:, :, None, :] * Bmat[:, :, :, None] # (B,L,ds,di)

        # ---- selective scan: state in registers, statically unrolled ----
        h = jnp.zeros((B, ds, di), jnp.float32)
        ys = []
        for t in range(L):                             # L == 8, static
            h = dA[:, t] * h + dBu[:, t]
            ys.append(jnp.sum(h * Cmat[:, t, :, None], axis=1))    # (B, di)
        y = jnp.stack(ys, axis=1)                                  # (B, L, di)

        y = y + small[4:5, :] * xconv                  # skip connection D * u
        y = y * (z * _sigmoid(z))                      # gate with SiLU(z)

        out = jnp.dot(y.reshape(B * L, di), w_out,
                      preferred_element_type=jnp.float32)
        return out.reshape(B, L, D), res_out

    # ---- embedding LayerNorm + state init ----
    hidden = _layer_norm(emb_ref[...], embn_ref[0:1, :], embn_ref[1:2, :])
    residual = jnp.zeros_like(hidden)                  # residual=None -> zeros

    # ---- statically-unrolled bi-directional layer stack ----
    for l in range(N_LAYER):
        # backward-direction inputs: shift_pad(flip(.), pos)
        cat_b = flip_shift(jnp.concatenate([hidden, residual], axis=-1))
        hs_in = (hidden, cat_b[:, :, :D])
        rs_in = (residual, cat_b[:, :, D:])

        hs_out, res_out = [], []
        for g in range(2):                             # 0 = fwd, 1 = bwd
            idx = 2 * l + g
            h_g, r_g = mamba_block(hs_in[g], rs_in[g], small_ref[idx],
                                   win_ref[idx], wx_ref[idx],
                                   alog_ref[idx], wout_ref[idx])
            hs_out.append(h_g)
            res_out.append(r_g)

        # un-flip/shift the backward outputs (same involution matrix)
        cat2 = flip_shift(jnp.concatenate([hs_out[1], res_out[1]], axis=-1))

        # hidden_fc(concat([h_f, h_b])) + residual averaging
        hidden = (jnp.dot(hs_out[0].reshape(B * L, D), fcw_ref[2 * l + 0],
                          preferred_element_type=jnp.float32)
                  + jnp.dot(cat2[:, :, :D].reshape(B * L, D),
                            fcw_ref[2 * l + 1],
                            preferred_element_type=jnp.float32)
                  + fcb_ref[l]).reshape(B, L, D)
        residual = 0.5 * (res_out[0] + cat2[:, :, D:])

    # ---- final: residual = hidden + residual; out = LayerNorm(residual) ----
    out_ref[...] = _layer_norm(hidden + residual,
                               fnorm_ref[0:1, :], fnorm_ref[1:2, :])


# ------------------------------ forward wrapper -------------------------------
@jax.jit
def forward(params, input_ids, seg, pos):
    # Embedding gathers are JAX glue; everything else runs in one pallas_call.
    emb = (jnp.take(params["tok"], input_ids, axis=0)
           + jnp.take(params["seg"], seg, axis=0))
    pos = pos.astype(jnp.int32)

    vmem = pl.BlockSpec(memory_space=pltpu.MemorySpace.VMEM)
    smem = pl.BlockSpec(memory_space=pltpu.MemorySpace.SMEM)
    return pl.pallas_call(
        _model_kernel,
        out_shape=jax.ShapeDtypeStruct((BATCH, SEQ, D_MODEL), jnp.float32),
        in_specs=[smem, vmem, vmem, vmem, vmem, vmem, vmem, vmem, vmem, vmem,
                  vmem],
        out_specs=vmem,
    )(pos, emb, params["emb_norm"], params["norm_f"], params["small"],
      params["w_in"], params["w_x"], params["a_logT"], params["w_out"],
      params["fc_w"], params["fc_b"])


# ------------------------------ parameters ------------------------------------
def init_params(key):
    keys = list(jax.random.split(key, 256))
    kit = iter(keys)

    def nrm(shape, std=0.02):
        return std * jax.random.normal(next(kit), shape, jnp.float32)

    def unif(shape, scale):
        return jax.random.uniform(next(kit), shape, jnp.float32, -scale, scale)

    params = {}
    params["tok"] = nrm((VOCAB, D_MODEL)).at[1].set(0.0)   # padding_idx = 1
    params["seg"] = nrm((N_SEG, D_MODEL)).at[2].set(0.0)   # padding_idx = 2
    params["emb_norm"] = jnp.stack([jnp.ones((D_MODEL,), jnp.float32),
                                    jnp.zeros((D_MODEL,), jnp.float32)])
    params["norm_f"] = jnp.stack([jnp.ones((D_MODEL,), jnp.float32),
                                  jnp.zeros((D_MODEL,), jnp.float32)])

    def mamba_dir():
        return {
            "norm_w": jnp.ones((1, D_MODEL), jnp.float32),
            "norm_b": jnp.zeros((1, D_MODEL), jnp.float32),
            "w_in": unif((D_MODEL, 2 * D_INNER), 1.0 / math.sqrt(D_MODEL)),
            "conv_w": unif((D_CONV, D_INNER), 1.0 / math.sqrt(D_CONV)),
            "conv_b": unif((1, D_INNER), 1.0 / math.sqrt(D_CONV)),
            "w_x": unif((D_INNER, DT_RANK + 2 * D_STATE),
                        1.0 / math.sqrt(D_INNER)),
            "w_dt": unif((DT_RANK, D_INNER), DT_RANK ** -0.5),
            "b_dt": jnp.full((1, D_INNER), math.log(math.expm1(0.01)),
                             jnp.float32),
            # A_log stored transposed: (d_state, d_inner)
            "a_logT": jnp.log(jnp.broadcast_to(
                jnp.arange(1, D_STATE + 1, dtype=jnp.float32)[:, None],
                (D_STATE, D_INNER))),
            "d": jnp.ones((1, D_INNER), jnp.float32),
            # out_proj rescaled by 1/sqrt(n_layer) (prenorm residual rescale)
            "w_out": unif((D_INNER, D_MODEL),
                          1.0 / math.sqrt(D_INNER)) / math.sqrt(N_LAYER),
        }

    def pack_small(p):
        def pad_d(v):  # (1, D_MODEL) -> (1, D_INNER)
            return jnp.pad(v, ((0, 0), (0, D_INNER - D_MODEL)))
        rows = jnp.concatenate([
            pad_d(p["norm_w"]), pad_d(p["norm_b"]),
            p["conv_b"], p["b_dt"], p["d"],
            p["conv_w"], p["w_dt"],
        ], axis=0)                                   # (5 + K + DT_RANK, d_inner)
        pad_rows = SMALL_ROWS - rows.shape[0]
        return jnp.concatenate(
            [rows, jnp.zeros((pad_rows, D_INNER), jnp.float32)], axis=0)

    layers = [[mamba_dir(), mamba_dir()] for _ in range(N_LAYER)]   # [layer][dir]

    def stack(name):                     # flattened leading axis: 2*l + g
        return jnp.stack([layers[l][g][name]
                          for l in range(N_LAYER) for g in range(2)])

    params["small"] = jnp.stack([pack_small(layers[l][g])
                                 for l in range(N_LAYER) for g in range(2)])
    params["w_in"] = stack("w_in")            # (2*N_LAYER, D, 2*d_inner)
    params["w_x"] = stack("w_x")              # (2*N_LAYER, d_inner, dtr+2*ds)
    params["a_logT"] = stack("a_logT")        # (2*N_LAYER, d_state, d_inner)
    params["w_out"] = stack("w_out")          # (2*N_LAYER, d_inner, D)

    fc_scale = 1.0 / math.sqrt(2 * D_MODEL)
    params["fc_w"] = jnp.stack([unif((D_MODEL, D_MODEL), fc_scale)
                                for _ in range(2 * N_LAYER)])  # (2*N_LAYER, D, D)
    params["fc_b"] = jnp.zeros((N_LAYER, 1, D_MODEL), jnp.float32)
    return params


# TODO(synk): inference_params / allocate_inference_cache (step-wise decoding
# cache) and the fused_add_norm Triton path are not implemented (non-fused
# prenorm path only).  Matmul operands are kept f32 (bf16 cast skipped to
# preserve reference numerics; negligible at D=32).

if __name__ == "__main__":
    key = jax.random.PRNGKey(0)
    pkey, ikey, skey = jax.random.split(key, 3)
    params = init_params(pkey)

    input_ids = jax.random.randint(ikey, (BATCH, SEQ), 0, VOCAB)
    seg = jax.random.randint(skey, (BATCH, SEQ), 0, N_SEG)
    pos = jnp.array([6, 5], dtype=jnp.int32)   # real (non-pad) tokens per row

    out = forward(params, input_ids, seg, pos)
    jax.block_until_ready(out)
    assert out.shape == (BATCH, SEQ, D_MODEL)
    assert bool(jnp.all(jnp.isfinite(out)))
    print("KERNEL_OK")
</pallas_src>

<mosaic_0001>
module attributes {stable_mosaic.version = 11 : i64} {
  func.func @_model_kernel(%arg0: memref<2xi32, #tpu.memory_space<smem>>, %arg1: memref<2x8x32xf32, #tpu.memory_space<vmem>>, %arg2: memref<2x32xf32, #tpu.memory_space<vmem>>, %arg3: memref<2x32xf32, #tpu.memory_space<vmem>>, %arg4: memref<4x16x64xf32, #tpu.memory_space<vmem>>, %arg5: memref<4x32x128xf32, #tpu.memory_space<vmem>>, %arg6: memref<4x64x34xf32, #tpu.memory_space<vmem>>, %arg7: memref<4x16x64xf32, #tpu.memory_space<vmem>>, %arg8: memref<4x64x32xf32, #tpu.memory_space<vmem>>, %arg9: memref<4x32x32xf32, #tpu.memory_space<vmem>>, %arg10: memref<2x1x32xf32, #tpu.memory_space<vmem>>, %arg11: memref<2x8x32xf32, #tpu.memory_space<vmem>>) attributes {dimension_semantics = [], scalar_prefetch = 0 : i64, scratch_operands = 0 : i64, tpu.core_type = #tpu.core_type<tc>} {
    %0 = tpu.iota {dimensions = array<i32: 0>} : vector<8x8xi32>
    %1 = tpu.iota {dimensions = array<i32: 1>} : vector<8x8xi32>
    %c0 = arith.constant 0 : index
    %2 = memref.load %arg0[%c0] : memref<2xi32, #tpu.memory_space<smem>>
    %c1_i32 = arith.constant 1 : i32
    %3 = arith.subi %2, %c1_i32 : i32
    %4 = vector.broadcast %3 : i32 to vector<8x8xi32>
    %5 = arith.subi %4, %0 : vector<8x8xi32>
    %6 = arith.cmpi eq, %1, %5 : vector<8x8xi32>
    %7 = vector.broadcast %2 : i32 to vector<8x8xi32>
    %8 = arith.cmpi slt, %0, %7 : vector<8x8xi32>
    %9 = arith.andi %6, %8 : vector<8x8xi1>
    %cst = arith.constant 1.000000e+00 : f32
    %cst_0 = arith.constant 0.000000e+00 : f32
    %10 = vector.broadcast %cst : f32 to vector<8x8xf32>
    %11 = vector.broadcast %cst_0 : f32 to vector<8x8xf32>
    %12 = arith.select %9, %10, %11 : vector<8x8xi1>, vector<8x8xf32>
    %c1 = arith.constant 1 : index
    %13 = memref.load %arg0[%c1] : memref<2xi32, #tpu.memory_space<smem>>
    %c1_i32_1 = arith.constant 1 : i32
    %14 = arith.subi %13, %c1_i32_1 : i32
    %15 = vector.broadcast %14 : i32 to vector<8x8xi32>
    %16 = arith.subi %15, %0 : vector<8x8xi32>
    %17 = arith.cmpi eq, %1, %16 : vector<8x8xi32>
    %18 = vector.broadcast %13 : i32 to vector<8x8xi32>
    %19 = arith.cmpi slt, %0, %18 : vector<8x8xi32>
    %20 = arith.andi %17, %19 : vector<8x8xi1>
    %cst_2 = arith.constant 1.000000e+00 : f32
    %cst_3 = arith.constant 0.000000e+00 : f32
    %21 = vector.broadcast %cst_2 : f32 to vector<8x8xf32>
    %22 = vector.broadcast %cst_3 : f32 to vector<8x8xf32>
    %23 = arith.select %20, %21, %22 : vector<8x8xi1>, vector<8x8xf32>
    %c0_4 = arith.constant 0 : index
    %c0_5 = arith.constant 0 : index
    %c0_6 = arith.constant 0 : index
    %24 = vector.load %arg1[%c0_4, %c0_5, %c0_6] : memref<2x8x32xf32, #tpu.memory_space<vmem>>, vector<2x8x32xf32>
    %c0_7 = arith.constant 0 : index
    %c0_8 = arith.constant 0 : index
    %25 = vector.load %arg2[%c0_7, %c0_8] : memref<2x32xf32, #tpu.memory_space<vmem>>, vector<1x32xf32>
    %c1_9 = arith.constant 1 : index
    %c0_10 = arith.constant 0 : index
    %26 = vector.load %arg2[%c1_9, %c0_10] : memref<2x32xf32, #tpu.memory_space<vmem>>, vector<1x32xf32>
    %cst_11 = arith.constant dense<0.000000e+00> : vector<2x8xf32>
    %27 = vector.multi_reduction <add>, %24, %cst_11 [2] : vector<2x8x32xf32> to vector<2x8xf32>
    %28 = vector.shape_cast %27 : vector<2x8xf32> to vector<2x8x1xf32>
    %cst_12 = arith.constant 3.200000e+01 : f32
    %29 = vector.broadcast %cst_12 : f32 to vector<2x8x1xf32>
    %30 = arith.divf %28, %29 : vector<2x8x1xf32>
    %31 = vector.broadcast %30 : vector<2x8x1xf32> to vector<2x8x32xf32>
    %32 = arith.subf %24, %31 : vector<2x8x32xf32>
    %33 = arith.mulf %32, %32 : vector<2x8x32xf32>
    %cst_13 = arith.constant dense<0.000000e+00> : vector<2x8xf32>
    %34 = vector.multi_reduction <add>, %33, %cst_13 [2] : vector<2x8x32xf32> to vector<2x8xf32>
    %35 = vector.shape_cast %34 : vector<2x8xf32> to vector<2x8x1xf32>
    %cst_14 = arith.constant 3.200000e+01 : f32
    %36 = vector.broadcast %cst_14 : f32 to vector<2x8x1xf32>
    %37 = arith.divf %35, %36 : vector<2x8x1xf32>
    %cst_15 = arith.constant 9.99999974E-6 : f32
    %38 = vector.broadcast %cst_15 : f32 to vector<2x8x1xf32>
    %39 = arith.addf %37, %38 : vector<2x8x1xf32>
    %40 = math.rsqrt %39 : vector<2x8x1xf32>
    %41 = vector.broadcast %40 : vector<2x8x1xf32> to vector<2x8x32xf32>
    %42 = arith.mulf %32, %41 : vector<2x8x32xf32>
    %43 = vector.shape_cast %25 : vector<1x32xf32> to vector<1x1x32xf32>
    %44 = vector.broadcast %43 : vector<1x1x32xf32> to vector<2x8x32xf32>
    %45 = arith.mulf %42, %44 : vector<2x8x32xf32>
    %46 = vector.shape_cast %26 : vector<1x32xf32> to vector<1x1x32xf32>
    %47 = vector.broadcast %46 : vector<1x1x32xf32> to vector<2x8x32xf32>
    %48 = arith.addf %45, %47 : vector<2x8x32xf32>
    %cst_16 = arith.constant 0.000000e+00 : f32
    %49 = vector.broadcast %cst_16 : f32 to vector<2x8x32xf32>
    %50 = tpu.concatenate %48, %49 in 2 : vector<2x8x32xf32>, vector<2x8x32xf32> -> vector<2x8x64xf32>
    %51 = vector.extract_strided_slice %50 {offsets = [0, 0, 0], sizes = [1, 8, 64], strides = [1, 1, 1]} : vector<2x8x64xf32> to vector<1x8x64xf32>
    %52 = vector.shape_cast %51 : vector<1x8x64xf32> to vector<8x64xf32>
    %cst_17 = arith.constant dense<0.000000e+00> : vector<8x64xf32>
    %53 = tpu.matmul %12, %52, %cst_17 {dimension_numbers = #tpu.dot_dimension_numbers<[1], [0], [0], [1], [0, 0, 1, 1], [], []>} : vector<8x8xf32>, vector<8x64xf32>, vector<8x64xf32> -> vector<8x64xf32>
    %54 = vector.extract_strided_slice %50 {offsets = [1, 0, 0], sizes = [1, 8, 64], strides = [1, 1, 1]} : vector<2x8x64xf32> to vector<1x8x64xf32>
    %55 = vector.shape_cast %54 : vector<1x8x64xf32> to vector<8x64xf32>
    %cst_18 = arith.constant dense<0.000000e+00> : vector<8x64xf32>
    %56 = tpu.matmul %23, %55, %cst_18 {dimension_numbers = #tpu.dot_dimension_numbers<[1], [0], [0], [1], [0, 0, 1, 1], [], []>} : vector<8x8xf32>, vector<8x64xf32>, vector<8x64xf32> -> vector<8x64xf32>
    %57 = vector.shape_cast %53 : vector<8x64xf32> to vector<1x8x64xf32>
    %58 = vector.shape_cast %56 : vector<8x64xf32> to vector<1x8x64xf32>
    %59 = tpu.concatenate %57, %58 in 0 : vector<1x8x64xf32>, vector<1x8x64xf32> -> vector<2x8x64xf32>
    %60 = vector.extract_strided_slice %59 {offsets = [0, 0, 0], sizes = [2, 8, 32], strides = [1, 1, 1]} : vector<2x8x64xf32> to vector<2x8x32xf32>
    %61 = vector.extract_strided_slice %59 {offsets = [0, 0, 32], sizes = [2, 8, 32], strides = [1, 1, 1]} : vector<2x8x64xf32> to vector<2x8x32xf32>
    %c0_19 = arith.constant 0 : index
    %c0_20 = arith.constant 0 : index
    %c0_21 = arith.constant 0 : index
    %62 = vector.load %arg4[%c0_19, %c0_20, %c0_21] : memref<4x16x64xf32, #tpu.memory_space<vmem>>, vector<1x16x64xf32>
    %63 = vector.shape_cast %62 : vector<1x16x64xf32> to vector<16x64xf32>
    %c0_22 = arith.constant 0 : index
    %c0_23 = arith.constant 0 : index
    %c0_24 = arith.constant 0 : index
    %64 = vector.load %arg5[%c0_22, %c0_23, %c0_24] : memref<4x32x128xf32, #tpu.memory_space<vmem>>, vector<1x32x128xf32>
    %65 = vector.shape_cast %64 : vector<1x32x128xf32> to vector<32x128xf32>
    %c0_25 = arith.constant 0 : index
    %c0_26 = arith.constant 0 : index
    %c0_27 = arith.constant 0 : index
    %66 = vector.load %arg6[%c0_25, %c0_26, %c0_27] : memref<4x64x34xf32, #tpu.memory_space<vmem>>, vector<1x64x34xf32>
    %67 = vector.shape_cast %66 : vector<1x64x34xf32> to vector<64x34xf32>
    %c0_28 = arith.constant 0 : index
    %c0_29 = arith.constant 0 : index
    %c0_30 = arith.constant 0 : index
    %68 = vector.load %arg7[%c0_28, %c0_29, %c0_30] : memref<4x16x64xf32, #tpu.memory_space<vmem>>, vector<1x16x64xf32>
    %69 = vector.shape_cast %68 : vector<1x16x64xf32> to vector<16x64xf32>
    %c0_31 = arith.constant 0 : index
    %c0_32 = arith.constant 0 : index
    %c0_33 = arith.constant 0 : index
    %70 = vector.load %arg8[%c0_31, %c0_32, %c0_33] : memref<4x64x32xf32, #tpu.memory_space<vmem>>, vector<1x64x32xf32>
    %71 = vector.shape_cast %70 : vector<1x64x32xf32> to vector<64x32xf32>
    %72 = arith.addf %48, %49 : vector<2x8x32xf32>
    %73 = vector.extract_strided_slice %63 {offsets = [0, 0], sizes = [1, 32], strides = [1, 1]} : vector<16x64xf32> to vector<1x32xf32>
    %74 = vector.extract_strided_slice %63 {offsets = [1, 0], sizes = [1, 32], strides = [1, 1]} : vector<16x64xf32> to vector<1x32xf32>
    %cst_34 = arith.constant dense<0.000000e+00> : vector<2x8xf32>
    %75 = vector.multi_reduction <add>, %72, %cst_34 [2] : vector<2x8x32xf32> to vector<2x8xf32>
    %76 = vector.shape_cast %75 : vector<2x8xf32> to vector<2x8x1xf32>
    %cst_35 = arith.constant 3.200000e+01 : f32
    %77 = vector.broadcast %cst_35 : f32 to vector<2x8x1xf32>
    %78 = arith.divf %76, %77 : vector<2x8x1xf32>
    %79 = vector.broadcast %78 : vector<2x8x1xf32> to vector<2x8x32xf32>
    %80 = arith.subf %72, %79 : vector<2x8x32xf32>
    %81 = arith.mulf %80, %80 : vector<2x8x32xf32>
    %cst_36 = arith.constant dense<0.000000e+00> : vector<2x8xf32>
    %82 = vector.multi_reduction <add>, %81, %cst_36 [2] : vector<2x8x32xf32> to vector<2x8xf32>
    %83 = vector.shape_cast %82 : vector<2x8xf32> to vector<2x8x1xf32>
    %cst_37 = arith.constant 3.200000e+01 : f32
    %84 = vector.broadcast %cst_37 : f32 to vector<2x8x1xf32>
    %85 = arith.divf %83, %84 : vector<2x8x1xf32>
    %cst_38 = arith.constant 9.99999974E-6 : f32
    %86 = vector.broadcast %cst_38 : f32 to vector<2x8x1xf32>
    %87 = arith.addf %85, %86 : vector<2x8x1xf32>
    %88 = math.rsqrt %87 : vector<2x8x1xf32>
    %89 = vector.broadcast %88 : vector<2x8x1xf32> to vector<2x8x32xf32>
    %90 = arith.mulf %80, %89 : vector<2x8x32xf32>
    %91 = vector.shape_cast %73 : vector<1x32xf32> to vector<1x1x32xf32>
    %92 = vector.broadcast %91 : vector<1x1x32xf32> to vector<2x8x32xf32>
    %93 = arith.mulf %90, %92 : vector<2x8x32xf32>
    %94 = vector.shape_cast %74 : vector<1x32xf32> to vector<1x1x32xf32>
    %95 = vector.broadcast %94 : vector<1x1x32xf32> to vector<2x8x32xf32>
    %96 = arith.addf %93, %95 : vector<2x8x32xf32>
    %97 = vector.shape_cast %96 : vector<2x8x32xf32> to vector<16x32xf32>
    %cst_39 = arith.constant dense<0.000000e+00> : vector<16x128xf32>
    %98 = tpu.matmul %97, %65, %cst_39 {dimension_numbers = #tpu.dot_dimension_numbers<[1], [0], [0], [1], [0, 0, 1, 1], [], []>} : vector<16x32xf32>, vector<32x128xf32>, vector<16x128xf32> -> vector<16x128xf32>
    %99 = vector.shape_cast %98 : vector<16x128xf32> to vector<2x8x128xf32>
    %100 = vector.extract_strided_slice %99 {offsets = [0, 0, 0], sizes = [2, 8, 64], strides = [1, 1, 1]} : vector<2x8x128xf32> to vector<2x8x64xf32>
    %101 = vector.extract_strided_slice %99 {offsets = [0, 0, 64], sizes = [2, 8, 64], strides = [1, 1, 1]} : vector<2x8x128xf32> to vector<2x8x64xf32>
    %cst_40 = arith.constant 0.000000e+00 : f32
    %102 = vector.broadcast %cst_40 : f32 to vector<2x3x64xf32>
    %103 = tpu.concatenate %102, %100 in 1 : vector<2x3x64xf32>, vector<2x8x64xf32> -> vector<2x11x64xf32>
    %104 = vector.extract_strided_slice %63 {offsets = [2, 0], sizes = [1, 64], strides = [1, 1]} : vector<16x64xf32> to vector<1x64xf32>
    %105 = vector.extract_strided_slice %103 {offsets = [0, 0, 0], sizes = [2, 8, 64], strides = [1, 1, 1]} : vector<2x11x64xf32> to vector<2x8x64xf32>
    %106 = vector.extract_strided_slice %63 {offsets = [5, 0], sizes = [1, 64], strides = [1, 1]} : vector<16x64xf32> to vector<1x64xf32>
    %107 = vector.shape_cast %106 : vector<1x64xf32> to vector<1x1x64xf32>
    %108 = vector.broadcast %107 : vector<1x1x64xf32> to vector<2x8x64xf32>
    %109 = arith.mulf %105, %108 : vector<2x8x64xf32>
    %110 = vector.shape_cast %104 : vector<1x64xf32> to vector<1x1x64xf32>
    %111 = vector.broadcast %110 : vector<1x1x64xf32> to vector<2x8x64xf32>
    %112 = arith.addf %111, %109 : vector<2x8x64xf32>
    %113 = vector.extract_strided_slice %103 {offsets = [0, 1, 0], sizes = [2, 8, 64], strides = [1, 1, 1]} : vector<2x11x64xf32> to vector<2x8x64xf32>
    %114 = vector.extract_strided_slice %63 {offsets = [6, 0], sizes = [1, 64], strides = [1, 1]} : vector<16x64xf32> to vector<1x64xf32>
    %115 = vector.shape_cast %114 : vector<1x64xf32> to vector<1x1x64xf32>
    %116 = vector.broadcast %115 : vector<1x1x64xf32> to vector<2x8x64xf32>
    %117 = arith.mulf %113, %116 : vector<2x8x64xf32>
    %118 = arith.addf %112, %117 : vector<2x8x64xf32>
    %119 = vector.extract_strided_slice %103 {offsets = [0, 2, 0], sizes = [2, 8, 64], strides = [1, 1, 1]} : vector<2x11x64xf32> to vector<2x8x64xf32>
    %120 = vector.extract_strided_slice %63 {offsets = [7, 0], sizes = [1, 64], strides = [1, 1]} : vector<16x64xf32> to vector<1x64xf32>
    %121 = vector.shape_cast %120 : vector<1x64xf32> to vector<1x1x64xf32>
    %122 = vector.broadcast %121 : vector<1x1x64xf32> to vector<2x8x64xf32>
    %123 = arith.mulf %119, %122 : vector<2x8x64xf32>
    %124 = arith.addf %118, %123 : vector<2x8x64xf32>
    %125 = vector.extract_strided_slice %103 {offsets = [0, 3, 0], sizes = [2, 8, 64], strides = [1, 1, 1]} : vector<2x11x64xf32> to vector<2x8x64xf32>
    %126 = vector.extract_strided_slice %63 {offsets = [8, 0], sizes = [1, 64], strides = [1, 1]} : vector<16x64xf32> to vector<1x64xf32>
    %127 = vector.shape_cast %126 : vector<1x64xf32> to vector<1x1x64xf32>
    %128 = vector.broadcast %127 : vector<1x1x64xf32> to vector<2x8x64xf32>
    %129 = arith.mulf %125, %128 : vector<2x8x64xf32>
    %130 = arith.addf %124, %129 : vector<2x8x64xf32>
    %cst_41 = arith.constant 0.000000e+00 : f32
    %131 = vector.broadcast %cst_41 : f32 to vector<2x8x64xf32>
    %132 = arith.subf %131, %130 : vector<2x8x64xf32>
    %133 = math.exp %132 : vector<2x8x64xf32>
    %cst_42 = arith.constant 1.000000e+00 : f32
    %134 = vector.broadcast %cst_42 : f32 to vector<2x8x64xf32>
    %135 = arith.addf %134, %133 : vector<2x8x64xf32>
    %cst_43 = arith.constant 1.000000e+00 : f32
    %136 = vector.broadcast %cst_43 : f32 to vector<2x8x64xf32>
    %137 = arith.divf %136, %135 : vector<2x8x64xf32>
    %138 = arith.mulf %130, %137 : vector<2x8x64xf32>
    %139 = vector.shape_cast %138 : vector<2x8x64xf32> to vector<16x64xf32>
    %cst_44 = arith.constant dense<0.000000e+00> : vector<16x34xf32>
    %140 = tpu.matmul %139, %67, %cst_44 {dimension_numbers = #tpu.dot_dimension_numbers<[1], [0], [0], [1], [0, 0, 1, 1], [], []>} : vector<16x64xf32>, vector<64x34xf32>, vector<16x34xf32> -> vector<16x34xf32>
    %141 = vector.extract_strided_slice %140 {offsets = [0, 2], sizes = [16, 16], strides = [1, 1]} : vector<16x34xf32> to vector<16x16xf32>
    %142 = vector.shape_cast %141 : vector<16x16xf32> to vector<2x8x16xf32>
    %143 = vector.extract_strided_slice %140 {offsets = [0, 18], sizes = [16, 16], strides = [1, 1]} : vector<16x34xf32> to vector<16x16xf32>
    %144 = vector.shape_cast %143 : vector<16x16xf32> to vector<2x8x16xf32>
    %145 = vector.extract_strided_slice %140 {offsets = [0, 0], sizes = [16, 2], strides = [1, 1]} : vector<16x34xf32> to vector<16x2xf32>
    %146 = vector.extract_strided_slice %63 {offsets = [9, 0], sizes = [2, 64], strides = [1, 1]} : vector<16x64xf32> to vector<2x64xf32>
    %cst_45 = arith.constant dense<0.000000e+00> : vector<16x64xf32>
    %147 = tpu.matmul %145, %146, %cst_45 {dimension_numbers = #tpu.dot_dimension_numbers<[1], [0], [0], [1], [0, 0, 1, 1], [], []>} : vector<16x2xf32>, vector<2x64xf32>, vector<16x64xf32> -> vector<16x64xf32>
    %148 = vector.extract_strided_slice %63 {offsets = [3, 0], sizes = [1, 64], strides = [1, 1]} : vector<16x64xf32> to vector<1x64xf32>
    %149 = vector.broadcast %148 : vector<1x64xf32> to vector<16x64xf32>
    %150 = arith.addf %147, %149 : vector<16x64xf32>
    %cst_46 = arith.constant 2.000000e+01 : f32
    %151 = vector.broadcast %cst_46 : f32 to vector<16x64xf32>
    %152 = arith.cmpf ogt, %150, %151 : vector<16x64xf32>
    %cst_47 = arith.constant 2.000000e+01 : f32
    %153 = vector.broadcast %cst_47 : f32 to vector<16x64xf32>
    %154 = arith.minimumf %150, %153 : vector<16x64xf32>
    %155 = math.exp %154 : vector<16x64xf32>
    %156 = math.log1p %155 : vector<16x64xf32>
    %157 = arith.select %152, %150, %156 : vector<16x64xi1>, vector<16x64xf32>
    %158 = vector.shape_cast %157 : vector<16x64xf32> to vector<2x8x64xf32>
    %159 = math.exp %69 : vector<16x64xf32>
    %cst_48 = arith.constant 0.000000e+00 : f32
    %160 = vector.broadcast %cst_48 : f32 to vector<16x64xf32>
    %161 = arith.subf %160, %159 : vector<16x64xf32>
    %162 = vector.shape_cast %158 : vector<2x8x64xf32> to vector<2x8x1x64xf32>
    %163 = vector.shape_cast %161 : vector<16x64xf32> to vector<1x1x16x64xf32>
    %164 = vector.broadcast %162 : vector<2x8x1x64xf32> to vector<2x8x16x64xf32>
    %165 = vector.broadcast %163 : vector<1x1x16x64xf32> to vector<2x8x16x64xf32>
    %166 = arith.mulf %164, %165 : vector<2x8x16x64xf32>
    %167 = math.exp %166 : vector<2x8x16x64xf32>
    %168 = arith.mulf %158, %138 : vector<2x8x64xf32>
    %169 = vector.shape_cast %168 : vector<2x8x64xf32> to vector<2x8x1x64xf32>
    %170 = vector.shape_cast %142 : vector<2x8x16xf32> to vector<2x8x16x1xf32>
    %171 = vector.broadcast %169 : vector<2x8x1x64xf32> to vector<2x8x16x64xf32>
    %172 = vector.broadcast %170 : vector<2x8x16x1xf32> to vector<2x8x16x64xf32>
    %173 = arith.mulf %171, %172 : vector<2x8x16x64xf32>
    %cst_49 = arith.constant 0.000000e+00 : f32
    %174 = vector.broadcast %cst_49 : f32 to vector<2x16x64xf32>
    %175 = vector.extract_strided_slice %167 {offsets = [0, 0, 0, 0], sizes = [2, 1, 16, 64], strides = [1, 1, 1, 1]} : vector<2x8x16x64xf32> to vector<2x1x16x64xf32>
    %176 = vector.shape_cast %175 : vector<2x1x16x64xf32> to vector<2x16x64xf32>
    %177 = arith.mulf %176, %174 : vector<2x16x64xf32>
    %178 = vector.extract_strided_slice %173 {offsets = [0, 0, 0, 0], sizes = [2, 1, 16, 64], strides = [1, 1, 1, 1]} : vector<2x8x16x64xf32> to vector<2x1x16x64xf32>
    %179 = vector.shape_cast %178 : vector<2x1x16x64xf32> to vector<2x16x64xf32>
    %180 = arith.addf %177, %179 : vector<2x16x64xf32>
    %181 = vector.extract_strided_slice %144 {offsets = [0, 0, 0], sizes = [2, 1, 16], strides = [1, 1, 1]} : vector<2x8x16xf32> to vector<2x1x16xf32>
    %182 = vector.shape_cast %181 : vector<2x1x16xf32> to vector<2x16xf32>
    %183 = vector.shape_cast %182 : vector<2x16xf32> to vector<2x16x1xf32>
    %184 = vector.broadcast %183 : vector<2x16x1xf32> to vector<2x16x64xf32>
    %185 = arith.mulf %180, %184 : vector<2x16x64xf32>
    %cst_50 = arith.constant dense<0.000000e+00> : vector<2x64xf32>
    %186 = vector.multi_reduction <add>, %185, %cst_50 [1] : vector<2x16x64xf32> to vector<2x64xf32>
    %187 = vector.extract_strided_slice %167 {offsets = [0, 1, 0, 0], sizes = [2, 1, 16, 64], strides = [1, 1, 1, 1]} : vector<2x8x16x64xf32> to vector<2x1x16x64xf32>
    %188 = vector.shape_cast %187 : vector<2x1x16x64xf32> to vector<2x16x64xf32>
    %189 = arith.mulf %188, %180 : vector<2x16x64xf32>
    %190 = vector.extract_strided_slice %173 {offsets = [0, 1, 0, 0], sizes = [2, 1, 16, 64], strides = [1, 1, 1, 1]} : vector<2x8x16x64xf32> to vector<2x1x16x64xf32>
    %191 = vector.shape_cast %190 : vector<2x1x16x64xf32> to vector<2x16x64xf32>
    %192 = arith.addf %189, %191 : vector<2x16x64xf32>
    %193 = vector.extract_strided_slice %144 {offsets = [0, 1, 0], sizes = [2, 1, 16], strides = [1, 1, 1]} : vector<2x8x16xf32> to vector<2x1x16xf32>
    %194 = vector.shape_cast %193 : vector<2x1x16xf32> to vector<2x16xf32>
    %195 = vector.shape_cast %194 : vector<2x16xf32> to vector<2x16x1xf32>
    %196 = vector.broadcast %195 : vector<2x16x1xf32> to vector<2x16x64xf32>
    %197 = arith.mulf %192, %196 : vector<2x16x64xf32>
    %cst_51 = arith.constant dense<0.000000e+00> : vector<2x64xf32>
    %198 = vector.multi_reduction <add>, %197, %cst_51 [1] : vector<2x16x64xf32> to vector<2x64xf32>
    %199 = vector.extract_strided_slice %167 {offsets = [0, 2, 0, 0], sizes = [2, 1, 16, 64], strides = [1, 1, 1, 1]} : vector<2x8x16x64xf32> to vector<2x1x16x64xf32>
    %200 = vector.shape_cast %199 : vector<2x1x16x64xf32> to vector<2x16x64xf32>
    %201 = arith.mulf %200, %192 : vector<2x16x64xf32>
    %202 = vector.extract_strided_slice %173 {offsets = [0, 2, 0, 0], sizes = [2, 1, 16, 64], strides = [1, 1, 1, 1]} : vector<2x8x16x64xf32> to vector<2x1x16x64xf32>
    %203 = vector.shape_cast %202 : vector<2x1x16x64xf32> to vector<2x16x64xf32>
    %204 = arith.addf %201, %203 : vector<2x16x64xf32>
    %205 = vector.extract_strided_slice %144 {offsets = [0, 2, 0], sizes = [2, 1, 16], strides = [1, 1, 1]} : vector<2x8x16xf32> to vector<2x1x16xf32>
    %206 = vector.shape_cast %205 : vector<2x1x16xf32> to vector<2x16xf32>
    %207 = vector.shape_cast %206 : vector<2x16xf32> to vector<2x16x1xf32>
    %208 = vector.broadcast %207 : vector<2x16x1xf32> to vector<2x16x64xf32>
    %209 = arith.mulf %204, %208 : vector<2x16x64xf32>
    %cst_52 = arith.constant dense<0.000000e+00> : vector<2x64xf32>
    %210 = vector.multi_reduction <add>, %209, %cst_52 [1] : vector<2x16x64xf32> to vector<2x64xf32>
    %211 = vector.extract_strided_slice %167 {offsets = [0, 3, 0, 0], sizes = [2, 1, 16, 64], strides = [1, 1, 1, 1]} : vector<2x8x16x64xf32> to vector<2x1x16x64xf32>
    %212 = vector.shape_cast %211 : vector<2x1x16x64xf32> to vector<2x16x64xf32>
    %213 = arith.mulf %212, %204 : vector<2x16x64xf32>
    %214 = vector.extract_strided_slice %173 {offsets = [0, 3, 0, 0], sizes = [2, 1, 16, 64], strides = [1, 1, 1, 1]} : vector<2x8x16x64xf32> to vector<2x1x16x64xf32>
    %215 = vector.shape_cast %214 : vector<2x1x16x64xf32> to vector<2x16x64xf32>
    %216 = arith.addf %213, %215 : vector<2x16x64xf32>
    %217 = vector.extract_strided_slice %144 {offsets = [0, 3, 0], sizes = [2, 1, 16], strides = [1, 1, 1]} : vector<2x8x16xf32> to vector<2x1x16xf32>
    %218 = vector.shape_cast %217 : vector<2x1x16xf32> to vector<2x16xf32>
    %219 = vector.shape_cast %218 : vector<2x16xf32> to vector<2x16x1xf32>
    %220 = vector.broadcast %219 : vector<2x16x1xf32> to vector<2x16x64xf32>
    %221 = arith.mulf %216, %220 : vector<2x16x64xf32>
    %cst_53 = arith.constant dense<0.000000e+00> : vector<2x64xf32>
    %222 = vector.multi_reduction <add>, %221, %cst_53 [1] : vector<2x16x64xf32> to vector<2x64xf32>
    %223 = vector.extract_strided_slice %167 {offsets = [0, 4, 0, 0], sizes = [2, 1, 16, 64], strides = [1, 1, 1, 1]} : vector<2x8x16x64xf32> to vector<2x1x16x64xf32>
    %224 = vector.shape_cast %223 : vector<2x1x16x64xf32> to vector<2x16x64xf32>
    %225 = arith.mulf %224, %216 : vector<2x16x64xf32>
    %226 = vector.extract_strided_slice %173 {offsets = [0, 4, 0, 0], sizes = [2, 1, 16, 64], strides = [1, 1, 1, 1]} : vector<2x8x16x64xf32> to vector<2x1x16x64xf32>
    %227 = vector.shape_cast %226 : vector<2x1x16x64xf32> to vector<2x16x64xf32>
    %228 = arith.addf %225, %227 : vector<2x16x64xf32>
    %229 = vector.extract_strided_slice %144 {offsets = [0, 4, 0], sizes = [2, 1, 16], strides = [1, 1, 1]} : vector<2x8x16xf32> to vector<2x1x16xf32>
    %230 = vector.shape_cast %229 : vector<2x1x16xf32> to vector<2x16xf32>
    %231 = vector.shape_cast %230 : vector<2x16xf32> to vector<2x16x1xf32>
    %232 = vector.broadcast %231 : vector<2x16x1xf32> to vector<2x16x64xf32>
    %233 = arith.mulf %228, %232 : vector<2x16x64xf32>
    %cst_54 = arith.constant dense<0.000000e+00> : vector<2x64xf32>
    %234 = vector.multi_reduction <add>, %233, %cst_54 [1] : vector<2x16x64xf32> to vector<2x64xf32>
    %235 = vector.extract_strided_slice %167 {offsets = [0, 5, 0, 0], sizes = [2, 1, 16, 64], strides = [1, 1, 1, 1]} : vector<2x8x16x64xf32> to vector<2x1x16x64xf32>
    %236 = vector.shape_cast %235 : vector<2x1x16x64xf32> to vector<2x16x64xf32>
    %237 = arith.mulf %236, %228 : vector<2x16x64xf32>
    %238 = vector.extract_strided_slice %173 {offsets = [0, 5, 0, 0], sizes = [2, 1, 16, 64], strides = [1, 1, 1, 1]} : vector<2x8x16x64xf32> to vector<2x1x16x64xf32>
    %239 = vector.shape_cast %238 : vector<2x1x16x64xf32> to vector<2x16x64xf32>
    %240 = arith.addf %237, %239 : vector<2x16x64xf32>
    %241 = vector.extract_strided_slice %144 {offsets = [0, 5, 0], sizes = [2, 1, 16], strides = [1, 1, 1]} : vector<2x8x16xf32> to vector<2x1x16xf32>
    %242 = vector.shape_cast %241 : vector<2x1x16xf32> to vector<2x16xf32>
    %243 = vector.shape_cast %242 : vector<2x16xf32> to vector<2x16x1xf32>
    %244 = vector.broadcast %243 : vector<2x16x1xf32> to vector<2x16x64xf32>
    %245 = arith.mulf %240, %244 : vector<2x16x64xf32>
    %cst_55 = arith.constant dense<0.000000e+00> : vector<2x64xf32>
    %246 = vector.multi_reduction <add>, %245, %cst_55 [1] : vector<2x16x64xf32> to vector<2x64xf32>
    %247 = vector.extract_strided_slice %167 {offsets = [0, 6, 0, 0], sizes = [2, 1, 16, 64], strides = [1, 1, 1, 1]} : vector<2x8x16x64xf32> to vector<2x1x16x64xf32>
    %248 = vector.shape_cast %247 : vector<2x1x16x64xf32> to vector<2x16x64xf32>
    %249 = arith.mulf %248, %240 : vector<2x16x64xf32>
    %250 = vector.extract_strided_slice %173 {offsets = [0, 6, 0, 0], sizes = [2, 1, 16, 64], strides = [1, 1, 1, 1]} : vector<2x8x16x64xf32> to vector<2x1x16x64xf32>
    %251 = vector.shape_cast %250 : vector<2x1x16x64xf32> to vector<2x16x64xf32>
    %252 = arith.addf %249, %251 : vector<2x16x64xf32>
    %253 = vector.extract_strided_slice %144 {offsets = [0, 6, 0], sizes = [2, 1, 16], strides = [1, 1, 1]} : vector<2x8x16xf32> to vector<2x1x16xf32>
    %254 = vector.shape_cast %253 : vector<2x1x16xf32> to vector<2x16xf32>
    %255 = vector.shape_cast %254 : vector<2x16xf32> to vector<2x16x1xf32>
    %256 = vector.broadcast %255 : vector<2x16x1xf32> to vector<2x16x64xf32>
    %257 = arith.mulf %252, %256 : vector<2x16x64xf32>
    %cst_56 = arith.constant dense<0.000000e+00> : vector<2x64xf32>
    %258 = vector.multi_reduction <add>, %257, %cst_56 [1] : vector<2x16x64xf32> to vector<2x64xf32>
    %259 = vector.extract_strided_slice %167 {offsets = [0, 7, 0, 0], sizes = [2, 1, 16, 64], strides = [1, 1, 1, 1]} : vector<2x8x16x64xf32> to vector<2x1x16x64xf32>
    %260 = vector.shape_cast %259 : vector<2x1x16x64xf32> to vector<2x16x64xf32>
    %261 = arith.mulf %260, %252 : vector<2x16x64xf32>
    %262 = vector.extract_strided_slice %173 {offsets = [0, 7, 0, 0], sizes = [2, 1, 16, 64], strides = [1, 1, 1, 1]} : vector<2x8x16x64xf32> to vector<2x1x16x64xf32>
    %263 = vector.shape_cast %262 : vector<2x1x16x64xf32> to vector<2x16x64xf32>
    %264 = arith.addf %261, %263 : vector<2x16x64xf32>
    %265 = vector.extract_strided_slice %144 {offsets = [0, 7, 0], sizes = [2, 1, 16], strides = [1, 1, 1]} : vector<2x8x16xf32> to vector<2x1x16xf32>
    %266 = vector.shape_cast %265 : vector<2x1x16xf32> to vector<2x16xf32>
    %267 = vector.shape_cast %266 : vector<2x16xf32> to vector<2x16x1xf32>
    %268 = vector.broadcast %267 : vector<2x16x1xf32> to vector<2x16x64xf32>
    %269 = arith.mulf %264, %268 : vector<2x16x64xf32>
    %cst_57 = arith.constant dense<0.000000e+00> : vector<2x64xf32>
    %270 = vector.multi_reduction <add>, %269, %cst_57 [1] : vector<2x16x64xf32> to vector<2x64xf32>
    %271 = vector.shape_cast %186 : vector<2x64xf32> to vector<2x1x64xf32>
    %272 = vector.shape_cast %198 : vector<2x64xf32> to vector<2x1x64xf32>
    %273 = vector.shape_cast %210 : vector<2x64xf32> to vector<2x1x64xf32>
    %274 = vector.shape_cast %222 : vector<2x64xf32> to vector<2x1x64xf32>
    %275 = vector.shape_cast %234 : vector<2x64xf32> to vector<2x1x64xf32>
    %276 = vector.shape_cast %246 : vector<2x64xf32> to vector<2x1x64xf32>
    %277 = vector.shape_cast %258 : vector<2x64xf32> to vector<2x1x64xf32>
    %278 = vector.shape_cast %270 : vector<2x64xf32> to vector<2x1x64xf32>
    %279 = tpu.concatenate %271, %272, %273, %274, %275, %276, %277, %278 in 1 : vector<2x1x64xf32>, vector<2x1x64xf32>, vector<2x1x64xf32>, vector<2x1x64xf32>, vector<2x1x64xf32>, vector<2x1x64xf32>, vector<2x1x64xf32>, vector<2x1x64xf32> -> vector<2x8x64xf32>
    %280 = vector.extract_strided_slice %63 {offsets = [4, 0], sizes = [1, 64], strides = [1, 1]} : vector<16x64xf32> to vector<1x64xf32>
    %281 = vector.shape_cast %280 : vector<1x64xf32> to vector<1x1x64xf32>
    %282 = vector.broadcast %281 : vector<1x1x64xf32> to vector<2x8x64xf32>
    %283 = arith.mulf %282, %138 : vector<2x8x64xf32>
    %284 = arith.addf %279, %283 : vector<2x8x64xf32>
    %cst_58 = arith.constant 0.000000e+00 : f32
    %285 = vector.broadcast %cst_58 : f32 to vector<2x8x64xf32>
    %286 = arith.subf %285, %101 : vector<2x8x64xf32>
    %287 = math.exp %286 : vector<2x8x64xf32>
    %cst_59 = arith.constant 1.000000e+00 : f32
    %288 = vector.broadcast %cst_59 : f32 to vector<2x8x64xf32>
    %289 = arith.addf %288, %287 : vector<2x8x64xf32>
    %cst_60 = arith.constant 1.000000e+00 : f32
    %290 = vector.broadcast %cst_60 : f32 to vector<2x8x64xf32>
    %291 = arith.divf %290, %289 : vector<2x8x64xf32>
    %292 = arith.mulf %101, %291 : vector<2x8x64xf32>
    %293 = arith.mulf %284, %292 : vector<2x8x64xf32>
    %294 = vector.shape_cast %293 : vector<2x8x64xf32> to vector<16x64xf32>
    %cst_61 = arith.constant dense<0.000000e+00> : vector<16x32xf32>
    %295 = tpu.matmul %294, %71, %cst_61 {dimension_numbers = #tpu.dot_dimension_numbers<[1], [0], [0], [1], [0, 0, 1, 1], [], []>} : vector<16x64xf32>, vector<64x32xf32>, vector<16x32xf32> -> vector<16x32xf32>
    %296 = vector.shape_cast %295 : vector<16x32xf32> to vector<2x8x32xf32>
    %c1_62 = arith.constant 1 : index
    %c0_63 = arith.constant 0 : index
    %c0_64 = arith.constant 0 : index
    %297 = vector.load %arg4[%c1_62, %c0_63, %c0_64] : memref<4x16x64xf32, #tpu.memory_space<vmem>>, vector<1x16x64xf32>
    %298 = vector.shape_cast %297 : vector<1x16x64xf32> to vector<16x64xf32>
    %c1_65 = arith.constant 1 : index
    %c0_66 = arith.constant 0 : index
    %c0_67 = arith.constant 0 : index
    %299 = vector.load %arg5[%c1_65, %c0_66, %c0_67] : memref<4x32x128xf32, #tpu.memory_space<vmem>>, vector<1x32x128xf32>
    %300 = vector.shape_cast %299 : vector<1x32x128xf32> to vector<32x128xf32>
    %c1_68 = arith.constant 1 : index
    %c0_69 = arith.constant 0 : index
    %c0_70 = arith.constant 0 : index
    %301 = vector.load %arg6[%c1_68, %c0_69, %c0_70] : memref<4x64x34xf32, #tpu.memory_space<vmem>>, vector<1x64x34xf32>
    %302 = vector.shape_cast %301 : vector<1x64x34xf32> to vector<64x34xf32>
    %c1_71 = arith.constant 1 : index
    %c0_72 = arith.constant 0 : index
    %c0_73 = arith.constant 0 : index
    %303 = vector.load %arg7[%c1_71, %c0_72, %c0_73] : memref<4x16x64xf32, #tpu.memory_space<vmem>>, vector<1x16x64xf32>
    %304 = vector.shape_cast %303 : vector<1x16x64xf32> to vector<16x64xf32>
    %c1_74 = arith.constant 1 : index
    %c0_75 = arith.constant 0 : index
    %c0_76 = arith.constant 0 : index
    %305 = vector.load %arg8[%c1_74, %c0_75, %c0_76] : memref<4x64x32xf32, #tpu.memory_space<vmem>>, vector<1x64x32xf32>
    %306 = vector.shape_cast %305 : vector<1x64x32xf32> to vector<64x32xf32>
    %307 = arith.addf %60, %61 : vector<2x8x32xf32>
    %308 = vector.extract_strided_slice %298 {offsets = [0, 0], sizes = [1, 32], strides = [1, 1]} : vector<16x64xf32> to vector<1x32xf32>
    %309 = vector.extract_strided_slice %298 {offsets = [1, 0], sizes = [1, 32], strides = [1, 1]} : vector<16x64xf32> to vector<1x32xf32>
    %cst_77 = arith.constant dense<0.000000e+00> : vector<2x8xf32>
    %310 = vector.multi_reduction <add>, %307, %cst_77 [2] : vector<2x8x32xf32> to vector<2x8xf32>
    %311 = vector.shape_cast %310 : vector<2x8xf32> to vector<2x8x1xf32>
    %cst_78 = arith.constant 3.200000e+01 : f32
    %312 = vector.broadcast %cst_78 : f32 to vector<2x8x1xf32>
    %313 = arith.divf %311, %312 : vector<2x8x1xf32>
    %314 = vector.broadcast %313 : vector<2x8x1xf32> to vector<2x8x32xf32>
    %315 = arith.subf %307, %314 : vector<2x8x32xf32>
    %316 = arith.mulf %315, %315 : vector<2x8x32xf32>
    %cst_79 = arith.constant dense<0.000000e+00> : vector<2x8xf32>
    %317 = vector.multi_reduction <add>, %316, %cst_79 [2] : vector<2x8x32xf32> to vector<2x8xf32>
    %318 = vector.shape_cast %317 : vector<2x8xf32> to vector<2x8x1xf32>
    %cst_80 = arith.constant 3.200000e+01 : f32
    %319 = vector.broadcast %cst_80 : f32 to vector<2x8x1xf32>
    %320 = arith.divf %318, %319 : vector<2x8x1xf32>
    %cst_81 = arith.constant 9.99999974E-6 : f32
    %321 = vector.broadcast %cst_81 : f32 to vector<2x8x1xf32>
    %322 = arith.addf %320, %321 : vector<2x8x1xf32>
    %323 = math.rsqrt %322 : vector<2x8x1xf32>
    %324 = vector.broadcast %323 : vector<2x8x1xf32> to vector<2x8x32xf32>
    %325 = arith.mulf %315, %324 : vector<2x8x32xf32>
    %326 = vector.shape_cast %308 : vector<1x32xf32> to vector<1x1x32xf32>
    %327 = vector.broadcast %326 : vector<1x1x32xf32> to vector<2x8x32xf32>
    %328 = arith.mulf %325, %327 : vector<2x8x32xf32>
    %329 = vector.shape_cast %309 : vector<1x32xf32> to vector<1x1x32xf32>
    %330 = vector.broadcast %329 : vector<1x1x32xf32> to vector<2x8x32xf32>
    %331 = arith.addf %328, %330 : vector<2x8x32xf32>
    %332 = vector.shape_cast %331 : vector<2x8x32xf32> to vector<16x32xf32>
    %cst_82 = arith.constant dense<0.000000e+00> : vector<16x128xf32>
    %333 = tpu.matmul %332, %300, %cst_82 {dimension_numbers = #tpu.dot_dimension_numbers<[1], [0], [0], [1], [0, 0, 1, 1], [], []>} : vector<16x32xf32>, vector<32x128xf32>, vector<16x128xf32> -> vector<16x128xf32>
    %334 = vector.shape_cast %333 : vector<16x128xf32> to vector<2x8x128xf32>
    %335 = vector.extract_strided_slice %334 {offsets = [0, 0, 0], sizes = [2, 8, 64], strides = [1, 1, 1]} : vector<2x8x128xf32> to vector<2x8x64xf32>
    %336 = vector.extract_strided_slice %334 {offsets = [0, 0, 64], sizes = [2, 8, 64], strides = [1, 1, 1]} : vector<2x8x128xf32> to vector<2x8x64xf32>
    %cst_83 = arith.constant 0.000000e+00 : f32
    %337 = vector.broadcast %cst_83 : f32 to vector<2x3x64xf32>
    %338 = tpu.concatenate %337, %335 in 1 : vector<2x3x64xf32>, vector<2x8x64xf32> -> vector<2x11x64xf32>
    %339 = vector.extract_strided_slice %298 {offsets = [2, 0], sizes = [1, 64], strides = [1, 1]} : vector<16x64xf32> to vector<1x64xf32>
    %340 = vector.extract_strided_slice %338 {offsets = [0, 0, 0], sizes = [2, 8, 64], strides = [1, 1, 1]} : vector<2x11x64xf32> to vector<2x8x64xf32>
    %341 = vector.extract_strided_slice %298 {offsets = [5, 0], sizes = [1, 64], strides = [1, 1]} : vector<16x64xf32> to vector<1x64xf32>
    %342 = vector.shape_cast %341 : vector<1x64xf32> to vector<1x1x64xf32>
    %343 = vector.broadcast %342 : vector<1x1x64xf32> to vector<2x8x64xf32>
    %344 = arith.mulf %340, %343 : vector<2x8x64xf32>
    %345 = vector.shape_cast %339 : vector<1x64xf32> to vector<1x1x64xf32>
    %346 = vector.broadcast %345 : vector<1x1x64xf32> to vector<2x8x64xf32>
    %347 = arith.addf %346, %344 : vector<2x8x64xf32>
    %348 = vector.extract_strided_slice %338 {offsets = [0, 1, 0], sizes = [2, 8, 64], strides = [1, 1, 1]} : vector<2x11x64xf32> to vector<2x8x64xf32>
    %349 = vector.extract_strided_slice %298 {offsets = [6, 0], sizes = [1, 64], strides = [1, 1]} : vector<16x64xf32> to vector<1x64xf32>
    %350 = vector.shape_cast %349 : vector<1x64xf32> to vector<1x1x64xf32>
    %351 = vector.broadcast %350 : vector<1x1x64xf32> to vector<2x8x64xf32>
    %352 = arith.mulf %348, %351 : vector<2x8x64xf32>
    %353 = arith.addf %347, %352 : vector<2x8x64xf32>
    %354 = vector.extract_strided_slice %338 {offsets = [0, 2, 0], sizes = [2, 8, 64], strides = [1, 1, 1]} : vector<2x11x64xf32> to vector<2x8x64xf32>
    %355 = vector.extract_strided_slice %298 {offsets = [7, 0], sizes = [1, 64], strides = [1, 1]} : vector<16x64xf32> to vector<1x64xf32>
    %356 = vector.shape_cast %355 : vector<1x64xf32> to vector<1x1x64xf32>
    %357 = vector.broadcast %356 : vector<1x1x64xf32> to vector<2x8x64xf32>
    %358 = arith.mulf %354, %357 : vector<2x8x64xf32>
    %359 = arith.addf %353, %358 : vector<2x8x64xf32>
    %360 = vector.extract_strided_slice %338 {offsets = [0, 3, 0], sizes = [2, 8, 64], strides = [1, 1, 1]} : vector<2x11x64xf32> to vector<2x8x64xf32>
    %361 = vector.extract_strided_slice %298 {offsets = [8, 0], sizes = [1, 64], strides = [1, 1]} : vector<16x64xf32> to vector<1x64xf32>
    %362 = vector.shape_cast %361 : vector<1x64xf32> to vector<1x1x64xf32>
    %363 = vector.broadcast %362 : vector<1x1x64xf32> to vector<2x8x64xf32>
    %364 = arith.mulf %360, %363 : vector<2x8x64xf32>
    %365 = arith.addf %359, %364 : vector<2x8x64xf32>
    %cst_84 = arith.constant 0.000000e+00 : f32
    %366 = vector.broadcast %cst_84 : f32 to vector<2x8x64xf32>
    %367 = arith.subf %366, %365 : vector<2x8x64xf32>
    %368 = math.exp %367 : vector<2x8x64xf32>
    %cst_85 = arith.constant 1.000000e+00 : f32
    %369 = vector.broadcast %cst_85 : f32 to vector<2x8x64xf32>
    %370 = arith.addf %369, %368 : vector<2x8x64xf32>
    %cst_86 = arith.constant 1.000000e+00 : f32
    %371 = vector.broadcast %cst_86 : f32 to vector<2x8x64xf32>
    %372 = arith.divf %371, %370 : vector<2x8x64xf32>
    %373 = arith.mulf %365, %372 : vector<2x8x64xf32>
    %374 = vector.shape_cast %373 : vector<2x8x64xf32> to vector<16x64xf32>
    %cst_87 = arith.constant dense<0.000000e+00> : vector<16x34xf32>
    %375 = tpu.matmul %374, %302, %cst_87 {dimension_numbers = #tpu.dot_dimension_numbers<[1], [0], [0], [1], [0, 0, 1, 1], [], []>} : vector<16x64xf32>, vector<64x34xf32>, vector<16x34xf32> -> vector<16x34xf32>
    %376 = vector.extract_strided_slice %375 {offsets = [0, 2], sizes = [16, 16], strides = [1, 1]} : vector<16x34xf32> to vector<16x16xf32>
    %377 = vector.shape_cast %376 : vector<16x16xf32> to vector<2x8x16xf32>
    %378 = vector.extract_strided_slice %375 {offsets = [0, 18], sizes = [16, 16], strides = [1, 1]} : vector<16x34xf32> to vector<16x16xf32>
    %379 = vector.shape_cast %378 : vector<16x16xf32> to vector<2x8x16xf32>
    %380 = vector.extract_strided_slice %375 {offsets = [0, 0], sizes = [16, 2], strides = [1, 1]} : vector<16x34xf32> to vector<16x2xf32>
    %381 = vector.extract_strided_slice %298 {offsets = [9, 0], sizes = [2, 64], strides = [1, 1]} : vector<16x64xf32> to vector<2x64xf32>
    %cst_88 = arith.constant dense<0.000000e+00> : vector<16x64xf32>
    %382 = tpu.matmul %380, %381, %cst_88 {dimension_numbers = #tpu.dot_dimension_numbers<[1], [0], [0], [1], [0, 0, 1, 1], [], []>} : vector<16x2xf32>, vector<2x64xf32>, vector<16x64xf32> -> vector<16x64xf32>
    %383 = vector.extract_strided_slice %298 {offsets = [3, 0], sizes = [1, 64], strides = [1, 1]} : vector<16x64xf32> to vector<1x64xf32>
    %384 = vector.broadcast %383 : vector<1x64xf32> to vector<16x64xf32>
    %385 = arith.addf %382, %384 : vector<16x64xf32>
    %cst_89 = arith.constant 2.000000e+01 : f32
    %386 = vector.broadcast %cst_89 : f32 to vector<16x64xf32>
    %387 = arith.cmpf ogt, %385, %386 : vector<16x64xf32>
    %cst_90 = arith.constant 2.000000e+01 : f32
    %388 = vector.broadcast %cst_90 : f32 to vector<16x64xf32>
    %389 = arith.minimumf %385, %388 : vector<16x64xf32>
    %390 = math.exp %389 : vector<16x64xf32>
    %391 = math.log1p %390 : vector<16x64xf32>
    %392 = arith.select %387, %385, %391 : vector<16x64xi1>, vector<16x64xf32>
    %393 = vector.shape_cast %392 : vector<16x64xf32> to vector<2x8x64xf32>
    %394 = math.exp %304 : vector<16x64xf32>
    %cst_91 = arith.constant 0.000000e+00 : f32
    %395 = vector.broadcast %cst_91 : f32 to vector<16x64xf32>
    %396 = arith.subf %395, %394 : vector<16x64xf32>
    %397 = vector.shape_cast %393 : vector<2x8x64xf32> to vector<2x8x1x64xf32>
    %398 = vector.shape_cast %396 : vector<16x64xf32> to vector<1x1x16x64xf32>
    %399 = vector.broadcast %397 : vector<2x8x1x64xf32> to vector<2x8x16x64xf32>
    %400 = vector.broadcast %398 : vector<1x1x16x64xf32> to vector<2x8x16x64xf32>
    %401 = arith.mulf %399, %400 : vector<2x8x16x64xf32>
    %402 = math.exp %401 : vector<2x8x16x64xf32>
    %403 = arith.mulf %393, %373 : vector<2x8x64xf32>
    %404 = vector.shape_cast %403 : vector<2x8x64xf32> to vector<2x8x1x64xf32>
    %405 = vector.shape_cast %377 : vector<2x8x16xf32> to vector<2x8x16x1xf32>
    %406 = vector.broadcast %404 : vector<2x8x1x64xf32> to vector<2x8x16x64xf32>
    %407 = vector.broadcast %405 : vector<2x8x16x1xf32> to vector<2x8x16x64xf32>
    %408 = arith.mulf %406, %407 : vector<2x8x16x64xf32>
    %cst_92 = arith.constant 0.000000e+00 : f32
    %409 = vector.broadcast %cst_92 : f32 to vector<2x16x64xf32>
    %410 = vector.extract_strided_slice %402 {offsets = [0, 0, 0, 0], sizes = [2, 1, 16, 64], strides = [1, 1, 1, 1]} : vector<2x8x16x64xf32> to vector<2x1x16x64xf32>
    %411 = vector.shape_cast %410 : vector<2x1x16x64xf32> to vector<2x16x64xf32>
    %412 = arith.mulf %411, %409 : vector<2x16x64xf32>
    %413 = vector.extract_strided_slice %408 {offsets = [0, 0, 0, 0], sizes = [2, 1, 16, 64], strides = [1, 1, 1, 1]} : vector<2x8x16x64xf32> to vector<2x1x16x64xf32>
    %414 = vector.shape_cast %413 : vector<2x1x16x64xf32> to vector<2x16x64xf32>
    %415 = arith.addf %412, %414 : vector<2x16x64xf32>
    %416 = vector.extract_strided_slice %379 {offsets = [0, 0, 0], sizes = [2, 1, 16], strides = [1, 1, 1]} : vector<2x8x16xf32> to vector<2x1x16xf32>
    %417 = vector.shape_cast %416 : vector<2x1x16xf32> to vector<2x16xf32>
    %418 = vector.shape_cast %417 : vector<2x16xf32> to vector<2x16x1xf32>
    %419 = vector.broadcast %418 : vector<2x16x1xf32> to vector<2x16x64xf32>
    %420 = arith.mulf %415, %419 : vector<2x16x64xf32>
    %cst_93 = arith.constant dense<0.000000e+00> : vector<2x64xf32>
    %421 = vector.multi_reduction <add>, %420, %cst_93 [1] : vector<2x16x64xf32> to vector<2x64xf32>
    %422 = vector.extract_strided_slice %402 {offsets = [0, 1, 0, 0], sizes = [2, 1, 16, 64], strides = [1, 1, 1, 1]} : vector<2x8x16x64xf32> to vector<2x1x16x64xf32>
    %423 = vector.shape_cast %422 : vector<2x1x16x64xf32> to vector<2x16x64xf32>
    %424 = arith.mulf %423, %415 : vector<2x16x64xf32>
    %425 = vector.extract_strided_slice %408 {offsets = [0, 1, 0, 0], sizes = [2, 1, 16, 64], strides = [1, 1, 1, 1]} : vector<2x8x16x64xf32> to vector<2x1x16x64xf32>
    %426 = vector.shape_cast %425 : vector<2x1x16x64xf32> to vector<2x16x64xf32>
    %427 = arith.addf %424, %426 : vector<2x16x64xf32>
    %428 = vector.extract_strided_slice %379 {offsets = [0, 1, 0], sizes = [2, 1, 16], strides = [1, 1, 1]} : vector<2x8x16xf32> to vector<2x1x16xf32>
    %429 = vector.shape_cast %428 : vector<2x1x16xf32> to vector<2x16xf32>
    %430 = vector.shape_cast %429 : vector<2x16xf32> to vector<2x16x1xf32>
    %431 = vector.broadcast %430 : vector<2x16x1xf32> to vector<2x16x64xf32>
    %432 = arith.mulf %427, %431 : vector<2x16x64xf32>
    %cst_94 = arith.constant dense<0.000000e+00> : vector<2x64xf32>
    %433 = vector.multi_reduction <add>, %432, %cst_94 [1] : vector<2x16x64xf32> to vector<2x64xf32>
    %434 = vector.extract_strided_slice %402 {offsets = [0, 2, 0, 0], sizes = [2, 1, 16, 64], strides = [1, 1, 1, 1]} : vector<2x8x16x64xf32> to vector<2x1x16x64xf32>
    %435 = vector.shape_cast %434 : vector<2x1x16x64xf32> to vector<2x16x64xf32>
    %436 = arith.mulf %435, %427 : vector<2x16x64xf32>
    %437 = vector.extract_strided_slice %408 {offsets = [0, 2, 0, 0], sizes = [2, 1, 16, 64], strides = [1, 1, 1, 1]} : vector<2x8x16x64xf32> to vector<2x1x16x64xf32>
    %438 = vector.shape_cast %437 : vector<2x1x16x64xf32> to vector<2x16x64xf32>
    %439 = arith.addf %436, %438 : vector<2x16x64xf32>
    %440 = vector.extract_strided_slice %379 {offsets = [0, 2, 0], sizes = [2, 1, 16], strides = [1, 1, 1]} : vector<2x8x16xf32> to vector<2x1x16xf32>
    %441 = vector.shape_cast %440 : vector<2x1x16xf32> to vector<2x16xf32>
    %442 = vector.shape_cast %441 : vector<2x16xf32> to vector<2x16x1xf32>
    %443 = vector.broadcast %442 : vector<2x16x1xf32> to vector<2x16x64xf32>
    %444 = arith.mulf %439, %443 : vector<2x16x64xf32>
    %cst_95 = arith.constant dense<0.000000e+00> : vector<2x64xf32>
    %445 = vector.multi_reduction <add>, %444, %cst_95 [1] : vector<2x16x64xf32> to vector<2x64xf32>
    %446 = vector.extract_strided_slice %402 {offsets = [0, 3, 0, 0], sizes = [2, 1, 16, 64], strides = [1, 1, 1, 1]} : vector<2x8x16x64xf32> to vector<2x1x16x64xf32>
    %447 = vector.shape_cast %446 : vector<2x1x16x64xf32> to vector<2x16x64xf32>
    %448 = arith.mulf %447, %439 : vector<2x16x64xf32>
    %449 = vector.extract_strided_slice %408 {offsets = [0, 3, 0, 0], sizes = [2, 1, 16, 64], strides = [1, 1, 1, 1]} : vector<2x8x16x64xf32> to vector<2x1x16x64xf32>
    %450 = vector.shape_cast %449 : vector<2x1x16x64xf32> to vector<2x16x64xf32>
    %451 = arith.addf %448, %450 : vector<2x16x64xf32>
    %452 = vector.extract_strided_slice %379 {offsets = [0, 3, 0], sizes = [2, 1, 16], strides = [1, 1, 1]} : vector<2x8x16xf32> to vector<2x1x16xf32>
    %453 = vector.shape_cast %452 : vector<2x1x16xf32> to vector<2x16xf32>
    %454 = vector.shape_cast %453 : vector<2x16xf32> to vector<2x16x1xf32>
    %455 = vector.broadcast %454 : vector<2x16x1xf32> to vector<2x16x64xf32>
    %456 = arith.mulf %451, %455 : vector<2x16x64xf32>
    %cst_96 = arith.constant dense<0.000000e+00> : vector<2x64xf32>
    %457 = vector.multi_reduction <add>, %456, %cst_96 [1] : vector<2x16x64xf32> to vector<2x64xf32>
    %458 = vector.extract_strided_slice %402 {offsets = [0, 4, 0, 0], sizes = [2, 1, 16, 64], strides = [1, 1, 1, 1]} : vector<2x8x16x64xf32> to vector<2x1x16x64xf32>
    %459 = vector.shape_cast %458 : vector<2x1x16x64xf32> to vector<2x16x64xf32>
    %460 = arith.mulf %459, %451 : vector<2x16x64xf32>
    %461 = vector.extract_strided_slice %408 {offsets = [0, 4, 0, 0], sizes = [2, 1, 16, 64], strides = [1, 1, 1, 1]} : vector<2x8x16x64xf32> to vector<2x1x16x64xf32>
    %462 = vector.shape_cast %461 : vector<2x1x16x64xf32> to vector<2x16x64xf32>
    %463 = arith.addf %460, %462 : vector<2x16x64xf32>
    %464 = vector.extract_strided_slice %379 {offsets = [0, 4, 0], sizes = [2, 1, 16], strides = [1, 1, 1]} : vector<2x8x16xf32> to vector<2x1x16xf32>
    %465 = vector.shape_cast %464 : vector<2x1x16xf32> to vector<2x16xf32>
    %466 = vector.shape_cast %465 : vector<2x16xf32> to vector<2x16x1xf32>
    %467 = vector.broadcast %466 : vector<2x16x1xf32> to vector<2x16x64xf32>
    %468 = arith.mulf %463, %467 : vector<2x16x64xf32>
    %cst_97 = arith.constant dense<0.000000e+00> : vector<2x64xf32>
    %469 = vector.multi_reduction <add>, %468, %cst_97 [1] : vector<2x16x64xf32> to vector<2x64xf32>
    %470 = vector.extract_strided_slice %402 {offsets = [0, 5, 0, 0], sizes = [2, 1, 16, 64], strides = [1, 1, 1, 1]} : vector<2x8x16x64xf32> to vector<2x1x16x64xf32>
    %471 = vector.shape_cast %470 : vector<2x1x16x64xf32> to vector<2x16x64xf32>
    %472 = arith.mulf %471, %463 : vector<2x16x64xf32>
    %473 = vector.extract_strided_slice %408 {offsets = [0, 5, 0, 0], sizes = [2, 1, 16, 64], strides = [1, 1, 1, 1]} : vector<2x8x16x64xf32> to vector<2x1x16x64xf32>
    %474 = vector.shape_cast %473 : vector<2x1x16x64xf32> to vector<2x16x64xf32>
    %475 = arith.addf %472, %474 : vector<2x16x64xf32>
    %476 = vector.extract_strided_slice %379 {offsets = [0, 5, 0], sizes = [2, 1, 16], strides = [1, 1, 1]} : vector<2x8x16xf32> to vector<2x1x16xf32>
    %477 = vector.shape_cast %476 : vector<2x1x16xf32> to vector<2x16xf32>
    %478 = vector.shape_cast %477 : vector<2x16xf32> to vector<2x16x1xf32>
    %479 = vector.broadcast %478 : vector<2x16x1xf32> to vector<2x16x64xf32>
    %480 = arith.mulf %475, %479 : vector<2x16x64xf32>
    %cst_98 = arith.constant dense<0.000000e+00> : vector<2x64xf32>
    %481 = vector.multi_reduction <add>, %480, %cst_98 [1] : vector<2x16x64xf32> to vector<2x64xf32>
    %482 = vector.extract_strided_slice %402 {offsets = [0, 6, 0, 0], sizes = [2, 1, 16, 64], strides = [1, 1, 1, 1]} : vector<2x8x16x64xf32> to vector<2x1x16x64xf32>
    %483 = vector.shape_cast %482 : vector<2x1x16x64xf32> to vector<2x16x64xf32>
    %484 = arith.mulf %483, %475 : vector<2x16x64xf32>
    %485 = vector.extract_strided_slice %408 {offsets = [0, 6, 0, 0], sizes = [2, 1, 16, 64], strides = [1, 1, 1, 1]} : vector<2x8x16x64xf32> to vector<2x1x16x64xf32>
    %486 = vector.shape_cast %485 : vector<2x1x16x64xf32> to vector<2x16x64xf32>
    %487 = arith.addf %484, %486 : vector<2x16x64xf32>
    %488 = vector.extract_strided_slice %379 {offsets = [0, 6, 0], sizes = [2, 1, 16], strides = [1, 1, 1]} : vector<2x8x16xf32> to vector<2x1x16xf32>
    %489 = vector.shape_cast %488 : vector<2x1x16xf32> to vector<2x16xf32>
    %490 = vector.shape_cast %489 : vector<2x16xf32> to vector<2x16x1xf32>
    %491 = vector.broadcast %490 : vector<2x16x1xf32> to vector<2x16x64xf32>
    %492 = arith.mulf %487, %491 : vector<2x16x64xf32>
    %cst_99 = arith.constant dense<0.000000e+00> : vector<2x64xf32>
    %493 = vector.multi_reduction <add>, %492, %cst_99 [1] : vector<2x16x64xf32> to vector<2x64xf32>
    %494 = vector.extract_strided_slice %402 {offsets = [0, 7, 0, 0], sizes = [2, 1, 16, 64], strides = [1, 1, 1, 1]} : vector<2x8x16x64xf32> to vector<2x1x16x64xf32>
    %495 = vector.shape_cast %494 : vector<2x1x16x64xf32> to vector<2x16x64xf32>
    %496 = arith.mulf %495, %487 : vector<2x16x64xf32>
    %497 = vector.extract_strided_slice %408 {offsets = [0, 7, 0, 0], sizes = [2, 1, 16, 64], strides = [1, 1, 1, 1]} : vector<2x8x16x64xf32> to vector<2x1x16x64xf32>
    %498 = vector.shape_cast %497 : vector<2x1x16x64xf32> to vector<2x16x64xf32>
    %499 = arith.addf %496, %498 : vector<2x16x64xf32>
    %500 = vector.extract_strided_slice %379 {offsets = [0, 7, 0], sizes = [2, 1, 16], strides = [1, 1, 1]} : vector<2x8x16xf32> to vector<2x1x16xf32>
    %501 = vector.shape_cast %500 : vector<2x1x16xf32> to vector<2x16xf32>
    %502 = vector.shape_cast %501 : vector<2x16xf32> to vector<2x16x1xf32>
    %503 = vector.broadcast %502 : vector<2x16x1xf32> to vector<2x16x64xf32>
    %504 = arith.mulf %499, %503 : vector<2x16x64xf32>
    %cst_100 = arith.constant dense<0.000000e+00> : vector<2x64xf32>
    %505 = vector.multi_reduction <add>, %504, %cst_100 [1] : vector<2x16x64xf32> to vector<2x64xf32>
    %506 = vector.shape_cast %421 : vector<2x64xf32> to vector<2x1x64xf32>
    %507 = vector.shape_cast %433 : vector<2x64xf32> to vector<2x1x64xf32>
    %508 = vector.shape_cast %445 : vector<2x64xf32> to vector<2x1x64xf32>
    %509 = vector.shape_cast %457 : vector<2x64xf32> to vector<2x1x64xf32>
    %510 = vector.shape_cast %469 : vector<2x64xf32> to vector<2x1x64xf32>
    %511 = vector.shape_cast %481 : vector<2x64xf32> to vector<2x1x64xf32>
    %512 = vector.shape_cast %493 : vector<2x64xf32> to vector<2x1x64xf32>
    %513 = vector.shape_cast %505 : vector<2x64xf32> to vector<2x1x64xf32>
    %514 = tpu.concatenate %506, %507, %508, %509, %510, %511, %512, %513 in 1 : vector<2x1x64xf32>, vector<2x1x64xf32>, vector<2x1x64xf32>, vector<2x1x64xf32>, vector<2x1x64xf32>, vector<2x1x64xf32>, vector<2x1x64xf32>, vector<2x1x64xf32> -> vector<2x8x64xf32>
    %515 = vector.extract_strided_slice %298 {offsets = [4, 0], sizes = [1, 64], strides = [1, 1]} : vector<16x64xf32> to vector<1x64xf32>
    %516 = vector.shape_cast %515 : vector<1x64xf32> to vector<1x1x64xf32>
    %517 = vector.broadcast %516 : vector<1x1x64xf32> to vector<2x8x64xf32>
    %518 = arith.mulf %517, %373 : vector<2x8x64xf32>
    %519 = arith.addf %514, %518 : vector<2x8x64xf32>
    %cst_101 = arith.constant 0.000000e+00 : f32
    %520 = vector.broadcast %cst_101 : f32 to vector<2x8x64xf32>
    %521 = arith.subf %520, %336 : vector<2x8x64xf32>
    %522 = math.exp %521 : vector<2x8x64xf32>
    %cst_102 = arith.constant 1.000000e+00 : f32
    %523 = vector.broadcast %cst_102 : f32 to vector<2x8x64xf32>
    %524 = arith.addf %523, %522 : vector<2x8x64xf32>
    %cst_103 = arith.constant 1.000000e+00 : f32
    %525 = vector.broadcast %cst_103 : f32 to vector<2x8x64xf32>
    %526 = arith.divf %525, %524 : vector<2x8x64xf32>
    %527 = arith.mulf %336, %526 : vector<2x8x64xf32>
    %528 = arith.mulf %519, %527 : vector<2x8x64xf32>
    %529 = vector.shape_cast %528 : vector<2x8x64xf32> to vector<16x64xf32>
    %cst_104 = arith.constant dense<0.000000e+00> : vector<16x32xf32>
    %530 = tpu.matmul %529, %306, %cst_104 {dimension_numbers = #tpu.dot_dimension_numbers<[1], [0], [0], [1], [0, 0, 1, 1], [], []>} : vector<16x64xf32>, vector<64x32xf32>, vector<16x32xf32> -> vector<16x32xf32>
    %531 = vector.shape_cast %530 : vector<16x32xf32> to vector<2x8x32xf32>
    %532 = tpu.concatenate %531, %307 in 2 : vector<2x8x32xf32>, vector<2x8x32xf32> -> vector<2x8x64xf32>
    %533 = vector.extract_strided_slice %532 {offsets = [0, 0, 0], sizes = [1, 8, 64], strides = [1, 1, 1]} : vector<2x8x64xf32> to vector<1x8x64xf32>
    %534 = vector.shape_cast %533 : vector<1x8x64xf32> to vector<8x64xf32>
    %cst_105 = arith.constant dense<0.000000e+00> : vector<8x64xf32>
    %535 = tpu.matmul %12, %534, %cst_105 {dimension_numbers = #tpu.dot_dimension_numbers<[1], [0], [0], [1], [0, 0, 1, 1], [], []>} : vector<8x8xf32>, vector<8x64xf32>, vector<8x64xf32> -> vector<8x64xf32>
    %536 = vector.extract_strided_slice %532 {offsets = [1, 0, 0], sizes = [1, 8, 64], strides = [1, 1, 1]} : vector<2x8x64xf32> to vector<1x8x64xf32>
    %537 = vector.shape_cast %536 : vector<1x8x64xf32> to vector<8x64xf32>
    %cst_106 = arith.constant dense<0.000000e+00> : vector<8x64xf32>
    %538 = tpu.matmul %23, %537, %cst_106 {dimension_numbers = #tpu.dot_dimension_numbers<[1], [0], [0], [1], [0, 0, 1, 1], [], []>} : vector<8x8xf32>, vector<8x64xf32>, vector<8x64xf32> -> vector<8x64xf32>
    %539 = vector.shape_cast %535 : vector<8x64xf32> to vector<1x8x64xf32>
    %540 = vector.shape_cast %538 : vector<8x64xf32> to vector<1x8x64xf32>
    %541 = tpu.concatenate %539, %540 in 0 : vector<1x8x64xf32>, vector<1x8x64xf32> -> vector<2x8x64xf32>
    %542 = vector.shape_cast %296 : vector<2x8x32xf32> to vector<16x32xf32>
    %c0_107 = arith.constant 0 : index
    %c0_108 = arith.constant 0 : index
    %c0_109 = arith.constant 0 : index
    %543 = vector.load %arg9[%c0_107, %c0_108, %c0_109] : memref<4x32x32xf32, #tpu.memory_space<vmem>>, vector<1x32x32xf32>
    %544 = vector.shape_cast %543 : vector<1x32x32xf32> to vector<32x32xf32>
    %cst_110 = arith.constant dense<0.000000e+00> : vector<16x32xf32>
    %545 = tpu.matmul %542, %544, %cst_110 {dimension_numbers = #tpu.dot_dimension_numbers<[1], [0], [0], [1], [0, 0, 1, 1], [], []>} : vector<16x32xf32>, vector<32x32xf32>, vector<16x32xf32> -> vector<16x32xf32>
    %546 = vector.extract_strided_slice %541 {offsets = [0, 0, 0], sizes = [2, 8, 32], strides = [1, 1, 1]} : vector<2x8x64xf32> to vector<2x8x32xf32>
    %547 = vector.shape_cast %546 : vector<2x8x32xf32> to vector<16x32xf32>
    %c1_111 = arith.constant 1 : index
    %c0_112 = arith.constant 0 : index
    %c0_113 = arith.constant 0 : index
    %548 = vector.load %arg9[%c1_111, %c0_112, %c0_113] : memref<4x32x32xf32, #tpu.memory_space<vmem>>, vector<1x32x32xf32>
    %549 = vector.shape_cast %548 : vector<1x32x32xf32> to vector<32x32xf32>
    %cst_114 = arith.constant dense<0.000000e+00> : vector<16x32xf32>
    %550 = tpu.matmul %547, %549, %cst_114 {dimension_numbers = #tpu.dot_dimension_numbers<[1], [0], [0], [1], [0, 0, 1, 1], [], []>} : vector<16x32xf32>, vector<32x32xf32>, vector<16x32xf32> -> vector<16x32xf32>
    %551 = arith.addf %545, %550 : vector<16x32xf32>
    %c0_115 = arith.constant 0 : index
    %c0_116 = arith.constant 0 : index
    %c0_117 = arith.constant 0 : index
    %552 = vector.load %arg10[%c0_115, %c0_116, %c0_117] : memref<2x1x32xf32, #tpu.memory_space<vmem>>, vector<1x1x32xf32>
    %553 = vector.shape_cast %552 : vector<1x1x32xf32> to vector<1x32xf32>
    %554 = vector.broadcast %553 : vector<1x32xf32> to vector<16x32xf32>
    %555 = arith.addf %551, %554 : vector<16x32xf32>
    %556 = vector.shape_cast %555 : vector<16x32xf32> to vector<2x8x32xf32>
    %557 = vector.extract_strided_slice %541 {offsets = [0, 0, 32], sizes = [2, 8, 32], strides = [1, 1, 1]} : vector<2x8x64xf32> to vector<2x8x32xf32>
    %558 = arith.addf %72, %557 : vector<2x8x32xf32>
    %cst_118 = arith.constant 5.000000e-01 : f32
    %559 = vector.broadcast %cst_118 : f32 to vector<2x8x32xf32>
    %560 = arith.mulf %559, %558 : vector<2x8x32xf32>
    %561 = tpu.concatenate %556, %560 in 2 : vector<2x8x32xf32>, vector<2x8x32xf32> -> vector<2x8x64xf32>
    %562 = vector.extract_strided_slice %561 {offsets = [0, 0, 0], sizes = [1, 8, 64], strides = [1, 1, 1]} : vector<2x8x64xf32> to vector<1x8x64xf32>
    %563 = vector.shape_cast %562 : vector<1x8x64xf32> to vector<8x64xf32>
    %cst_119 = arith.constant dense<0.000000e+00> : vector<8x64xf32>
    %564 = tpu.matmul %12, %563, %cst_119 {dimension_numbers = #tpu.dot_dimension_numbers<[1], [0], [0], [1], [0, 0, 1, 1], [], []>} : vector<8x8xf32>, vector<8x64xf32>, vector<8x64xf32> -> vector<8x64xf32>
    %565 = vector.extract_strided_slice %561 {offsets = [1, 0, 0], sizes = [1, 8, 64], strides = [1, 1, 1]} : vector<2x8x64xf32> to vector<1x8x64xf32>
    %566 = vector.shape_cast %565 : vector<1x8x64xf32> to vector<8x64xf32>
    %cst_120 = arith.constant dense<0.000000e+00> : vector<8x64xf32>
    %567 = tpu.matmul %23, %566, %cst_120 {dimension_numbers = #tpu.dot_dimension_numbers<[1], [0], [0], [1], [0, 0, 1, 1], [], []>} : vector<8x8xf32>, vector<8x64xf32>, vector<8x64xf32> -> vector<8x64xf32>
    %568 = vector.shape_cast %564 : vector<8x64xf32> to vector<1x8x64xf32>
    %569 = vector.shape_cast %567 : vector<8x64xf32> to vector<1x8x64xf32>
    %570 = tpu.concatenate %568, %569 in 0 : vector<1x8x64xf32>, vector<1x8x64xf32> -> vector<2x8x64xf32>
    %571 = vector.extract_strided_slice %570 {offsets = [0, 0, 0], sizes = [2, 8, 32], strides = [1, 1, 1]} : vector<2x8x64xf32> to vector<2x8x32xf32>
    %572 = vector.extract_strided_slice %570 {offsets = [0, 0, 32], sizes = [2, 8, 32], strides = [1, 1, 1]} : vector<2x8x64xf32> to vector<2x8x32xf32>
    %c2 = arith.constant 2 : index
    %c0_121 = arith.constant 0 : index
    %c0_122 = arith.constant 0 : index
    %573 = vector.load %arg4[%c2, %c0_121, %c0_122] : memref<4x16x64xf32, #tpu.memory_space<vmem>>, vector<1x16x64xf32>
    %574 = vector.shape_cast %573 : vector<1x16x64xf32> to vector<16x64xf32>
    %c2_123 = arith.constant 2 : index
    %c0_124 = arith.constant 0 : index
    %c0_125 = arith.constant 0 : index
    %575 = vector.load %arg5[%c2_123, %c0_124, %c0_125] : memref<4x32x128xf32, #tpu.memory_space<vmem>>, vector<1x32x128xf32>
    %576 = vector.shape_cast %575 : vector<1x32x128xf32> to vector<32x128xf32>
    %c2_126 = arith.constant 2 : index
    %c0_127 = arith.constant 0 : index
    %c0_128 = arith.constant 0 : index
    %577 = vector.load %arg6[%c2_126, %c0_127, %c0_128] : memref<4x64x34xf32, #tpu.memory_space<vmem>>, vector<1x64x34xf32>
    %578 = vector.shape_cast %577 : vector<1x64x34xf32> to vector<64x34xf32>
    %c2_129 = arith.constant 2 : index
    %c0_130 = arith.constant 0 : index
    %c0_131 = arith.constant 0 : index
    %579 = vector.load %arg7[%c2_129, %c0_130, %c0_131] : memref<4x16x64xf32, #tpu.memory_space<vmem>>, vector<1x16x64xf32>
    %580 = vector.shape_cast %579 : vector<1x16x64xf32> to vector<16x64xf32>
    %c2_132 = arith.constant 2 : index
    %c0_133 = arith.constant 0 : index
    %c0_134 = arith.constant 0 : index
    %581 = vector.load %arg8[%c2_132, %c0_133, %c0_134] : memref<4x64x32xf32, #tpu.memory_space<vmem>>, vector<1x64x32xf32>
    %582 = vector.shape_cast %581 : vector<1x64x32xf32> to vector<64x32xf32>
    %583 = arith.addf %556, %560 : vector<2x8x32xf32>
    %584 = vector.extract_strided_slice %574 {offsets = [0, 0], sizes = [1, 32], strides = [1, 1]} : vector<16x64xf32> to vector<1x32xf32>
    %585 = vector.extract_strided_slice %574 {offsets = [1, 0], sizes = [1, 32], strides = [1, 1]} : vector<16x64xf32> to vector<1x32xf32>
    %cst_135 = arith.constant dense<0.000000e+00> : vector<2x8xf32>
    %586 = vector.multi_reduction <add>, %583, %cst_135 [2] : vector<2x8x32xf32> to vector<2x8xf32>
    %587 = vector.shape_cast %586 : vector<2x8xf32> to vector<2x8x1xf32>
    %cst_136 = arith.constant 3.200000e+01 : f32
    %588 = vector.broadcast %cst_136 : f32 to vector<2x8x1xf32>
    %589 = arith.divf %587, %588 : vector<2x8x1xf32>
    %590 = vector.broadcast %589 : vector<2x8x1xf32> to vector<2x8x32xf32>
    %591 = arith.subf %583, %590 : vector<2x8x32xf32>
    %592 = arith.mulf %591, %591 : vector<2x8x32xf32>
    %cst_137 = arith.constant dense<0.000000e+00> : vector<2x8xf32>
    %593 = vector.multi_reduction <add>, %592, %cst_137 [2] : vector<2x8x32xf32> to vector<2x8xf32>
    %594 = vector.shape_cast %593 : vector<2x8xf32> to vector<2x8x1xf32>
    %cst_138 = arith.constant 3.200000e+01 : f32
    %595 = vector.broadcast %cst_138 : f32 to vector<2x8x1xf32>
    %596 = arith.divf %594, %595 : vector<2x8x1xf32>
    %cst_139 = arith.constant 9.99999974E-6 : f32
    %597 = vector.broadcast %cst_139 : f32 to vector<2x8x1xf32>
    %598 = arith.addf %596, %597 : vector<2x8x1xf32>
    %599 = math.rsqrt %598 : vector<2x8x1xf32>
    %600 = vector.broadcast %599 : vector<2x8x1xf32> to vector<2x8x32xf32>
    %601 = arith.mulf %591, %600 : vector<2x8x32xf32>
    %602 = vector.shape_cast %584 : vector<1x32xf32> to vector<1x1x32xf32>
    %603 = vector.broadcast %602 : vector<1x1x32xf32> to vector<2x8x32xf32>
    %604 = arith.mulf %601, %603 : vector<2x8x32xf32>
    %605 = vector.shape_cast %585 : vector<1x32xf32> to vector<1x1x32xf32>
    %606 = vector.broadcast %605 : vector<1x1x32xf32> to vector<2x8x32xf32>
    %607 = arith.addf %604, %606 : vector<2x8x32xf32>
    %608 = vector.shape_cast %607 : vector<2x8x32xf32> to vector<16x32xf32>
    %cst_140 = arith.constant dense<0.000000e+00> : vector<16x128xf32>
    %609 = tpu.matmul %608, %576, %cst_140 {dimension_numbers = #tpu.dot_dimension_numbers<[1], [0], [0], [1], [0, 0, 1, 1], [], []>} : vector<16x32xf32>, vector<32x128xf32>, vector<16x128xf32> -> vector<16x128xf32>
    %610 = vector.shape_cast %609 : vector<16x128xf32> to vector<2x8x128xf32>
    %611 = vector.extract_strided_slice %610 {offsets = [0, 0, 0], sizes = [2, 8, 64], strides = [1, 1, 1]} : vector<2x8x128xf32> to vector<2x8x64xf32>
    %612 = vector.extract_strided_slice %610 {offsets = [0, 0, 64], sizes = [2, 8, 64], strides = [1, 1, 1]} : vector<2x8x128xf32> to vector<2x8x64xf32>
    %cst_141 = arith.constant 0.000000e+00 : f32
    %613 = vector.broadcast %cst_141 : f32 to vector<2x3x64xf32>
    %614 = tpu.concatenate %613, %611 in 1 : vector<2x3x64xf32>, vector<2x8x64xf32> -> vector<2x11x64xf32>
    %615 = vector.extract_strided_slice %574 {offsets = [2, 0], sizes = [1, 64], strides = [1, 1]} : vector<16x64xf32> to vector<1x64xf32>
    %616 = vector.extract_strided_slice %614 {offsets = [0, 0, 0], sizes = [2, 8, 64], strides = [1, 1, 1]} : vector<2x11x64xf32> to vector<2x8x64xf32>
    %617 = vector.extract_strided_slice %574 {offsets = [5, 0], sizes = [1, 64], strides = [1, 1]} : vector<16x64xf32> to vector<1x64xf32>
    %618 = vector.shape_cast %617 : vector<1x64xf32> to vector<1x1x64xf32>
    %619 = vector.broadcast %618 : vector<1x1x64xf32> to vector<2x8x64xf32>
    %620 = arith.mulf %616, %619 : vector<2x8x64xf32>
    %621 = vector.shape_cast %615 : vector<1x64xf32> to vector<1x1x64xf32>
    %622 = vector.broadcast %621 : vector<1x1x64xf32> to vector<2x8x64xf32>
    %623 = arith.addf %622, %620 : vector<2x8x64xf32>
    %624 = vector.extract_strided_slice %614 {offsets = [0, 1, 0], sizes = [2, 8, 64], strides = [1, 1, 1]} : vector<2x11x64xf32> to vector<2x8x64xf32>
    %625 = vector.extract_strided_slice %574 {offsets = [6, 0], sizes = [1, 64], strides = [1, 1]} : vector<16x64xf32> to vector<1x64xf32>
    %626 = vector.shape_cast %625 : vector<1x64xf32> to vector<1x1x64xf32>
    %627 = vector.broadcast %626 : vector<1x1x64xf32> to vector<2x8x64xf32>
    %628 = arith.mulf %624, %627 : vector<2x8x64xf32>
    %629 = arith.addf %623, %628 : vector<2x8x64xf32>
    %630 = vector.extract_strided_slice %614 {offsets = [0, 2, 0], sizes = [2, 8, 64], strides = [1, 1, 1]} : vector<2x11x64xf32> to vector<2x8x64xf32>
    %631 = vector.extract_strided_slice %574 {offsets = [7, 0], sizes = [1, 64], strides = [1, 1]} : vector<16x64xf32> to vector<1x64xf32>
    %632 = vector.shape_cast %631 : vector<1x64xf32> to vector<1x1x64xf32>
    %633 = vector.broadcast %632 : vector<1x1x64xf32> to vector<2x8x64xf32>
    %634 = arith.mulf %630, %633 : vector<2x8x64xf32>
    %635 = arith.addf %629, %634 : vector<2x8x64xf32>
    %636 = vector.extract_strided_slice %614 {offsets = [0, 3, 0], sizes = [2, 8, 64], strides = [1, 1, 1]} : vector<2x11x64xf32> to vector<2x8x64xf32>
    %637 = vector.extract_strided_slice %574 {offsets = [8, 0], sizes = [1, 64], strides = [1, 1]} : vector<16x64xf32> to vector<1x64xf32>
    %638 = vector.shape_cast %637 : vector<1x64xf32> to vector<1x1x64xf32>
    %639 = vector.broadcast %638 : vector<1x1x64xf32> to vector<2x8x64xf32>
    %640 = arith.mulf %636, %639 : vector<2x8x64xf32>
    %641 = arith.addf %635, %640 : vector<2x8x64xf32>
    %cst_142 = arith.constant 0.000000e+00 : f32
    %642 = vector.broadcast %cst_142 : f32 to vector<2x8x64xf32>
    %643 = arith.subf %642, %641 : vector<2x8x64xf32>
    %644 = math.exp %643 : vector<2x8x64xf32>
    %cst_143 = arith.constant 1.000000e+00 : f32
    %645 = vector.broadcast %cst_143 : f32 to vector<2x8x64xf32>
    %646 = arith.addf %645, %644 : vector<2x8x64xf32>
    %cst_144 = arith.constant 1.000000e+00 : f32
    %647 = vector.broadcast %cst_144 : f32 to vector<2x8x64xf32>
    %648 = arith.divf %647, %646 : vector<2x8x64xf32>
    %649 = arith.mulf %641, %648 : vector<2x8x64xf32>
    %650 = vector.shape_cast %649 : vector<2x8x64xf32> to vector<16x64xf32>
    %cst_145 = arith.constant dense<0.000000e+00> : vector<16x34xf32>
    %651 = tpu.matmul %650, %578, %cst_145 {dimension_numbers = #tpu.dot_dimension_numbers<[1], [0], [0], [1], [0, 0, 1, 1], [], []>} : vector<16x64xf32>, vector<64x34xf32>, vector<16x34xf32> -> vector<16x34xf32>
    %652 = vector.extract_strided_slice %651 {offsets = [0, 2], sizes = [16, 16], strides = [1, 1]} : vector<16x34xf32> to vector<16x16xf32>
    %653 = vector.shape_cast %652 : vector<16x16xf32> to vector<2x8x16xf32>
    %654 = vector.extract_strided_slice %651 {offsets = [0, 18], sizes = [16, 16], strides = [1, 1]} : vector<16x34xf32> to vector<16x16xf32>
    %655 = vector.shape_cast %654 : vector<16x16xf32> to vector<2x8x16xf32>
    %656 = vector.extract_strided_slice %651 {offsets = [0, 0], sizes = [16, 2], strides = [1, 1]} : vector<16x34xf32> to vector<16x2xf32>
    %657 = vector.extract_strided_slice %574 {offsets = [9, 0], sizes = [2, 64], strides = [1, 1]} : vector<16x64xf32> to vector<2x64xf32>
    %cst_146 = arith.constant dense<0.000000e+00> : vector<16x64xf32>
    %658 = tpu.matmul %656, %657, %cst_146 {dimension_numbers = #tpu.dot_dimension_numbers<[1], [0], [0], [1], [0, 0, 1, 1], [], []>} : vector<16x2xf32>, vector<2x64xf32>, vector<16x64xf32> -> vector<16x64xf32>
    %659 = vector.extract_strided_slice %574 {offsets = [3, 0], sizes = [1, 64], strides = [1, 1]} : vector<16x64xf32> to vector<1x64xf32>
    %660 = vector.broadcast %659 : vector<1x64xf32> to vector<16x64xf32>
    %661 = arith.addf %658, %660 : vector<16x64xf32>
    %cst_147 = arith.constant 2.000000e+01 : f32
    %662 = vector.broadcast %cst_147 : f32 to vector<16x64xf32>
    %663 = arith.cmpf ogt, %661, %662 : vector<16x64xf32>
    %cst_148 = arith.constant 2.000000e+01 : f32
    %664 = vector.broadcast %cst_148 : f32 to vector<16x64xf32>
    %665 = arith.minimumf %661, %664 : vector<16x64xf32>
    %666 = math.exp %665 : vector<16x64xf32>
    %667 = math.log1p %666 : vector<16x64xf32>
    %668 = arith.select %663, %661, %667 : vector<16x64xi1>, vector<16x64xf32>
    %669 = vector.shape_cast %668 : vector<16x64xf32> to vector<2x8x64xf32>
    %670 = math.exp %580 : vector<16x64xf32>
    %cst_149 = arith.constant 0.000000e+00 : f32
    %671 = vector.broadcast %cst_149 : f32 to vector<16x64xf32>
    %672 = arith.subf %671, %670 : vector<16x64xf32>
    %673 = vector.shape_cast %669 : vector<2x8x64xf32> to vector<2x8x1x64xf32>
    %674 = vector.shape_cast %672 : vector<16x64xf32> to vector<1x1x16x64xf32>
    %675 = vector.broadcast %673 : vector<2x8x1x64xf32> to vector<2x8x16x64xf32>
    %676 = vector.broadcast %674 : vector<1x1x16x64xf32> to vector<2x8x16x64xf32>
    %677 = arith.mulf %675, %676 : vector<2x8x16x64xf32>
    %678 = math.exp %677 : vector<2x8x16x64xf32>
    %679 = arith.mulf %669, %649 : vector<2x8x64xf32>
    %680 = vector.shape_cast %679 : vector<2x8x64xf32> to vector<2x8x1x64xf32>
    %681 = vector.shape_cast %653 : vector<2x8x16xf32> to vector<2x8x16x1xf32>
    %682 = vector.broadcast %680 : vector<2x8x1x64xf32> to vector<2x8x16x64xf32>
    %683 = vector.broadcast %681 : vector<2x8x16x1xf32> to vector<2x8x16x64xf32>
    %684 = arith.mulf %682, %683 : vector<2x8x16x64xf32>
    %cst_150 = arith.constant 0.000000e+00 : f32
    %685 = vector.broadcast %cst_150 : f32 to vector<2x16x64xf32>
    %686 = vector.extract_strided_slice %678 {offsets = [0, 0, 0, 0], sizes = [2, 1, 16, 64], strides = [1, 1, 1, 1]} : vector<2x8x16x64xf32> to vector<2x1x16x64xf32>
    %687 = vector.shape_cast %686 : vector<2x1x16x64xf32> to vector<2x16x64xf32>
    %688 = arith.mulf %687, %685 : vector<2x16x64xf32>
    %689 = vector.extract_strided_slice %684 {offsets = [0, 0, 0, 0], sizes = [2, 1, 16, 64], strides = [1, 1, 1, 1]} : vector<2x8x16x64xf32> to vector<2x1x16x64xf32>
    %690 = vector.shape_cast %689 : vector<2x1x16x64xf32> to vector<2x16x64xf32>
    %691 = arith.addf %688, %690 : vector<2x16x64xf32>
    %692 = vector.extract_strided_slice %655 {offsets = [0, 0, 0], sizes = [2, 1, 16], strides = [1, 1, 1]} : vector<2x8x16xf32> to vector<2x1x16xf32>
    %693 = vector.shape_cast %692 : vector<2x1x16xf32> to vector<2x16xf32>
    %694 = vector.shape_cast %693 : vector<2x16xf32> to vector<2x16x1xf32>
    %695 = vector.broadcast %694 : vector<2x16x1xf32> to vector<2x16x64xf32>
    %696 = arith.mulf %691, %695 : vector<2x16x64xf32>
    %cst_151 = arith.constant dense<0.000000e+00> : vector<2x64xf32>
    %697 = vector.multi_reduction <add>, %696, %cst_151 [1] : vector<2x16x64xf32> to vector<2x64xf32>
    %698 = vector.extract_strided_slice %678 {offsets = [0, 1, 0, 0], sizes = [2, 1, 16, 64], strides = [1, 1, 1, 1]} : vector<2x8x16x64xf32> to vector<2x1x16x64xf32>
    %699 = vector.shape_cast %698 : vector<2x1x16x64xf32> to vector<2x16x64xf32>
    %700 = arith.mulf %699, %691 : vector<2x16x64xf32>
    %701 = vector.extract_strided_slice %684 {offsets = [0, 1, 0, 0], sizes = [2, 1, 16, 64], strides = [1, 1, 1, 1]} : vector<2x8x16x64xf32> to vector<2x1x16x64xf32>
    %702 = vector.shape_cast %701 : vector<2x1x16x64xf32> to vector<2x16x64xf32>
    %703 = arith.addf %700, %702 : vector<2x16x64xf32>
    %704 = vector.extract_strided_slice %655 {offsets = [0, 1, 0], sizes = [2, 1, 16], strides = [1, 1, 1]} : vector<2x8x16xf32> to vector<2x1x16xf32>
    %705 = vector.shape_cast %704 : vector<2x1x16xf32> to vector<2x16xf32>
    %706 = vector.shape_cast %705 : vector<2x16xf32> to vector<2x16x1xf32>
    %707 = vector.broadcast %706 : vector<2x16x1xf32> to vector<2x16x64xf32>
    %708 = arith.mulf %703, %707 : vector<2x16x64xf32>
    %cst_152 = arith.constant dense<0.000000e+00> : vector<2x64xf32>
    %709 = vector.multi_reduction <add>, %708, %cst_152 [1] : vector<2x16x64xf32> to vector<2x64xf32>
    %710 = vector.extract_strided_slice %678 {offsets = [0, 2, 0, 0], sizes = [2, 1, 16, 64], strides = [1, 1, 1, 1]} : vector<2x8x16x64xf32> to vector<2x1x16x64xf32>
    %711 = vector.shape_cast %710 : vector<2x1x16x64xf32> to vector<2x16x64xf32>
    %712 = arith.mulf %711, %703 : vector<2x16x64xf32>
    %713 = vector.extract_strided_slice %684 {offsets = [0, 2, 0, 0], sizes = [2, 1, 16, 64], strides = [1, 1, 1, 1]} : vector<2x8x16x64xf32> to vector<2x1x16x64xf32>
    %714 = vector.shape_cast %713 : vector<2x1x16x64xf32> to vector<2x16x64xf32>
    %715 = arith.addf %712, %714 : vector<2x16x64xf32>
    %716 = vector.extract_strided_slice %655 {offsets = [0, 2, 0], sizes = [2, 1, 16], strides = [1, 1, 1]} : vector<2x8x16xf32> to vector<2x1x16xf32>
    %717 = vector.shape_cast %716 : vector<2x1x16xf32> to vector<2x16xf32>
    %718 = vector.shape_cast %717 : vector<2x16xf32> to vector<2x16x1xf32>
    %719 = vector.broadcast %718 : vector<2x16x1xf32> to vector<2x16x64xf32>
    %720 = arith.mulf %715, %719 : vector<2x16x64xf32>
    %cst_153 = arith.constant dense<0.000000e+00> : vector<2x64xf32>
    %721 = vector.multi_reduction <add>, %720, %cst_153 [1] : vector<2x16x64xf32> to vector<2x64xf32>
    %722 = vector.extract_strided_slice %678 {offsets = [0, 3, 0, 0], sizes = [2, 1, 16, 64], strides = [1, 1, 1, 1]} : vector<2x8x16x64xf32> to vector<2x1x16x64xf32>
    %723 = vector.shape_cast %722 : vector<2x1x16x64xf32> to vector<2x16x64xf32>
    %724 = arith.mulf %723, %715 : vector<2x16x64xf32>
    %725 = vector.extract_strided_slice %684 {offsets = [0, 3, 0, 0], sizes = [2, 1, 16, 64], strides = [1, 1, 1, 1]} : vector<2x8x16x64xf32> to vector<2x1x16x64xf32>
    %726 = vector.shape_cast %725 : vector<2x1x16x64xf32> to vector<2x16x64xf32>
    %727 = arith.addf %724, %726 : vector<2x16x64xf32>
    %728 = vector.extract_strided_slice %655 {offsets = [0, 3, 0], sizes = [2, 1, 16], strides = [1, 1, 1]} : vector<2x8x16xf32> to vector<2x1x16xf32>
    %729 = vector.shape_cast %728 : vector<2x1x16xf32> to vector<2x16xf32>
    %730 = vector.shape_cast %729 : vector<2x16xf32> to vector<2x16x1xf32>
    %731 = vector.broadcast %730 : vector<2x16x1xf32> to vector<2x16x64xf32>
    %732 = arith.mulf %727, %731 : vector<2x16x64xf32>
    %cst_154 = arith.constant dense<0.000000e+00> : vector<2x64xf32>
    %733 = vector.multi_reduction <add>, %732, %cst_154 [1] : vector<2x16x64xf32> to vector<2x64xf32>
    %734 = vector.extract_strided_slice %678 {offsets = [0, 4, 0, 0], sizes = [2, 1, 16, 64], strides = [1, 1, 1, 1]} : vector<2x8x16x64xf32> to vector<2x1x16x64xf32>
    %735 = vector.shape_cast %734 : vector<2x1x16x64xf32> to vector<2x16x64xf32>
    %736 = arith.mulf %735, %727 : vector<2x16x64xf32>
    %737 = vector.extract_strided_slice %684 {offsets = [0, 4, 0, 0], sizes = [2, 1, 16, 64], strides = [1, 1, 1, 1]} : vector<2x8x16x64xf32> to vector<2x1x16x64xf32>
    %738 = vector.shape_cast %737 : vector<2x1x16x64xf32> to vector<2x16x64xf32>
    %739 = arith.addf %736, %738 : vector<2x16x64xf32>
    %740 = vector.extract_strided_slice %655 {offsets = [0, 4, 0], sizes = [2, 1, 16], strides = [1, 1, 1]} : vector<2x8x16xf32> to vector<2x1x16xf32>
    %741 = vector.shape_cast %740 : vector<2x1x16xf32> to vector<2x16xf32>
    %742 = vector.shape_cast %741 : vector<2x16xf32> to vector<2x16x1xf32>
    %743 = vector.broadcast %742 : vector<2x16x1xf32> to vector<2x16x64xf32>
    %744 = arith.mulf %739, %743 : vector<2x16x64xf32>
    %cst_155 = arith.constant dense<0.000000e+00> : vector<2x64xf32>
    %745 = vector.multi_reduction <add>, %744, %cst_155 [1] : vector<2x16x64xf32> to vector<2x64xf32>
    %746 = vector.extract_strided_slice %678 {offsets = [0, 5, 0, 0], sizes = [2, 1, 16, 64], strides = [1, 1, 1, 1]} : vector<2x8x16x64xf32> to vector<2x1x16x64xf32>
    %747 = vector.shape_cast %746 : vector<2x1x16x64xf32> to vector<2x16x64xf32>
    %748 = arith.mulf %747, %739 : vector<2x16x64xf32>
    %749 = vector.extract_strided_slice %684 {offsets = [0, 5, 0, 0], sizes = [2, 1, 16, 64], strides = [1, 1, 1, 1]} : vector<2x8x16x64xf32> to vector<2x1x16x64xf32>
    %750 = vector.shape_cast %749 : vector<2x1x16x64xf32> to vector<2x16x64xf32>
    %751 = arith.addf %748, %750 : vector<2x16x64xf32>
    %752 = vector.extract_strided_slice %655 {offsets = [0, 5, 0], sizes = [2, 1, 16], strides = [1, 1, 1]} : vector<2x8x16xf32> to vector<2x1x16xf32>
    %753 = vector.shape_cast %752 : vector<2x1x16xf32> to vector<2x16xf32>
    %754 = vector.shape_cast %753 : vector<2x16xf32> to vector<2x16x1xf32>
    %755 = vector.broadcast %754 : vector<2x16x1xf32> to vector<2x16x64xf32>
    %756 = arith.mulf %751, %755 : vector<2x16x64xf32>
    %cst_156 = arith.constant dense<0.000000e+00> : vector<2x64xf32>
    %757 = vector.multi_reduction <add>, %756, %cst_156 [1] : vector<2x16x64xf32> to vector<2x64xf32>
    %758 = vector.extract_strided_slice %678 {offsets = [0, 6, 0, 0], sizes = [2, 1, 16, 64], strides = [1, 1, 1, 1]} : vector<2x8x16x64xf32> to vector<2x1x16x64xf32>
    %759 = vector.shape_cast %758 : vector<2x1x16x64xf32> to vector<2x16x64xf32>
    %760 = arith.mulf %759, %751 : vector<2x16x64xf32>
    %761 = vector.extract_strided_slice %684 {offsets = [0, 6, 0, 0], sizes = [2, 1, 16, 64], strides = [1, 1, 1, 1]} : vector<2x8x16x64xf32> to vector<2x1x16x64xf32>
    %762 = vector.shape_cast %761 : vector<2x1x16x64xf32> to vector<2x16x64xf32>
    %763 = arith.addf %760, %762 : vector<2x16x64xf32>
    %764 = vector.extract_strided_slice %655 {offsets = [0, 6, 0], sizes = [2, 1, 16], strides = [1, 1, 1]} : vector<2x8x16xf32> to vector<2x1x16xf32>
    %765 = vector.shape_cast %764 : vector<2x1x16xf32> to vector<2x16xf32>
    %766 = vector.shape_cast %765 : vector<2x16xf32> to vector<2x16x1xf32>
    %767 = vector.broadcast %766 : vector<2x16x1xf32> to vector<2x16x64xf32>
    %768 = arith.mulf %763, %767 : vector<2x16x64xf32>
    %cst_157 = arith.constant dense<0.000000e+00> : vector<2x64xf32>
    %769 = vector.multi_reduction <add>, %768, %cst_157 [1] : vector<2x16x64xf32> to vector<2x64xf32>
    %770 = vector.extract_strided_slice %678 {offsets = [0, 7, 0, 0], sizes = [2, 1, 16, 64], strides = [1, 1, 1, 1]} : vector<2x8x16x64xf32> to vector<2x1x16x64xf32>
    %771 = vector.shape_cast %770 : vector<2x1x16x64xf32> to vector<2x16x64xf32>
    %772 = arith.mulf %771, %763 : vector<2x16x64xf32>
    %773 = vector.extract_strided_slice %684 {offsets = [0, 7, 0, 0], sizes = [2, 1, 16, 64], strides = [1, 1, 1, 1]} : vector<2x8x16x64xf32> to vector<2x1x16x64xf32>
    %774 = vector.shape_cast %773 : vector<2x1x16x64xf32> to vector<2x16x64xf32>
    %775 = arith.addf %772, %774 : vector<2x16x64xf32>
    %776 = vector.extract_strided_slice %655 {offsets = [0, 7, 0], sizes = [2, 1, 16], strides = [1, 1, 1]} : vector<2x8x16xf32> to vector<2x1x16xf32>
    %777 = vector.shape_cast %776 : vector<2x1x16xf32> to vector<2x16xf32>
    %778 = vector.shape_cast %777 : vector<2x16xf32> to vector<2x16x1xf32>
    %779 = vector.broadcast %778 : vector<2x16x1xf32> to vector<2x16x64xf32>
    %780 = arith.mulf %775, %779 : vector<2x16x64xf32>
    %cst_158 = arith.constant dense<0.000000e+00> : vector<2x64xf32>
    %781 = vector.multi_reduction <add>, %780, %cst_158 [1] : vector<2x16x64xf32> to vector<2x64xf32>
    %782 = vector.shape_cast %697 : vector<2x64xf32> to vector<2x1x64xf32>
    %783 = vector.shape_cast %709 : vector<2x64xf32> to vector<2x1x64xf32>
    %784 = vector.shape_cast %721 : vector<2x64xf32> to vector<2x1x64xf32>
    %785 = vector.shape_cast %733 : vector<2x64xf32> to vector<2x1x64xf32>
    %786 = vector.shape_cast %745 : vector<2x64xf32> to vector<2x1x64xf32>
    %787 = vector.shape_cast %757 : vector<2x64xf32> to vector<2x1x64xf32>
    %788 = vector.shape_cast %769 : vector<2x64xf32> to vector<2x1x64xf32>
    %789 = vector.shape_cast %781 : vector<2x64xf32> to vector<2x1x64xf32>
    %790 = tpu.concatenate %782, %783, %784, %785, %786, %787, %788, %789 in 1 : vector<2x1x64xf32>, vector<2x1x64xf32>, vector<2x1x64xf32>, vector<2x1x64xf32>, vector<2x1x64xf32>, vector<2x1x64xf32>, vector<2x1x64xf32>, vector<2x1x64xf32> -> vector<2x8x64xf32>
    %791 = vector.extract_strided_slice %574 {offsets = [4, 0], sizes = [1, 64], strides = [1, 1]} : vector<16x64xf32> to vector<1x64xf32>
    %792 = vector.shape_cast %791 : vector<1x64xf32> to vector<1x1x64xf32>
    %793 = vector.broadcast %792 : vector<1x1x64xf32> to vector<2x8x64xf32>
    %794 = arith.mulf %793, %649 : vector<2x8x64xf32>
    %795 = arith.addf %790, %794 : vector<2x8x64xf32>
    %cst_159 = arith.constant 0.000000e+00 : f32
    %796 = vector.broadcast %cst_159 : f32 to vector<2x8x64xf32>
    %797 = arith.subf %796, %612 : vector<2x8x64xf32>
    %798 = math.exp %797 : vector<2x8x64xf32>
    %cst_160 = arith.constant 1.000000e+00 : f32
    %799 = vector.broadcast %cst_160 : f32 to vector<2x8x64xf32>
    %800 = arith.addf %799, %798 : vector<2x8x64xf32>
    %cst_161 = arith.constant 1.000000e+00 : f32
    %801 = vector.broadcast %cst_161 : f32 to vector<2x8x64xf32>
    %802 = arith.divf %801, %800 : vector<2x8x64xf32>
    %803 = arith.mulf %612, %802 : vector<2x8x64xf32>
    %804 = arith.mulf %795, %803 : vector<2x8x64xf32>
    %805 = vector.shape_cast %804 : vector<2x8x64xf32> to vector<16x64xf32>
    %cst_162 = arith.constant dense<0.000000e+00> : vector<16x32xf32>
    %806 = tpu.matmul %805, %582, %cst_162 {dimension_numbers = #tpu.dot_dimension_numbers<[1], [0], [0], [1], [0, 0, 1, 1], [], []>} : vector<16x64xf32>, vector<64x32xf32>, vector<16x32xf32> -> vector<16x32xf32>
    %807 = vector.shape_cast %806 : vector<16x32xf32> to vector<2x8x32xf32>
    %c3 = arith.constant 3 : index
    %c0_163 = arith.constant 0 : index
    %c0_164 = arith.constant 0 : index
    %808 = vector.load %arg4[%c3, %c0_163, %c0_164] : memref<4x16x64xf32, #tpu.memory_space<vmem>>, vector<1x16x64xf32>
    %809 = vector.shape_cast %808 : vector<1x16x64xf32> to vector<16x64xf32>
    %c3_165 = arith.constant 3 : index
    %c0_166 = arith.constant 0 : index
    %c0_167 = arith.constant 0 : index
    %810 = vector.load %arg5[%c3_165, %c0_166, %c0_167] : memref<4x32x128xf32, #tpu.memory_space<vmem>>, vector<1x32x128xf32>
    %811 = vector.shape_cast %810 : vector<1x32x128xf32> to vector<32x128xf32>
    %c3_168 = arith.constant 3 : index
    %c0_169 = arith.constant 0 : index
    %c0_170 = arith.constant 0 : index
    %812 = vector.load %arg6[%c3_168, %c0_169, %c0_170] : memref<4x64x34xf32, #tpu.memory_space<vmem>>, vector<1x64x34xf32>
    %813 = vector.shape_cast %812 : vector<1x64x34xf32> to vector<64x34xf32>
    %c3_171 = arith.constant 3 : index
    %c0_172 = arith.constant 0 : index
    %c0_173 = arith.constant 0 : index
    %814 = vector.load %arg7[%c3_171, %c0_172, %c0_173] : memref<4x16x64xf32, #tpu.memory_space<vmem>>, vector<1x16x64xf32>
    %815 = vector.shape_cast %814 : vector<1x16x64xf32> to vector<16x64xf32>
    %c3_174 = arith.constant 3 : index
    %c0_175 = arith.constant 0 : index
    %c0_176 = arith.constant 0 : index
    %816 = vector.load %arg8[%c3_174, %c0_175, %c0_176] : memref<4x64x32xf32, #tpu.memory_space<vmem>>, vector<1x64x32xf32>
    %817 = vector.shape_cast %816 : vector<1x64x32xf32> to vector<64x32xf32>
    %818 = arith.addf %571, %572 : vector<2x8x32xf32>
    %819 = vector.extract_strided_slice %809 {offsets = [0, 0], sizes = [1, 32], strides = [1, 1]} : vector<16x64xf32> to vector<1x32xf32>
    %820 = vector.extract_strided_slice %809 {offsets = [1, 0], sizes = [1, 32], strides = [1, 1]} : vector<16x64xf32> to vector<1x32xf32>
    %cst_177 = arith.constant dense<0.000000e+00> : vector<2x8xf32>
    %821 = vector.multi_reduction <add>, %818, %cst_177 [2] : vector<2x8x32xf32> to vector<2x8xf32>
    %822 = vector.shape_cast %821 : vector<2x8xf32> to vector<2x8x1xf32>
    %cst_178 = arith.constant 3.200000e+01 : f32
    %823 = vector.broadcast %cst_178 : f32 to vector<2x8x1xf32>
    %824 = arith.divf %822, %823 : vector<2x8x1xf32>
    %825 = vector.broadcast %824 : vector<2x8x1xf32> to vector<2x8x32xf32>
    %826 = arith.subf %818, %825 : vector<2x8x32xf32>
    %827 = arith.mulf %826, %826 : vector<2x8x32xf32>
    %cst_179 = arith.constant dense<0.000000e+00> : vector<2x8xf32>
    %828 = vector.multi_reduction <add>, %827, %cst_179 [2] : vector<2x8x32xf32> to vector<2x8xf32>
    %829 = vector.shape_cast %828 : vector<2x8xf32> to vector<2x8x1xf32>
    %cst_180 = arith.constant 3.200000e+01 : f32
    %830 = vector.broadcast %cst_180 : f32 to vector<2x8x1xf32>
    %831 = arith.divf %829, %830 : vector<2x8x1xf32>
    %cst_181 = arith.constant 9.99999974E-6 : f32
    %832 = vector.broadcast %cst_181 : f32 to vector<2x8x1xf32>
    %833 = arith.addf %831, %832 : vector<2x8x1xf32>
    %834 = math.rsqrt %833 : vector<2x8x1xf32>
    %835 = vector.broadcast %834 : vector<2x8x1xf32> to vector<2x8x32xf32>
    %836 = arith.mulf %826, %835 : vector<2x8x32xf32>
    %837 = vector.shape_cast %819 : vector<1x32xf32> to vector<1x1x32xf32>
    %838 = vector.broadcast %837 : vector<1x1x32xf32> to vector<2x8x32xf32>
    %839 = arith.mulf %836, %838 : vector<2x8x32xf32>
    %840 = vector.shape_cast %820 : vector<1x32xf32> to vector<1x1x32xf32>
    %841 = vector.broadcast %840 : vector<1x1x32xf32> to vector<2x8x32xf32>
    %842 = arith.addf %839, %841 : vector<2x8x32xf32>
    %843 = vector.shape_cast %842 : vector<2x8x32xf32> to vector<16x32xf32>
    %cst_182 = arith.constant dense<0.000000e+00> : vector<16x128xf32>
    %844 = tpu.matmul %843, %811, %cst_182 {dimension_numbers = #tpu.dot_dimension_numbers<[1], [0], [0], [1], [0, 0, 1, 1], [], []>} : vector<16x32xf32>, vector<32x128xf32>, vector<16x128xf32> -> vector<16x128xf32>
    %845 = vector.shape_cast %844 : vector<16x128xf32> to vector<2x8x128xf32>
    %846 = vector.extract_strided_slice %845 {offsets = [0, 0, 0], sizes = [2, 8, 64], strides = [1, 1, 1]} : vector<2x8x128xf32> to vector<2x8x64xf32>
    %847 = vector.extract_strided_slice %845 {offsets = [0, 0, 64], sizes = [2, 8, 64], strides = [1, 1, 1]} : vector<2x8x128xf32> to vector<2x8x64xf32>
    %cst_183 = arith.constant 0.000000e+00 : f32
    %848 = vector.broadcast %cst_183 : f32 to vector<2x3x64xf32>
    %849 = tpu.concatenate %848, %846 in 1 : vector<2x3x64xf32>, vector<2x8x64xf32> -> vector<2x11x64xf32>
    %850 = vector.extract_strided_slice %809 {offsets = [2, 0], sizes = [1, 64], strides = [1, 1]} : vector<16x64xf32> to vector<1x64xf32>
    %851 = vector.extract_strided_slice %849 {offsets = [0, 0, 0], sizes = [2, 8, 64], strides = [1, 1, 1]} : vector<2x11x64xf32> to vector<2x8x64xf32>
    %852 = vector.extract_strided_slice %809 {offsets = [5, 0], sizes = [1, 64], strides = [1, 1]} : vector<16x64xf32> to vector<1x64xf32>
    %853 = vector.shape_cast %852 : vector<1x64xf32> to vector<1x1x64xf32>
    %854 = vector.broadcast %853 : vector<1x1x64xf32> to vector<2x8x64xf32>
    %855 = arith.mulf %851, %854 : vector<2x8x64xf32>
    %856 = vector.shape_cast %850 : vector<1x64xf32> to vector<1x1x64xf32>
    %857 = vector.broadcast %856 : vector<1x1x64xf32> to vector<2x8x64xf32>
    %858 = arith.addf %857, %855 : vector<2x8x64xf32>
    %859 = vector.extract_strided_slice %849 {offsets = [0, 1, 0], sizes = [2, 8, 64], strides = [1, 1, 1]} : vector<2x11x64xf32> to vector<2x8x64xf32>
    %860 = vector.extract_strided_slice %809 {offsets = [6, 0], sizes = [1, 64], strides = [1, 1]} : vector<16x64xf32> to vector<1x64xf32>
    %861 = vector.shape_cast %860 : vector<1x64xf32> to vector<1x1x64xf32>
    %862 = vector.broadcast %861 : vector<1x1x64xf32> to vector<2x8x64xf32>
    %863 = arith.mulf %859, %862 : vector<2x8x64xf32>
    %864 = arith.addf %858, %863 : vector<2x8x64xf32>
    %865 = vector.extract_strided_slice %849 {offsets = [0, 2, 0], sizes = [2, 8, 64], strides = [1, 1, 1]} : vector<2x11x64xf32> to vector<2x8x64xf32>
    %866 = vector.extract_strided_slice %809 {offsets = [7, 0], sizes = [1, 64], strides = [1, 1]} : vector<16x64xf32> to vector<1x64xf32>
    %867 = vector.shape_cast %866 : vector<1x64xf32> to vector<1x1x64xf32>
    %868 = vector.broadcast %867 : vector<1x1x64xf32> to vector<2x8x64xf32>
    %869 = arith.mulf %865, %868 : vector<2x8x64xf32>
    %870 = arith.addf %864, %869 : vector<2x8x64xf32>
    %871 = vector.extract_strided_slice %849 {offsets = [0, 3, 0], sizes = [2, 8, 64], strides = [1, 1, 1]} : vector<2x11x64xf32> to vector<2x8x64xf32>
    %872 = vector.extract_strided_slice %809 {offsets = [8, 0], sizes = [1, 64], strides = [1, 1]} : vector<16x64xf32> to vector<1x64xf32>
    %873 = vector.shape_cast %872 : vector<1x64xf32> to vector<1x1x64xf32>
    %874 = vector.broadcast %873 : vector<1x1x64xf32> to vector<2x8x64xf32>
    %875 = arith.mulf %871, %874 : vector<2x8x64xf32>
    %876 = arith.addf %870, %875 : vector<2x8x64xf32>
    %cst_184 = arith.constant 0.000000e+00 : f32
    %877 = vector.broadcast %cst_184 : f32 to vector<2x8x64xf32>
    %878 = arith.subf %877, %876 : vector<2x8x64xf32>
    %879 = math.exp %878 : vector<2x8x64xf32>
    %cst_185 = arith.constant 1.000000e+00 : f32
    %880 = vector.broadcast %cst_185 : f32 to vector<2x8x64xf32>
    %881 = arith.addf %880, %879 : vector<2x8x64xf32>
    %cst_186 = arith.constant 1.000000e+00 : f32
    %882 = vector.broadcast %cst_186 : f32 to vector<2x8x64xf32>
    %883 = arith.divf %882, %881 : vector<2x8x64xf32>
    %884 = arith.mulf %876, %883 : vector<2x8x64xf32>
    %885 = vector.shape_cast %884 : vector<2x8x64xf32> to vector<16x64xf32>
    %cst_187 = arith.constant dense<0.000000e+00> : vector<16x34xf32>
    %886 = tpu.matmul %885, %813, %cst_187 {dimension_numbers = #tpu.dot_dimension_numbers<[1], [0], [0], [1], [0, 0, 1, 1], [], []>} : vector<16x64xf32>, vector<64x34xf32>, vector<16x34xf32> -> vector<16x34xf32>
    %887 = vector.extract_strided_slice %886 {offsets = [0, 2], sizes = [16, 16], strides = [1, 1]} : vector<16x34xf32> to vector<16x16xf32>
    %888 = vector.shape_cast %887 : vector<16x16xf32> to vector<2x8x16xf32>
    %889 = vector.extract_strided_slice %886 {offsets = [0, 18], sizes = [16, 16], strides = [1, 1]} : vector<16x34xf32> to vector<16x16xf32>
    %890 = vector.shape_cast %889 : vector<16x16xf32> to vector<2x8x16xf32>
    %891 = vector.extract_strided_slice %886 {offsets = [0, 0], sizes = [16, 2], strides = [1, 1]} : vector<16x34xf32> to vector<16x2xf32>
    %892 = vector.extract_strided_slice %809 {offsets = [9, 0], sizes = [2, 64], strides = [1, 1]} : vector<16x64xf32> to vector<2x64xf32>
    %cst_188 = arith.constant dense<0.000000e+00> : vector<16x64xf32>
    %893 = tpu.matmul %891, %892, %cst_188 {dimension_numbers = #tpu.dot_dimension_numbers<[1], [0], [0], [1], [0, 0, 1, 1], [], []>} : vector<16x2xf32>, vector<2x64xf32>, vector<16x64xf32> -> vector<16x64xf32>
    %894 = vector.extract_strided_slice %809 {offsets = [3, 0], sizes = [1, 64], strides = [1, 1]} : vector<16x64xf32> to vector<1x64xf32>
    %895 = vector.broadcast %894 : vector<1x64xf32> to vector<16x64xf32>
    %896 = arith.addf %893, %895 : vector<16x64xf32>
    %cst_189 = arith.constant 2.000000e+01 : f32
    %897 = vector.broadcast %cst_189 : f32 to vector<16x64xf32>
    %898 = arith.cmpf ogt, %896, %897 : vector<16x64xf32>
    %cst_190 = arith.constant 2.000000e+01 : f32
    %899 = vector.broadcast %cst_190 : f32 to vector<16x64xf32>
    %900 = arith.minimumf %896, %899 : vector<16x64xf32>
    %901 = math.exp %900 : vector<16x64xf32>
    %902 = math.log1p %901 : vector<16x64xf32>
    %903 = arith.select %898, %896, %902 : vector<16x64xi1>, vector<16x64xf32>
    %904 = vector.shape_cast %903 : vector<16x64xf32> to vector<2x8x64xf32>
    %905 = math.exp %815 : vector<16x64xf32>
    %cst_191 = arith.constant 0.000000e+00 : f32
    %906 = vector.broadcast %cst_191 : f32 to vector<16x64xf32>
    %907 = arith.subf %906, %905 : vector<16x64xf32>
    %908 = vector.shape_cast %904 : vector<2x8x64xf32> to vector<2x8x1x64xf32>
    %909 = vector.shape_cast %907 : vector<16x64xf32> to vector<1x1x16x64xf32>
    %910 = vector.broadcast %908 : vector<2x8x1x64xf32> to vector<2x8x16x64xf32>
    %911 = vector.broadcast %909 : vector<1x1x16x64xf32> to vector<2x8x16x64xf32>
    %912 = arith.mulf %910, %911 : vector<2x8x16x64xf32>
    %913 = math.exp %912 : vector<2x8x16x64xf32>
    %914 = arith.mulf %904, %884 : vector<2x8x64xf32>
    %915 = vector.shape_cast %914 : vector<2x8x64xf32> to vector<2x8x1x64xf32>
    %916 = vector.shape_cast %888 : vector<2x8x16xf32> to vector<2x8x16x1xf32>
    %917 = vector.broadcast %915 : vector<2x8x1x64xf32> to vector<2x8x16x64xf32>
    %918 = vector.broadcast %916 : vector<2x8x16x1xf32> to vector<2x8x16x64xf32>
    %919 = arith.mulf %917, %918 : vector<2x8x16x64xf32>
    %cst_192 = arith.constant 0.000000e+00 : f32
    %920 = vector.broadcast %cst_192 : f32 to vector<2x16x64xf32>
    %921 = vector.extract_strided_slice %913 {offsets = [0, 0, 0, 0], sizes = [2, 1, 16, 64], strides = [1, 1, 1, 1]} : vector<2x8x16x64xf32> to vector<2x1x16x64xf32>
    %922 = vector.shape_cast %921 : vector<2x1x16x64xf32> to vector<2x16x64xf32>
    %923 = arith.mulf %922, %920 : vector<2x16x64xf32>
    %924 = vector.extract_strided_slice %919 {offsets = [0, 0, 0, 0], sizes = [2, 1, 16, 64], strides = [1, 1, 1, 1]} : vector<2x8x16x64xf32> to vector<2x1x16x64xf32>
    %925 = vector.shape_cast %924 : vector<2x1x16x64xf32> to vector<2x16x64xf32>
    %926 = arith.addf %923, %925 : vector<2x16x64xf32>
    %927 = vector.extract_strided_slice %890 {offsets = [0, 0, 0], sizes = [2, 1, 16], strides = [1, 1, 1]} : vector<2x8x16xf32> to vector<2x1x16xf32>
    %928 = vector.shape_cast %927 : vector<2x1x16xf32> to vector<2x16xf32>
    %929 = vector.shape_cast %928 : vector<2x16xf32> to vector<2x16x1xf32>
    %930 = vector.broadcast %929 : vector<2x16x1xf32> to vector<2x16x64xf32>
    %931 = arith.mulf %926, %930 : vector<2x16x64xf32>
    %cst_193 = arith.constant dense<0.000000e+00> : vector<2x64xf32>
    %932 = vector.multi_reduction <add>, %931, %cst_193 [1] : vector<2x16x64xf32> to vector<2x64xf32>
    %933 = vector.extract_strided_slice %913 {offsets = [0, 1, 0, 0], sizes = [2, 1, 16, 64], strides = [1, 1, 1, 1]} : vector<2x8x16x64xf32> to vector<2x1x16x64xf32>
    %934 = vector.shape_cast %933 : vector<2x1x16x64xf32> to vector<2x16x64xf32>
    %935 = arith.mulf %934, %926 : vector<2x16x64xf32>
    %936 = vector.extract_strided_slice %919 {offsets = [0, 1, 0, 0], sizes = [2, 1, 16, 64], strides = [1, 1, 1, 1]} : vector<2x8x16x64xf32> to vector<2x1x16x64xf32>
    %937 = vector.shape_cast %936 : vector<2x1x16x64xf32> to vector<2x16x64xf32>
    %938 = arith.addf %935, %937 : vector<2x16x64xf32>
    %939 = vector.extract_strided_slice %890 {offsets = [0, 1, 0], sizes = [2, 1, 16], strides = [1, 1, 1]} : vector<2x8x16xf32> to vector<2x1x16xf32>
    %940 = vector.shape_cast %939 : vector<2x1x16xf32> to vector<2x16xf32>
    %941 = vector.shape_cast %940 : vector<2x16xf32> to vector<2x16x1xf32>
    %942 = vector.broadcast %941 : vector<2x16x1xf32> to vector<2x16x64xf32>
    %943 = arith.mulf %938, %942 : vector<2x16x64xf32>
    %cst_194 = arith.constant dense<0.000000e+00> : vector<2x64xf32>
    %944 = vector.multi_reduction <add>, %943, %cst_194 [1] : vector<2x16x64xf32> to vector<2x64xf32>
    %945 = vector.extract_strided_slice %913 {offsets = [0, 2, 0, 0], sizes = [2, 1, 16, 64], strides = [1, 1, 1, 1]} : vector<2x8x16x64xf32> to vector<2x1x16x64xf32>
    %946 = vector.shape_cast %945 : vector<2x1x16x64xf32> to vector<2x16x64xf32>
    %947 = arith.mulf %946, %938 : vector<2x16x64xf32>
    %948 = vector.extract_strided_slice %919 {offsets = [0, 2, 0, 0], sizes = [2, 1, 16, 64], strides = [1, 1, 1, 1]} : vector<2x8x16x64xf32> to vector<2x1x16x64xf32>
    %949 = vector.shape_cast %948 : vector<2x1x16x64xf32> to vector<2x16x64xf32>
    %950 = arith.addf %947, %949 : vector<2x16x64xf32>
    %951 = vector.extract_strided_slice %890 {offsets = [0, 2, 0], sizes = [2, 1, 16], strides = [1, 1, 1]} : vector<2x8x16xf32> to vector<2x1x16xf32>
    %952 = vector.shape_cast %951 : vector<2x1x16xf32> to vector<2x16xf32>
    %953 = vector.shape_cast %952 : vector<2x16xf32> to vector<2x16x1xf32>
    %954 = vector.broadcast %953 : vector<2x16x1xf32> to vector<2x16x64xf32>
    %955 = arith.mulf %950, %954 : vector<2x16x64xf32>
    %cst_195 = arith.constant dense<0.000000e+00> : vector<2x64xf32>
    %956 = vector.multi_reduction <add>, %955, %cst_195 [1] : vector<2x16x64xf32> to vector<2x64xf32>
    %957 = vector.extract_strided_slice %913 {offsets = [0, 3, 0, 0], sizes = [2, 1, 16, 64], strides = [1, 1, 1, 1]} : vector<2x8x16x64xf32> to vector<2x1x16x64xf32>
    %958 = vector.shape_cast %957 : vector<2x1x16x64xf32> to vector<2x16x64xf32>
    %959 = arith.mulf %958, %950 : vector<2x16x64xf32>
    %960 = vector.extract_strided_slice %919 {offsets = [0, 3, 0, 0], sizes = [2, 1, 16, 64], strides = [1, 1, 1, 1]} : vector<2x8x16x64xf32> to vector<2x1x16x64xf32>
    %961 = vector.shape_cast %960 : vector<2x1x16x64xf32> to vector<2x16x64xf32>
    %962 = arith.addf %959, %961 : vector<2x16x64xf32>
    %963 = vector.extract_strided_slice %890 {offsets = [0, 3, 0], sizes = [2, 1, 16], strides = [1, 1, 1]} : vector<2x8x16xf32> to vector<2x1x16xf32>
    %964 = vector.shape_cast %963 : vector<2x1x16xf32> to vector<2x16xf32>
    %965 = vector.shape_cast %964 : vector<2x16xf32> to vector<2x16x1xf32>
    %966 = vector.broadcast %965 : vector<2x16x1xf32> to vector<2x16x64xf32>
    %967 = arith.mulf %962, %966 : vector<2x16x64xf32>
    %cst_196 = arith.constant dense<0.000000e+00> : vector<2x64xf32>
    %968 = vector.multi_reduction <add>, %967, %cst_196 [1] : vector<2x16x64xf32> to vector<2x64xf32>
    %969 = vector.extract_strided_slice %913 {offsets = [0, 4, 0, 0], sizes = [2, 1, 16, 64], strides = [1, 1, 1, 1]} : vector<2x8x16x64xf32> to vector<2x1x16x64xf32>
    %970 = vector.shape_cast %969 : vector<2x1x16x64xf32> to vector<2x16x64xf32>
    %971 = arith.mulf %970, %962 : vector<2x16x64xf32>
    %972 = vector.extract_strided_slice %919 {offsets = [0, 4, 0, 0], sizes = [2, 1, 16, 64], strides = [1, 1, 1, 1]} : vector<2x8x16x64xf32> to vector<2x1x16x64xf32>
    %973 = vector.shape_cast %972 : vector<2x1x16x64xf32> to vector<2x16x64xf32>
    %974 = arith.addf %971, %973 : vector<2x16x64xf32>
    %975 = vector.extract_strided_slice %890 {offsets = [0, 4, 0], sizes = [2, 1, 16], strides = [1, 1, 1]} : vector<2x8x16xf32> to vector<2x1x16xf32>
    %976 = vector.shape_cast %975 : vector<2x1x16xf32> to vector<2x16xf32>
    %977 = vector.shape_cast %976 : vector<2x16xf32> to vector<2x16x1xf32>
    %978 = vector.broadcast %977 : vector<2x16x1xf32> to vector<2x16x64xf32>
    %979 = arith.mulf %974, %978 : vector<2x16x64xf32>
    %cst_197 = arith.constant dense<0.000000e+00> : vector<2x64xf32>
    %980 = vector.multi_reduction <add>, %979, %cst_197 [1] : vector<2x16x64xf32> to vector<2x64xf32>
    %981 = vector.extract_strided_slice %913 {offsets = [0, 5, 0, 0], sizes = [2, 1, 16, 64], strides = [1, 1, 1, 1]} : vector<2x8x16x64xf32> to vector<2x1x16x64xf32>
    %982 = vector.shape_cast %981 : vector<2x1x16x64xf32> to vector<2x16x64xf32>
    %983 = arith.mulf %982, %974 : vector<2x16x64xf32>
    %984 = vector.extract_strided_slice %919 {offsets = [0, 5, 0, 0], sizes = [2, 1, 16, 64], strides = [1, 1, 1, 1]} : vector<2x8x16x64xf32> to vector<2x1x16x64xf32>
    %985 = vector.shape_cast %984 : vector<2x1x16x64xf32> to vector<2x16x64xf32>
    %986 = arith.addf %983, %985 : vector<2x16x64xf32>
    %987 = vector.extract_strided_slice %890 {offsets = [0, 5, 0], sizes = [2, 1, 16], strides = [1, 1, 1]} : vector<2x8x16xf32> to vector<2x1x16xf32>
    %988 = vector.shape_cast %987 : vector<2x1x16xf32> to vector<2x16xf32>
    %989 = vector.shape_cast %988 : vector<2x16xf32> to vector<2x16x1xf32>
    %990 = vector.broadcast %989 : vector<2x16x1xf32> to vector<2x16x64xf32>
    %991 = arith.mulf %986, %990 : vector<2x16x64xf32>
    %cst_198 = arith.constant dense<0.000000e+00> : vector<2x64xf32>
    %992 = vector.multi_reduction <add>, %991, %cst_198 [1] : vector<2x16x64xf32> to vector<2x64xf32>
    %993 = vector.extract_strided_slice %913 {offsets = [0, 6, 0, 0], sizes = [2, 1, 16, 64], strides = [1, 1, 1, 1]} : vector<2x8x16x64xf32> to vector<2x1x16x64xf32>
    %994 = vector.shape_cast %993 : vector<2x1x16x64xf32> to vector<2x16x64xf32>
    %995 = arith.mulf %994, %986 : vector<2x16x64xf32>
    %996 = vector.extract_strided_slice %919 {offsets = [0, 6, 0, 0], sizes = [2, 1, 16, 64], strides = [1, 1, 1, 1]} : vector<2x8x16x64xf32> to vector<2x1x16x64xf32>
    %997 = vector.shape_cast %996 : vector<2x1x16x64xf32> to vector<2x16x64xf32>
    %998 = arith.addf %995, %997 : vector<2x16x64xf32>
    %999 = vector.extract_strided_slice %890 {offsets = [0, 6, 0], sizes = [2, 1, 16], strides = [1, 1, 1]} : vector<2x8x16xf32> to vector<2x1x16xf32>
    %1000 = vector.shape_cast %999 : vector<2x1x16xf32> to vector<2x16xf32>
    %1001 = vector.shape_cast %1000 : vector<2x16xf32> to vector<2x16x1xf32>
    %1002 = vector.broadcast %1001 : vector<2x16x1xf32> to vector<2x16x64xf32>
    %1003 = arith.mulf %998, %1002 : vector<2x16x64xf32>
    %cst_199 = arith.constant dense<0.000000e+00> : vector<2x64xf32>
    %1004 = vector.multi_reduction <add>, %1003, %cst_199 [1] : vector<2x16x64xf32> to vector<2x64xf32>
    %1005 = vector.extract_strided_slice %913 {offsets = [0, 7, 0, 0], sizes = [2, 1, 16, 64], strides = [1, 1, 1, 1]} : vector<2x8x16x64xf32> to vector<2x1x16x64xf32>
    %1006 = vector.shape_cast %1005 : vector<2x1x16x64xf32> to vector<2x16x64xf32>
    %1007 = arith.mulf %1006, %998 : vector<2x16x64xf32>
    %1008 = vector.extract_strided_slice %919 {offsets = [0, 7, 0, 0], sizes = [2, 1, 16, 64], strides = [1, 1, 1, 1]} : vector<2x8x16x64xf32> to vector<2x1x16x64xf32>
    %1009 = vector.shape_cast %1008 : vector<2x1x16x64xf32> to vector<2x16x64xf32>
    %1010 = arith.addf %1007, %1009 : vector<2x16x64xf32>
    %1011 = vector.extract_strided_slice %890 {offsets = [0, 7, 0], sizes = [2, 1, 16], strides = [1, 1, 1]} : vector<2x8x16xf32> to vector<2x1x16xf32>
    %1012 = vector.shape_cast %1011 : vector<2x1x16xf32> to vector<2x16xf32>
    %1013 = vector.shape_cast %1012 : vector<2x16xf32> to vector<2x16x1xf32>
    %1014 = vector.broadcast %1013 : vector<2x16x1xf32> to vector<2x16x64xf32>
    %1015 = arith.mulf %1010, %1014 : vector<2x16x64xf32>
    %cst_200 = arith.constant dense<0.000000e+00> : vector<2x64xf32>
    %1016 = vector.multi_reduction <add>, %1015, %cst_200 [1] : vector<2x16x64xf32> to vector<2x64xf32>
    %1017 = vector.shape_cast %932 : vector<2x64xf32> to vector<2x1x64xf32>
    %1018 = vector.shape_cast %944 : vector<2x64xf32> to vector<2x1x64xf32>
    %1019 = vector.shape_cast %956 : vector<2x64xf32> to vector<2x1x64xf32>
    %1020 = vector.shape_cast %968 : vector<2x64xf32> to vector<2x1x64xf32>
    %1021 = vector.shape_cast %980 : vector<2x64xf32> to vector<2x1x64xf32>
    %1022 = vector.shape_cast %992 : vector<2x64xf32> to vector<2x1x64xf32>
    %1023 = vector.shape_cast %1004 : vector<2x64xf32> to vector<2x1x64xf32>
    %1024 = vector.shape_cast %1016 : vector<2x64xf32> to vector<2x1x64xf32>
    %1025 = tpu.concatenate %1017, %1018, %1019, %1020, %1021, %1022, %1023, %1024 in 1 : vector<2x1x64xf32>, vector<2x1x64xf32>, vector<2x1x64xf32>, vector<2x1x64xf32>, vector<2x1x64xf32>, vector<2x1x64xf32>, vector<2x1x64xf32>, vector<2x1x64xf32> -> vector<2x8x64xf32>
    %1026 = vector.extract_strided_slice %809 {offsets = [4, 0], sizes = [1, 64], strides = [1, 1]} : vector<16x64xf32> to vector<1x64xf32>
    %1027 = vector.shape_cast %1026 : vector<1x64xf32> to vector<1x1x64xf32>
    %1028 = vector.broadcast %1027 : vector<1x1x64xf32> to vector<2x8x64xf32>
    %1029 = arith.mulf %1028, %884 : vector<2x8x64xf32>
    %1030 = arith.addf %1025, %1029 : vector<2x8x64xf32>
    %cst_201 = arith.constant 0.000000e+00 : f32
    %1031 = vector.broadcast %cst_201 : f32 to vector<2x8x64xf32>
    %1032 = arith.subf %1031, %847 : vector<2x8x64xf32>
    %1033 = math.exp %1032 : vector<2x8x64xf32>
    %cst_202 = arith.constant 1.000000e+00 : f32
    %1034 = vector.broadcast %cst_202 : f32 to vector<2x8x64xf32>
    %1035 = arith.addf %1034, %1033 : vector<2x8x64xf32>
    %cst_203 = arith.constant 1.000000e+00 : f32
    %1036 = vector.broadcast %cst_203 : f32 to vector<2x8x64xf32>
    %1037 = arith.divf %1036, %1035 : vector<2x8x64xf32>
    %1038 = arith.mulf %847, %1037 : vector<2x8x64xf32>
    %1039 = arith.mulf %1030, %1038 : vector<2x8x64xf32>
    %1040 = vector.shape_cast %1039 : vector<2x8x64xf32> to vector<16x64xf32>
    %cst_204 = arith.constant dense<0.000000e+00> : vector<16x32xf32>
    %1041 = tpu.matmul %1040, %817, %cst_204 {dimension_numbers = #tpu.dot_dimension_numbers<[1], [0], [0], [1], [0, 0, 1, 1], [], []>} : vector<16x64xf32>, vector<64x32xf32>, vector<16x32xf32> -> vector<16x32xf32>
    %1042 = vector.shape_cast %1041 : vector<16x32xf32> to vector<2x8x32xf32>
    %1043 = tpu.concatenate %1042, %818 in 2 : vector<2x8x32xf32>, vector<2x8x32xf32> -> vector<2x8x64xf32>
    %1044 = vector.extract_strided_slice %1043 {offsets = [0, 0, 0], sizes = [1, 8, 64], strides = [1, 1, 1]} : vector<2x8x64xf32> to vector<1x8x64xf32>
    %1045 = vector.shape_cast %1044 : vector<1x8x64xf32> to vector<8x64xf32>
    %cst_205 = arith.constant dense<0.000000e+00> : vector<8x64xf32>
    %1046 = tpu.matmul %12, %1045, %cst_205 {dimension_numbers = #tpu.dot_dimension_numbers<[1], [0], [0], [1], [0, 0, 1, 1], [], []>} : vector<8x8xf32>, vector<8x64xf32>, vector<8x64xf32> -> vector<8x64xf32>
    %1047 = vector.extract_strided_slice %1043 {offsets = [1, 0, 0], sizes = [1, 8, 64], strides = [1, 1, 1]} : vector<2x8x64xf32> to vector<1x8x64xf32>
    %1048 = vector.shape_cast %1047 : vector<1x8x64xf32> to vector<8x64xf32>
    %cst_206 = arith.constant dense<0.000000e+00> : vector<8x64xf32>
    %1049 = tpu.matmul %23, %1048, %cst_206 {dimension_numbers = #tpu.dot_dimension_numbers<[1], [0], [0], [1], [0, 0, 1, 1], [], []>} : vector<8x8xf32>, vector<8x64xf32>, vector<8x64xf32> -> vector<8x64xf32>
    %1050 = vector.shape_cast %1046 : vector<8x64xf32> to vector<1x8x64xf32>
    %1051 = vector.shape_cast %1049 : vector<8x64xf32> to vector<1x8x64xf32>
    %1052 = tpu.concatenate %1050, %1051 in 0 : vector<1x8x64xf32>, vector<1x8x64xf32> -> vector<2x8x64xf32>
    %1053 = vector.shape_cast %807 : vector<2x8x32xf32> to vector<16x32xf32>
    %c2_207 = arith.constant 2 : index
    %c0_208 = arith.constant 0 : index
    %c0_209 = arith.constant 0 : index
    %1054 = vector.load %arg9[%c2_207, %c0_208, %c0_209] : memref<4x32x32xf32, #tpu.memory_space<vmem>>, vector<1x32x32xf32>
    %1055 = vector.shape_cast %1054 : vector<1x32x32xf32> to vector<32x32xf32>
    %cst_210 = arith.constant dense<0.000000e+00> : vector<16x32xf32>
    %1056 = tpu.matmul %1053, %1055, %cst_210 {dimension_numbers = #tpu.dot_dimension_numbers<[1], [0], [0], [1], [0, 0, 1, 1], [], []>} : vector<16x32xf32>, vector<32x32xf32>, vector<16x32xf32> -> vector<16x32xf32>
    %1057 = vector.extract_strided_slice %1052 {offsets = [0, 0, 0], sizes = [2, 8, 32], strides = [1, 1, 1]} : vector<2x8x64xf32> to vector<2x8x32xf32>
    %1058 = vector.shape_cast %1057 : vector<2x8x32xf32> to vector<16x32xf32>
    %c3_211 = arith.constant 3 : index
    %c0_212 = arith.constant 0 : index
    %c0_213 = arith.constant 0 : index
    %1059 = vector.load %arg9[%c3_211, %c0_212, %c0_213] : memref<4x32x32xf32, #tpu.memory_space<vmem>>, vector<1x32x32xf32>
    %1060 = vector.shape_cast %1059 : vector<1x32x32xf32> to vector<32x32xf32>
    %cst_214 = arith.constant dense<0.000000e+00> : vector<16x32xf32>
    %1061 = tpu.matmul %1058, %1060, %cst_214 {dimension_numbers = #tpu.dot_dimension_numbers<[1], [0], [0], [1], [0, 0, 1, 1], [], []>} : vector<16x32xf32>, vector<32x32xf32>, vector<16x32xf32> -> vector<16x32xf32>
    %1062 = arith.addf %1056, %1061 : vector<16x32xf32>
    %c1_215 = arith.constant 1 : index
    %c0_216 = arith.constant 0 : index
    %c0_217 = arith.constant 0 : index
    %1063 = vector.load %arg10[%c1_215, %c0_216, %c0_217] : memref<2x1x32xf32, #tpu.memory_space<vmem>>, vector<1x1x32xf32>
    %1064 = vector.shape_cast %1063 : vector<1x1x32xf32> to vector<1x32xf32>
    %1065 = vector.broadcast %1064 : vector<1x32xf32> to vector<16x32xf32>
    %1066 = arith.addf %1062, %1065 : vector<16x32xf32>
    %1067 = vector.shape_cast %1066 : vector<16x32xf32> to vector<2x8x32xf32>
    %1068 = vector.extract_strided_slice %1052 {offsets = [0, 0, 32], sizes = [2, 8, 32], strides = [1, 1, 1]} : vector<2x8x64xf32> to vector<2x8x32xf32>
    %1069 = arith.addf %583, %1068 : vector<2x8x32xf32>
    %cst_218 = arith.constant 5.000000e-01 : f32
    %1070 = vector.broadcast %cst_218 : f32 to vector<2x8x32xf32>
    %1071 = arith.mulf %1070, %1069 : vector<2x8x32xf32>
    %1072 = arith.addf %1067, %1071 : vector<2x8x32xf32>
    %c0_219 = arith.constant 0 : index
    %c0_220 = arith.constant 0 : index
    %1073 = vector.load %arg3[%c0_219, %c0_220] : memref<2x32xf32, #tpu.memory_space<vmem>>, vector<1x32xf32>
    %c1_221 = arith.constant 1 : index
    %c0_222 = arith.constant 0 : index
    %1074 = vector.load %arg3[%c1_221, %c0_222] : memref<2x32xf32, #tpu.memory_space<vmem>>, vector<1x32xf32>
    %cst_223 = arith.constant dense<0.000000e+00> : vector<2x8xf32>
    %1075 = vector.multi_reduction <add>, %1072, %cst_223 [2] : vector<2x8x32xf32> to vector<2x8xf32>
    %1076 = vector.shape_cast %1075 : vector<2x8xf32> to vector<2x8x1xf32>
    %cst_224 = arith.constant 3.200000e+01 : f32
    %1077 = vector.broadcast %cst_224 : f32 to vector<2x8x1xf32>
    %1078 = arith.divf %1076, %1077 : vector<2x8x1xf32>
    %1079 = vector.broadcast %1078 : vector<2x8x1xf32> to vector<2x8x32xf32>
    %1080 = arith.subf %1072, %1079 : vector<2x8x32xf32>
    %1081 = arith.mulf %1080, %1080 : vector<2x8x32xf32>
    %cst_225 = arith.constant dense<0.000000e+00> : vector<2x8xf32>
    %1082 = vector.multi_reduction <add>, %1081, %cst_225 [2] : vector<2x8x32xf32> to vector<2x8xf32>
    %1083 = vector.shape_cast %1082 : vector<2x8xf32> to vector<2x8x1xf32>
    %cst_226 = arith.constant 3.200000e+01 : f32
    %1084 = vector.broadcast %cst_226 : f32 to vector<2x8x1xf32>
    %1085 = arith.divf %1083, %1084 : vector<2x8x1xf32>
    %cst_227 = arith.constant 9.99999974E-6 : f32
    %1086 = vector.broadcast %cst_227 : f32 to vector<2x8x1xf32>
    %1087 = arith.addf %1085, %1086 : vector<2x8x1xf32>
    %1088 = math.rsqrt %1087 : vector<2x8x1xf32>
    %1089 = vector.broadcast %1088 : vector<2x8x1xf32> to vector<2x8x32xf32>
    %1090 = arith.mulf %1080, %1089 : vector<2x8x32xf32>
    %1091 = vector.shape_cast %1073 : vector<1x32xf32> to vector<1x1x32xf32>
    %1092 = vector.broadcast %1091 : vector<1x1x32xf32> to vector<2x8x32xf32>
    %1093 = arith.mulf %1090, %1092 : vector<2x8x32xf32>
    %1094 = vector.shape_cast %1074 : vector<1x32xf32> to vector<1x1x32xf32>
    %1095 = vector.broadcast %1094 : vector<1x1x32xf32> to vector<2x8x32xf32>
    %1096 = arith.addf %1093, %1095 : vector<2x8x32xf32>
    %c0_228 = arith.constant 0 : index
    %c0_229 = arith.constant 0 : index
    %c0_230 = arith.constant 0 : index
    %1097 = vector.load %arg11[%c0_228, %c0_229, %c0_230] : memref<2x8x32xf32, #tpu.memory_space<vmem>>, vector<2x8x32xf32>
    tpu.vector_store %arg11[%c0_228, %c0_229, %c0_230], %1096 {strides = array<i32>} : memref<2x8x32xf32, #tpu.memory_space<vmem>>, vector<2x8x32xf32>,
    return
  }
}

</mosaic_0001>

<llo_original>
// kernel: forward.1
$region0: #{forward.1}
  #allocation0 [shape = 'u32[]', space=smem, size = 0x4, offset = 0x4, fixed_abs, tag = 'smem constant byte address 0x4 - core index']
  #allocation1 [shape = 'u32[144,128]{1,0:T(1,128)}', space=vmem, size = 0x12000, scoped, tag = 'internal scratch']
  %s0 = inlined_call_operand.vmem [shape: s32[2], index: 0, kind: input, shape index: {}]
  %s1 = inlined_call_operand.vmem [shape: f32[2,8,32], index: 1, kind: input, shape index: {}]
  %s2 = inlined_call_operand.vmem [shape: f32[2,32], index: 2, kind: input, shape index: {}]
  %s3 = inlined_call_operand.vmem [shape: f32[2,32], index: 3, kind: input, shape index: {}]
  %s4 = inlined_call_operand.vmem [shape: f32[4,16,64], index: 4, kind: input, shape index: {}]
  %s5 = inlined_call_operand.vmem [shape: f32[4,32,128], index: 5, kind: input, shape index: {}]
  %s6 = inlined_call_operand.vmem [shape: f32[4,64,34], index: 6, kind: input, shape index: {}]
  %s7 = inlined_call_operand.vmem [shape: f32[4,16,64], index: 7, kind: input, shape index: {}]
  %s8 = inlined_call_operand.vmem [shape: f32[4,64,32], index: 8, kind: input, shape index: {}]
  %s9 = inlined_call_operand.vmem [shape: f32[4,32,32], index: 9, kind: input, shape index: {}]
  %s10 = inlined_call_operand.vmem [shape: f32[2,1,32], index: 10, kind: input, shape index: {}]
  %s11 = inlined_call_operand.hbm [shape: f32[2,8,32], index: 11, kind: output, shape index: {}]
  %s12 = sld [smem:[#allocation0]]
  $region58: #{forward.1} parent=0
    _
  %s14 = ssub.s32 1, %s12
  %s15 = scalar_select 0, %s14, %s12
  $region1: #{forward.1} parent=0
    #allocation2 [shape = 'u8[512]{0}', space=smem, size = 0x200, scoped, tag = 'input window, operand 0, single buffered']
    #allocation3 [shape = 's32[1]{0}', space=sflag, size = 0x4, scoped, tag = 'scoped memory for forward.1']
    #allocation4 [shape = 's32[1]{0}', space=sflag, size = 0x4, scoped, tag = 'scoped memory for forward.1']
    #allocation5 [shape = 'u8[8192]{0}', space=vmem, size = 0x2000, scoped, tag = 'output window, operand 0, single buffered']
    %16 = vsyncpa [#allocation4], 0
    %17 = vsyncpa [#allocation3], 0
    // Predicated region
    $region2: #{forward.1} parent=1 // pred_check
      _
    $region3: #{forward.1} parent=1 // pred_check_branch
      %19 = sbr.rel (0) target = $region5
    $region4: #{forward.1} parent=1 // pred_region
      %s21 = ssub.s32 16, 16
      %22 = vsyncadd [#allocation4], %s21
      %s24 = sshll.u32 %s0, 4
      %s25 = int_to_ptr.vmem [resolvable:$true] %s24
      %27 = dma.vmem_to_smem %s25, 16, [#allocation2], [#allocation4]
    $region5: #{forward.1} parent=1 // pred_fallthru
      _
    // Predicated region
    $region6: #{forward.1} parent=1 // pred_check
      _
    $region7: #{forward.1} parent=1 // pred_check_branch
      %29 = sbr.rel (0) target = $region9
    $region8: #{forward.1} parent=1 // pred_region
      _
    $region9: #{forward.1} parent=1 // pred_fallthru
      _
    // Predicated region
    $region10: #{forward.1} parent=1 // pred_check
      _
    $region11: #{forward.1} parent=1 // pred_check_branch
      %31 = sbr.rel (0) target = $region13
    $region12: #{forward.1} parent=1 // pred_region
      _
    $region13: #{forward.1} parent=1 // pred_fallthru
      _
    // Predicated region
    $region14: #{forward.1} parent=1 // pred_check
      _
    $region15: #{forward.1} parent=1 // pred_check_branch
      %33 = sbr.rel (0) target = $region17
    $region16: #{forward.1} parent=1 // pred_region
      _
    $region17: #{forward.1} parent=1 // pred_fallthru
      _
    // Predicated region
    $region18: #{forward.1} parent=1 // pred_check
      _
    $region19: #{forward.1} parent=1 // pred_check_branch
      %35 = sbr.rel (0) target = $region21
    $region20: #{forward.1} parent=1 // pred_region
      _
    $region21: #{forward.1} parent=1 // pred_fallthru
      _
    // Predicated region
    $region22: #{forward.1} parent=1 // pred_check
      _
    $region23: #{forward.1} parent=1 // pred_check_branch
      %37 = sbr.rel (0) target = $region25
    $region24: #{forward.1} parent=1 // pred_region
      _
    $region25: #{forward.1} parent=1 // pred_fallthru
      _
    // Predicated region
    $region26: #{forward.1} parent=1 // pred_check
      _
    $region27: #{forward.1} parent=1 // pred_check_branch
      %39 = sbr.rel (0) target = $region29
    $region28: #{forward.1} parent=1 // pred_region
      _
    $region29: #{forward.1} parent=1 // pred_fallthru
      _
    // Predicated region
    $region30: #{forward.1} parent=1 // pred_check
      _
    $region31: #{forward.1} parent=1 // pred_check_branch
      %41 = sbr.rel (0) target = $region33
    $region32: #{forward.1} parent=1 // pred_region
      _
    $region33: #{forward.1} parent=1 // pred_fallthru
      _
    // Predicated region
    $region34: #{forward.1} parent=1 // pred_check
      _
    $region35: #{forward.1} parent=1 // pred_check_branch
      %43 = sbr.rel (0) target = $region37
    $region36: #{forward.1} parent=1 // pred_region
      _
    $region37: #{forward.1} parent=1 // pred_fallthru
      _
    // Predicated region
    $region38: #{forward.1} parent=1 // pred_check
      _
    $region39: #{forward.1} parent=1 // pred_check_branch
      %45 = sbr.rel (0) target = $region41
    $region40: #{forward.1} parent=1 // pred_region
      _
    $region41: #{forward.1} parent=1 // pred_fallthru
      _
    // Predicated region
    $region42: #{forward.1} parent=1 // pred_check
      _
    $region43: #{forward.1} parent=1 // pred_check_branch
      %47 = sbr.rel (0) target = $region45
    $region44: #{forward.1} parent=1 // pred_region
      _
    $region45: #{forward.1} parent=1 // pred_fallthru
      _
    // Predicated region
    $region46: #{forward.1} parent=1 // pred_check
      _
    $region47: #{forward.1} parent=1 // pred_check_branch
      %49 = sbr.rel (0) target = $region49
    $region48: #{forward.1} parent=1 // pred_region
      %50 = dma.done [#allocation4], 16
    $region49: #{forward.1} parent=1 // pred_fallthru
      _
    %51 = sfence
    %v52 = vlaneseq
    %v53 = vshrl.u32 %v52, 7
    %v54 = vlaneseq
    %v55 = vand.u32 %v54, 127
    %s56 = sld [smem:[#allocation2]]
    %s57 = ssub.s32 %s56, 1
    %v58 = vstv %s57
    %v59 = vsub.s32 %v58, %v53
    %vm60 = vcmp.eq.s32.totalorder %v55, %v59
    %v61 = vstv %s56
    %vm62 = vcmp.lt.s32.totalorder %v53, %v61
    %vm63 = vmand %vm60, %vm62
    %v64 = vsel %vm63, 1.0, 0.0
    %s65 = sld [smem:[#allocation2 + $0x1]]
    %s66 = ssub.s32 %s65, 1
    %v67 = vstv %s66
    %v68 = vsub.s32 %v67, %v53
    %vm69 = vcmp.eq.s32.totalorder %v55, %v68
    %v70 = vstv %s65
    %vm71 = vcmp.lt.s32.totalorder %v53, %v70
    %vm72 = vmand %vm69, %vm71
    %v73 = vsel %vm72, 1.0, 0.0
    %v74 = vld [vmem:[%s1] sm:$0xff]
    %v75 = vld [vmem:[%s1 + $0x8] sm:$0xff]
    %v76 = vld [vmem:[%s2] sm:$0x1]
    %v77 = vld [vmem:[%s2 + $0x1] sm:$0x1]
    %vm78 = vcmask 261120
    %v79 = vsel %vm78, %v74, 0.0
    %80 = vadd.xlane.f32.xlu0 %v79
    %v81 = vpop.xlane.xlu0 %80
    %v82 = vsel %vm78, %v75, 0.0
    %83 = vadd.xlane.f32.xlu0 %v82
    %v84 = vpop.xlane.xlu0 %83
    %v85 = vrcp.pop 32.0
    %v86 = vmul.f32 %v81, %v85
    %v87 = vmul.f32 %v84, %v85
    %v88 = vsub.f32 %v74, %v86
    %v89 = vsub.f32 %v75, %v87
    %v90 = vmul.f32 %v88, %v88
    %v91 = vmul.f32 %v89, %v89
    %v92 = vsel %vm78, %v90, 0.0
    %93 = vadd.xlane.f32.xlu0 %v92
    %v94 = vpop.xlane.xlu0 %93
    %v95 = vsel %vm78, %v91, 0.0
    %96 = vadd.xlane.f32.xlu0 %v95
    %v97 = vpop.xlane.xlu0 %96
    %v98 = vmul.f32 %v94, %v85
    %v99 = vmul.f32 %v97, %v85
    %v100 = vadd.f32 %v98, 1e-05
    %v101 = vadd.f32 %v99, 1e-05
    %v102 = vrsqrt.pop %v100
    %v103 = vrsqrt.pop %v101
    %v104 = vmul.f32 %v88, %v102
    %v105 = vmul.f32 %v89, %v103
    %v106 = vlaneseq
    %v107 = vshrl.u32 %v106, 7
    %v108 = vsub.s32 0, %v107
    %v109 = vrot.slane %v76, %v108
    %v110 = vmul.f32 %v104, %v109
    %v111 = vmul.f32 %v105, %v109
    %v112 = vlaneseq
    %v113 = vshrl.u32 %v112, 7
    %v114 = vsub.s32 0, %v113
    %v115 = vrot.slane %v77, %v114
    %v116 = vadd.f32 %v110, %v115
    %v117 = vadd.f32 %v111, %v115
    %v118 = vsel %vm78, %v116, 0.0
    %v119 = vsel %vm78, %v117, 0.0
    %vm120 = vcmask 64512
    %v122 = vsel %vm120, %v64, 0
    %124 = vmatprep.subr.mxu0 0.0
    %125 = vmatpush1.msra.mxu0 0.0
    %126 = vmatprep.subr.mxu0 0.0
    %127 = vmatpush1.msra.mxu0 0.0
    %128 = vmatprep.subr.mxu0 0.0
    %129 = vmatpush1.msra.mxu0 0.0
    %130 = vmatprep.subr.mxu0 0.0
    %131 = vmatpush1.msra.mxu0 0.0
    %132 = vmatprep.subr.mxu0 0.0
    %133 = vmatpush1.msra.mxu0 0.0
    %134 = vmatprep.subr.mxu0 0.0
    %135 = vmatpush1.msra.mxu0 0.0
    %136 = vmatprep.subr.mxu0 0.0
    %137 = vmatpush1.msra.mxu0 0.0
    %138 = vmatprep.subr.mxu0 0.0
    %139 = vmatpush1.msra.mxu0 0.0
    %140 = vmatprep.subr.mxu0 0.0
    %141 = vmatpush1.msra.mxu0 0.0
    %142 = vmatprep.subr.mxu0 0.0
    %143 = vmatpush1.msra.mxu0 0.0
    %144 = vmatprep.subr.mxu0 0.0
    %145 = vmatpush1.msra.mxu0 0.0
    %146 = vmatprep.subr.mxu0 0.0
    %147 = vmatpush1.msra.mxu0 0.0
    %148 = vmatprep.subr.mxu0 0.0
    %149 = vmatpush1.msra.mxu0 0.0
    %150 = vmatprep.subr.mxu0 0.0
    %151 = vmatpush1.msra.mxu0 0.0
    %152 = vmatprep.subr.mxu0 0.0
    %153 = vmatpush1.msra.mxu0 0.0
    %154 = vmatprep.subr.mxu0 0.0
    %155 = vmatpush1.msra.mxu0 %v118
    %156 = vmatprep.subr.mxu0 0.0
    %157 = vmatpush2.msra.mxu0 0.0
    %158 = vmatprep.subr.mxu0 0.0
    %159 = vmatpush2.msra.mxu0 0.0
    %160 = vmatprep.subr.mxu0 0.0
    %161 = vmatpush2.msra.mxu0 0.0
    %162 = vmatprep.subr.mxu0 0.0
    %163 = vmatpush2.msra.mxu0 0.0
    %164 = vmatprep.subr.mxu0 0.0
    %165 = vmatpush2.msra.mxu0 0.0
    %166 = vmatprep.subr.mxu0 0.0
    %167 = vmatpush2.msra.mxu0 0.0
    %168 = vmatprep.subr.mxu0 0.0
    %169 = vmatpush2.msra.mxu0 0.0
    %170 = vmatprep.subr.mxu0 0.0
    %171 = vmatpush2.msra.mxu0 0.0
    %172 = vmatprep.subr.mxu0 0.0
    %173 = vmatpush2.msra.mxu0 0.0
    %174 = vmatprep.subr.mxu0 0.0
    %175 = vmatpush2.msra.mxu0 0.0
    %176 = vmatprep.subr.mxu0 0.0
    %177 = vmatpush2.msra.mxu0 0.0
    %178 = vmatprep.subr.mxu0 0.0
    %179 = vmatpush2.msra.mxu0 0.0
    %180 = vmatprep.subr.mxu0 0.0
    %181 = vmatpush2.msra.mxu0 0.0
    %182 = vmatprep.subr.mxu0 0.0
    %183 = vmatpush2.msra.mxu0 0.0
    %184 = vmatprep.subr.mxu0 0.0
    %185 = vmatpush2.msra.mxu0 0.0
    %186 = vmatprep.subr.mxu0 0.0
    %187 = vmatpush2.msra.mxu0 0.0
    %188 = vmatprep.mubr.f32.mxu0 0.0
    %189 = vmatmul.mubr.f32.gmra.mxu0 %v122
    %v190 = vpop.f32.mrf.mxu0
    %v191 = vadd.f32 0.0, %v190
    %v192 = vpop.f32.mrf.mxu0
    %193 = vdwg.mxu0
    %v195 = vsel %vm120, %v73, 0
    %197 = vmatprep.subr.mxu0 0.0
    %198 = vmatpush1.msra.mxu0 0.0
    %199 = vmatprep.subr.mxu0 0.0
    %200 = vmatpush1.msra.mxu0 0.0
    %201 = vmatprep.subr.mxu0 0.0
    %202 = vmatpush1.msra.mxu0 0.0
    %203 = vmatprep.subr.mxu0 0.0
    %204 = vmatpush1.msra.mxu0 0.0
    %205 = vmatprep.subr.mxu0 0.0
    %206 = vmatpush1.msra.mxu0 0.0
    %207 = vmatprep.subr.mxu0 0.0
    %208 = vmatpush1.msra.mxu0 0.0
    %209 = vmatprep.subr.mxu0 0.0
    %210 = vmatpush1.msra.mxu0 0.0
    %211 = vmatprep.subr.mxu0 0.0
    %212 = vmatpush1.msra.mxu0 0.0
    %213 = vmatprep.subr.mxu0 0.0
    %214 = vmatpush1.msra.mxu0 0.0
    %215 = vmatprep.subr.mxu0 0.0
    %216 = vmatpush1.msra.mxu0 0.0
    %217 = vmatprep.subr.mxu0 0.0
    %218 = vmatpush1.msra.mxu0 0.0
    %219 = vmatprep.subr.mxu0 0.0
    %220 = vmatpush1.msra.mxu0 0.0
    %221 = vmatprep.subr.mxu0 0.0
    %222 = vmatpush1.msra.mxu0 0.0
    %223 = vmatprep.subr.mxu0 0.0
    %224 = vmatpush1.msra.mxu0 0.0
    %225 = vmatprep.subr.mxu0 0.0
    %226 = vmatpush1.msra.mxu0 0.0
    %227 = vmatprep.subr.mxu0 0.0
    %228 = vmatpush1.msra.mxu0 %v119
    %229 = vmatprep.subr.mxu0 0.0
    %230 = vmatpush2.msra.mxu0 0.0
    %231 = vmatprep.subr.mxu0 0.0
    %232 = vmatpush2.msra.mxu0 0.0
    %233 = vmatprep.subr.mxu0 0.0
    %234 = vmatpush2.msra.mxu0 0.0
    %235 = vmatprep.subr.mxu0 0.0
    %236 = vmatpush2.msra.mxu0 0.0
    %237 = vmatprep.subr.mxu0 0.0
    %238 = vmatpush2.msra.mxu0 0.0
    %239 = vmatprep.subr.mxu0 0.0
    %240 = vmatpush2.msra.mxu0 0.0
    %241 = vmatprep.subr.mxu0 0.0
    %242 = vmatpush2.msra.mxu0 0.0
    %243 = vmatprep.subr.mxu0 0.0
    %244 = vmatpush2.msra.mxu0 0.0
    %245 = vmatprep.subr.mxu0 0.0
    %246 = vmatpush2.msra.mxu0 0.0
    %247 = vmatprep.subr.mxu0 0.0
    %248 = vmatpush2.msra.mxu0 0.0
    %249 = vmatprep.subr.mxu0 0.0
    %250 = vmatpush2.msra.mxu0 0.0
    %251 = vmatprep.subr.mxu0 0.0
    %252 = vmatpush2.msra.mxu0 0.0
    %253 = vmatprep.subr.mxu0 0.0
    %254 = vmatpush2.msra.mxu0 0.0
    %255 = vmatprep.subr.mxu0 0.0
    %256 = vmatpush2.msra.mxu0 0.0
    %257 = vmatprep.subr.mxu0 0.0
    %258 = vmatpush2.msra.mxu0 0.0
    %259 = vmatprep.subr.mxu0 0.0
    %260 = vmatpush2.msra.mxu0 0.0
    %261 = vmatprep.mubr.f32.mxu0 0.0
    %262 = vmatmul.mubr.f32.gmra.mxu0 %v195
    %v263 = vpop.f32.mrf.mxu0
    %v264 = vadd.f32 0.0, %v263
    %v265 = vpop.f32.mrf.mxu0
    %266 = vdwg.mxu0
    %v267 = vld [vmem:[%s4] sm:$0xff]
    %v268 = vld [vmem:[%s4 + $0x8] sm:$0xff]
    %v269 = vld [vmem:[%s5] sm:$0xff]
    %v270 = vld [vmem:[%s5 + $0x8] sm:$0xff]
    %v271 = vld [vmem:[%s5 + $0x10] sm:$0xff]
    %v272 = vld [vmem:[%s5 + $0x18] sm:$0xff]
    %v273 = vld [vmem:[%s6] sm:$0xff]
    %v274 = vld [vmem:[%s6 + $0x8] sm:$0xff]
    %v275 = vld [vmem:[%s6 + $0x10] sm:$0xff]
    %v276 = vld [vmem:[%s6 + $0x18] sm:$0xff]
    %v277 = vld [vmem:[%s6 + $0x20] sm:$0xff]
    %v278 = vld [vmem:[%s6 + $0x28] sm:$0xff]
    %v279 = vld [vmem:[%s6 + $0x30] sm:$0xff]
    %v280 = vld [vmem:[%s6 + $0x38] sm:$0xff]
    %v281 = vld [vmem:[%s7] sm:$0xff]
    %v282 = vld [vmem:[%s7 + $0x8] sm:$0xff]
    %v283 = vld [vmem:[%s8] sm:$0xff]
    %v284 = vld [vmem:[%s8 + $0x8] sm:$0xff]
    %v285 = vld [vmem:[%s8 + $0x10] sm:$0xff]
    %v286 = vld [vmem:[%s8 + $0x18] sm:$0xff]
    %v287 = vld [vmem:[%s8 + $0x20] sm:$0xff]
    %v288 = vld [vmem:[%s8 + $0x28] sm:$0xff]
    %v289 = vld [vmem:[%s8 + $0x30] sm:$0xff]
    %v290 = vld [vmem:[%s8 + $0x38] sm:$0xff]
    %v291 = vadd.f32 %v116, 0.0
    %v292 = vadd.f32 %v117, 0.0
    %v293 = vsel %vm78, %v291, 0.0
    %294 = vadd.xlane.f32.xlu0 %v293
    %v295 = vpop.xlane.xlu0 %294
    %v296 = vsel %vm78, %v292, 0.0
    %297 = vadd.xlane.f32.xlu0 %v296
    %v298 = vpop.xlane.xlu0 %297
    %v299 = vmul.f32 %v295, %v85
    %v300 = vmul.f32 %v298, %v85
    %v301 = vsub.f32 %v291, %v299
    %v302 = vsub.f32 %v292, %v300
    %v303 = vmul.f32 %v301, %v301
    %v304 = vmul.f32 %v302, %v302
    %v305 = vsel %vm78, %v303, 0.0
    %306 = vadd.xlane.f32.xlu0 %v305
    %v307 = vpop.xlane.xlu0 %306
    %v308 = vsel %vm78, %v304, 0.0
    %309 = vadd.xlane.f32.xlu0 %v308
    %v310 = vpop.xlane.xlu0 %309
    %v311 = vmul.f32 %v307, %v85
    %v312 = vmul.f32 %v310, %v85
    %v313 = vadd.f32 %v311, 1e-05
    %v314 = vadd.f32 %v312, 1e-05
    %v315 = vrsqrt.pop %v313
    %v316 = vrsqrt.pop %v314
    %v317 = vmul.f32 %v301, %v315
    %v318 = vmul.f32 %v302, %v316
    %v319 = vlaneseq
    %v320 = vshrl.u32 %v319, 7
    %v321 = vsub.s32 0, %v320
    %v322 = vrot.slane %v267, %v321
    %v323 = vmul.f32 %v317, %v322
    %v324 = vmul.f32 %v318, %v322
    %v325 = vlaneseq
    %v326 = vshrl.u32 %v325, 7
    %v327 = vsub.s32 1, %v326
    %v328 = vrot.slane %v267, %v327
    %v329 = vadd.f32 %v323, %v328
    %v330 = vadd.f32 %v324, %v328
    %v332 = vsel %vm78, %v329, 0
    %v335 = vsel %vm78, %v330, 0
    %337 = vmatprep.subr.mxu0 0.0
    %338 = vmatpush1.msra.mxu0 0.0
    %339 = vmatprep.subr.mxu0 0.0
    %340 = vmatpush1.msra.mxu0 0.0
    %341 = vmatprep.subr.mxu0 0.0
    %342 = vmatpush1.msra.mxu0 0.0
    %343 = vmatprep.subr.mxu0 0.0
    %344 = vmatpush1.msra.mxu0 0.0
    %345 = vmatprep.subr.mxu0 0.0
    %346 = vmatpush1.msra.mxu0 0.0
    %347 = vmatprep.subr.mxu0 0.0
    %348 = vmatpush1.msra.mxu0 0.0
    %349 = vmatprep.subr.mxu0 0.0
    %350 = vmatpush1.msra.mxu0 0.0
    %351 = vmatprep.subr.mxu0 0.0
    %352 = vmatpush1.msra.mxu0 0.0
    %353 = vmatprep.subr.mxu0 0.0
    %354 = vmatpush1.msra.mxu0 0.0
    %355 = vmatprep.subr.mxu0 0.0
    %356 = vmatpush1.msra.mxu0 0.0
    %357 = vmatprep.subr.mxu0 0.0
    %358 = vmatpush1.msra.mxu0 0.0
    %359 = vmatprep.subr.mxu0 0.0
    %360 = vmatpush1.msra.mxu0 0.0
    %361 = vmatprep.subr.mxu0 0.0
    %362 = vmatpush1.msra.mxu0 %v272
    %363 = vmatprep.subr.mxu0 0.0
    %364 = vmatpush1.msra.mxu0 %v271
    %365 = vmatprep.subr.mxu0 0.0
    %366 = vmatpush1.msra.mxu0 %v270
    %367 = vmatprep.subr.mxu0 0.0
    %368 = vmatpush1.msra.mxu0 %v269
    %369 = vmatprep.subr.mxu0 0.0
    %370 = vmatpush2.msra.mxu0 0.0
    %371 = vmatprep.subr.mxu0 0.0
    %372 = vmatpush2.msra.mxu0 0.0
    %373 = vmatprep.subr.mxu0 0.0
    %374 = vmatpush2.msra.mxu0 0.0
    %375 = vmatprep.subr.mxu0 0.0
    %376 = vmatpush2.msra.mxu0 0.0
    %377 = vmatprep.subr.mxu0 0.0
    %378 = vmatpush2.msra.mxu0 0.0
    %379 = vmatprep.subr.mxu0 0.0
    %380 = vmatpush2.msra.mxu0 0.0
    %381 = vmatprep.subr.mxu0 0.0
    %382 = vmatpush2.msra.mxu0 0.0
    %383 = vmatprep.subr.mxu0 0.0
    %384 = vmatpush2.msra.mxu0 0.0
    %385 = vmatprep.subr.mxu0 0.0
    %386 = vmatpush2.msra.mxu0 0.0
    %387 = vmatprep.subr.mxu0 0.0
    %388 = vmatpush2.msra.mxu0 0.0
    %389 = vmatprep.subr.mxu0 0.0
    %390 = vmatpush2.msra.mxu0 0.0
    %391 = vmatprep.subr.mxu0 0.0
    %392 = vmatpush2.msra.mxu0 0.0
    %393 = vmatprep.subr.mxu0 0.0
    %394 = vmatpush2.msra.mxu0 0.0
    %395 = vmatprep.subr.mxu0 0.0
    %396 = vmatpush2.msra.mxu0 0.0
    %397 = vmatprep.subr.mxu0 0.0
    %398 = vmatpush2.msra.mxu0 0.0
    %399 = vmatprep.subr.mxu0 0.0
    %400 = vmatpush2.msra.mxu0 0.0
    %401 = vmatprep.mubr.f32.mxu0 0.0
    %402 = vmatmul.mubr.f32.gmra.mxu0 %v332
    %v403 = vpop.f32.mrf.mxu0
    %v404 = vadd.f32 0.0, %v403
    %v405 = vpop.f32.mrf.mxu0
    %406 = vmatprep.mubr.f32.mxu0 0.0
    %407 = vmatmul.mubr.f32.gmra.mxu0 %v335
    %v408 = vpop.f32.mrf.mxu0
    %v409 = vadd.f32 0.0, %v408
    %v410 = vpop.f32.mrf.mxu0
    %411 = vdwg.mxu0
    %v414 = vrot.slane %v404, 5
    %v415 = vrot.slane %v409, 5
    %vm418 = vcmask 1042432
    %v419 = vsel %vm418, 0.0, %v414
    %v420 = vsel %vm418, 0.0, %v415
    %v421 = vlaneseq
    %v422 = vshrl.u32 %v421, 7
    %v423 = vsub.s32 5, %v422
    %v424 = vrot.slane %v267, %v423
    %v425 = vmul.f32 %v419, %v424
    %v426 = vmul.f32 %v420, %v424
    %v427 = vlaneseq
    %v428 = vshrl.u32 %v427, 7
    %v429 = vsub.s32 2, %v428
    %v430 = vrot.slane %v267, %v429
    %v431 = vadd.f32 %v430, %v425
    %v432 = vadd.f32 %v430, %v426
    %v433 = vlaneseq
    %v434 = vshrl.u32 %v433, 7
    %v435 = vsub.s32 6, %v434
    %v436 = vrot.slane %v267, %v435
    %v437 = vmul.f32 %v419, %v436
    %v438 = vmul.f32 %v414, %v436
    %v439 = vmul.f32 %v420, %v436
    %v440 = vmul.f32 %v415, %v436
    %vm445 = vcmask 1046528
    %v446 = vrot.slane %v437, 1
    %v447 = vrot.slane %v438, 1
    %v448 = vsel %vm445, %v446, %v447
    %v449 = vrot.slane %v439, 1
    %v450 = vrot.slane %v440, 1
    %v451 = vsel %vm445, %v449, %v450
    %v454 = vadd.f32 %v431, %v448
    %v455 = vadd.f32 %v432, %v451
    %v456 = vlaneseq
    %v457 = vshrl.u32 %v456, 7
    %v458 = vsub.s32 7, %v457
    %v459 = vrot.slane %v267, %v458
    %v460 = vmul.f32 %v419, %v459
    %v461 = vmul.f32 %v414, %v459
    %v462 = vmul.f32 %v420, %v459
    %v463 = vmul.f32 %v415, %v459
    %vm468 = vcmask 1045504
    %v469 = vrot.slane %v460, 2
    %v470 = vrot.slane %v461, 2
    %v471 = vsel %vm468, %v469, %v470
    %v472 = vrot.slane %v462, 2
    %v473 = vrot.slane %v463, 2
    %v474 = vsel %vm468, %v472, %v473
    %v477 = vadd.f32 %v454, %v471
    %v478 = vadd.f32 %v455, %v474
    %v479 = vlaneseq
    %v480 = vshrl.u32 %v479, 7
    %v481 = vsub.s32 0, %v480
    %v482 = vrot.slane %v268, %v481
    %v483 = vmul.f32 %v419, %v482
    %v484 = vmul.f32 %v414, %v482
    %v485 = vmul.f32 %v420, %v482
    %v486 = vmul.f32 %v415, %v482
    %vm491 = vcmask 1044480
    %v492 = vrot.slane %v483, 3
    %v493 = vrot.slane %v484, 3
    %v494 = vsel %vm491, %v492, %v493
    %v495 = vrot.slane %v485, 3
    %v496 = vrot.slane %v486, 3
    %v497 = vsel %vm491, %v495, %v496
    %v500 = vadd.f32 %v477, %v494
    %v501 = vadd.f32 %v478, %v497
    %v502 = vsub.f32 0.0, %v500
    %v503 = vsub.f32 0.0, %v501
    %v504 = vmul.f32 %v502, 1.442695
    %v505 = vpow.pop %v504
    %v506 = vmul.f32 %v503, 1.442695
    %v507 = vpow.pop %v506
    %v508 = vadd.f32 %v505, 1.0
    %v509 = vadd.f32 %v507, 1.0
    %v510 = vrcp.pop %v508
    %v511 = vmul.f32 1.0, %v510
    %v512 = vrcp.pop %v509
    %v513 = vmul.f32 1.0, %v512
    %v514 = vmul.f32 %v500, %v511
    %v515 = vmul.f32 %v501, %v513
    %vm516 = vcmask 523264
    %v518 = vsel %vm516, %v514, 0
    %v521 = vsel %vm516, %v515, 0
    %523 = vmatprep.subr.mxu0 0.0
    %524 = vmatpush1.msra.mxu0 0.0
    %525 = vmatprep.subr.mxu0 0.0
    %526 = vmatpush1.msra.mxu0 0.0
    %527 = vmatprep.subr.mxu0 0.0
    %528 = vmatpush1.msra.mxu0 0.0
    %529 = vmatprep.subr.mxu0 0.0
    %530 = vmatpush1.msra.mxu0 0.0
    %531 = vmatprep.subr.mxu0 0.0
    %532 = vmatpush1.msra.mxu0 0.0
    %533 = vmatprep.subr.mxu0 0.0
    %534 = vmatpush1.msra.mxu0 0.0
    %535 = vmatprep.subr.mxu0 0.0
    %536 = vmatpush1.msra.mxu0 0.0
    %537 = vmatprep.subr.mxu0 0.0
    %538 = vmatpush1.msra.mxu0 0.0
    %539 = vmatprep.subr.mxu0 0.0
    %540 = vmatpush1.msra.mxu0 %v280
    %541 = vmatprep.subr.mxu0 0.0
    %542 = vmatpush1.msra.mxu0 %v279
    %543 = vmatprep.subr.mxu0 0.0
    %544 = vmatpush1.msra.mxu0 %v278
    %545 = vmatprep.subr.mxu0 0.0
    %546 = vmatpush1.msra.mxu0 %v277
    %547 = vmatprep.subr.mxu0 0.0
    %548 = vmatpush1.msra.mxu0 %v276
    %549 = vmatprep.subr.mxu0 0.0
    %550 = vmatpush1.msra.mxu0 %v275
    %551 = vmatprep.subr.mxu0 0.0
    %552 = vmatpush1.msra.mxu0 %v274
    %553 = vmatprep.subr.mxu0 0.0
    %554 = vmatpush1.msra.mxu0 %v273
    %555 = vmatprep.subr.mxu0 0.0
    %556 = vmatpush2.msra.mxu0 0.0
    %557 = vmatprep.subr.mxu0 0.0
    %558 = vmatpush2.msra.mxu0 0.0
    %559 = vmatprep.subr.mxu0 0.0
    %560 = vmatpush2.msra.mxu0 0.0
    %561 = vmatprep.subr.mxu0 0.0
    %562 = vmatpush2.msra.mxu0 0.0
    %563 = vmatprep.subr.mxu0 0.0
    %564 = vmatpush2.msra.mxu0 0.0
    %565 = vmatprep.subr.mxu0 0.0
    %566 = vmatpush2.msra.mxu0 0.0
    %567 = vmatprep.subr.mxu0 0.0
    %568 = vmatpush2.msra.mxu0 0.0
    %569 = vmatprep.subr.mxu0 0.0
    %570 = vmatpush2.msra.mxu0 0.0
    %571 = vmatprep.subr.mxu0 0.0
    %572 = vmatpush2.msra.mxu0 0.0
    %573 = vmatprep.subr.mxu0 0.0
    %574 = vmatpush2.msra.mxu0 0.0
    %575 = vmatprep.subr.mxu0 0.0
    %576 = vmatpush2.msra.mxu0 0.0
    %577 = vmatprep.subr.mxu0 0.0
    %578 = vmatpush2.msra.mxu0 0.0
    %579 = vmatprep.subr.mxu0 0.0
    %580 = vmatpush2.msra.mxu0 0.0
    %581 = vmatprep.subr.mxu0 0.0
    %582 = vmatpush2.msra.mxu0 0.0
    %583 = vmatprep.subr.mxu0 0.0
    %584 = vmatpush2.msra.mxu0 0.0
    %585 = vmatprep.subr.mxu0 0.0
    %586 = vmatpush2.msra.mxu0 0.0
    %587 = vmatprep.mubr.f32.mxu0 0.0
    %588 = vmatmul.mubr.f32.gmra.mxu0 %v518
    %v589 = vpop.f32.mrf.mxu0
    %v590 = vadd.f32 0.0, %v589
    %v591 = vpop.f32.mrf.mxu0
    %592 = vmatprep.mubr.f32.mxu0 0.0
    %593 = vmatmul.mubr.f32.gmra.mxu0 %v521
    %v594 = vpop.f32.mrf.mxu0
    %v595 = vadd.f32 0.0, %v594
    %v596 = vpop.f32.mrf.mxu0
    %597 = vdwg.mxu0
    %v598 = vlaneseq
    %v599 = vshrl.u32 %v598, 7
    %v600 = vsub.s32 3, %v599
    %v601 = vrot.slane %v267, %v600
    %v603 = vrot.slane %v268, 1
    %vm604 = vcmask 15360
    %v606 = vsel %vm604, %v590, 0
    %v609 = vsel %vm604, %v595, 0
    %vm611 = vcmask 1041408
    %v612 = vsel %vm611, %v603, 0
    %614 = vmatprep.subr.mxu0 0.0
    %615 = vmatpush1.msra.mxu0 0.0
    %616 = vmatprep.subr.mxu0 0.0
    %617 = vmatpush1.msra.mxu0 0.0
    %618 = vmatprep.subr.mxu0 0.0
    %619 = vmatpush1.msra.mxu0 0.0
    %620 = vmatprep.subr.mxu0 0.0
    %621 = vmatpush1.msra.mxu0 0.0
    %622 = vmatprep.subr.mxu0 0.0
    %623 = vmatpush1.msra.mxu0 0.0
    %624 = vmatprep.subr.mxu0 0.0
    %625 = vmatpush1.msra.mxu0 0.0
    %626 = vmatprep.subr.mxu0 0.0
    %627 = vmatpush1.msra.mxu0 0.0
    %628 = vmatprep.subr.mxu0 0.0
    %629 = vmatpush1.msra.mxu0 0.0
    %630 = vmatprep.subr.mxu0 0.0
    %631 = vmatpush1.msra.mxu0 0.0
    %632 = vmatprep.subr.mxu0 0.0
    %633 = vmatpush1.msra.mxu0 0.0
    %634 = vmatprep.subr.mxu0 0.0
    %635 = vmatpush1.msra.mxu0 0.0
    %636 = vmatprep.subr.mxu0 0.0
    %637 = vmatpush1.msra.mxu0 0.0
    %638 = vmatprep.subr.mxu0 0.0
    %639 = vmatpush1.msra.mxu0 0.0
    %640 = vmatprep.subr.mxu0 0.0
    %641 = vmatpush1.msra.mxu0 0.0
    %642 = vmatprep.subr.mxu0 0.0
    %643 = vmatpush1.msra.mxu0 0.0
    %644 = vmatprep.subr.mxu0 0.0
    %645 = vmatpush1.msra.mxu0 %v612
    %646 = vmatprep.subr.mxu0 0.0
    %647 = vmatpush2.msra.mxu0 0.0
    %648 = vmatprep.subr.mxu0 0.0
    %649 = vmatpush2.msra.mxu0 0.0
    %650 = vmatprep.subr.mxu0 0.0
    %651 = vmatpush2.msra.mxu0 0.0
    %652 = vmatprep.subr.mxu0 0.0
    %653 = vmatpush2.msra.mxu0 0.0
    %654 = vmatprep.subr.mxu0 0.0
    %655 = vmatpush2.msra.mxu0 0.0
    %656 = vmatprep.subr.mxu0 0.0
    %657 = vmatpush2.msra.mxu0 0.0
    %658 = vmatprep.subr.mxu0 0.0
    %659 = vmatpush2.msra.mxu0 0.0
    %660 = vmatprep.subr.mxu0 0.0
    %661 = vmatpush2.msra.mxu0 0.0
    %662 = vmatprep.subr.mxu0 0.0
    %663 = vmatpush2.msra.mxu0 0.0
    %664 = vmatprep.subr.mxu0 0.0
    %665 = vmatpush2.msra.mxu0 0.0
    %666 = vmatprep.subr.mxu0 0.0
    %667 = vmatpush2.msra.mxu0 0.0
    %668 = vmatprep.subr.mxu0 0.0
    %669 = vmatpush2.msra.mxu0 0.0
    %670 = vmatprep.subr.mxu0 0.0
    %671 = vmatpush2.msra.mxu0 0.0
    %672 = vmatprep.subr.mxu0 0.0
    %673 = vmatpush2.msra.mxu0 0.0
    %674 = vmatprep.subr.mxu0 0.0
    %675 = vmatpush2.msra.mxu0 0.0
    %676 = vmatprep.subr.mxu0 0.0
    %677 = vmatpush2.msra.mxu0 0.0
    %678 = vmatprep.mubr.f32.mxu0 0.0
    %679 = vmatmul.mubr.f32.gmra.mxu0 %v606
    %v680 = vpop.f32.mrf.mxu0
    %v681 = vadd.f32 %v601, %v680
    %v682 = vpop.f32.mrf.mxu0
    %683 = vmatprep.mubr.f32.mxu0 0.0
    %684 = vmatmul.mubr.f32.gmra.mxu0 %v609
    %v685 = vpop.f32.mrf.mxu0
    %v686 = vadd.f32 %v601, %v685
    %v687 = vpop.f32.mrf.mxu0
    %688 = vdwg.mxu0
    %vm689 = vcmp.gt.f32.partialorder %v681, 20.0
    %vm690 = vcmp.gt.f32.partialorder %v686, 20.0
    %v691 = vmin.f32 %v681, 20.0
    %v692 = vmin.f32 %v686, 20.0
    %v693 = vmul.f32 %v691, 1.442695
    %v694 = vpow.pop %v693
    %v695 = vmul.f32 %v692, 1.442695
    %v696 = vpow.pop %v695
    %v697 = vadd.f32 %v694, 1.0
    %v698 = vlog2.pop %v697
    %v699 = vmul.f32 %v698, 0.6931472
    %v700 = vmul.f32 -0.5, %v694
    %v701 = vadd.f32 %v700, 1.0
    %v702 = vmul.f32 %v701, %v694
    %v703 = vand.u32 2147483647, %v694
    %vm704 = vcmp.lt.f32.partialorder %v703, 0.0004427343
    %v705 = vsel %vm704, %v702, %v699
    %v706 = vadd.f32 %v696, 1.0
    %v707 = vlog2.pop %v706
    %v708 = vmul.f32 %v707, 0.6931472
    %v709 = vmul.f32 -0.5, %v696
    %v710 = vadd.f32 %v709, 1.0
    %v711 = vmul.f32 %v710, %v696
    %v712 = vand.u32 2147483647, %v696
    %vm713 = vcmp.lt.f32.partialorder %v712, 0.0004427343
    %v714 = vsel %vm713, %v711, %v708
    %v715 = vsel %vm689, %v681, %v705
    %v716 = vsel %vm690, %v686, %v714
    %v717 = vmul.f32 %v281, 1.442695
    %v718 = vpow.pop %v717
    %v719 = vmul.f32 %v282, 1.442695
    %v720 = vpow.pop %v719
    %v721 = vsub.f32 0.0, %v718
    %v722 = vsub.f32 0.0, %v720
    %v725 = vcombine.high %v715, %v715
    %v727 = vunpack.c.l.s4 1966171168
    %v728 = vunpack.c.0.s8 %v727
    %v729 = vlaneseq
    %v730 = vshrl.u32 %v729, 7
    %v731 = vsub.s32 %v728, %v730
    %v732 = vrot.slane %v715, %v731
    %v734 = vunpack.c.l.s4 1966171168
    %v735 = vunpack.c.0.s8 %v734
    %v736 = vlaneseq
    %v737 = vshrl.u32 %v736, 7
    %v738 = vsub.s32 %v735, %v737
    %v739 = vrot.slane %v725, %v738
    %v740 = vcombine.high %v732, %v732
    %v741 = vcombine.high %v739, %v739
    %v743 = vunpack.c.l.s4 1966171168
    %v744 = vunpack.c.0.s8 %v743
    %v745 = vlaneseq
    %v746 = vshrl.u32 %v745, 7
    %v747 = vsub.s32 %v744, %v746
    %v748 = vrot.slane %v732, %v747
    %v750 = vunpack.c.l.s4 1966171168
    %v751 = vunpack.c.0.s8 %v750
    %v752 = vlaneseq
    %v753 = vshrl.u32 %v752, 7
    %v754 = vsub.s32 %v751, %v753
    %v755 = vrot.slane %v739, %v754
    %v757 = vunpack.c.l.s4 1966171168
    %v758 = vunpack.c.0.s8 %v757
    %v759 = vlaneseq
    %v760 = vshrl.u32 %v759, 7
    %v761 = vsub.s32 %v758, %v760
    %v762 = vrot.slane %v740, %v761
    %v764 = vunpack.c.l.s4 1966171168
    %v765 = vunpack.c.0.s8 %v764
    %v766 = vlaneseq
    %v767 = vshrl.u32 %v766, 7
    %v768 = vsub.s32 %v765, %v767
    %v769 = vrot.slane %v741, %v768
    %v770 = vcombine.high %v748, %v748
    %v771 = vcombine.high %v755, %v755
    %v772 = vcombine.high %v762, %v762
    %v773 = vcombine.high %v769, %v769
    %v774 = vcombine.high %v716, %v716
    %v776 = vunpack.c.l.s4 1966171168
    %v777 = vunpack.c.0.s8 %v776
    %v778 = vlaneseq
    %v779 = vshrl.u32 %v778, 7
    %v780 = vsub.s32 %v777, %v779
    %v781 = vrot.slane %v716, %v780
    %v783 = vunpack.c.l.s4 1966171168
    %v784 = vunpack.c.0.s8 %v783
    %v785 = vlaneseq
    %v786 = vshrl.u32 %v785, 7
    %v787 = vsub.s32 %v784, %v786
    %v788 = vrot.slane %v774, %v787
    %v789 = vcombine.high %v781, %v781
    %v790 = vcombine.high %v788, %v788
    %v792 = vunpack.c.l.s4 1966171168
    %v793 = vunpack.c.0.s8 %v792
    %v794 = vlaneseq
    %v795 = vshrl.u32 %v794, 7
    %v796 = vsub.s32 %v793, %v795
    %v797 = vrot.slane %v781, %v796
    %v799 = vunpack.c.l.s4 1966171168
    %v800 = vunpack.c.0.s8 %v799
    %v801 = vlaneseq
    %v802 = vshrl.u32 %v801, 7
    %v803 = vsub.s32 %v800, %v802
    %v804 = vrot.slane %v788, %v803
    %v806 = vunpack.c.l.s4 1966171168
    %v807 = vunpack.c.0.s8 %v806
    %v808 = vlaneseq
    %v809 = vshrl.u32 %v808, 7
    %v810 = vsub.s32 %v807, %v809
    %v811 = vrot.slane %v789, %v810
    %v813 = vunpack.c.l.s4 1966171168
    %v814 = vunpack.c.0.s8 %v813
    %v815 = vlaneseq
    %v816 = vshrl.u32 %v815, 7
    %v817 = vsub.s32 %v814, %v816
    %v818 = vrot.slane %v790, %v817
    %v819 = vcombine.high %v797, %v797
    %v820 = vcombine.high %v804, %v804
    %v821 = vcombine.high %v811, %v811
    %v822 = vcombine.high %v818, %v818
    %v823 = vlaneseq
    %v824 = vshrl.u32 %v823, 7
    %v825 = vsub.s32 0, %v824
    %v826 = vrot.slane %v748, %v825
    %v827 = vlaneseq
    %v828 = vshrl.u32 %v827, 7
    %v829 = vsub.s32 0, %v828
    %v830 = vrot.slane %v762, %v829
    %v831 = vlaneseq
    %v832 = vshrl.u32 %v831, 7
    %v833 = vsub.s32 0, %v832
    %v834 = vrot.slane %v770, %v833
    %v835 = vlaneseq
    %v836 = vshrl.u32 %v835, 7
    %v837 = vsub.s32 0, %v836
    %v838 = vrot.slane %v772, %v837
    %v839 = vlaneseq
    %v840 = vshrl.u32 %v839, 7
    %v841 = vsub.s32 0, %v840
    %v842 = vrot.slane %v755, %v841
    %v843 = vlaneseq
    %v844 = vshrl.u32 %v843, 7
    %v845 = vsub.s32 0, %v844
    %v846 = vrot.slane %v769, %v845
    %v847 = vlaneseq
    %v848 = vshrl.u32 %v847, 7
    %v849 = vsub.s32 0, %v848
    %v850 = vrot.slane %v771, %v849
    %v851 = vlaneseq
    %v852 = vshrl.u32 %v851, 7
    %v853 = vsub.s32 0, %v852
    %v854 = vrot.slane %v773, %v853
    %v855 = vlaneseq
    %v856 = vshrl.u32 %v855, 7
    %v857 = vsub.s32 0, %v856
    %v858 = vrot.slane %v797, %v857
    %v859 = vlaneseq
    %v860 = vshrl.u32 %v859, 7
    %v861 = vsub.s32 0, %v860
    %v862 = vrot.slane %v811, %v861
    %v863 = vlaneseq
    %v864 = vshrl.u32 %v863, 7
    %v865 = vsub.s32 0, %v864
    %v866 = vrot.slane %v819, %v865
    %v867 = vlaneseq
    %v868 = vshrl.u32 %v867, 7
    %v869 = vsub.s32 0, %v868
    %v870 = vrot.slane %v821, %v869
    %v871 = vlaneseq
    %v872 = vshrl.u32 %v871, 7
    %v873 = vsub.s32 0, %v872
    %v874 = vrot.slane %v804, %v873
    %v875 = vlaneseq
    %v876 = vshrl.u32 %v875, 7
    %v877 = vsub.s32 0, %v876
    %v878 = vrot.slane %v818, %v877
    %v879 = vlaneseq
    %v880 = vshrl.u32 %v879, 7
    %v881 = vsub.s32 0, %v880
    %v882 = vrot.slane %v820, %v881
    %v883 = vlaneseq
    %v884 = vshrl.u32 %v883, 7
    %v885 = vsub.s32 0, %v884
    %v886 = vrot.slane %v822, %v885
    %v903 = vmul.f32 %v826, %v721
    %v904 = vmul.f32 %v826, %v722
    %v905 = vmul.f32 %v830, %v721
    %v906 = vmul.f32 %v830, %v722
    %v907 = vmul.f32 %v834, %v721
    %v908 = vmul.f32 %v834, %v722
    %v909 = vmul.f32 %v838, %v721
    %v910 = vmul.f32 %v838, %v722
    %v911 = vmul.f32 %v842, %v721
    %v912 = vmul.f32 %v842, %v722
    %v913 = vmul.f32 %v846, %v721
    %v914 = vmul.f32 %v846, %v722
    %v915 = vmul.f32 %v850, %v721
    %v916 = vmul.f32 %v850, %v722
    %v917 = vmul.f32 %v854, %v721
    %v918 = vmul.f32 %v854, %v722
    %v919 = vmul.f32 %v858, %v721
    %v920 = vmul.f32 %v858, %v722
    %v921 = vmul.f32 %v862, %v721
    %v922 = vmul.f32 %v862, %v722
    %v923 = vmul.f32 %v866, %v721
    %v924 = vmul.f32 %v866, %v722
    %v925 = vmul.f32 %v870, %v721
    %v926 = vmul.f32 %v870, %v722
    %v927 = vmul.f32 %v874, %v721
    %v928 = vmul.f32 %v874, %v722
    %v929 = vmul.f32 %v878, %v721
    %v930 = vmul.f32 %v878, %v722
    %v931 = vmul.f32 %v882, %v721
    %v932 = vmul.f32 %v882, %v722
    %v933 = vmul.f32 %v886, %v721
    %v934 = vmul.f32 %v886, %v722
    %v935 = vmul.f32 %v903, 1.442695
    %v936 = vpow.pop %v935
    %v937 = vmul.f32 %v904, 1.442695
    %v938 = vpow.pop %v937
    %v939 = vmul.f32 %v905, 1.442695
    %v940 = vpow.pop %v939
    %v941 = vmul.f32 %v906, 1.442695
    %v942 = vpow.pop %v941
    %v943 = vmul.f32 %v907, 1.442695
    %v944 = vpow.pop %v943
    %v945 = vmul.f32 %v908, 1.442695
    %v946 = vpow.pop %v945
    %v947 = vmul.f32 %v909, 1.442695
    %v948 = vpow.pop %v947
    %v949 = vmul.f32 %v910, 1.442695
    %v950 = vpow.pop %v949
    %v951 = vmul.f32 %v911, 1.442695
    %v952 = vpow.pop %v951
    %v953 = vmul.f32 %v912, 1.442695
    %v954 = vpow.pop %v953
    %v955 = vmul.f32 %v913, 1.442695
    %v956 = vpow.pop %v955
    %v957 = vmul.f32 %v914, 1.442695
    %v958 = vpow.pop %v957
    %v959 = vmul.f32 %v915, 1.442695
    %v960 = vpow.pop %v959
    %v961 = vmul.f32 %v916, 1.442695
    %v962 = vpow.pop %v961
    %v963 = vmul.f32 %v917, 1.442695
    %v964 = vpow.pop %v963
    %v965 = vmul.f32 %v918, 1.442695
    %v966 = vpow.pop %v965
    %v967 = vmul.f32 %v919, 1.442695
    %v968 = vpow.pop %v967
    %v969 = vmul.f32 %v920, 1.442695
    %v970 = vpow.pop %v969
    %v971 = vmul.f32 %v921, 1.442695
    %v972 = vpow.pop %v971
    %v973 = vmul.f32 %v922, 1.442695
    %v974 = vpow.pop %v973
    %v975 = vmul.f32 %v923, 1.442695
    %v976 = vpow.pop %v975
    %v977 = vmul.f32 %v924, 1.442695
    %v978 = vpow.pop %v977
    %v979 = vmul.f32 %v925, 1.442695
    %v980 = vpow.pop %v979
    %v981 = vmul.f32 %v926, 1.442695
    %v982 = vpow.pop %v981
    %v983 = vmul.f32 %v927, 1.442695
    %v984 = vpow.pop %v983
    %v985 = vmul.f32 %v928, 1.442695
    %v986 = vpow.pop %v985
    %v987 = vmul.f32 %v929, 1.442695
    %v988 = vpow.pop %v987
    %v989 = vmul.f32 %v930, 1.442695
    %v990 = vpow.pop %v989
    %v991 = vmul.f32 %v931, 1.442695
    %v992 = vpow.pop %v991
    %v993 = vmul.f32 %v932, 1.442695
    %v994 = vpow.pop %v993
    %v995 = vmul.f32 %v933, 1.442695
    %v996 = vpow.pop %v995
    %v997 = vmul.f32 %v934, 1.442695
    %v998 = vpow.pop %v997
    %v999 = vmul.f32 %v715, %v514
    %v1000 = vmul.f32 %v716, %v515
    %v1003 = vcombine.high %v999, %v999
    %v1005 = vunpack.c.l.s4 1966171168
    %v1006 = vunpack.c.0.s8 %v1005
    %v1007 = vlaneseq
    %v1008 = vshrl.u32 %v1007, 7
    %v1009 = vsub.s32 %v1006, %v1008
    %v1010 = vrot.slane %v999, %v1009
    %v1012 = vunpack.c.l.s4 1966171168
    %v1013 = vunpack.c.0.s8 %v1012
    %v1014 = vlaneseq
    %v1015 = vshrl.u32 %v1014, 7
    %v1016 = vsub.s32 %v1013, %v1015
    %v1017 = vrot.slane %v1003, %v1016
    %v1018 = vcombine.high %v1010, %v1010
    %v1019 = vcombine.high %v1017, %v1017
    %v1021 = vunpack.c.l.s4 1966171168
    %v1022 = vunpack.c.0.s8 %v1021
    %v1023 = vlaneseq
    %v1024 = vshrl.u32 %v1023, 7
    %v1025 = vsub.s32 %v1022, %v1024
    %v1026 = vrot.slane %v1010, %v1025
    %v1028 = vunpack.c.l.s4 1966171168
    %v1029 = vunpack.c.0.s8 %v1028
    %v1030 = vlaneseq
    %v1031 = vshrl.u32 %v1030, 7
    %v1032 = vsub.s32 %v1029, %v1031
    %v1033 = vrot.slane %v1017, %v1032
    %v1035 = vunpack.c.l.s4 1966171168
    %v1036 = vunpack.c.0.s8 %v1035
    %v1037 = vlaneseq
    %v1038 = vshrl.u32 %v1037, 7
    %v1039 = vsub.s32 %v1036, %v1038
    %v1040 = vrot.slane %v1018, %v1039
    %v1042 = vunpack.c.l.s4 1966171168
    %v1043 = vunpack.c.0.s8 %v1042
    %v1044 = vlaneseq
    %v1045 = vshrl.u32 %v1044, 7
    %v1046 = vsub.s32 %v1043, %v1045
    %v1047 = vrot.slane %v1019, %v1046
    %v1048 = vcombine.high %v1026, %v1026
    %v1049 = vcombine.high %v1033, %v1033
    %v1050 = vcombine.high %v1040, %v1040
    %v1051 = vcombine.high %v1047, %v1047
    %v1052 = vcombine.high %v1000, %v1000
    %v1054 = vunpack.c.l.s4 1966171168
    %v1055 = vunpack.c.0.s8 %v1054
    %v1056 = vlaneseq
    %v1057 = vshrl.u32 %v1056, 7
    %v1058 = vsub.s32 %v1055, %v1057
    %v1059 = vrot.slane %v1000, %v1058
    %v1061 = vunpack.c.l.s4 1966171168
    %v1062 = vunpack.c.0.s8 %v1061
    %v1063 = vlaneseq
    %v1064 = vshrl.u32 %v1063, 7
    %v1065 = vsub.s32 %v1062, %v1064
    %v1066 = vrot.slane %v1052, %v1065
    %v1067 = vcombine.high %v1059, %v1059
    %v1068 = vcombine.high %v1066, %v1066
    %v1070 = vunpack.c.l.s4 1966171168
    %v1071 = vunpack.c.0.s8 %v1070
    %v1072 = vlaneseq
    %v1073 = vshrl.u32 %v1072, 7
    %v1074 = vsub.s32 %v1071, %v1073
    %v1075 = vrot.slane %v1059, %v1074
    %v1077 = vunpack.c.l.s4 1966171168
    %v1078 = vunpack.c.0.s8 %v1077
    %v1079 = vlaneseq
    %v1080 = vshrl.u32 %v1079, 7
    %v1081 = vsub.s32 %v1078, %v1080
    %v1082 = vrot.slane %v1066, %v1081
    %v1084 = vunpack.c.l.s4 1966171168
    %v1085 = vunpack.c.0.s8 %v1084
    %v1086 = vlaneseq
    %v1087 = vshrl.u32 %v1086, 7
    %v1088 = vsub.s32 %v1085, %v1087
    %v1089 = vrot.slane %v1067, %v1088
    %v1091 = vunpack.c.l.s4 1966171168
    %v1092 = vunpack.c.0.s8 %v1091
    %v1093 = vlaneseq
    %v1094 = vshrl.u32 %v1093, 7
    %v1095 = vsub.s32 %v1092, %v1094
    %v1096 = vrot.slane %v1068, %v1095
    %v1097 = vcombine.high %v1075, %v1075
    %v1098 = vcombine.high %v1082, %v1082
    %v1099 = vcombine.high %v1089, %v1089
    %v1100 = vcombine.high %v1096, %v1096
    %v1101 = vlaneseq
    %v1102 = vshrl.u32 %v1101, 7
    %v1103 = vsub.s32 0, %v1102
    %v1104 = vrot.slane %v590, %v1103
    %s1106 = sor.u32 256, 2
    %1107 = vbcast.lane.b32.xlu0 %v1104, %s1106
    %v1108 = vpop.permute.xlu0 %1107
    %s1110 = sor.u32 256, 10
    %1111 = vbcast.lane.b32.xlu0 %v1104, %s1110
    %v1112 = vpop.permute.xlu0 %1111
    %v1113 = vlaneseq
    %v1114 = vshrl.u32 %v1113, 7
    %v1115 = vsub.s32 1, %v1114
    %v1116 = vrot.slane %v590, %v1115
    %s1118 = sor.u32 256, 2
    %1119 = vbcast.lane.b32.xlu0 %v1116, %s1118
    %v1120 = vpop.permute.xlu0 %1119
    %s1122 = sor.u32 256, 10
    %1123 = vbcast.lane.b32.xlu0 %v1116, %s1122
    %v1124 = vpop.permute.xlu0 %1123
    %v1125 = vlaneseq
    %v1126 = vshrl.u32 %v1125, 7
    %v1127 = vsub.s32 2, %v1126
    %v1128 = vrot.slane %v590, %v1127
    %s1130 = sor.u32 256, 2
    %1131 = vbcast.lane.b32.xlu0 %v1128, %s1130
    %v1132 = vpop.permute.xlu0 %1131
    %s1134 = sor.u32 256, 10
    %1135 = vbcast.lane.b32.xlu0 %v1128, %s1134
    %v1136 = vpop.permute.xlu0 %1135
    %v1137 = vlaneseq
    %v1138 = vshrl.u32 %v1137, 7
    %v1139 = vsub.s32 3, %v1138
    %v1140 = vrot.slane %v590, %v1139
    %s1142 = sor.u32 256, 2
    %1143 = vbcast.lane.b32.xlu0 %v1140, %s1142
    %v1144 = vpop.permute.xlu0 %1143
    %s1146 = sor.u32 256, 10
    %1147 = vbcast.lane.b32.xlu0 %v1140, %s1146
    %v1148 = vpop.permute.xlu0 %1147
    %v1149 = vlaneseq
    %v1150 = vshrl.u32 %v1149, 7
    %v1151 = vsub.s32 4, %v1150
    %v1152 = vrot.slane %v590, %v1151
    %s1154 = sor.u32 256, 2
    %1155 = vbcast.lane.b32.xlu0 %v1152, %s1154
    %v1156 = vpop.permute.xlu0 %1155
    %s1158 = sor.u32 256, 10
    %1159 = vbcast.lane.b32.xlu0 %v1152, %s1158
    %v1160 = vpop.permute.xlu0 %1159
    %v1161 = vlaneseq
    %v1162 = vshrl.u32 %v1161, 7
    %v1163 = vsub.s32 5, %v1162
    %v1164 = vrot.slane %v590, %v1163
    %s1166 = sor.u32 256, 2
    %1167 = vbcast.lane.b32.xlu0 %v1164, %s1166
    %v1168 = vpop.permute.xlu0 %1167
    %s1170 = sor.u32 256, 10
    %1171 = vbcast.lane.b32.xlu0 %v1164, %s1170
    %v1172 = vpop.permute.xlu0 %1171
    %v1173 = vlaneseq
    %v1174 = vshrl.u32 %v1173, 7
    %v1175 = vsub.s32 6, %v1174
    %v1176 = vrot.slane %v590, %v1175
    %s1178 = sor.u32 256, 2
    %1179 = vbcast.lane.b32.xlu0 %v1176, %s1178
    %v1180 = vpop.permute.xlu0 %1179
    %s1182 = sor.u32 256, 10
    %1183 = vbcast.lane.b32.xlu0 %v1176, %s1182
    %v1184 = vpop.permute.xlu0 %1183
    %v1185 = vlaneseq
    %v1186 = vshrl.u32 %v1185, 7
    %v1187 = vsub.s32 7, %v1186
    %v1188 = vrot.slane %v590, %v1187
    %s1190 = sor.u32 256, 2
    %1191 = vbcast.lane.b32.xlu0 %v1188, %s1190
    %v1192 = vpop.permute.xlu0 %1191
    %s1194 = sor.u32 256, 10
    %1195 = vbcast.lane.b32.xlu0 %v1188, %s1194
    %v1196 = vpop.permute.xlu0 %1195
    %v1197 = vlaneseq
    %v1198 = vshrl.u32 %v1197, 7
    %v1199 = vsub.s32 0, %v1198
    %v1200 = vrot.slane %v595, %v1199
    %s1202 = sor.u32 256, 2
    %1203 = vbcast.lane.b32.xlu0 %v1200, %s1202
    %v1204 = vpop.permute.xlu0 %1203
    %s1206 = sor.u32 256, 10
    %1207 = vbcast.lane.b32.xlu0 %v1200, %s1206
    %v1208 = vpop.permute.xlu0 %1207
    %v1209 = vlaneseq
    %v1210 = vshrl.u32 %v1209, 7
    %v1211 = vsub.s32 1, %v1210
    %v1212 = vrot.slane %v595, %v1211
    %s1214 = sor.u32 256, 2
    %1215 = vbcast.lane.b32.xlu0 %v1212, %s1214
    %v1216 = vpop.permute.xlu0 %1215
    %s1218 = sor.u32 256, 10
    %1219 = vbcast.lane.b32.xlu0 %v1212, %s1218
    %v1220 = vpop.permute.xlu0 %1219
    %v1221 = vlaneseq
    %v1222 = vshrl.u32 %v1221, 7
    %v1223 = vsub.s32 2, %v1222
    %v1224 = vrot.slane %v595, %v1223
    %s1226 = sor.u32 256, 2
    %1227 = vbcast.lane.b32.xlu0 %v1224, %s1226
    %v1228 = vpop.permute.xlu0 %1227
    %s1230 = sor.u32 256, 10
    %1231 = vbcast.lane.b32.xlu0 %v1224, %s1230
    %v1232 = vpop.permute.xlu0 %1231
    %v1233 = vlaneseq
    %v1234 = vshrl.u32 %v1233, 7
    %v1235 = vsub.s32 3, %v1234
    %v1236 = vrot.slane %v595, %v1235
    %s1238 = sor.u32 256, 2
    %1239 = vbcast.lane.b32.xlu0 %v1236, %s1238
    %v1240 = vpop.permute.xlu0 %1239
    %s1242 = sor.u32 256, 10
    %1243 = vbcast.lane.b32.xlu0 %v1236, %s1242
    %v1244 = vpop.permute.xlu0 %1243
    %v1245 = vlaneseq
    %v1246 = vshrl.u32 %v1245, 7
    %v1247 = vsub.s32 4, %v1246
    %v1248 = vrot.slane %v595, %v1247
    %s1250 = sor.u32 256, 2
    %1251 = vbcast.lane.b32.xlu0 %v1248, %s1250
    %v1252 = vpop.permute.xlu0 %1251
    %s1254 = sor.u32 256, 10
    %1255 = vbcast.lane.b32.xlu0 %v1248, %s1254
    %v1256 = vpop.permute.xlu0 %1255
    %v1257 = vlaneseq
    %v1258 = vshrl.u32 %v1257, 7
    %v1259 = vsub.s32 5, %v1258
    %v1260 = vrot.slane %v595, %v1259
    %s1262 = sor.u32 256, 2
    %1263 = vbcast.lane.b32.xlu0 %v1260, %s1262
    %v1264 = vpop.permute.xlu0 %1263
    %s1266 = sor.u32 256, 10
    %1267 = vbcast.lane.b32.xlu0 %v1260, %s1266
    %v1268 = vpop.permute.xlu0 %1267
    %v1269 = vlaneseq
    %v1270 = vshrl.u32 %v1269, 7
    %v1271 = vsub.s32 6, %v1270
    %v1272 = vrot.slane %v595, %v1271
    %s1274 = sor.u32 256, 2
    %1275 = vbcast.lane.b32.xlu0 %v1272, %s1274
    %v1276 = vpop.permute.xlu0 %1275
    %s1278 = sor.u32 256, 10
    %1279 = vbcast.lane.b32.xlu0 %v1272, %s1278
    %v1280 = vpop.permute.xlu0 %1279
    %v1281 = vlaneseq
    %v1282 = vshrl.u32 %v1281, 7
    %v1283 = vsub.s32 7, %v1282
    %v1284 = vrot.slane %v595, %v1283
    %s1286 = sor.u32 256, 2
    %1287 = vbcast.lane.b32.xlu0 %v1284, %s1286
    %v1288 = vpop.permute.xlu0 %1287
    %s1290 = sor.u32 256, 10
    %1291 = vbcast.lane.b32.xlu0 %v1284, %s1290
    %v1292 = vpop.permute.xlu0 %1291
    %v1293 = vlaneseq
    %v1294 = vshrl.u32 %v1293, 7
    %v1295 = vsub.s32 0, %v1294
    %v1296 = vrot.slane %v1026, %v1295
    %v1297 = vlaneseq
    %v1298 = vshrl.u32 %v1297, 7
    %v1299 = vsub.s32 0, %v1298
    %v1300 = vrot.slane %v1040, %v1299
    %v1301 = vlaneseq
    %v1302 = vshrl.u32 %v1301, 7
    %v1303 = vsub.s32 0, %v1302
    %v1304 = vrot.slane %v1048, %v1303
    %v1305 = vlaneseq
    %v1306 = vshrl.u32 %v1305, 7
    %v1307 = vsub.s32 0, %v1306
    %v1308 = vrot.slane %v1050, %v1307
    %v1309 = vlaneseq
    %v1310 = vshrl.u32 %v1309, 7
    %v1311 = vsub.s32 0, %v1310
    %v1312 = vrot.slane %v1033, %v1311
    %v1313 = vlaneseq
    %v1314 = vshrl.u32 %v1313, 7
    %v1315 = vsub.s32 0, %v1314
    %v1316 = vrot.slane %v1047, %v1315
    %v1317 = vlaneseq
    %v1318 = vshrl.u32 %v1317, 7
    %v1319 = vsub.s32 0, %v1318
    %v1320 = vrot.slane %v1049, %v1319
    %v1321 = vlaneseq
    %v1322 = vshrl.u32 %v1321, 7
    %v1323 = vsub.s32 0, %v1322
    %v1324 = vrot.slane %v1051, %v1323
    %v1325 = vlaneseq
    %v1326 = vshrl.u32 %v1325, 7
    %v1327 = vsub.s32 0, %v1326
    %v1328 = vrot.slane %v1075, %v1327
    %v1329 = vlaneseq
    %v1330 = vshrl.u32 %v1329, 7
    %v1331 = vsub.s32 0, %v1330
    %v1332 = vrot.slane %v1089, %v1331
    %v1333 = vlaneseq
    %v1334 = vshrl.u32 %v1333, 7
    %v1335 = vsub.s32 0, %v1334
    %v1336 = vrot.slane %v1097, %v1335
    %v1337 = vlaneseq
    %v1338 = vshrl.u32 %v1337, 7
    %v1339 = vsub.s32 0, %v1338
    %v1340 = vrot.slane %v1099, %v1339
    %v1341 = vlaneseq
    %v1342 = vshrl.u32 %v1341, 7
    %v1343 = vsub.s32 0, %v1342
    %v1344 = vrot.slane %v1082, %v1343
    %v1345 = vlaneseq
    %v1346 = vshrl.u32 %v1345, 7
    %v1347 = vsub.s32 0, %v1346
    %v1348 = vrot.slane %v1096, %v1347
    %v1349 = vlaneseq
    %v1350 = vshrl.u32 %v1349, 7
    %v1351 = vsub.s32 0, %v1350
    %v1352 = vrot.slane %v1098, %v1351
    %v1353 = vlaneseq
    %v1354 = vshrl.u32 %v1353, 7
    %v1355 = vsub.s32 0, %v1354
    %v1356 = vrot.slane %v1100, %v1355
    %v1373 = vmul.f32 %v1296, %v1108
    %v1374 = vmul.f32 %v1296, %v1112
    %v1375 = vmul.f32 %v1300, %v1120
    %v1376 = vmul.f32 %v1300, %v1124
    %v1377 = vmul.f32 %v1304, %v1132
    %v1378 = vmul.f32 %v1304, %v1136
    %v1379 = vmul.f32 %v1308, %v1144
    %v1380 = vmul.f32 %v1308, %v1148
    %v1381 = vmul.f32 %v1312, %v1156
    %v1382 = vmul.f32 %v1312, %v1160
    %v1383 = vmul.f32 %v1316, %v1168
    %v1384 = vmul.f32 %v1316, %v1172
    %v1385 = vmul.f32 %v1320, %v1180
    %v1386 = vmul.f32 %v1320, %v1184
    %v1387 = vmul.f32 %v1324, %v1192
    %v1388 = vmul.f32 %v1324, %v1196
    %v1389 = vmul.f32 %v1328, %v1204
    %v1390 = vmul.f32 %v1328, %v1208
    %v1391 = vmul.f32 %v1332, %v1216
    %v1392 = vmul.f32 %v1332, %v1220
    %v1393 = vmul.f32 %v1336, %v1228
    %v1394 = vmul.f32 %v1336, %v1232
    %v1395 = vmul.f32 %v1340, %v1240
    %v1396 = vmul.f32 %v1340, %v1244
    %v1397 = vmul.f32 %v1344, %v1252
    %v1398 = vmul.f32 %v1344, %v1256
    %v1399 = vmul.f32 %v1348, %v1264
    %v1400 = vmul.f32 %v1348, %v1268
    %v1401 = vmul.f32 %v1352, %v1276
    %v1402 = vmul.f32 %v1352, %v1280
    %v1403 = vmul.f32 %v1356, %v1288
    %v1404 = vmul.f32 %v1356, %v1292
    %v1405 = vmul.f32 %v936, 0.0
    %v1406 = vmul.f32 %v938, 0.0
    %v1407 = vmul.f32 %v968, 0.0
    %v1408 = vmul.f32 %v970, 0.0
    %v1409 = vadd.f32 %v1405, %v1373
    %v1410 = vadd.f32 %v1406, %v1374
    %v1411 = vadd.f32 %v1407, %v1389
    %v1412 = vadd.f32 %v1408, %v1390
    %s1414 = sor.u32 256, 18
    %1415 = vbcast.lane.b32.xlu0 %v1104, %s1414
    %v1416 = vpop.permute.xlu0 %1415
    %s1418 = sor.u32 256, 26
    %1419 = vbcast.lane.b32.xlu0 %v1104, %s1418
    %v1420 = vpop.permute.xlu0 %1419
    %s1422 = sor.u32 256, 18
    %1423 = vbcast.lane.b32.xlu0 %v1200, %s1422
    %v1424 = vpop.permute.xlu0 %1423
    %s1426 = sor.u32 256, 26
    %1427 = vbcast.lane.b32.xlu0 %v1200, %s1426
    %v1428 = vpop.permute.xlu0 %1427
    %v1429 = vmul.f32 %v1409, %v1416
    %v1430 = vmul.f32 %v1410, %v1420
    %v1431 = vmul.f32 %v1411, %v1424
    %v1432 = vmul.f32 %v1412, %v1428
    %v1433 = vsel %vm516, %v1429, 0.0
    %v1434 = vsel %vm516, %v1430, 0.0
    %v1435 = vadd.f32 %v1433, %v1434
    %v1436 = vrot.slane %v1435, 4
    %v1437 = vadd.f32 %v1435, %v1436
    %v1438 = vrot.slane %v1437, 2
    %v1439 = vadd.f32 %v1437, %v1438
    %v1440 = vrot.slane %v1439, 1
    %v1441 = vadd.f32 %v1439, %v1440
    %v1442 = vsel %vm516, %v1431, 0.0
    %v1443 = vsel %vm516, %v1432, 0.0
    %v1444 = vadd.f32 %v1442, %v1443
    %v1445 = vrot.slane %v1444, 4
    %v1446 = vadd.f32 %v1444, %v1445
    %v1447 = vrot.slane %v1446, 2
    %v1448 = vadd.f32 %v1446, %v1447
    %v1449 = vrot.slane %v1448, 1
    %v1450 = vadd.f32 %v1448, %v1449
    %v1451 = vmul.f32 %v940, %v1409
    %v1452 = vmul.f32 %v942, %v1410
    %v1453 = vmul.f32 %v972, %v1411
    %v1454 = vmul.f32 %v974, %v1412
    %v1455 = vadd.f32 %v1451, %v1375
    %v1456 = vadd.f32 %v1452, %v1376
    %v1457 = vadd.f32 %v1453, %v1391
    %v1458 = vadd.f32 %v1454, %v1392
    %s1460 = sor.u32 256, 18
    %1461 = vbcast.lane.b32.xlu0 %v1116, %s1460
    %v1462 = vpop.permute.xlu0 %1461
    %s1464 = sor.u32 256, 26
    %1465 = vbcast.lane.b32.xlu0 %v1116, %s1464
    %v1466 = vpop.permute.xlu0 %1465
    %s1468 = sor.u32 256, 18
    %1469 = vbcast.lane.b32.xlu0 %v1212, %s1468
    %v1470 = vpop.permute.xlu0 %1469
    %s1472 = sor.u32 256, 26
    %1473 = vbcast.lane.b32.xlu0 %v1212, %s1472
    %v1474 = vpop.permute.xlu0 %1473
    %v1475 = vmul.f32 %v1455, %v1462
    %v1476 = vmul.f32 %v1456, %v1466
    %v1477 = vmul.f32 %v1457, %v1470
    %v1478 = vmul.f32 %v1458, %v1474
    %v1479 = vsel %vm516, %v1475, 0.0
    %v1480 = vsel %vm516, %v1476, 0.0
    %v1481 = vadd.f32 %v1479, %v1480
    %v1482 = vrot.slane %v1481, 4
    %v1483 = vadd.f32 %v1481, %v1482
    %v1484 = vrot.slane %v1483, 2
    %v1485 = vadd.f32 %v1483, %v1484
    %v1486 = vrot.slane %v1485, 1
    %v1487 = vadd.f32 %v1485, %v1486
    %v1488 = vsel %vm516, %v1477, 0.0
    %v1489 = vsel %vm516, %v1478, 0.0
    %v1490 = vadd.f32 %v1488, %v1489
    %v1491 = vrot.slane %v1490, 4
    %v1492 = vadd.f32 %v1490, %v1491
    %v1493 = vrot.slane %v1492, 2
    %v1494 = vadd.f32 %v1492, %v1493
    %v1495 = vrot.slane %v1494, 1
    %v1496 = vadd.f32 %v1494, %v1495
    %v1497 = vmul.f32 %v944, %v1455
    %v1498 = vmul.f32 %v946, %v1456
    %v1499 = vmul.f32 %v976, %v1457
    %v1500 = vmul.f32 %v978, %v1458
    %v1501 = vadd.f32 %v1497, %v1377
    %v1502 = vadd.f32 %v1498, %v1378
    %v1503 = vadd.f32 %v1499, %v1393
    %v1504 = vadd.f32 %v1500, %v1394
    %s1506 = sor.u32 256, 18
    %1507 = vbcast.lane.b32.xlu0 %v1128, %s1506
    %v1508 = vpop.permute.xlu0 %1507
    %s1510 = sor.u32 256, 26
    %1511 = vbcast.lane.b32.xlu0 %v1128, %s1510
    %v1512 = vpop.permute.xlu0 %1511
    %s1514 = sor.u32 256, 18
    %1515 = vbcast.lane.b32.xlu0 %v1224, %s1514
    %v1516 = vpop.permute.xlu0 %1515
    %s1518 = sor.u32 256, 26
    %1519 = vbcast.lane.b32.xlu0 %v1224, %s1518
    %v1520 = vpop.permute.xlu0 %1519
    %v1521 = vmul.f32 %v1501, %v1508
    %v1522 = vmul.f32 %v1502, %v1512
    %v1523 = vmul.f32 %v1503, %v1516
    %v1524 = vmul.f32 %v1504, %v1520
    %v1525 = vsel %vm516, %v1521, 0.0
    %v1526 = vsel %vm516, %v1522, 0.0
    %v1527 = vadd.f32 %v1525, %v1526
    %v1528 = vrot.slane %v1527, 4
    %v1529 = vadd.f32 %v1527, %v1528
    %v1530 = vrot.slane %v1529, 2
    %v1531 = vadd.f32 %v1529, %v1530
    %v1532 = vrot.slane %v1531, 1
    %v1533 = vadd.f32 %v1531, %v1532
    %v1534 = vsel %vm516, %v1523, 0.0
    %v1535 = vsel %vm516, %v1524, 0.0
    %v1536 = vadd.f32 %v1534, %v1535
    %v1537 = vrot.slane %v1536, 4
    %v1538 = vadd.f32 %v1536, %v1537
    %v1539 = vrot.slane %v1538, 2
    %v1540 = vadd.f32 %v1538, %v1539
    %v1541 = vrot.slane %v1540, 1
    %v1542 = vadd.f32 %v1540, %v1541
    %v1543 = vmul.f32 %v948, %v1501
    %v1544 = vmul.f32 %v950, %v1502
    %v1545 = vmul.f32 %v980, %v1503
    %v1546 = vmul.f32 %v982, %v1504
    %v1547 = vadd.f32 %v1543, %v1379
    %v1548 = vadd.f32 %v1544, %v1380
    %v1549 = vadd.f32 %v1545, %v1395
    %v1550 = vadd.f32 %v1546, %v1396
    %s1552 = sor.u32 256, 18
    %1553 = vbcast.lane.b32.xlu0 %v1140, %s1552
    %v1554 = vpop.permute.xlu0 %1553
    %s1556 = sor.u32 256, 26
    %1557 = vbcast.lane.b32.xlu0 %v1140, %s1556
    %v1558 = vpop.permute.xlu0 %1557
    %s1560 = sor.u32 256, 18
    %1561 = vbcast.lane.b32.xlu0 %v1236, %s1560
    %v1562 = vpop.permute.xlu0 %1561
    %s1564 = sor.u32 256, 26
    %1565 = vbcast.lane.b32.xlu0 %v1236, %s1564
    %v1566 = vpop.permute.xlu0 %1565
    %v1567 = vmul.f32 %v1547, %v1554
    %v1568 = vmul.f32 %v1548, %v1558
    %v1569 = vmul.f32 %v1549, %v1562
    %v1570 = vmul.f32 %v1550, %v1566
    %v1571 = vsel %vm516, %v1567, 0.0
    %v1572 = vsel %vm516, %v1568, 0.0
    %v1573 = vadd.f32 %v1571, %v1572
    %v1574 = vrot.slane %v1573, 4
    %v1575 = vadd.f32 %v1573, %v1574
    %v1576 = vrot.slane %v1575, 2
    %v1577 = vadd.f32 %v1575, %v1576
    %v1578 = vrot.slane %v1577, 1
    %v1579 = vadd.f32 %v1577, %v1578
    %v1580 = vsel %vm516, %v1569, 0.0
    %v1581 = vsel %vm516, %v1570, 0.0
    %v1582 = vadd.f32 %v1580, %v1581
    %v1583 = vrot.slane %v1582, 4
    %v1584 = vadd.f32 %v1582, %v1583
    %v1585 = vrot.slane %v1584, 2
    %v1586 = vadd.f32 %v1584, %v1585
    %v1587 = vrot.slane %v1586, 1
    %v1588 = vadd.f32 %v1586, %v1587
    %v1589 = vmul.f32 %v952, %v1547
    %v1590 = vmul.f32 %v954, %v1548
    %v1591 = vmul.f32 %v984, %v1549
    %v1592 = vmul.f32 %v986, %v1550
    %v1593 = vadd.f32 %v1589, %v1381
    %v1594 = vadd.f32 %v1590, %v1382
    %v1595 = vadd.f32 %v1591, %v1397
    %v1596 = vadd.f32 %v1592, %v1398
    %s1598 = sor.u32 256, 18
    %1599 = vbcast.lane.b32.xlu0 %v1152, %s1598
    %v1600 = vpop.permute.xlu0 %1599
    %s1602 = sor.u32 256, 26
    %1603 = vbcast.lane.b32.xlu0 %v1152, %s1602
    %v1604 = vpop.permute.xlu0 %1603
    %s1606 = sor.u32 256, 18
    %1607 = vbcast.lane.b32.xlu0 %v1248, %s1606
    %v1608 = vpop.permute.xlu0 %1607
    %s1610 = sor.u32 256, 26
    %1611 = vbcast.lane.b32.xlu0 %v1248, %s1610
    %v1612 = vpop.permute.xlu0 %1611
    %v1613 = vmul.f32 %v1593, %v1600
    %v1614 = vmul.f32 %v1594, %v1604
    %v1615 = vmul.f32 %v1595, %v1608
    %v1616 = vmul.f32 %v1596, %v1612
    %v1617 = vsel %vm516, %v1613, 0.0
    %v1618 = vsel %vm516, %v1614, 0.0
    %v1619 = vadd.f32 %v1617, %v1618
    %v1620 = vrot.slane %v1619, 4
    %v1621 = vadd.f32 %v1619, %v1620
    %v1622 = vrot.slane %v1621, 2
    %v1623 = vadd.f32 %v1621, %v1622
    %v1624 = vrot.slane %v1623, 1
    %v1625 = vadd.f32 %v1623, %v1624
    %v1626 = vsel %vm516, %v1615, 0.0
    %v1627 = vsel %vm516, %v1616, 0.0
    %v1628 = vadd.f32 %v1626, %v1627
    %v1629 = vrot.slane %v1628, 4
    %v1630 = vadd.f32 %v1628, %v1629
    %v1631 = vrot.slane %v1630, 2
    %v1632 = vadd.f32 %v1630, %v1631
    %v1633 = vrot.slane %v1632, 1
    %v1634 = vadd.f32 %v1632, %v1633
    %v1635 = vmul.f32 %v956, %v1593
    %v1636 = vmul.f32 %v958, %v1594
    %v1637 = vmul.f32 %v988, %v1595
    %v1638 = vmul.f32 %v990, %v1596
    %v1639 = vadd.f32 %v1635, %v1383
    %v1640 = vadd.f32 %v1636, %v1384
    %v1641 = vadd.f32 %v1637, %v1399
    %v1642 = vadd.f32 %v1638, %v1400
    %s1644 = sor.u32 256, 18
    %1645 = vbcast.lane.b32.xlu0 %v1164, %s1644
    %v1646 = vpop.permute.xlu0 %1645
    %s1648 = sor.u32 256, 26
    %1649 = vbcast.lane.b32.xlu0 %v1164, %s1648
    %v1650 = vpop.permute.xlu0 %1649
    %s1652 = sor.u32 256, 18
    %1653 = vbcast.lane.b32.xlu0 %v1260, %s1652
    %v1654 = vpop.permute.xlu0 %1653
    %s1656 = sor.u32 256, 26
    %1657 = vbcast.lane.b32.xlu0 %v1260, %s1656
    %v1658 = vpop.permute.xlu0 %1657
    %v1659 = vmul.f32 %v1639, %v1646
    %v1660 = vmul.f32 %v1640, %v1650
    %v1661 = vmul.f32 %v1641, %v1654
    %v1662 = vmul.f32 %v1642, %v1658
    %v1663 = vsel %vm516, %v1659, 0.0
    %v1664 = vsel %vm516, %v1660, 0.0
    %v1665 = vadd.f32 %v1663, %v1664
    %v1666 = vrot.slane %v1665, 4
    %v1667 = vadd.f32 %v1665, %v1666
    %v1668 = vrot.slane %v1667, 2
    %v1669 = vadd.f32 %v1667, %v1668
    %v1670 = vrot.slane %v1669, 1
    %v1671 = vadd.f32 %v1669, %v1670
    %v1672 = vsel %vm516, %v1661, 0.0
    %v1673 = vsel %vm516, %v1662, 0.0
    %v1674 = vadd.f32 %v1672, %v1673
    %v1675 = vrot.slane %v1674, 4
    %v1676 = vadd.f32 %v1674, %v1675
    %v1677 = vrot.slane %v1676, 2
    %v1678 = vadd.f32 %v1676, %v1677
    %v1679 = vrot.slane %v1678, 1
    %v1680 = vadd.f32 %v1678, %v1679
    %v1681 = vmul.f32 %v960, %v1639
    %v1682 = vmul.f32 %v962, %v1640
    %v1683 = vmul.f32 %v992, %v1641
    %v1684 = vmul.f32 %v994, %v1642
    %v1685 = vadd.f32 %v1681, %v1385
    %v1686 = vadd.f32 %v1682, %v1386
    %v1687 = vadd.f32 %v1683, %v1401
    %v1688 = vadd.f32 %v1684, %v1402
    %s1690 = sor.u32 256, 18
    %1691 = vbcast.lane.b32.xlu0 %v1176, %s1690
    %v1692 = vpop.permute.xlu0 %1691
    %s1694 = sor.u32 256, 26
    %1695 = vbcast.lane.b32.xlu0 %v1176, %s1694
    %v1696 = vpop.permute.xlu0 %1695
    %s1698 = sor.u32 256, 18
    %1699 = vbcast.lane.b32.xlu0 %v1272, %s1698
    %v1700 = vpop.permute.xlu0 %1699
    %s1702 = sor.u32 256, 26
    %1703 = vbcast.lane.b32.xlu0 %v1272, %s1702
    %v1704 = vpop.permute.xlu0 %1703
    %v1705 = vmul.f32 %v1685, %v1692
    %v1706 = vmul.f32 %v1686, %v1696
    %v1707 = vmul.f32 %v1687, %v1700
    %v1708 = vmul.f32 %v1688, %v1704
    %v1709 = vsel %vm516, %v1705, 0.0
    %v1710 = vsel %vm516, %v1706, 0.0
    %v1711 = vadd.f32 %v1709, %v1710
    %v1712 = vrot.slane %v1711, 4
    %v1713 = vadd.f32 %v1711, %v1712
    %v1714 = vrot.slane %v1713, 2
    %v1715 = vadd.f32 %v1713, %v1714
    %v1716 = vrot.slane %v1715, 1
    %v1717 = vadd.f32 %v1715, %v1716
    %v1718 = vsel %vm516, %v1707, 0.0
    %v1719 = vsel %vm516, %v1708, 0.0
    %v1720 = vadd.f32 %v1718, %v1719
    %v1721 = vrot.slane %v1720, 4
    %v1722 = vadd.f32 %v1720, %v1721
    %v1723 = vrot.slane %v1722, 2
    %v1724 = vadd.f32 %v1722, %v1723
    %v1725 = vrot.slane %v1724, 1
    %v1726 = vadd.f32 %v1724, %v1725
    %v1727 = vmul.f32 %v964, %v1685
    %v1728 = vmul.f32 %v966, %v1686
    %v1729 = vmul.f32 %v996, %v1687
    %v1730 = vmul.f32 %v998, %v1688
    %v1731 = vadd.f32 %v1727, %v1387
    %v1732 = vadd.f32 %v1728, %v1388
    %v1733 = vadd.f32 %v1729, %v1403
    %v1734 = vadd.f32 %v1730, %v1404
    %s1736 = sor.u32 256, 18
    %1737 = vbcast.lane.b32.xlu0 %v1188, %s1736
    %v1738 = vpop.permute.xlu0 %1737
    %s1740 = sor.u32 256, 26
    %1741 = vbcast.lane.b32.xlu0 %v1188, %s1740
    %v1742 = vpop.permute.xlu0 %1741
    %s1744 = sor.u32 256, 18
    %1745 = vbcast.lane.b32.xlu0 %v1284, %s1744
    %v1746 = vpop.permute.xlu0 %1745
    %s1748 = sor.u32 256, 26
    %1749 = vbcast.lane.b32.xlu0 %v1284, %s1748
    %v1750 = vpop.permute.xlu0 %1749
    %v1751 = vmul.f32 %v1731, %v1738
    %v1752 = vmul.f32 %v1732, %v1742
    %v1753 = vmul.f32 %v1733, %v1746
    %v1754 = vmul.f32 %v1734, %v1750
    %v1755 = vsel %vm516, %v1751, 0.0
    %v1756 = vsel %vm516, %v1752, 0.0
    %v1757 = vadd.f32 %v1755, %v1756
    %v1758 = vrot.slane %v1757, 4
    %v1759 = vadd.f32 %v1757, %v1758
    %v1760 = vrot.slane %v1759, 2
    %v1761 = vadd.f32 %v1759, %v1760
    %v1762 = vrot.slane %v1761, 1
    %v1763 = vadd.f32 %v1761, %v1762
    %v1764 = vsel %vm516, %v1753, 0.0
    %v1765 = vsel %vm516, %v1754, 0.0
    %v1766 = vadd.f32 %v1764, %v1765
    %v1767 = vrot.slane %v1766, 4
    %v1768 = vadd.f32 %v1766, %v1767
    %v1769 = vrot.slane %v1768, 2
    %v1770 = vadd.f32 %v1768, %v1769
    %v1771 = vrot.slane %v1770, 1
    %v1772 = vadd.f32 %v1770, %v1771
    %vm1773 = vcmask 1040384
    %v1774 = vsel %vm1773, %v1441, %v1487
    %v1775 = vsel %vm1773, %v1450, %v1496
    %v1776 = vsel %vm611, %v1774, %v1533
    %v1777 = vsel %vm611, %v1775, %v1542
    %v1778 = vsel %vm418, %v1776, %v1579
    %v1779 = vsel %vm418, %v1777, %v1588
    %vm1780 = vcmask 1043456
    %v1781 = vsel %vm1780, %v1778, %v1625
    %v1782 = vsel %vm1780, %v1779, %v1634
    %v1783 = vsel %vm491, %v1781, %v1671
    %v1784 = vsel %vm491, %v1782, %v1680
    %v1785 = vsel %vm468, %v1783, %v1717
    %v1786 = vsel %vm468, %v1784, %v1726
    %v1787 = vsel %vm445, %v1785, %v1763
    %v1788 = vsel %vm445, %v1786, %v1772
    %v1789 = vlaneseq
    %v1790 = vshrl.u32 %v1789, 7
    %v1791 = vsub.s32 4, %v1790
    %v1792 = vrot.slane %v267, %v1791
    %v1793 = vmul.f32 %v1792, %v514
    %v1794 = vmul.f32 %v1792, %v515
    %v1795 = vadd.f32 %v1787, %v1793
    %v1796 = vadd.f32 %v1788, %v1794
    %v1797 = vsub.f32 0.0, %v404
    %v1798 = vsub.f32 0.0, %v409
    %v1799 = vmul.f32 %v1797, 1.442695
    %v1800 = vpow.pop %v1799
    %v1801 = vmul.f32 %v1798, 1.442695
    %v1802 = vpow.pop %v1801
    %v1803 = vadd.f32 %v1800, 1.0
    %v1804 = vadd.f32 %v1802, 1.0
    %v1805 = vrcp.pop %v1803
    %v1806 = vmul.f32 1.0, %v1805
    %v1807 = vrcp.pop %v1804
    %v1808 = vmul.f32 1.0, %v1807
    %v1809 = vmul.f32 %v404, %v1806
    %v1810 = vmul.f32 %v409, %v1808
    %1813 = vrot.lane.b32.xlu0 %v1809, 64
    %v1814 = vpop.permute.xlu0 %1813
    %1815 = vrot.lane.b32.xlu0 %v1810, 64
    %v1816 = vpop.permute.xlu0 %1815
    %v1819 = vmul.f32 %v1795, %v1814
    %v1820 = vmul.f32 %v1796, %v1816
    %v1822 = vsel %vm516, %v1819, 0
    %v1825 = vsel %vm516, %v1820, 0
    %1827 = vmatprep.subr.mxu0 0.0
    %1828 = vmatpush1.msra.mxu0 0.0
    %1829 = vmatprep.subr.mxu0 0.0
    %1830 = vmatpush1.msra.mxu0 0.0
    %1831 = vmatprep.subr.mxu0 0.0
    %1832 = vmatpush1.msra.mxu0 0.0
    %1833 = vmatprep.subr.mxu0 0.0
    %1834 = vmatpush1.msra.mxu0 0.0
    %1835 = vmatprep.subr.mxu0 0.0
    %1836 = vmatpush1.msra.mxu0 0.0
    %1837 = vmatprep.subr.mxu0 0.0
    %1838 = vmatpush1.msra.mxu0 0.0
    %1839 = vmatprep.subr.mxu0 0.0
    %1840 = vmatpush1.msra.mxu0 0.0
    %1841 = vmatprep.subr.mxu0 0.0
    %1842 = vmatpush1.msra.mxu0 0.0
    %1843 = vmatprep.subr.mxu0 0.0
    %1844 = vmatpush1.msra.mxu0 %v290
    %1845 = vmatprep.subr.mxu0 0.0
    %1846 = vmatpush1.msra.mxu0 %v289
    %1847 = vmatprep.subr.mxu0 0.0
    %1848 = vmatpush1.msra.mxu0 %v288
    %1849 = vmatprep.subr.mxu0 0.0
    %1850 = vmatpush1.msra.mxu0 %v287
    %1851 = vmatprep.subr.mxu0 0.0
    %1852 = vmatpush1.msra.mxu0 %v286
    %1853 = vmatprep.subr.mxu0 0.0
    %1854 = vmatpush1.msra.mxu0 %v285
    %1855 = vmatprep.subr.mxu0 0.0
    %1856 = vmatpush1.msra.mxu0 %v284
    %1857 = vmatprep.subr.mxu0 0.0
    %1858 = vmatpush1.msra.mxu0 %v283
    %1859 = vmatprep.subr.mxu0 0.0
    %1860 = vmatpush2.msra.mxu0 0.0
    %1861 = vmatprep.subr.mxu0 0.0
    %1862 = vmatpush2.msra.mxu0 0.0
    %1863 = vmatprep.subr.mxu0 0.0
    %1864 = vmatpush2.msra.mxu0 0.0
    %1865 = vmatprep.subr.mxu0 0.0
    %1866 = vmatpush2.msra.mxu0 0.0
    %1867 = vmatprep.subr.mxu0 0.0
    %1868 = vmatpush2.msra.mxu0 0.0
    %1869 = vmatprep.subr.mxu0 0.0
    %1870 = vmatpush2.msra.mxu0 0.0
    %1871 = vmatprep.subr.mxu0 0.0
    %1872 = vmatpush2.msra.mxu0 0.0
    %1873 = vmatprep.subr.mxu0 0.0
    %1874 = vmatpush2.msra.mxu0 0.0
    %1875 = vmatprep.subr.mxu0 0.0
    %1876 = vmatpush2.msra.mxu0 0.0
    %1877 = vmatprep.subr.mxu0 0.0
    %1878 = vmatpush2.msra.mxu0 0.0
    %1879 = vmatprep.subr.mxu0 0.0
    %1880 = vmatpush2.msra.mxu0 0.0
    %1881 = vmatprep.subr.mxu0 0.0
    %1882 = vmatpush2.msra.mxu0 0.0
    %1883 = vmatprep.subr.mxu0 0.0
    %1884 = vmatpush2.msra.mxu0 0.0
    %1885 = vmatprep.subr.mxu0 0.0
    %1886 = vmatpush2.msra.mxu0 0.0
    %1887 = vmatprep.subr.mxu0 0.0
    %1888 = vmatpush2.msra.mxu0 0.0
    %1889 = vmatprep.subr.mxu0 0.0
    %1890 = vmatpush2.msra.mxu0 0.0
    %1891 = vmatprep.mubr.f32.mxu0 0.0
    %1892 = vmatmul.mubr.f32.gmra.mxu0 %v1822
    %v1893 = vpop.f32.mrf.mxu0
    %v1894 = vadd.f32 0.0, %v1893
    %v1895 = vpop.f32.mrf.mxu0
    %1896 = vmatprep.mubr.f32.mxu0 0.0
    %1897 = vmatmul.mubr.f32.gmra.mxu0 %v1825
    %v1898 = vpop.f32.mrf.mxu0
    %v1899 = vadd.f32 0.0, %v1898
    %v1900 = vpop.f32.mrf.mxu0
    %1901 = vdwg.mxu0
    %s1902 = scalar_lea.vmem %s4, 16
    %v1903 = vld [vmem:[%s1902] sm:$0xff]
    %v1904 = vld [vmem:[%s1902 + $0x8] sm:$0xff]
    %s1905 = scalar_lea.vmem %s5, 32
    %v1906 = vld [vmem:[%s1905] sm:$0xff]
    %v1907 = vld [vmem:[%s1905 + $0x8] sm:$0xff]
    %v1908 = vld [vmem:[%s1905 + $0x10] sm:$0xff]
    %v1909 = vld [vmem:[%s1905 + $0x18] sm:$0xff]
    %s1910 = scalar_lea.vmem %s6, 64
    %v1911 = vld [vmem:[%s1910] sm:$0xff]
    %v1912 = vld [vmem:[%s1910 + $0x8] sm:$0xff]
    %v1913 = vld [vmem:[%s1910 + $0x10] sm:$0xff]
    %v1914 = vld [vmem:[%s1910 + $0x18] sm:$0xff]
    %v1915 = vld [vmem:[%s1910 + $0x20] sm:$0xff]
    %v1916 = vld [vmem:[%s1910 + $0x28] sm:$0xff]
    %v1917 = vld [vmem:[%s1910 + $0x30] sm:$0xff]
    %v1918 = vld [vmem:[%s1910 + $0x38] sm:$0xff]
    %s1919 = scalar_lea.vmem %s7, 16
    %v1920 = vld [vmem:[%s1919] sm:$0xff]
    %v1921 = vld [vmem:[%s1919 + $0x8] sm:$0xff]
    %s1922 = scalar_lea.vmem %s8, 64
    %v1923 = vld [vmem:[%s1922] sm:$0xff]
    %v1924 = vld [vmem:[%s1922 + $0x8] sm:$0xff]
    %v1925 = vld [vmem:[%s1922 + $0x10] sm:$0xff]
    %v1926 = vld [vmem:[%s1922 + $0x18] sm:$0xff]
    %v1927 = vld [vmem:[%s1922 + $0x20] sm:$0xff]
    %v1928 = vld [vmem:[%s1922 + $0x28] sm:$0xff]
    %v1929 = vld [vmem:[%s1922 + $0x30] sm:$0xff]
    %v1930 = vld [vmem:[%s1922 + $0x38] sm:$0xff]
    %1933 = vrot.lane.b32.xlu0 %v191, 96
    %v1934 = vpop.permute.xlu0 %1933
    %1935 = vrot.lane.b32.xlu0 %v264, 96
    %v1936 = vpop.permute.xlu0 %1935
    %v1939 = vadd.f32 %v191, %v1934
    %v1940 = vadd.f32 %v264, %v1936
    %v1941 = vsel %vm78, %v1939, 0.0
    %1942 = vadd.xlane.f32.xlu0 %v1941
    %v1943 = vpop.xlane.xlu0 %1942
    %v1944 = vsel %vm78, %v1940, 0.0
    %1945 = vadd.xlane.f32.xlu0 %v1944
    %v1946 = vpop.xlane.xlu0 %1945
    %v1947 = vmul.f32 %v1943, %v85
    %v1948 = vmul.f32 %v1946, %v85
    %v1949 = vsub.f32 %v1939, %v1947
    %v1950 = vsub.f32 %v1940, %v1948
    %v1951 = vmul.f32 %v1949, %v1949
    %v1952 = vmul.f32 %v1950, %v1950
    %v1953 = vsel %vm78, %v1951, 0.0
    %1954 = vadd.xlane.f32.xlu0 %v1953
    %v1955 = vpop.xlane.xlu0 %1954
    %v1956 = vsel %vm78, %v1952, 0.0
    %1957 = vadd.xlane.f32.xlu0 %v1956
    %v1958 = vpop.xlane.xlu0 %1957
    %v1959 = vmul.f32 %v1955, %v85
    %v1960 = vmul.f32 %v1958, %v85
    %v1961 = vadd.f32 %v1959, 1e-05
    %v1962 = vadd.f32 %v1960, 1e-05
    %v1963 = vrsqrt.pop %v1961
    %v1964 = vrsqrt.pop %v1962
    %v1965 = vmul.f32 %v1949, %v1963
    %v1966 = vmul.f32 %v1950, %v1964
    %v1967 = vlaneseq
    %v1968 = vshrl.u32 %v1967, 7
    %v1969 = vsub.s32 0, %v1968
    %v1970 = vrot.slane %v1903, %v1969
    %v1971 = vmul.f32 %v1965, %v1970
    %v1972 = vmul.f32 %v1966, %v1970
    %v1973 = vlaneseq
    %v1974 = vshrl.u32 %v1973, 7
    %v1975 = vsub.s32 1, %v1974
    %v1976 = vrot.slane %v1903, %v1975
    %v1977 = vadd.f32 %v1971, %v1976
    %v1978 = vadd.f32 %v1972, %v1976
    %v1980 = vsel %vm78, %v1977, 0
    %v1983 = vsel %vm78, %v1978, 0
    %1985 = vmatprep.subr.mxu0 0.0
    %1986 = vmatpush1.msra.mxu0 0.0
    %1987 = vmatprep.subr.mxu0 0.0
    %1988 = vmatpush1.msra.mxu0 0.0
    %1989 = vmatprep.subr.mxu0 0.0
    %1990 = vmatpush1.msra.mxu0 0.0
    %1991 = vmatprep.subr.mxu0 0.0
    %1992 = vmatpush1.msra.mxu0 0.0
    %1993 = vmatprep.subr.mxu0 0.0
    %1994 = vmatpush1.msra.mxu0 0.0
    %1995 = vmatprep.subr.mxu0 0.0
    %1996 = vmatpush1.msra.mxu0 0.0
    %1997 = vmatprep.subr.mxu0 0.0
    %1998 = vmatpush1.msra.mxu0 0.0
    %1999 = vmatprep.subr.mxu0 0.0
    %2000 = vmatpush1.msra.mxu0 0.0
    %2001 = vmatprep.subr.mxu0 0.0
    %2002 = vmatpush1.msra.mxu0 0.0
    %2003 = vmatprep.subr.mxu0 0.0
    %2004 = vmatpush1.msra.mxu0 0.0
    %2005 = vmatprep.subr.mxu0 0.0
    %2006 = vmatpush1.msra.mxu0 0.0
    %2007 = vmatprep.subr.mxu0 0.0
    %2008 = vmatpush1.msra.mxu0 0.0
    %2009 = vmatprep.subr.mxu0 0.0
    %2010 = vmatpush1.msra.mxu0 %v1909
    %2011 = vmatprep.subr.mxu0 0.0
    %2012 = vmatpush1.msra.mxu0 %v1908
    %2013 = vmatprep.subr.mxu0 0.0
    %2014 = vmatpush1.msra.mxu0 %v1907
    %2015 = vmatprep.subr.mxu0 0.0
    %2016 = vmatpush1.msra.mxu0 %v1906
    %2017 = vmatprep.subr.mxu0 0.0
    %2018 = vmatpush2.msra.mxu0 0.0
    %2019 = vmatprep.subr.mxu0 0.0
    %2020 = vmatpush2.msra.mxu0 0.0
    %2021 = vmatprep.subr.mxu0 0.0
    %2022 = vmatpush2.msra.mxu0 0.0
    %2023 = vmatprep.subr.mxu0 0.0
    %2024 = vmatpush2.msra.mxu0 0.0
    %2025 = vmatprep.subr.mxu0 0.0
    %2026 = vmatpush2.msra.mxu0 0.0
    %2027 = vmatprep.subr.mxu0 0.0
    %2028 = vmatpush2.msra.mxu0 0.0
    %2029 = vmatprep.subr.mxu0 0.0
    %2030 = vmatpush2.msra.mxu0 0.0
    %2031 = vmatprep.subr.mxu0 0.0
    %2032 = vmatpush2.msra.mxu0 0.0
    %2033 = vmatprep.subr.mxu0 0.0
    %2034 = vmatpush2.msra.mxu0 0.0
    %2035 = vmatprep.subr.mxu0 0.0
    %2036 = vmatpush2.msra.mxu0 0.0
    %2037 = vmatprep.subr.mxu0 0.0
    %2038 = vmatpush2.msra.mxu0 0.0
    %2039 = vmatprep.subr.mxu0 0.0
    %2040 = vmatpush2.msra.mxu0 0.0
    %2041 = vmatprep.subr.mxu0 0.0
    %2042 = vmatpush2.msra.mxu0 0.0
    %2043 = vmatprep.subr.mxu0 0.0
    %2044 = vmatpush2.msra.mxu0 0.0
    %2045 = vmatprep.subr.mxu0 0.0
    %2046 = vmatpush2.msra.mxu0 0.0
    %2047 = vmatprep.subr.mxu0 0.0
    %2048 = vmatpush2.msra.mxu0 0.0
    %2049 = vmatprep.mubr.f32.mxu0 0.0
    %2050 = vmatmul.mubr.f32.gmra.mxu0 %v1980
    %v2051 = vpop.f32.mrf.mxu0
    %v2052 = vadd.f32 0.0, %v2051
    %v2053 = vpop.f32.mrf.mxu0
    %2054 = vmatprep.mubr.f32.mxu0 0.0
    %2055 = vmatmul.mubr.f32.gmra.mxu0 %v1983
    %v2056 = vpop.f32.mrf.mxu0
    %v2057 = vadd.f32 0.0, %v2056
    %v2058 = vpop.f32.mrf.mxu0
    %2059 = vdwg.mxu0
    %v2062 = vrot.slane %v2052, 5
    %v2063 = vrot.slane %v2057, 5
    %v2066 = vsel %vm418, 0.0, %v2062
    %v2067 = vsel %vm418, 0.0, %v2063
    %v2068 = vlaneseq
    %v2069 = vshrl.u32 %v2068, 7
    %v2070 = vsub.s32 5, %v2069
    %v2071 = vrot.slane %v1903, %v2070
    %v2072 = vmul.f32 %v2066, %v2071
    %v2073 = vmul.f32 %v2067, %v2071
    %v2074 = vlaneseq
    %v2075 = vshrl.u32 %v2074, 7
    %v2076 = vsub.s32 2, %v2075
    %v2077 = vrot.slane %v1903, %v2076
    %v2078 = vadd.f32 %v2077, %v2072
    %v2079 = vadd.f32 %v2077, %v2073
    %v2080 = vlaneseq
    %v2081 = vshrl.u32 %v2080, 7
    %v2082 = vsub.s32 6, %v2081
    %v2083 = vrot.slane %v1903, %v2082
    %v2084 = vmul.f32 %v2066, %v2083
    %v2085 = vmul.f32 %v2062, %v2083
    %v2086 = vmul.f32 %v2067, %v2083
    %v2087 = vmul.f32 %v2063, %v2083
    %v2092 = vrot.slane %v2084, 1
    %v2093 = vrot.slane %v2085, 1
    %v2094 = vsel %vm445, %v2092, %v2093
    %v2095 = vrot.slane %v2086, 1
    %v2096 = vrot.slane %v2087, 1
    %v2097 = vsel %vm445, %v2095, %v2096
    %v2100 = vadd.f32 %v2078, %v2094
    %v2101 = vadd.f32 %v2079, %v2097
    %v2102 = vlaneseq
    %v2103 = vshrl.u32 %v2102, 7
    %v2104 = vsub.s32 7, %v2103
    %v2105 = vrot.slane %v1903, %v2104
    %v2106 = vmul.f32 %v2066, %v2105
    %v2107 = vmul.f32 %v2062, %v2105
    %v2108 = vmul.f32 %v2067, %v2105
    %v2109 = vmul.f32 %v2063, %v2105
    %v2114 = vrot.slane %v2106, 2
    %v2115 = vrot.slane %v2107, 2
    %v2116 = vsel %vm468, %v2114, %v2115
    %v2117 = vrot.slane %v2108, 2
    %v2118 = vrot.slane %v2109, 2
    %v2119 = vsel %vm468, %v2117, %v2118
    %v2122 = vadd.f32 %v2100, %v2116
    %v2123 = vadd.f32 %v2101, %v2119
    %v2124 = vlaneseq
    %v2125 = vshrl.u32 %v2124, 7
    %v2126 = vsub.s32 0, %v2125
    %v2127 = vrot.slane %v1904, %v2126
    %v2128 = vmul.f32 %v2066, %v2127
    %v2129 = vmul.f32 %v2062, %v2127
    %v2130 = vmul.f32 %v2067, %v2127
    %v2131 = vmul.f32 %v2063, %v2127
    %v2136 = vrot.slane %v2128, 3
    %v2137 = vrot.slane %v2129, 3
    %v2138 = vsel %vm491, %v2136, %v2137
    %v2139 = vrot.slane %v2130, 3
    %v2140 = vrot.slane %v2131, 3
    %v2141 = vsel %vm491, %v2139, %v2140
    %v2144 = vadd.f32 %v2122, %v2138
    %v2145 = vadd.f32 %v2123, %v2141
    %v2146 = vsub.f32 0.0, %v2144
    %v2147 = vsub.f32 0.0, %v2145
    %v2148 = vmul.f32 %v2146, 1.442695
    %v2149 = vpow.pop %v2148
    %v2150 = vmul.f32 %v2147, 1.442695
    %v2151 = vpow.pop %v2150
    %v2152 = vadd.f32 %v2149, 1.0
    %v2153 = vadd.f32 %v2151, 1.0
    %v2154 = vrcp.pop %v2152
    %v2155 = vmul.f32 1.0, %v2154
    %v2156 = vrcp.pop %v2153
    %v2157 = vmul.f32 1.0, %v2156
    %v2158 = vmul.f32 %v2144, %v2155
    %v2159 = vmul.f32 %v2145, %v2157
    %v2161 = vsel %vm516, %v2158, 0
    %v2164 = vsel %vm516, %v2159, 0
    %2166 = vmatprep.subr.mxu0 0.0
    %2167 = vmatpush1.msra.mxu0 0.0
    %2168 = vmatprep.subr.mxu0 0.0
    %2169 = vmatpush1.msra.mxu0 0.0
    %2170 = vmatprep.subr.mxu0 0.0
    %2171 = vmatpush1.msra.mxu0 0.0
    %2172 = vmatprep.subr.mxu0 0.0
    %2173 = vmatpush1.msra.mxu0 0.0
    %2174 = vmatprep.subr.mxu0 0.0
    %2175 = vmatpush1.msra.mxu0 0.0
    %2176 = vmatprep.subr.mxu0 0.0
    %2177 = vmatpush1.msra.mxu0 0.0
    %2178 = vmatprep.subr.mxu0 0.0
    %2179 = vmatpush1.msra.mxu0 0.0
    %2180 = vmatprep.subr.mxu0 0.0
    %2181 = vmatpush1.msra.mxu0 0.0
    %2182 = vmatprep.subr.mxu0 0.0
    %2183 = vmatpush1.msra.mxu0 %v1918
    %2184 = vmatprep.subr.mxu0 0.0
    %2185 = vmatpush1.msra.mxu0 %v1917
    %2186 = vmatprep.subr.mxu0 0.0
    %2187 = vmatpush1.msra.mxu0 %v1916
    %2188 = vmatprep.subr.mxu0 0.0
    %2189 = vmatpush1.msra.mxu0 %v1915
    %2190 = vmatprep.subr.mxu0 0.0
    %2191 = vmatpush1.msra.mxu0 %v1914
    %2192 = vmatprep.subr.mxu0 0.0
    %2193 = vmatpush1.msra.mxu0 %v1913
    %2194 = vmatprep.subr.mxu0 0.0
    %2195 = vmatpush1.msra.mxu0 %v1912
    %2196 = vmatprep.subr.mxu0 0.0
    %2197 = vmatpush1.msra.mxu0 %v1911
    %2198 = vmatprep.subr.mxu0 0.0
    %2199 = vmatpush2.msra.mxu0 0.0
    %2200 = vmatprep.subr.mxu0 0.0
    %2201 = vmatpush2.msra.mxu0 0.0
    %2202 = vmatprep.subr.mxu0 0.0
    %2203 = vmatpush2.msra.mxu0 0.0
    %2204 = vmatprep.subr.mxu0 0.0
    %2205 = vmatpush2.msra.mxu0 0.0
    %2206 = vmatprep.subr.mxu0 0.0
    %2207 = vmatpush2.msra.mxu0 0.0
    %2208 = vmatprep.subr.mxu0 0.0
    %2209 = vmatpush2.msra.mxu0 0.0
    %2210 = vmatprep.subr.mxu0 0.0
    %2211 = vmatpush2.msra.mxu0 0.0
    %2212 = vmatprep.subr.mxu0 0.0
    %2213 = vmatpush2.msra.mxu0 0.0
    %2214 = vmatprep.subr.mxu0 0.0
    %2215 = vmatpush2.msra.mxu0 0.0
    %2216 = vmatprep.subr.mxu0 0.0
    %2217 = vmatpush2.msra.mxu0 0.0
    %2218 = vmatprep.subr.mxu0 0.0
    %2219 = vmatpush2.msra.mxu0 0.0
    %2220 = vmatprep.subr.mxu0 0.0
    %2221 = vmatpush2.msra.mxu0 0.0
    %2222 = vmatprep.subr.mxu0 0.0
    %2223 = vmatpush2.msra.mxu0 0.0
    %2224 = vmatprep.subr.mxu0 0.0
    %2225 = vmatpush2.msra.mxu0 0.0
    %2226 = vmatprep.subr.mxu0 0.0
    %2227 = vmatpush2.msra.mxu0 0.0
    %2228 = vmatprep.subr.mxu0 0.0
    %2229 = vmatpush2.msra.mxu0 0.0
    %2230 = vmatprep.mubr.f32.mxu0 0.0
    %2231 = vmatmul.mubr.f32.gmra.mxu0 %v2161
    %v2232 = vpop.f32.mrf.mxu0
    %v2233 = vadd.f32 0.0, %v2232
    %v2234 = vpop.f32.mrf.mxu0
    %2235 = vmatprep.mubr.f32.mxu0 0.0
    %2236 = vmatmul.mubr.f32.gmra.mxu0 %v2164
    %v2237 = vpop.f32.mrf.mxu0
    %v2238 = vadd.f32 0.0, %v2237
    %v2239 = vpop.f32.mrf.mxu0
    %2240 = vdwg.mxu0
    %v2241 = vlaneseq
    %v2242 = vshrl.u32 %v2241, 7
    %v2243 = vsub.s32 3, %v2242
    %v2244 = vrot.slane %v1903, %v2243
    %v2246 = vrot.slane %v1904, 1
    %v2248 = vsel %vm604, %v2233, 0
    %v2251 = vsel %vm604, %v2238, 0
    %v2253 = vsel %vm611, %v2246, 0
    %2255 = vmatprep.subr.mxu0 0.0
    %2256 = vmatpush1.msra.mxu0 0.0
    %2257 = vmatprep.subr.mxu0 0.0
    %2258 = vmatpush1.msra.mxu0 0.0
    %2259 = vmatprep.subr.mxu0 0.0
    %2260 = vmatpush1.msra.mxu0 0.0
    %2261 = vmatprep.subr.mxu0 0.0
    %2262 = vmatpush1.msra.mxu0 0.0
    %2263 = vmatprep.subr.mxu0 0.0
    %2264 = vmatpush1.msra.mxu0 0.0
    %2265 = vmatprep.subr.mxu0 0.0
    %2266 = vmatpush1.msra.mxu0 0.0
    %2267 = vmatprep.subr.mxu0 0.0
    %2268 = vmatpush1.msra.mxu0 0.0
    %2269 = vmatprep.subr.mxu0 0.0
    %2270 = vmatpush1.msra.mxu0 0.0
    %2271 = vmatprep.subr.mxu0 0.0
    %2272 = vmatpush1.msra.mxu0 0.0
    %2273 = vmatprep.subr.mxu0 0.0
    %2274 = vmatpush1.msra.mxu0 0.0
    %2275 = vmatprep.subr.mxu0 0.0
    %2276 = vmatpush1.msra.mxu0 0.0
    %2277 = vmatprep.subr.mxu0 0.0
    %2278 = vmatpush1.msra.mxu0 0.0
    %2279 = vmatprep.subr.mxu0 0.0
    %2280 = vmatpush1.msra.mxu0 0.0
    %2281 = vmatprep.subr.mxu0 0.0
    %2282 = vmatpush1.msra.mxu0 0.0
    %2283 = vmatprep.subr.mxu0 0.0
    %2284 = vmatpush1.msra.mxu0 0.0
    %2285 = vmatprep.subr.mxu0 0.0
    %2286 = vmatpush1.msra.mxu0 %v2253
    %2287 = vmatprep.subr.mxu0 0.0
    %2288 = vmatpush2.msra.mxu0 0.0
    %2289 = vmatprep.subr.mxu0 0.0
    %2290 = vmatpush2.msra.mxu0 0.0
    %2291 = vmatprep.subr.mxu0 0.0
    %2292 = vmatpush2.msra.mxu0 0.0
    %2293 = vmatprep.subr.mxu0 0.0
    %2294 = vmatpush2.msra.mxu0 0.0
    %2295 = vmatprep.subr.mxu0 0.0
    %2296 = vmatpush2.msra.mxu0 0.0
    %2297 = vmatprep.subr.mxu0 0.0
    %2298 = vmatpush2.msra.mxu0 0.0
    %2299 = vmatprep.subr.mxu0 0.0
    %2300 = vmatpush2.msra.mxu0 0.0
    %2301 = vmatprep.subr.mxu0 0.0
    %2302 = vmatpush2.msra.mxu0 0.0
    %2303 = vmatprep.subr.mxu0 0.0
    %2304 = vmatpush2.msra.mxu0 0.0
    %2305 = vmatprep.subr.mxu0 0.0
    %2306 = vmatpush2.msra.mxu0 0.0
    %2307 = vmatprep.subr.mxu0 0.0
    %2308 = vmatpush2.msra.mxu0 0.0
    %2309 = vmatprep.subr.mxu0 0.0
    %2310 = vmatpush2.msra.mxu0 0.0
    %2311 = vmatprep.subr.mxu0 0.0
    %2312 = vmatpush2.msra.mxu0 0.0
    %2313 = vmatprep.subr.mxu0 0.0
    %2314 = vmatpush2.msra.mxu0 0.0
    %2315 = vmatprep.subr.mxu0 0.0
    %2316 = vmatpush2.msra.mxu0 0.0
    %2317 = vmatprep.subr.mxu0 0.0
    %2318 = vmatpush2.msra.mxu0 0.0
    %2319 = vmatprep.mubr.f32.mxu0 0.0
    %2320 = vmatmul.mubr.f32.gmra.mxu0 %v2248
    %v2321 = vpop.f32.mrf.mxu0
    %v2322 = vadd.f32 %v2244, %v2321
    %v2323 = vpop.f32.mrf.mxu0
    %2324 = vmatprep.mubr.f32.mxu0 0.0
    %2325 = vmatmul.mubr.f32.gmra.mxu0 %v2251
    %v2326 = vpop.f32.mrf.mxu0
    %v2327 = vadd.f32 %v2244, %v2326
    %v2328 = vpop.f32.mrf.mxu0
    %2329 = vdwg.mxu0
    %vm2330 = vcmp.gt.f32.partialorder %v2322, 20.0
    %vm2331 = vcmp.gt.f32.partialorder %v2327, 20.0
    %v2332 = vmin.f32 %v2322, 20.0
    %v2333 = vmin.f32 %v2327, 20.0
    %v2334 = vmul.f32 %v2332, 1.442695
    %v2335 = vpow.pop %v2334
    %v2336 = vmul.f32 %v2333, 1.442695
    %v2337 = vpow.pop %v2336
    %v2338 = vadd.f32 %v2335, 1.0
    %v2339 = vlog2.pop %v2338
    %v2340 = vmul.f32 %v2339, 0.6931472
    %v2341 = vmul.f32 -0.5, %v2335
    %v2342 = vadd.f32 %v2341, 1.0
    %v2343 = vmul.f32 %v2342, %v2335
    %v2344 = vand.u32 2147483647, %v2335
    %vm2345 = vcmp.lt.f32.partialorder %v2344, 0.0004427343
    %v2346 = vsel %vm2345, %v2343, %v2340
    %v2347 = vadd.f32 %v2337, 1.0
    %v2348 = vlog2.pop %v2347
    %v2349 = vmul.f32 %v2348, 0.6931472
    %v2350 = vmul.f32 -0.5, %v2337
    %v2351 = vadd.f32 %v2350, 1.0
    %v2352 = vmul.f32 %v2351, %v2337
    %v2353 = vand.u32 2147483647, %v2337
    %vm2354 = vcmp.lt.f32.partialorder %v2353, 0.0004427343
    %v2355 = vsel %vm2354, %v2352, %v2349
    %v2356 = vsel %vm2330, %v2322, %v2346
    %v2357 = vsel %vm2331, %v2327, %v2355
    %v2358 = vmul.f32 %v1920, 1.442695
    %v2359 = vpow.pop %v2358
    %v2360 = vmul.f32 %v1921, 1.442695
    %v2361 = vpow.pop %v2360
    %v2362 = vsub.f32 0.0, %v2359
    %v2363 = vsub.f32 0.0, %v2361
    %v2366 = vcombine.high %v2356, %v2356
    %v2368 = vunpack.c.l.s4 1966171168
    %v2369 = vunpack.c.0.s8 %v2368
    %v2370 = vlaneseq
    %v2371 = vshrl.u32 %v2370, 7
    %v2372 = vsub.s32 %v2369, %v2371
    %v2373 = vrot.slane %v2356, %v2372
    %v2375 = vunpack.c.l.s4 1966171168
    %v2376 = vunpack.c.0.s8 %v2375
    %v2377 = vlaneseq
    %v2378 = vshrl.u32 %v2377, 7
    %v2379 = vsub.s32 %v2376, %v2378
    %v2380 = vrot.slane %v2366, %v2379
    %v2381 = vcombine.high %v2373, %v2373
    %v2382 = vcombine.high %v2380, %v2380
    %v2384 = vunpack.c.l.s4 1966171168
    %v2385 = vunpack.c.0.s8 %v2384
    %v2386 = vlaneseq
    %v2387 = vshrl.u32 %v2386, 7
    %v2388 = vsub.s32 %v2385, %v2387
    %v2389 = vrot.slane %v2373, %v2388
    %v2391 = vunpack.c.l.s4 1966171168
    %v2392 = vunpack.c.0.s8 %v2391
    %v2393 = vlaneseq
    %v2394 = vshrl.u32 %v2393, 7
    %v2395 = vsub.s32 %v2392, %v2394
    %v2396 = vrot.slane %v2380, %v2395
    %v2398 = vunpack.c.l.s4 1966171168
    %v2399 = vunpack.c.0.s8 %v2398
    %v2400 = vlaneseq
    %v2401 = vshrl.u32 %v2400, 7
    %v2402 = vsub.s32 %v2399, %v2401
    %v2403 = vrot.slane %v2381, %v2402
    %v2405 = vunpack.c.l.s4 1966171168
    %v2406 = vunpack.c.0.s8 %v2405
    %v2407 = vlaneseq
    %v2408 = vshrl.u32 %v2407, 7
    %v2409 = vsub.s32 %v2406, %v2408
    %v2410 = vrot.slane %v2382, %v2409
    %v2411 = vcombine.high %v2389, %v2389
    %v2412 = vcombine.high %v2396, %v2396
    %v2413 = vcombine.high %v2403, %v2403
    %v2414 = vcombine.high %v2410, %v2410
    %v2415 = vcombine.high %v2357, %v2357
    %v2417 = vunpack.c.l.s4 1966171168
    %v2418 = vunpack.c.0.s8 %v2417
    %v2419 = vlaneseq
    %v2420 = vshrl.u32 %v2419, 7
    %v2421 = vsub.s32 %v2418, %v2420
    %v2422 = vrot.slane %v2357, %v2421
    %v2424 = vunpack.c.l.s4 1966171168
    %v2425 = vunpack.c.0.s8 %v2424
    %v2426 = vlaneseq
    %v2427 = vshrl.u32 %v2426, 7
    %v2428 = vsub.s32 %v2425, %v2427
    %v2429 = vrot.slane %v2415, %v2428
    %v2430 = vcombine.high %v2422, %v2422
    %v2431 = vcombine.high %v2429, %v2429
    %v2433 = vunpack.c.l.s4 1966171168
    %v2434 = vunpack.c.0.s8 %v2433
    %v2435 = vlaneseq
    %v2436 = vshrl.u32 %v2435, 7
    %v2437 = vsub.s32 %v2434, %v2436
    %v2438 = vrot.slane %v2422, %v2437
    %v2440 = vunpack.c.l.s4 1966171168
    %v2441 = vunpack.c.0.s8 %v2440
    %v2442 = vlaneseq
    %v2443 = vshrl.u32 %v2442, 7
    %v2444 = vsub.s32 %v2441, %v2443
    %v2445 = vrot.slane %v2429, %v2444
    %v2447 = vunpack.c.l.s4 1966171168
    %v2448 = vunpack.c.0.s8 %v2447
    %v2449 = vlaneseq
    %v2450 = vshrl.u32 %v2449, 7
    %v2451 = vsub.s32 %v2448, %v2450
    %v2452 = vrot.slane %v2430, %v2451
    %v2454 = vunpack.c.l.s4 1966171168
    %v2455 = vunpack.c.0.s8 %v2454
    %v2456 = vlaneseq
    %v2457 = vshrl.u32 %v2456, 7
    %v2458 = vsub.s32 %v2455, %v2457
    %v2459 = vrot.slane %v2431, %v2458
    %v2460 = vcombine.high %v2438, %v2438
    %v2461 = vcombine.high %v2445, %v2445
    %v2462 = vcombine.high %v2452, %v2452
    %v2463 = vcombine.high %v2459, %v2459
    %v2464 = vlaneseq
    %v2465 = vshrl.u32 %v2464, 7
    %v2466 = vsub.s32 0, %v2465
    %v2467 = vrot.slane %v2389, %v2466
    %v2468 = vlaneseq
    %v2469 = vshrl.u32 %v2468, 7
    %v2470 = vsub.s32 0, %v2469
    %v2471 = vrot.slane %v2403, %v2470
    %v2472 = vlaneseq
    %v2473 = vshrl.u32 %v2472, 7
    %v2474 = vsub.s32 0, %v2473
    %v2475 = vrot.slane %v2411, %v2474
    %v2476 = vlaneseq
    %v2477 = vshrl.u32 %v2476, 7
    %v2478 = vsub.s32 0, %v2477
    %v2479 = vrot.slane %v2413, %v2478
    %v2480 = vlaneseq
    %v2481 = vshrl.u32 %v2480, 7
    %v2482 = vsub.s32 0, %v2481
    %v2483 = vrot.slane %v2396, %v2482
    %v2484 = vlaneseq
    %v2485 = vshrl.u32 %v2484, 7
    %v2486 = vsub.s32 0, %v2485
    %v2487 = vrot.slane %v2410, %v2486
    %v2488 = vlaneseq
    %v2489 = vshrl.u32 %v2488, 7
    %v2490 = vsub.s32 0, %v2489
    %v2491 = vrot.slane %v2412, %v2490
    %v2492 = vlaneseq
    %v2493 = vshrl.u32 %v2492, 7
    %v2494 = vsub.s32 0, %v2493
    %v2495 = vrot.slane %v2414, %v2494
    %v2496 = vlaneseq
    %v2497 = vshrl.u32 %v2496, 7
    %v2498 = vsub.s32 0, %v2497
    %v2499 = vrot.slane %v2438, %v2498
    %v2500 = vlaneseq
    %v2501 = vshrl.u32 %v2500, 7
    %v2502 = vsub.s32 0, %v2501
    %v2503 = vrot.slane %v2452, %v2502
    %v2504 = vlaneseq
    %v2505 = vshrl.u32 %v2504, 7
    %v2506 = vsub.s32 0, %v2505
    %v2507 = vrot.slane %v2460, %v2506
    %v2508 = vlaneseq
    %v2509 = vshrl.u32 %v2508, 7
    %v2510 = vsub.s32 0, %v2509
    %v2511 = vrot.slane %v2462, %v2510
    %v2512 = vlaneseq
    %v2513 = vshrl.u32 %v2512, 7
    %v2514 = vsub.s32 0, %v2513
    %v2515 = vrot.slane %v2445, %v2514
    %v2516 = vlaneseq
    %v2517 = vshrl.u32 %v2516, 7
    %v2518 = vsub.s32 0, %v2517
    %v2519 = vrot.slane %v2459, %v2518
    %v2520 = vlaneseq
    %v2521 = vshrl.u32 %v2520, 7
    %v2522 = vsub.s32 0, %v2521
    %v2523 = vrot.slane %v2461, %v2522
    %v2524 = vlaneseq
    %v2525 = vshrl.u32 %v2524, 7
    %v2526 = vsub.s32 0, %v2525
    %v2527 = vrot.slane %v2463, %v2526
    %v2544 = vmul.f32 %v2467, %v2362
    %v2545 = vmul.f32 %v2467, %v2363
    %v2546 = vmul.f32 %v2471, %v2362
    %v2547 = vmul.f32 %v2471, %v2363
    %v2548 = vmul.f32 %v2475, %v2362
    %v2549 = vmul.f32 %v2475, %v2363
    %v2550 = vmul.f32 %v2479, %v2362
    %v2551 = vmul.f32 %v2479, %v2363
    %v2552 = vmul.f32 %v2483, %v2362
    %v2553 = vmul.f32 %v2483, %v2363
    %v2554 = vmul.f32 %v2487, %v2362
    %v2555 = vmul.f32 %v2487, %v2363
    %v2556 = vmul.f32 %v2491, %v2362
    %v2557 = vmul.f32 %v2491, %v2363
    %v2558 = vmul.f32 %v2495, %v2362
    %v2559 = vmul.f32 %v2495, %v2363
    %v2560 = vmul.f32 %v2499, %v2362
    %v2561 = vmul.f32 %v2499, %v2363
    %v2562 = vmul.f32 %v2503, %v2362
    %v2563 = vmul.f32 %v2503, %v2363
    %v2564 = vmul.f32 %v2507, %v2362
    %v2565 = vmul.f32 %v2507, %v2363
    %v2566 = vmul.f32 %v2511, %v2362
    %v2567 = vmul.f32 %v2511, %v2363
    %v2568 = vmul.f32 %v2515, %v2362
    %v2569 = vmul.f32 %v2515, %v2363
    %v2570 = vmul.f32 %v2519, %v2362
    %v2571 = vmul.f32 %v2519, %v2363
    %v2572 = vmul.f32 %v2523, %v2362
    %v2573 = vmul.f32 %v2523, %v2363
    %v2574 = vmul.f32 %v2527, %v2362
    %v2575 = vmul.f32 %v2527, %v2363
    %v2576 = vmul.f32 %v2544, 1.442695
    %v2577 = vpow.pop %v2576
    %v2578 = vmul.f32 %v2545, 1.442695
    %v2579 = vpow.pop %v2578
    %v2580 = vmul.f32 %v2546, 1.442695
    %v2581 = vpow.pop %v2580
    %v2582 = vmul.f32 %v2547, 1.442695
    %v2583 = vpow.pop %v2582
    %v2584 = vmul.f32 %v2548, 1.442695
    %v2585 = vpow.pop %v2584
    %v2586 = vmul.f32 %v2549, 1.442695
    %v2587 = vpow.pop %v2586
    %v2588 = vmul.f32 %v2550, 1.442695
    %v2589 = vpow.pop %v2588
    %v2590 = vmul.f32 %v2551, 1.442695
    %v2591 = vpow.pop %v2590
    %v2592 = vmul.f32 %v2552, 1.442695
    %v2593 = vpow.pop %v2592
    %v2594 = vmul.f32 %v2553, 1.442695
    %v2595 = vpow.pop %v2594
    %v2596 = vmul.f32 %v2554, 1.442695
    %v2597 = vpow.pop %v2596
    %v2598 = vmul.f32 %v2555, 1.442695
    %v2599 = vpow.pop %v2598
    %v2600 = vmul.f32 %v2556, 1.442695
    %v2601 = vpow.pop %v2600
    %v2602 = vmul.f32 %v2557, 1.442695
    %v2603 = vpow.pop %v2602
    %v2604 = vmul.f32 %v2558, 1.442695
    %v2605 = vpow.pop %v2604
    %v2606 = vmul.f32 %v2559, 1.442695
    %v2607 = vpow.pop %v2606
    %v2608 = vmul.f32 %v2560, 1.442695
    %v2609 = vpow.pop %v2608
    %v2610 = vmul.f32 %v2561, 1.442695
    %v2611 = vpow.pop %v2610
    %v2612 = vmul.f32 %v2562, 1.442695
    %v2613 = vpow.pop %v2612
    %v2614 = vmul.f32 %v2563, 1.442695
    %v2615 = vpow.pop %v2614
    %v2616 = vmul.f32 %v2564, 1.442695
    %v2617 = vpow.pop %v2616
    %v2618 = vmul.f32 %v2565, 1.442695
    %v2619 = vpow.pop %v2618
    %v2620 = vmul.f32 %v2566, 1.442695
    %v2621 = vpow.pop %v2620
    %v2622 = vmul.f32 %v2567, 1.442695
    %v2623 = vpow.pop %v2622
    %v2624 = vmul.f32 %v2568, 1.442695
    %v2625 = vpow.pop %v2624
    %v2626 = vmul.f32 %v2569, 1.442695
    %v2627 = vpow.pop %v2626
    %v2628 = vmul.f32 %v2570, 1.442695
    %v2629 = vpow.pop %v2628
    %v2630 = vmul.f32 %v2571, 1.442695
    %v2631 = vpow.pop %v2630
    %v2632 = vmul.f32 %v2572, 1.442695
    %v2633 = vpow.pop %v2632
    %v2634 = vmul.f32 %v2573, 1.442695
    %v2635 = vpow.pop %v2634
    %v2636 = vmul.f32 %v2574, 1.442695
    %v2637 = vpow.pop %v2636
    %v2638 = vmul.f32 %v2575, 1.442695
    %v2639 = vpow.pop %v2638
    %v2640 = vmul.f32 %v2356, %v2158
    %v2641 = vmul.f32 %v2357, %v2159
    %v2644 = vcombine.high %v2640, %v2640
    %v2646 = vunpack.c.l.s4 1966171168
    %v2647 = vunpack.c.0.s8 %v2646
    %v2648 = vlaneseq
    %v2649 = vshrl.u32 %v2648, 7
    %v2650 = vsub.s32 %v2647, %v2649
    %v2651 = vrot.slane %v2640, %v2650
    %v2653 = vunpack.c.l.s4 1966171168
    %v2654 = vunpack.c.0.s8 %v2653
    %v2655 = vlaneseq
    %v2656 = vshrl.u32 %v2655, 7
    %v2657 = vsub.s32 %v2654, %v2656
    %v2658 = vrot.slane %v2644, %v2657
    %v2659 = vcombine.high %v2651, %v2651
    %v2660 = vcombine.high %v2658, %v2658
    %v2662 = vunpack.c.l.s4 1966171168
    %v2663 = vunpack.c.0.s8 %v2662
    %v2664 = vlaneseq
    %v2665 = vshrl.u32 %v2664, 7
    %v2666 = vsub.s32 %v2663, %v2665
    %v2667 = vrot.slane %v2651, %v2666
    %v2669 = vunpack.c.l.s4 1966171168
    %v2670 = vunpack.c.0.s8 %v2669
    %v2671 = vlaneseq
    %v2672 = vshrl.u32 %v2671, 7
    %v2673 = vsub.s32 %v2670, %v2672
    %v2674 = vrot.slane %v2658, %v2673
    %v2676 = vunpack.c.l.s4 1966171168
    %v2677 = vunpack.c.0.s8 %v2676
    %v2678 = vlaneseq
    %v2679 = vshrl.u32 %v2678, 7
    %v2680 = vsub.s32 %v2677, %v2679
    %v2681 = vrot.slane %v2659, %v2680
    %v2683 = vunpack.c.l.s4 1966171168
    %v2684 = vunpack.c.0.s8 %v2683
    %v2685 = vlaneseq
    %v2686 = vshrl.u32 %v2685, 7
    %v2687 = vsub.s32 %v2684, %v2686
    %v2688 = vrot.slane %v2660, %v2687
    %v2689 = vcombine.high %v2667, %v2667
    %v2690 = vcombine.high %v2674, %v2674
    %v2691 = vcombine.high %v2681, %v2681
    %v2692 = vcombine.high %v2688, %v2688
    %v2693 = vcombine.high %v2641, %v2641
    %v2695 = vunpack.c.l.s4 1966171168
    %v2696 = vunpack.c.0.s8 %v2695
    %v2697 = vlaneseq
    %v2698 = vshrl.u32 %v2697, 7
    %v2699 = vsub.s32 %v2696, %v2698
    %v2700 = vrot.slane %v2641, %v2699
    %v2702 = vunpack.c.l.s4 1966171168
    %v2703 = vunpack.c.0.s8 %v2702
    %v2704 = vlaneseq
    %v2705 = vshrl.u32 %v2704, 7
    %v2706 = vsub.s32 %v2703, %v2705
    %v2707 = vrot.slane %v2693, %v2706
    %v2708 = vcombine.high %v2700, %v2700
    %v2709 = vcombine.high %v2707, %v2707
    %v2711 = vunpack.c.l.s4 1966171168
    %v2712 = vunpack.c.0.s8 %v2711
    %v2713 = vlaneseq
    %v2714 = vshrl.u32 %v2713, 7
    %v2715 = vsub.s32 %v2712, %v2714
    %v2716 = vrot.slane %v2700, %v2715
    %v2718 = vunpack.c.l.s4 1966171168
    %v2719 = vunpack.c.0.s8 %v2718
    %v2720 = vlaneseq
    %v2721 = vshrl.u32 %v2720, 7
    %v2722 = vsub.s32 %v2719, %v2721
    %v2723 = vrot.slane %v2707, %v2722
    %v2725 = vunpack.c.l.s4 1966171168
    %v2726 = vunpack.c.0.s8 %v2725
    %v2727 = vlaneseq
    %v2728 = vshrl.u32 %v2727, 7
    %v2729 = vsub.s32 %v2726, %v2728
    %v2730 = vrot.slane %v2708, %v2729
    %v2732 = vunpack.c.l.s4 1966171168
    %v2733 = vunpack.c.0.s8 %v2732
    %v2734 = vlaneseq
    %v2735 = vshrl.u32 %v2734, 7
    %v2736 = vsub.s32 %v2733, %v2735
    %v2737 = vrot.slane %v2709, %v2736
    %v2738 = vcombine.high %v2716, %v2716
    %v2739 = vcombine.high %v2723, %v2723
    %v2740 = vcombine.high %v2730, %v2730
    %v2741 = vcombine.high %v2737, %v2737
    %v2742 = vlaneseq
    %v2743 = vshrl.u32 %v2742, 7
    %v2744 = vsub.s32 0, %v2743
    %v2745 = vrot.slane %v2233, %v2744
    %s2747 = sor.u32 256, 2
    %2748 = vbcast.lane.b32.xlu0 %v2745, %s2747
    %v2749 = vpop.permute.xlu0 %2748
    %s2751 = sor.u32 256, 10
    %2752 = vbcast.lane.b32.xlu0 %v2745, %s2751
    %v2753 = vpop.permute.xlu0 %2752
    %v2754 = vlaneseq
    %v2755 = vshrl.u32 %v2754, 7
    %v2756 = vsub.s32 1, %v2755
    %v2757 = vrot.slane %v2233, %v2756
    %s2759 = sor.u32 256, 2
    %2760 = vbcast.lane.b32.xlu0 %v2757, %s2759
    %v2761 = vpop.permute.xlu0 %2760
    %s2763 = sor.u32 256, 10
    %2764 = vbcast.lane.b32.xlu0 %v2757, %s2763
    %v2765 = vpop.permute.xlu0 %2764
    %v2766 = vlaneseq
    %v2767 = vshrl.u32 %v2766, 7
    %v2768 = vsub.s32 2, %v2767
    %v2769 = vrot.slane %v2233, %v2768
    %s2771 = sor.u32 256, 2
    %2772 = vbcast.lane.b32.xlu0 %v2769, %s2771
    %v2773 = vpop.permute.xlu0 %2772
    %s2775 = sor.u32 256, 10
    %2776 = vbcast.lane.b32.xlu0 %v2769, %s2775
    %v2777 = vpop.permute.xlu0 %2776
    %v2778 = vlaneseq
    %v2779 = vshrl.u32 %v2778, 7
    %v2780 = vsub.s32 3, %v2779
    %v2781 = vrot.slane %v2233, %v2780
    %s2783 = sor.u32 256, 2
    %2784 = vbcast.lane.b32.xlu0 %v2781, %s2783
    %v2785 = vpop.permute.xlu0 %2784
    %s2787 = sor.u32 256, 10
    %2788 = vbcast.lane.b32.xlu0 %v2781, %s2787
    %v2789 = vpop.permute.xlu0 %2788
    %v2790 = vlaneseq
    %v2791 = vshrl.u32 %v2790, 7
    %v2792 = vsub.s32 4, %v2791
    %v2793 = vrot.slane %v2233, %v2792
    %s2795 = sor.u32 256, 2
    %2796 = vbcast.lane.b32.xlu0 %v2793, %s2795
    %v2797 = vpop.permute.xlu0 %2796
    %s2799 = sor.u32 256, 10
    %2800 = vbcast.lane.b32.xlu0 %v2793, %s2799
    %v2801 = vpop.permute.xlu0 %2800
    %v2802 = vlaneseq
    %v2803 = vshrl.u32 %v2802, 7
    %v2804 = vsub.s32 5, %v2803
    %v2805 = vrot.slane %v2233, %v2804
    %s2807 = sor.u32 256, 2
    %2808 = vbcast.lane.b32.xlu0 %v2805, %s2807
    %v2809 = vpop.permute.xlu0 %2808
    %s2811 = sor.u32 256, 10
    %2812 = vbcast.lane.b32.xlu0 %v2805, %s2811
    %v2813 = vpop.permute.xlu0 %2812
    %v2814 = vlaneseq
    %v2815 = vshrl.u32 %v2814, 7
    %v2816 = vsub.s32 6, %v2815
    %v2817 = vrot.slane %v2233, %v2816
    %s2819 = sor.u32 256, 2
    %2820 = vbcast.lane.b32.xlu0 %v2817, %s2819
    %v2821 = vpop.permute.xlu0 %2820
    %s2823 = sor.u32 256, 10
    %2824 = vbcast.lane.b32.xlu0 %v2817, %s2823
    %v2825 = vpop.permute.xlu0 %2824
    %v2826 = vlaneseq
    %v2827 = vshrl.u32 %v2826, 7
    %v2828 = vsub.s32 7, %v2827
    %v2829 = vrot.slane %v2233, %v2828
    %s2831 = sor.u32 256, 2
    %2832 = vbcast.lane.b32.xlu0 %v2829, %s2831
    %v2833 = vpop.permute.xlu0 %2832
    %s2835 = sor.u32 256, 10
    %2836 = vbcast.lane.b32.xlu0 %v2829, %s2835
    %v2837 = vpop.permute.xlu0 %2836
    %v2838 = vlaneseq
    %v2839 = vshrl.u32 %v2838, 7
    %v2840 = vsub.s32 0, %v2839
    %v2841 = vrot.slane %v2238, %v2840
    %s2843 = sor.u32 256, 2
    %2844 = vbcast.lane.b32.xlu0 %v2841, %s2843
    %v2845 = vpop.permute.xlu0 %2844
    %s2847 = sor.u32 256, 10
    %2848 = vbcast.lane.b32.xlu0 %v2841, %s2847
    %v2849 = vpop.permute.xlu0 %2848
    %v2850 = vlaneseq
    %v2851 = vshrl.u32 %v2850, 7
    %v2852 = vsub.s32 1, %v2851
    %v2853 = vrot.slane %v2238, %v2852
    %s2855 = sor.u32 256, 2
    %2856 = vbcast.lane.b32.xlu0 %v2853, %s2855
    %v2857 = vpop.permute.xlu0 %2856
    %s2859 = sor.u32 256, 10
    %2860 = vbcast.lane.b32.xlu0 %v2853, %s2859
    %v2861 = vpop.permute.xlu0 %2860
    %v2862 = vlaneseq
    %v2863 = vshrl.u32 %v2862, 7
    %v2864 = vsub.s32 2, %v2863
    %v2865 = vrot.slane %v2238, %v2864
    %s2867 = sor.u32 256, 2
    %2868 = vbcast.lane.b32.xlu0 %v2865, %s2867
    %v2869 = vpop.permute.xlu0 %2868
    %s2871 = sor.u32 256, 10
    %2872 = vbcast.lane.b32.xlu0 %v2865, %s2871
    %v2873 = vpop.permute.xlu0 %2872
    %v2874 = vlaneseq
    %v2875 = vshrl.u32 %v2874, 7
    %v2876 = vsub.s32 3, %v2875
    %v2877 = vrot.slane %v2238, %v2876
    %s2879 = sor.u32 256, 2
    %2880 = vbcast.lane.b32.xlu0 %v2877, %s2879
    %v2881 = vpop.permute.xlu0 %2880
    %s2883 = sor.u32 256, 10
    %2884 = vbcast.lane.b32.xlu0 %v2877, %s2883
    %v2885 = vpop.permute.xlu0 %2884
    %v2886 = vlaneseq
    %v2887 = vshrl.u32 %v2886, 7
    %v2888 = vsub.s32 4, %v2887
    %v2889 = vrot.slane %v2238, %v2888
    %s2891 = sor.u32 256, 2
    %2892 = vbcast.lane.b32.xlu0 %v2889, %s2891
    %v2893 = vpop.permute.xlu0 %2892
    %s2895 = sor.u32 256, 10
    %2896 = vbcast.lane.b32.xlu0 %v2889, %s2895
    %v2897 = vpop.permute.xlu0 %2896
    %v2898 = vlaneseq
    %v2899 = vshrl.u32 %v2898, 7
    %v2900 = vsub.s32 5, %v2899
    %v2901 = vrot.slane %v2238, %v2900
    %s2903 = sor.u32 256, 2
    %2904 = vbcast.lane.b32.xlu0 %v2901, %s2903
    %v2905 = vpop.permute.xlu0 %2904
    %s2907 = sor.u32 256, 10
    %2908 = vbcast.lane.b32.xlu0 %v2901, %s2907
    %v2909 = vpop.permute.xlu0 %2908
    %v2910 = vlaneseq
    %v2911 = vshrl.u32 %v2910, 7
    %v2912 = vsub.s32 6, %v2911
    %v2913 = vrot.slane %v2238, %v2912
    %s2915 = sor.u32 256, 2
    %2916 = vbcast.lane.b32.xlu0 %v2913, %s2915
    %v2917 = vpop.permute.xlu0 %2916
    %s2919 = sor.u32 256, 10
    %2920 = vbcast.lane.b32.xlu0 %v2913, %s2919
    %v2921 = vpop.permute.xlu0 %2920
    %v2922 = vlaneseq
    %v2923 = vshrl.u32 %v2922, 7
    %v2924 = vsub.s32 7, %v2923
    %v2925 = vrot.slane %v2238, %v2924
    %s2927 = sor.u32 256, 2
    %2928 = vbcast.lane.b32.xlu0 %v2925, %s2927
    %v2929 = vpop.permute.xlu0 %2928
    %s2931 = sor.u32 256, 10
    %2932 = vbcast.lane.b32.xlu0 %v2925, %s2931
    %v2933 = vpop.permute.xlu0 %2932
    %v2934 = vlaneseq
    %v2935 = vshrl.u32 %v2934, 7
    %v2936 = vsub.s32 0, %v2935
    %v2937 = vrot.slane %v2667, %v2936
    %v2938 = vlaneseq
    %v2939 = vshrl.u32 %v2938, 7
    %v2940 = vsub.s32 0, %v2939
    %v2941 = vrot.slane %v2681, %v2940
    %v2942 = vlaneseq
    %v2943 = vshrl.u32 %v2942, 7
    %v2944 = vsub.s32 0, %v2943
    %v2945 = vrot.slane %v2689, %v2944
    %v2946 = vlaneseq
    %v2947 = vshrl.u32 %v2946, 7
    %v2948 = vsub.s32 0, %v2947
    %v2949 = vrot.slane %v2691, %v2948
    %v2950 = vlaneseq
    %v2951 = vshrl.u32 %v2950, 7
    %v2952 = vsub.s32 0, %v2951
    %v2953 = vrot.slane %v2674, %v2952
    %v2954 = vlaneseq
    %v2955 = vshrl.u32 %v2954, 7
    %v2956 = vsub.s32 0, %v2955
    %v2957 = vrot.slane %v2688, %v2956
    %v2958 = vlaneseq
    %v2959 = vshrl.u32 %v2958, 7
    %v2960 = vsub.s32 0, %v2959
    %v2961 = vrot.slane %v2690, %v2960
    %v2962 = vlaneseq
    %v2963 = vshrl.u32 %v2962, 7
    %v2964 = vsub.s32 0, %v2963
    %v2965 = vrot.slane %v2692, %v2964
    %v2966 = vlaneseq
    %v2967 = vshrl.u32 %v2966, 7
    %v2968 = vsub.s32 0, %v2967
    %v2969 = vrot.slane %v2716, %v2968
    %v2970 = vlaneseq
    %v2971 = vshrl.u32 %v2970, 7
    %v2972 = vsub.s32 0, %v2971
    %v2973 = vrot.slane %v2730, %v2972
    %v2974 = vlaneseq
    %v2975 = vshrl.u32 %v2974, 7
    %v2976 = vsub.s32 0, %v2975
    %v2977 = vrot.slane %v2738, %v2976
    %v2978 = vlaneseq
    %v2979 = vshrl.u32 %v2978, 7
    %v2980 = vsub.s32 0, %v2979
    %v2981 = vrot.slane %v2740, %v2980
    %v2982 = vlaneseq
    %v2983 = vshrl.u32 %v2982, 7
    %v2984 = vsub.s32 0, %v2983
    %v2985 = vrot.slane %v2723, %v2984
    %v2986 = vlaneseq
    %v2987 = vshrl.u32 %v2986, 7
    %v2988 = vsub.s32 0, %v2987
    %v2989 = vrot.slane %v2737, %v2988
    %v2990 = vlaneseq
    %v2991 = vshrl.u32 %v2990, 7
    %v2992 = vsub.s32 0, %v2991
    %v2993 = vrot.slane %v2739, %v2992
    %v2994 = vlaneseq
    %v2995 = vshrl.u32 %v2994, 7
    %v2996 = vsub.s32 0, %v2995
    %v2997 = vrot.slane %v2741, %v2996
    %v3014 = vmul.f32 %v2937, %v2749
    %v3015 = vmul.f32 %v2937, %v2753
    %v3016 = vmul.f32 %v2941, %v2761
    %v3017 = vmul.f32 %v2941, %v2765
    %v3018 = vmul.f32 %v2945, %v2773
    %v3019 = vmul.f32 %v2945, %v2777
    %v3020 = vmul.f32 %v2949, %v2785
    %v3021 = vmul.f32 %v2949, %v2789
    %v3022 = vmul.f32 %v2953, %v2797
    %v3023 = vmul.f32 %v2953, %v2801
    %v3024 = vmul.f32 %v2957, %v2809
    %v3025 = vmul.f32 %v2957, %v2813
    %v3026 = vmul.f32 %v2961, %v2821
    %v3027 = vmul.f32 %v2961, %v2825
    %v3028 = vmul.f32 %v2965, %v2833
    %v3029 = vmul.f32 %v2965, %v2837
    %v3030 = vmul.f32 %v2969, %v2845
    %v3031 = vmul.f32 %v2969, %v2849
    %v3032 = vmul.f32 %v2973, %v2857
    %v3033 = vmul.f32 %v2973, %v2861
    %v3034 = vmul.f32 %v2977, %v2869
    %v3035 = vmul.f32 %v2977, %v2873
    %v3036 = vmul.f32 %v2981, %v2881
    %v3037 = vmul.f32 %v2981, %v2885
    %v3038 = vmul.f32 %v2985, %v2893
    %v3039 = vmul.f32 %v2985, %v2897
    %v3040 = vmul.f32 %v2989, %v2905
    %v3041 = vmul.f32 %v2989, %v2909
    %v3042 = vmul.f32 %v2993, %v2917
    %v3043 = vmul.f32 %v2993, %v2921
    %v3044 = vmul.f32 %v2997, %v2929
    %v3045 = vmul.f32 %v2997, %v2933
    %v3046 = vmul.f32 %v2577, 0.0
    %v3047 = vmul.f32 %v2579, 0.0
    %v3048 = vmul.f32 %v2609, 0.0
    %v3049 = vmul.f32 %v2611, 0.0
    %v3050 = vadd.f32 %v3046, %v3014
    %v3051 = vadd.f32 %v3047, %v3015
    %v3052 = vadd.f32 %v3048, %v3030
    %v3053 = vadd.f32 %v3049, %v3031
    %s3055 = sor.u32 256, 18
    %3056 = vbcast.lane.b32.xlu0 %v2745, %s3055
    %v3057 = vpop.permute.xlu0 %3056
    %s3059 = sor.u32 256, 26
    %3060 = vbcast.lane.b32.xlu0 %v2745, %s3059
    %v3061 = vpop.permute.xlu0 %3060
    %s3063 = sor.u32 256, 18
    %3064 = vbcast.lane.b32.xlu0 %v2841, %s3063
    %v3065 = vpop.permute.xlu0 %3064
    %s3067 = sor.u32 256, 26
    %3068 = vbcast.lane.b32.xlu0 %v2841, %s3067
    %v3069 = vpop.permute.xlu0 %3068
    %v3070 = vmul.f32 %v3050, %v3057
    %v3071 = vmul.f32 %v3051, %v3061
    %v3072 = vmul.f32 %v3052, %v3065
    %v3073 = vmul.f32 %v3053, %v3069
    %v3074 = vsel %vm516, %v3070, 0.0
    %v3075 = vsel %vm516, %v3071, 0.0
    %v3076 = vadd.f32 %v3074, %v3075
    %v3077 = vrot.slane %v3076, 4
    %v3078 = vadd.f32 %v3076, %v3077
    %v3079 = vrot.slane %v3078, 2
    %v3080 = vadd.f32 %v3078, %v3079
    %v3081 = vrot.slane %v3080, 1
    %v3082 = vadd.f32 %v3080, %v3081
    %v3083 = vsel %vm516, %v3072, 0.0
    %v3084 = vsel %vm516, %v3073, 0.0
    %v3085 = vadd.f32 %v3083, %v3084
    %v3086 = vrot.slane %v3085, 4
    %v3087 = vadd.f32 %v3085, %v3086
    %v3088 = vrot.slane %v3087, 2
    %v3089 = vadd.f32 %v3087, %v3088
    %v3090 = vrot.slane %v3089, 1
    %v3091 = vadd.f32 %v3089, %v3090
    %v3092 = vmul.f32 %v2581, %v3050
    %v3093 = vmul.f32 %v2583, %v3051
    %v3094 = vmul.f32 %v2613, %v3052
    %v3095 = vmul.f32 %v2615, %v3053
    %v3096 = vadd.f32 %v3092, %v3016
    %v3097 = vadd.f32 %v3093, %v3017
    %v3098 = vadd.f32 %v3094, %v3032
    %v3099 = vadd.f32 %v3095, %v3033
    %s3101 = sor.u32 256, 18
    %3102 = vbcast.lane.b32.xlu0 %v2757, %s3101
    %v3103 = vpop.permute.xlu0 %3102
    %s3105 = sor.u32 256, 26
    %3106 = vbcast.lane.b32.xlu0 %v2757, %s3105
    %v3107 = vpop.permute.xlu0 %3106
    %s3109 = sor.u32 256, 18
    %3110 = vbcast.lane.b32.xlu0 %v2853, %s3109
    %v3111 = vpop.permute.xlu0 %3110
    %s3113 = sor.u32 256, 26
    %3114 = vbcast.lane.b32.xlu0 %v2853, %s3113
    %v3115 = vpop.permute.xlu0 %3114
    %v3116 = vmul.f32 %v3096, %v3103
    %v3117 = vmul.f32 %v3097, %v3107
    %v3118 = vmul.f32 %v3098, %v3111
    %v3119 = vmul.f32 %v3099, %v3115
    %v3120 = vsel %vm516, %v3116, 0.0
    %v3121 = vsel %vm516, %v3117, 0.0
    %v3122 = vadd.f32 %v3120, %v3121
    %v3123 = vrot.slane %v3122, 4
    %v3124 = vadd.f32 %v3122, %v3123
    %v3125 = vrot.slane %v3124, 2
    %v3126 = vadd.f32 %v3124, %v3125
    %v3127 = vrot.slane %v3126, 1
    %v3128 = vadd.f32 %v3126, %v3127
    %v3129 = vsel %vm516, %v3118, 0.0
    %v3130 = vsel %vm516, %v3119, 0.0
    %v3131 = vadd.f32 %v3129, %v3130
    %v3132 = vrot.slane %v3131, 4
    %v3133 = vadd.f32 %v3131, %v3132
    %v3134 = vrot.slane %v3133, 2
    %v3135 = vadd.f32 %v3133, %v3134
    %v3136 = vrot.slane %v3135, 1
    %v3137 = vadd.f32 %v3135, %v3136
    %v3138 = vmul.f32 %v2585, %v3096
    %v3139 = vmul.f32 %v2587, %v3097
    %v3140 = vmul.f32 %v2617, %v3098
    %v3141 = vmul.f32 %v2619, %v3099
    %v3142 = vadd.f32 %v3138, %v3018
    %v3143 = vadd.f32 %v3139, %v3019
    %v3144 = vadd.f32 %v3140, %v3034
    %v3145 = vadd.f32 %v3141, %v3035
    %s3147 = sor.u32 256, 18
    %3148 = vbcast.lane.b32.xlu0 %v2769, %s3147
    %v3149 = vpop.permute.xlu0 %3148
    %s3151 = sor.u32 256, 26
    %3152 = vbcast.lane.b32.xlu0 %v2769, %s3151
    %v3153 = vpop.permute.xlu0 %3152
    %s3155 = sor.u32 256, 18
    %3156 = vbcast.lane.b32.xlu0 %v2865, %s3155
    %v3157 = vpop.permute.xlu0 %3156
    %s3159 = sor.u32 256, 26
    %3160 = vbcast.lane.b32.xlu0 %v2865, %s3159
    %v3161 = vpop.permute.xlu0 %3160
    %v3162 = vmul.f32 %v3142, %v3149
    %v3163 = vmul.f32 %v3143, %v3153
    %v3164 = vmul.f32 %v3144, %v3157
    %v3165 = vmul.f32 %v3145, %v3161
    %v3166 = vsel %vm516, %v3162, 0.0
    %v3167 = vsel %vm516, %v3163, 0.0
    %v3168 = vadd.f32 %v3166, %v3167
    %v3169 = vrot.slane %v3168, 4
    %v3170 = vadd.f32 %v3168, %v3169
    %v3171 = vrot.slane %v3170, 2
    %v3172 = vadd.f32 %v3170, %v3171
    %v3173 = vrot.slane %v3172, 1
    %v3174 = vadd.f32 %v3172, %v3173
    %v3175 = vsel %vm516, %v3164, 0.0
    %v3176 = vsel %vm516, %v3165, 0.0
    %v3177 = vadd.f32 %v3175, %v3176
    %v3178 = vrot.slane %v3177, 4
    %v3179 = vadd.f32 %v3177, %v3178
    %v3180 = vrot.slane %v3179, 2
    %v3181 = vadd.f32 %v3179, %v3180
    %v3182 = vrot.slane %v3181, 1
    %v3183 = vadd.f32 %v3181, %v3182
    %v3184 = vmul.f32 %v2589, %v3142
    %v3185 = vmul.f32 %v2591, %v3143
    %v3186 = vmul.f32 %v2621, %v3144
    %v3187 = vmul.f32 %v2623, %v3145
    %v3188 = vadd.f32 %v3184, %v3020
    %v3189 = vadd.f32 %v3185, %v3021
    %v3190 = vadd.f32 %v3186, %v3036
    %v3191 = vadd.f32 %v3187, %v3037
    %s3193 = sor.u32 256, 18
    %3194 = vbcast.lane.b32.xlu0 %v2781, %s3193
    %v3195 = vpop.permute.xlu0 %3194
    %s3197 = sor.u32 256, 26
    %3198 = vbcast.lane.b32.xlu0 %v2781, %s3197
    %v3199 = vpop.permute.xlu0 %3198
    %s3201 = sor.u32 256, 18
    %3202 = vbcast.lane.b32.xlu0 %v2877, %s3201
    %v3203 = vpop.permute.xlu0 %3202
    %s3205 = sor.u32 256, 26
    %3206 = vbcast.lane.b32.xlu0 %v2877, %s3205
    %v3207 = vpop.permute.xlu0 %3206
    %v3208 = vmul.f32 %v3188, %v3195
    %v3209 = vmul.f32 %v3189, %v3199
    %v3210 = vmul.f32 %v3190, %v3203
    %v3211 = vmul.f32 %v3191, %v3207
    %v3212 = vsel %vm516, %v3208, 0.0
    %v3213 = vsel %vm516, %v3209, 0.0
    %v3214 = vadd.f32 %v3212, %v3213
    %v3215 = vrot.slane %v3214, 4
    %v3216 = vadd.f32 %v3214, %v3215
    %v3217 = vrot.slane %v3216, 2
    %v3218 = vadd.f32 %v3216, %v3217
    %v3219 = vrot.slane %v3218, 1
    %v3220 = vadd.f32 %v3218, %v3219
    %v3221 = vsel %vm516, %v3210, 0.0
    %v3222 = vsel %vm516, %v3211, 0.0
    %v3223 = vadd.f32 %v3221, %v3222
    %v3224 = vrot.slane %v3223, 4
    %v3225 = vadd.f32 %v3223, %v3224
    %v3226 = vrot.slane %v3225, 2
    %v3227 = vadd.f32 %v3225, %v3226
    %v3228 = vrot.slane %v3227, 1
    %v3229 = vadd.f32 %v3227, %v3228
    %v3230 = vmul.f32 %v2593, %v3188
    %v3231 = vmul.f32 %v2595, %v3189
    %v3232 = vmul.f32 %v2625, %v3190
    %v3233 = vmul.f32 %v2627, %v3191
    %v3234 = vadd.f32 %v3230, %v3022
    %v3235 = vadd.f32 %v3231, %v3023
    %v3236 = vadd.f32 %v3232, %v3038
    %v3237 = vadd.f32 %v3233, %v3039
    %s3239 = sor.u32 256, 18
    %3240 = vbcast.lane.b32.xlu0 %v2793, %s3239
    %v3241 = vpop.permute.xlu0 %3240
    %s3243 = sor.u32 256, 26
    %3244 = vbcast.lane.b32.xlu0 %v2793, %s3243
    %v3245 = vpop.permute.xlu0 %3244
    %s3247 = sor.u32 256, 18
    %3248 = vbcast.lane.b32.xlu0 %v2889, %s3247
    %v3249 = vpop.permute.xlu0 %3248
    %s3251 = sor.u32 256, 26
    %3252 = vbcast.lane.b32.xlu0 %v2889, %s3251
    %v3253 = vpop.permute.xlu0 %3252
    %v3254 = vmul.f32 %v3234, %v3241
    %v3255 = vmul.f32 %v3235, %v3245
    %v3256 = vmul.f32 %v3236, %v3249
    %v3257 = vmul.f32 %v3237, %v3253
    %v3258 = vsel %vm516, %v3254, 0.0
    %v3259 = vsel %vm516, %v3255, 0.0
    %v3260 = vadd.f32 %v3258, %v3259
    %v3261 = vrot.slane %v3260, 4
    %v3262 = vadd.f32 %v3260, %v3261
    %v3263 = vrot.slane %v3262, 2
    %v3264 = vadd.f32 %v3262, %v3263
    %v3265 = vrot.slane %v3264, 1
    %v3266 = vadd.f32 %v3264, %v3265
    %v3267 = vsel %vm516, %v3256, 0.0
    %v3268 = vsel %vm516, %v3257, 0.0
    %v3269 = vadd.f32 %v3267, %v3268
    %v3270 = vrot.slane %v3269, 4
    %v3271 = vadd.f32 %v3269, %v3270
    %v3272 = vrot.slane %v3271, 2
    %v3273 = vadd.f32 %v3271, %v3272
    %v3274 = vrot.slane %v3273, 1
    %v3275 = vadd.f32 %v3273, %v3274
    %v3276 = vmul.f32 %v2597, %v3234
    %v3277 = vmul.f32 %v2599, %v3235
    %v3278 = vmul.f32 %v2629, %v3236
    %v3279 = vmul.f32 %v2631, %v3237
    %v3280 = vadd.f32 %v3276, %v3024
    %v3281 = vadd.f32 %v3277, %v3025
    %v3282 = vadd.f32 %v3278, %v3040
    %v3283 = vadd.f32 %v3279, %v3041
    %s3285 = sor.u32 256, 18
    %3286 = vbcast.lane.b32.xlu0 %v2805, %s3285
    %v3287 = vpop.permute.xlu0 %3286
    %s3289 = sor.u32 256, 26
    %3290 = vbcast.lane.b32.xlu0 %v2805, %s3289
    %v3291 = vpop.permute.xlu0 %3290
    %s3293 = sor.u32 256, 18
    %3294 = vbcast.lane.b32.xlu0 %v2901, %s3293
    %v3295 = vpop.permute.xlu0 %3294
    %s3297 = sor.u32 256, 26
    %3298 = vbcast.lane.b32.xlu0 %v2901, %s3297
    %v3299 = vpop.permute.xlu0 %3298
    %v3300 = vmul.f32 %v3280, %v3287
    %v3301 = vmul.f32 %v3281, %v3291
    %v3302 = vmul.f32 %v3282, %v3295
    %v3303 = vmul.f32 %v3283, %v3299
    %v3304 = vsel %vm516, %v3300, 0.0
    %v3305 = vsel %vm516, %v3301, 0.0
    %v3306 = vadd.f32 %v3304, %v3305
    %v3307 = vrot.slane %v3306, 4
    %v3308 = vadd.f32 %v3306, %v3307
    %v3309 = vrot.slane %v3308, 2
    %v3310 = vadd.f32 %v3308, %v3309
    %v3311 = vrot.slane %v3310, 1
    %v3312 = vadd.f32 %v3310, %v3311
    %v3313 = vsel %vm516, %v3302, 0.0
    %v3314 = vsel %vm516, %v3303, 0.0
    %v3315 = vadd.f32 %v3313, %v3314
    %v3316 = vrot.slane %v3315, 4
    %v3317 = vadd.f32 %v3315, %v3316
    %v3318 = vrot.slane %v3317, 2
    %v3319 = vadd.f32 %v3317, %v3318
    %v3320 = vrot.slane %v3319, 1
    %v3321 = vadd.f32 %v3319, %v3320
    %v3322 = vmul.f32 %v2601, %v3280
    %v3323 = vmul.f32 %v2603, %v3281
    %v3324 = vmul.f32 %v2633, %v3282
    %v3325 = vmul.f32 %v2635, %v3283
    %v3326 = vadd.f32 %v3322, %v3026
    %v3327 = vadd.f32 %v3323, %v3027
    %v3328 = vadd.f32 %v3324, %v3042
    %v3329 = vadd.f32 %v3325, %v3043
    %s3331 = sor.u32 256, 18
    %3332 = vbcast.lane.b32.xlu0 %v2817, %s3331
    %v3333 = vpop.permute.xlu0 %3332
    %s3335 = sor.u32 256, 26
    %3336 = vbcast.lane.b32.xlu0 %v2817, %s3335
    %v3337 = vpop.permute.xlu0 %3336
    %s3339 = sor.u32 256, 18
    %3340 = vbcast.lane.b32.xlu0 %v2913, %s3339
    %v3341 = vpop.permute.xlu0 %3340
    %s3343 = sor.u32 256, 26
    %3344 = vbcast.lane.b32.xlu0 %v2913, %s3343
    %v3345 = vpop.permute.xlu0 %3344
    %v3346 = vmul.f32 %v3326, %v3333
    %v3347 = vmul.f32 %v3327, %v3337
    %v3348 = vmul.f32 %v3328, %v3341
    %v3349 = vmul.f32 %v3329, %v3345
    %v3350 = vsel %vm516, %v3346, 0.0
    %v3351 = vsel %vm516, %v3347, 0.0
    %v3352 = vadd.f32 %v3350, %v3351
    %v3353 = vrot.slane %v3352, 4
    %v3354 = vadd.f32 %v3352, %v3353
    %v3355 = vrot.slane %v3354, 2
    %v3356 = vadd.f32 %v3354, %v3355
    %v3357 = vrot.slane %v3356, 1
    %v3358 = vadd.f32 %v3356, %v3357
    %v3359 = vsel %vm516, %v3348, 0.0
    %v3360 = vsel %vm516, %v3349, 0.0
    %v3361 = vadd.f32 %v3359, %v3360
    %v3362 = vrot.slane %v3361, 4
    %v3363 = vadd.f32 %v3361, %v3362
    %v3364 = vrot.slane %v3363, 2
    %v3365 = vadd.f32 %v3363, %v3364
    %v3366 = vrot.slane %v3365, 1
    %v3367 = vadd.f32 %v3365, %v3366
    %v3368 = vmul.f32 %v2605, %v3326
    %v3369 = vmul.f32 %v2607, %v3327
    %v3370 = vmul.f32 %v2637, %v3328
    %v3371 = vmul.f32 %v2639, %v3329
    %v3372 = vadd.f32 %v3368, %v3028
    %v3373 = vadd.f32 %v3369, %v3029
    %v3374 = vadd.f32 %v3370, %v3044
    %v3375 = vadd.f32 %v3371, %v3045
    %s3377 = sor.u32 256, 18
    %3378 = vbcast.lane.b32.xlu0 %v2829, %s3377
    %v3379 = vpop.permute.xlu0 %3378
    %s3381 = sor.u32 256, 26
    %3382 = vbcast.lane.b32.xlu0 %v2829, %s3381
    %v3383 = vpop.permute.xlu0 %3382
    %s3385 = sor.u32 256, 18
    %3386 = vbcast.lane.b32.xlu0 %v2925, %s3385
    %v3387 = vpop.permute.xlu0 %3386
    %s3389 = sor.u32 256, 26
    %3390 = vbcast.lane.b32.xlu0 %v2925, %s3389
    %v3391 = vpop.permute.xlu0 %3390
    %v3392 = vmul.f32 %v3372, %v3379
    %v3393 = vmul.f32 %v3373, %v3383
    %v3394 = vmul.f32 %v3374, %v3387
    %v3395 = vmul.f32 %v3375, %v3391
    %v3396 = vsel %vm516, %v3392, 0.0
    %v3397 = vsel %vm516, %v3393, 0.0
    %v3398 = vadd.f32 %v3396, %v3397
    %v3399 = vrot.slane %v3398, 4
    %v3400 = vadd.f32 %v3398, %v3399
    %v3401 = vrot.slane %v3400, 2
    %v3402 = vadd.f32 %v3400, %v3401
    %v3403 = vrot.slane %v3402, 1
    %v3404 = vadd.f32 %v3402, %v3403
    %v3405 = vsel %vm516, %v3394, 0.0
    %v3406 = vsel %vm516, %v3395, 0.0
    %v3407 = vadd.f32 %v3405, %v3406
    %v3408 = vrot.slane %v3407, 4
    %v3409 = vadd.f32 %v3407, %v3408
    %v3410 = vrot.slane %v3409, 2
    %v3411 = vadd.f32 %v3409, %v3410
    %v3412 = vrot.slane %v3411, 1
    %v3413 = vadd.f32 %v3411, %v3412
    %v3414 = vsel %vm1773, %v3082, %v3128
    %v3415 = vsel %vm1773, %v3091, %v3137
    %v3416 = vsel %vm611, %v3414, %v3174
    %v3417 = vsel %vm611, %v3415, %v3183
    %v3418 = vsel %vm418, %v3416, %v3220
    %v3419 = vsel %vm418, %v3417, %v3229
    %v3420 = vsel %vm1780, %v3418, %v3266
    %v3421 = vsel %vm1780, %v3419, %v3275
    %v3422 = vsel %vm491, %v3420, %v3312
    %v3423 = vsel %vm491, %v3421, %v3321
    %v3424 = vsel %vm468, %v3422, %v3358
    %v3425 = vsel %vm468, %v3423, %v3367
    %v3426 = vsel %vm445, %v3424, %v3404
    %v3427 = vsel %vm445, %v3425, %v3413
    %v3428 = vlaneseq
    %v3429 = vshrl.u32 %v3428, 7
    %v3430 = vsub.s32 4, %v3429
    %v3431 = vrot.slane %v1903, %v3430
    %v3432 = vmul.f32 %v3431, %v2158
    %v3433 = vmul.f32 %v3431, %v2159
    %v3434 = vadd.f32 %v3426, %v3432
    %v3435 = vadd.f32 %v3427, %v3433
    %v3436 = vsub.f32 0.0, %v2052
    %v3437 = vsub.f32 0.0, %v2057
    %v3438 = vmul.f32 %v3436, 1.442695
    %v3439 = vpow.pop %v3438
    %v3440 = vmul.f32 %v3437, 1.442695
    %v3441 = vpow.pop %v3440
    %v3442 = vadd.f32 %v3439, 1.0
    %v3443 = vadd.f32 %v3441, 1.0
    %v3444 = vrcp.pop %v3442
    %v3445 = vmul.f32 1.0, %v3444
    %v3446 = vrcp.pop %v3443
    %v3447 = vmul.f32 1.0, %v3446
    %v3448 = vmul.f32 %v2052, %v3445
    %v3449 = vmul.f32 %v2057, %v3447
    %3452 = vrot.lane.b32.xlu0 %v3448, 64
    %v3453 = vpop.permute.xlu0 %3452
    %3454 = vrot.lane.b32.xlu0 %v3449, 64
    %v3455 = vpop.permute.xlu0 %3454
    %v3458 = vmul.f32 %v3434, %v3453
    %v3459 = vmul.f32 %v3435, %v3455
    %v3461 = vsel %vm516, %v3458, 0
    %v3464 = vsel %vm516, %v3459, 0
    %3466 = vmatprep.subr.mxu0 0.0
    %3467 = vmatpush1.msra.mxu0 0.0
    %3468 = vmatprep.subr.mxu0 0.0
    %3469 = vmatpush1.msra.mxu0 0.0
    %3470 = vmatprep.subr.mxu0 0.0
    %3471 = vmatpush1.msra.mxu0 0.0
    %3472 = vmatprep.subr.mxu0 0.0
    %3473 = vmatpush1.msra.mxu0 0.0
    %3474 = vmatprep.subr.mxu0 0.0
    %3475 = vmatpush1.msra.mxu0 0.0
    %3476 = vmatprep.subr.mxu0 0.0
    %3477 = vmatpush1.msra.mxu0 0.0
    %3478 = vmatprep.subr.mxu0 0.0
    %3479 = vmatpush1.msra.mxu0 0.0
    %3480 = vmatprep.subr.mxu0 0.0
    %3481 = vmatpush1.msra.mxu0 0.0
    %3482 = vmatprep.subr.mxu0 0.0
    %3483 = vmatpush1.msra.mxu0 %v1930
    %3484 = vmatprep.subr.mxu0 0.0
    %3485 = vmatpush1.msra.mxu0 %v1929
    %3486 = vmatprep.subr.mxu0 0.0
    %3487 = vmatpush1.msra.mxu0 %v1928
    %3488 = vmatprep.subr.mxu0 0.0
    %3489 = vmatpush1.msra.mxu0 %v1927
    %3490 = vmatprep.subr.mxu0 0.0
    %3491 = vmatpush1.msra.mxu0 %v1926
    %3492 = vmatprep.subr.mxu0 0.0
    %3493 = vmatpush1.msra.mxu0 %v1925
    %3494 = vmatprep.subr.mxu0 0.0
    %3495 = vmatpush1.msra.mxu0 %v1924
    %3496 = vmatprep.subr.mxu0 0.0
    %3497 = vmatpush1.msra.mxu0 %v1923
    %3498 = vmatprep.subr.mxu0 0.0
    %3499 = vmatpush2.msra.mxu0 0.0
    %3500 = vmatprep.subr.mxu0 0.0
    %3501 = vmatpush2.msra.mxu0 0.0
    %3502 = vmatprep.subr.mxu0 0.0
    %3503 = vmatpush2.msra.mxu0 0.0
    %3504 = vmatprep.subr.mxu0 0.0
    %3505 = vmatpush2.msra.mxu0 0.0
    %3506 = vmatprep.subr.mxu0 0.0
    %3507 = vmatpush2.msra.mxu0 0.0
    %3508 = vmatprep.subr.mxu0 0.0
    %3509 = vmatpush2.msra.mxu0 0.0
    %3510 = vmatprep.subr.mxu0 0.0
    %3511 = vmatpush2.msra.mxu0 0.0
    %3512 = vmatprep.subr.mxu0 0.0
    %3513 = vmatpush2.msra.mxu0 0.0
    %3514 = vmatprep.subr.mxu0 0.0
    %3515 = vmatpush2.msra.mxu0 0.0
    %3516 = vmatprep.subr.mxu0 0.0
    %3517 = vmatpush2.msra.mxu0 0.0
    %3518 = vmatprep.subr.mxu0 0.0
    %3519 = vmatpush2.msra.mxu0 0.0
    %3520 = vmatprep.subr.mxu0 0.0
    %3521 = vmatpush2.msra.mxu0 0.0
    %3522 = vmatprep.subr.mxu0 0.0
    %3523 = vmatpush2.msra.mxu0 0.0
    %3524 = vmatprep.subr.mxu0 0.0
    %3525 = vmatpush2.msra.mxu0 0.0
    %3526 = vmatprep.subr.mxu0 0.0
    %3527 = vmatpush2.msra.mxu0 0.0
    %3528 = vmatprep.subr.mxu0 0.0
    %3529 = vmatpush2.msra.mxu0 0.0
    %3530 = vmatprep.mubr.f32.mxu0 0.0
    %3531 = vmatmul.mubr.f32.gmra.mxu0 %v3461
    %v3532 = vpop.f32.mrf.mxu0
    %v3533 = vadd.f32 0.0, %v3532
    %v3534 = vpop.f32.mrf.mxu0
    %3535 = vmatprep.mubr.f32.mxu0 0.0
    %3536 = vmatmul.mubr.f32.gmra.mxu0 %v3464
    %v3537 = vpop.f32.mrf.mxu0
    %v3538 = vadd.f32 0.0, %v3537
    %v3539 = vpop.f32.mrf.mxu0
    %3540 = vdwg.mxu0
    %3543 = vrot.lane.b32.xlu0 %v1939, 32
    %v3544 = vpop.permute.xlu0 %3543
    %3545 = vrot.lane.b32.xlu0 %v1940, 32
    %v3546 = vpop.permute.xlu0 %3545
    %v3549 = vsel %vm78, %v3533, %v3544
    %v3550 = vsel %vm78, %v3538, %v3546
    %3551 = vmatprep.subr.mxu0 0.0
    %3552 = vmatpush1.msra.mxu0 0.0
    %3553 = vmatprep.subr.mxu0 0.0
    %3554 = vmatpush1.msra.mxu0 0.0
    %3555 = vmatprep.subr.mxu0 0.0
    %3556 = vmatpush1.msra.mxu0 0.0
    %3557 = vmatprep.subr.mxu0 0.0
    %3558 = vmatpush1.msra.mxu0 0.0
    %3559 = vmatprep.subr.mxu0 0.0
    %3560 = vmatpush1.msra.mxu0 0.0
    %3561 = vmatprep.subr.mxu0 0.0
    %3562 = vmatpush1.msra.mxu0 0.0
    %3563 = vmatprep.subr.mxu0 0.0
    %3564 = vmatpush1.msra.mxu0 0.0
    %3565 = vmatprep.subr.mxu0 0.0
    %3566 = vmatpush1.msra.mxu0 0.0
    %3567 = vmatprep.subr.mxu0 0.0
    %3568 = vmatpush1.msra.mxu0 0.0
    %3569 = vmatprep.subr.mxu0 0.0
    %3570 = vmatpush1.msra.mxu0 0.0
    %3571 = vmatprep.subr.mxu0 0.0
    %3572 = vmatpush1.msra.mxu0 0.0
    %3573 = vmatprep.subr.mxu0 0.0
    %3574 = vmatpush1.msra.mxu0 0.0
    %3575 = vmatprep.subr.mxu0 0.0
    %3576 = vmatpush1.msra.mxu0 0.0
    %3577 = vmatprep.subr.mxu0 0.0
    %3578 = vmatpush1.msra.mxu0 0.0
    %3579 = vmatprep.subr.mxu0 0.0
    %3580 = vmatpush1.msra.mxu0 0.0
    %3581 = vmatprep.subr.mxu0 0.0
    %3582 = vmatpush1.msra.mxu0 %v3549
    %3583 = vmatprep.subr.mxu0 0.0
    %3584 = vmatpush2.msra.mxu0 0.0
    %3585 = vmatprep.subr.mxu0 0.0
    %3586 = vmatpush2.msra.mxu0 0.0
    %3587 = vmatprep.subr.mxu0 0.0
    %3588 = vmatpush2.msra.mxu0 0.0
    %3589 = vmatprep.subr.mxu0 0.0
    %3590 = vmatpush2.msra.mxu0 0.0
    %3591 = vmatprep.subr.mxu0 0.0
    %3592 = vmatpush2.msra.mxu0 0.0
    %3593 = vmatprep.subr.mxu0 0.0
    %3594 = vmatpush2.msra.mxu0 0.0
    %3595 = vmatprep.subr.mxu0 0.0
    %3596 = vmatpush2.msra.mxu0 0.0
    %3597 = vmatprep.subr.mxu0 0.0
    %3598 = vmatpush2.msra.mxu0 0.0
    %3599 = vmatprep.subr.mxu0 0.0
    %3600 = vmatpush2.msra.mxu0 0.0
    %3601 = vmatprep.subr.mxu0 0.0
    %3602 = vmatpush2.msra.mxu0 0.0
    %3603 = vmatprep.subr.mxu0 0.0
    %3604 = vmatpush2.msra.mxu0 0.0
    %3605 = vmatprep.subr.mxu0 0.0
    %3606 = vmatpush2.msra.mxu0 0.0
    %3607 = vmatprep.subr.mxu0 0.0
    %3608 = vmatpush2.msra.mxu0 0.0
    %3609 = vmatprep.subr.mxu0 0.0
    %3610 = vmatpush2.msra.mxu0 0.0
    %3611 = vmatprep.subr.mxu0 0.0
    %3612 = vmatpush2.msra.mxu0 0.0
    %3613 = vmatprep.subr.mxu0 0.0
    %3614 = vmatpush2.msra.mxu0 0.0
    %3615 = vmatprep.mubr.f32.mxu0 0.0
    %3616 = vmatmul.mubr.f32.gmra.mxu0 %v122
    %v3617 = vpop.f32.mrf.mxu0
    %v3618 = vadd.f32 0.0, %v3617
    %v3619 = vpop.f32.mrf.mxu0
    %3620 = vdwg.mxu0
    %3621 = vmatprep.subr.mxu0 0.0
    %3622 = vmatpush1.msra.mxu0 0.0
    %3623 = vmatprep.subr.mxu0 0.0
    %3624 = vmatpush1.msra.mxu0 0.0
    %3625 = vmatprep.subr.mxu0 0.0
    %3626 = vmatpush1.msra.mxu0 0.0
    %3627 = vmatprep.subr.mxu0 0.0
    %3628 = vmatpush1.msra.mxu0 0.0
    %3629 = vmatprep.subr.mxu0 0.0
    %3630 = vmatpush1.msra.mxu0 0.0
    %3631 = vmatprep.subr.mxu0 0.0
    %3632 = vmatpush1.msra.mxu0 0.0
    %3633 = vmatprep.subr.mxu0 0.0
    %3634 = vmatpush1.msra.mxu0 0.0
    %3635 = vmatprep.subr.mxu0 0.0
    %3636 = vmatpush1.msra.mxu0 0.0
    %3637 = vmatprep.subr.mxu0 0.0
    %3638 = vmatpush1.msra.mxu0 0.0
    %3639 = vmatprep.subr.mxu0 0.0
    %3640 = vmatpush1.msra.mxu0 0.0
    %3641 = vmatprep.subr.mxu0 0.0
    %3642 = vmatpush1.msra.mxu0 0.0
    %3643 = vmatprep.subr.mxu0 0.0
    %3644 = vmatpush1.msra.mxu0 0.0
    %3645 = vmatprep.subr.mxu0 0.0
    %3646 = vmatpush1.msra.mxu0 0.0
    %3647 = vmatprep.subr.mxu0 0.0
    %3648 = vmatpush1.msra.mxu0 0.0
    %3649 = vmatprep.subr.mxu0 0.0
    %3650 = vmatpush1.msra.mxu0 0.0
    %3651 = vmatprep.subr.mxu0 0.0
    %3652 = vmatpush1.msra.mxu0 %v3550
    %3653 = vmatprep.subr.mxu0 0.0
    %3654 = vmatpush2.msra.mxu0 0.0
    %3655 = vmatprep.subr.mxu0 0.0
    %3656 = vmatpush2.msra.mxu0 0.0
    %3657 = vmatprep.subr.mxu0 0.0
    %3658 = vmatpush2.msra.mxu0 0.0
    %3659 = vmatprep.subr.mxu0 0.0
    %3660 = vmatpush2.msra.mxu0 0.0
    %3661 = vmatprep.subr.mxu0 0.0
    %3662 = vmatpush2.msra.mxu0 0.0
    %3663 = vmatprep.subr.mxu0 0.0
    %3664 = vmatpush2.msra.mxu0 0.0
    %3665 = vmatprep.subr.mxu0 0.0
    %3666 = vmatpush2.msra.mxu0 0.0
    %3667 = vmatprep.subr.mxu0 0.0
    %3668 = vmatpush2.msra.mxu0 0.0
    %3669 = vmatprep.subr.mxu0 0.0
    %3670 = vmatpush2.msra.mxu0 0.0
    %3671 = vmatprep.subr.mxu0 0.0
    %3672 = vmatpush2.msra.mxu0 0.0
    %3673 = vmatprep.subr.mxu0 0.0
    %3674 = vmatpush2.msra.mxu0 0.0
    %3675 = vmatprep.subr.mxu0 0.0
    %3676 = vmatpush2.msra.mxu0 0.0
    %3677 = vmatprep.subr.mxu0 0.0
    %3678 = vmatpush2.msra.mxu0 0.0
    %3679 = vmatprep.subr.mxu0 0.0
    %3680 = vmatpush2.msra.mxu0 0.0
    %3681 = vmatprep.subr.mxu0 0.0
    %3682 = vmatpush2.msra.mxu0 0.0
    %3683 = vmatprep.subr.mxu0 0.0
    %3684 = vmatpush2.msra.mxu0 0.0
    %3685 = vmatprep.mubr.f32.mxu0 0.0
    %3686 = vmatmul.mubr.f32.gmra.mxu0 %v195
    %v3687 = vpop.f32.mrf.mxu0
    %v3688 = vadd.f32 0.0, %v3687
    %v3689 = vpop.f32.mrf.mxu0
    %3690 = vdwg.mxu0
    %v3691 = vld [vmem:[%s9] sm:$0xff]
    %v3692 = vld [vmem:[%s9 + $0x8] sm:$0xff]
    %v3693 = vld [vmem:[%s9 + $0x10] sm:$0xff]
    %v3694 = vld [vmem:[%s9 + $0x18] sm:$0xff]
    %s3695 = scalar_lea.vmem %s9, 32
    %v3696 = vld [vmem:[%s3695] sm:$0xff]
    %v3697 = vld [vmem:[%s3695 + $0x8] sm:$0xff]
    %v3698 = vld [vmem:[%s3695 + $0x10] sm:$0xff]
    %v3699 = vld [vmem:[%s3695 + $0x18] sm:$0xff]
    %v3701 = vsel %vm78, %v3618, 0
    %v3704 = vsel %vm78, %v3688, 0
    %3706 = vmatprep.subr.mxu0 0.0
    %3707 = vmatpush1.msra.mxu0 0.0
    %3708 = vmatprep.subr.mxu0 0.0
    %3709 = vmatpush1.msra.mxu0 0.0
    %3710 = vmatprep.subr.mxu0 0.0
    %3711 = vmatpush1.msra.mxu0 0.0
    %3712 = vmatprep.subr.mxu0 0.0
    %3713 = vmatpush1.msra.mxu0 0.0
    %3714 = vmatprep.subr.mxu0 0.0
    %3715 = vmatpush1.msra.mxu0 0.0
    %3716 = vmatprep.subr.mxu0 0.0
    %3717 = vmatpush1.msra.mxu0 0.0
    %3718 = vmatprep.subr.mxu0 0.0
    %3719 = vmatpush1.msra.mxu0 0.0
    %3720 = vmatprep.subr.mxu0 0.0
    %3721 = vmatpush1.msra.mxu0 0.0
    %3722 = vmatprep.subr.mxu0 0.0
    %3723 = vmatpush1.msra.mxu0 0.0
    %3724 = vmatprep.subr.mxu0 0.0
    %3725 = vmatpush1.msra.mxu0 0.0
    %3726 = vmatprep.subr.mxu0 0.0
    %3727 = vmatpush1.msra.mxu0 0.0
    %3728 = vmatprep.subr.mxu0 0.0
    %3729 = vmatpush1.msra.mxu0 0.0
    %3730 = vmatprep.subr.mxu0 0.0
    %3731 = vmatpush1.msra.mxu0 %v3699
    %3732 = vmatprep.subr.mxu0 0.0
    %3733 = vmatpush1.msra.mxu0 %v3698
    %3734 = vmatprep.subr.mxu0 0.0
    %3735 = vmatpush1.msra.mxu0 %v3697
    %3736 = vmatprep.subr.mxu0 0.0
    %3737 = vmatpush1.msra.mxu0 %v3696
    %3738 = vmatprep.subr.mxu0 0.0
    %3739 = vmatpush2.msra.mxu0 0.0
    %3740 = vmatprep.subr.mxu0 0.0
    %3741 = vmatpush2.msra.mxu0 0.0
    %3742 = vmatprep.subr.mxu0 0.0
    %3743 = vmatpush2.msra.mxu0 0.0
    %3744 = vmatprep.subr.mxu0 0.0
    %3745 = vmatpush2.msra.mxu0 0.0
    %3746 = vmatprep.subr.mxu0 0.0
    %3747 = vmatpush2.msra.mxu0 0.0
    %3748 = vmatprep.subr.mxu0 0.0
    %3749 = vmatpush2.msra.mxu0 0.0
    %3750 = vmatprep.subr.mxu0 0.0
    %3751 = vmatpush2.msra.mxu0 0.0
    %3752 = vmatprep.subr.mxu0 0.0
    %3753 = vmatpush2.msra.mxu0 0.0
    %3754 = vmatprep.subr.mxu0 0.0
    %3755 = vmatpush2.msra.mxu0 0.0
    %3756 = vmatprep.subr.mxu0 0.0
    %3757 = vmatpush2.msra.mxu0 0.0
    %3758 = vmatprep.subr.mxu0 0.0
    %3759 = vmatpush2.msra.mxu0 0.0
    %3760 = vmatprep.subr.mxu0 0.0
    %3761 = vmatpush2.msra.mxu0 0.0
    %3762 = vmatprep.subr.mxu0 0.0
    %3763 = vmatpush2.msra.mxu0 0.0
    %3764 = vmatprep.subr.mxu0 0.0
    %3765 = vmatpush2.msra.mxu0 0.0
    %3766 = vmatprep.subr.mxu0 0.0
    %3767 = vmatpush2.msra.mxu0 0.0
    %3768 = vmatprep.subr.mxu0 0.0
    %3769 = vmatpush2.msra.mxu0 0.0
    %3770 = vmatprep.mubr.f32.mxu0 0.0
    %3771 = vmatmul.mubr.f32.gmra.mxu0 %v3701
    %v3772 = vpop.f32.mrf.mxu0
    %v3773 = vadd.f32 0.0, %v3772
    %v3774 = vpop.f32.mrf.mxu0
    %3775 = vmatprep.mubr.f32.mxu0 0.0
    %3776 = vmatmul.mubr.f32.gmra.mxu0 %v3704
    %v3777 = vpop.f32.mrf.mxu0
    %v3778 = vadd.f32 0.0, %v3777
    %v3779 = vpop.f32.mrf.mxu0
    %3780 = vdwg.mxu0
    %v3782 = vsel %vm78, %v1894, 0
    %v3785 = vsel %vm78, %v1899, 0
    %3787 = vmatprep.subr.mxu0 0.0
    %3788 = vmatpush1.msra.mxu0 0.0
    %3789 = vmatprep.subr.mxu0 0.0
    %3790 = vmatpush1.msra.mxu0 0.0
    %3791 = vmatprep.subr.mxu0 0.0
    %3792 = vmatpush1.msra.mxu0 0.0
    %3793 = vmatprep.subr.mxu0 0.0
    %3794 = vmatpush1.msra.mxu0 0.0
    %3795 = vmatprep.subr.mxu0 0.0
    %3796 = vmatpush1.msra.mxu0 0.0
    %3797 = vmatprep.subr.mxu0 0.0
    %3798 = vmatpush1.msra.mxu0 0.0
    %3799 = vmatprep.subr.mxu0 0.0
    %3800 = vmatpush1.msra.mxu0 0.0
    %3801 = vmatprep.subr.mxu0 0.0
    %3802 = vmatpush1.msra.mxu0 0.0
    %3803 = vmatprep.subr.mxu0 0.0
    %3804 = vmatpush1.msra.mxu0 0.0
    %3805 = vmatprep.subr.mxu0 0.0
    %3806 = vmatpush1.msra.mxu0 0.0
    %3807 = vmatprep.subr.mxu0 0.0
    %3808 = vmatpush1.msra.mxu0 0.0
    %3809 = vmatprep.subr.mxu0 0.0
    %3810 = vmatpush1.msra.mxu0 0.0
    %3811 = vmatprep.subr.mxu0 0.0
    %3812 = vmatpush1.msra.mxu0 %v3694
    %3813 = vmatprep.subr.mxu0 0.0
    %3814 = vmatpush1.msra.mxu0 %v3693
    %3815 = vmatprep.subr.mxu0 0.0
    %3816 = vmatpush1.msra.mxu0 %v3692
    %3817 = vmatprep.subr.mxu0 0.0
    %3818 = vmatpush1.msra.mxu0 %v3691
    %3819 = vmatprep.subr.mxu0 0.0
    %3820 = vmatpush2.msra.mxu0 0.0
    %3821 = vmatprep.subr.mxu0 0.0
    %3822 = vmatpush2.msra.mxu0 0.0
    %3823 = vmatprep.subr.mxu0 0.0
    %3824 = vmatpush2.msra.mxu0 0.0
    %3825 = vmatprep.subr.mxu0 0.0
    %3826 = vmatpush2.msra.mxu0 0.0
    %3827 = vmatprep.subr.mxu0 0.0
    %3828 = vmatpush2.msra.mxu0 0.0
    %3829 = vmatprep.subr.mxu0 0.0
    %3830 = vmatpush2.msra.mxu0 0.0
    %3831 = vmatprep.subr.mxu0 0.0
    %3832 = vmatpush2.msra.mxu0 0.0
    %3833 = vmatprep.subr.mxu0 0.0
    %3834 = vmatpush2.msra.mxu0 0.0
    %3835 = vmatprep.subr.mxu0 0.0
    %3836 = vmatpush2.msra.mxu0 0.0
    %3837 = vmatprep.subr.mxu0 0.0
    %3838 = vmatpush2.msra.mxu0 0.0
    %3839 = vmatprep.subr.mxu0 0.0
    %3840 = vmatpush2.msra.mxu0 0.0
    %3841 = vmatprep.subr.mxu0 0.0
    %3842 = vmatpush2.msra.mxu0 0.0
    %3843 = vmatprep.subr.mxu0 0.0
    %3844 = vmatpush2.msra.mxu0 0.0
    %3845 = vmatprep.subr.mxu0 0.0
    %3846 = vmatpush2.msra.mxu0 0.0
    %3847 = vmatprep.subr.mxu0 0.0
    %3848 = vmatpush2.msra.mxu0 0.0
    %3849 = vmatprep.subr.mxu0 0.0
    %3850 = vmatpush2.msra.mxu0 0.0
    %3851 = vmatprep.mubr.f32.mxu0 0.0
    %3852 = vmatmul.mubr.f32.gmra.mxu0 %v3782
    %v3853 = vpop.f32.mrf.mxu0
    %v3854 = vadd.f32 %v3773, %v3853
    %v3855 = vpop.f32.mrf.mxu0
    %3856 = vmatprep.mubr.f32.mxu0 0.0
    %3857 = vmatmul.mubr.f32.gmra.mxu0 %v3785
    %v3858 = vpop.f32.mrf.mxu0
    %v3859 = vadd.f32 %v3778, %v3858
    %v3860 = vpop.f32.mrf.mxu0
    %3861 = vdwg.mxu0
    %v3862 = vld [vmem:[%s10] sm:$0x1]
    %v3864 = vlaneseq
    %v3865 = vshrl.u32 %v3864, 7
    %v3866 = vsub.s32 0, %v3865
    %v3867 = vrot.slane %v3862, %v3866
    %v3869 = vadd.f32 %v3854, %v3867
    %v3870 = vadd.f32 %v3859, %v3867
    %3871 = vrot.lane.b32.xlu0 %v3618, 96
    %v3872 = vpop.permute.xlu0 %3871
    %3873 = vrot.lane.b32.xlu0 %v3688, 96
    %v3874 = vpop.permute.xlu0 %3873
    %v3877 = vadd.f32 %v291, %v3872
    %v3878 = vadd.f32 %v292, %v3874
    %v3879 = vmul.f32 %v3877, 0.5
    %v3880 = vmul.f32 %v3878, 0.5
    %3883 = vrot.lane.b32.xlu0 %v3879, 32
    %v3884 = vpop.permute.xlu0 %3883
    %3885 = vrot.lane.b32.xlu0 %v3880, 32
    %v3886 = vpop.permute.xlu0 %3885
    %v3889 = vsel %vm78, %v3869, %v3884
    %v3890 = vsel %vm78, %v3870, %v3886
    %3891 = vmatprep.subr.mxu0 0.0
    %3892 = vmatpush1.msra.mxu0 0.0
    %3893 = vmatprep.subr.mxu0 0.0
    %3894 = vmatpush1.msra.mxu0 0.0
    %3895 = vmatprep.subr.mxu0 0.0
    %3896 = vmatpush1.msra.mxu0 0.0
    %3897 = vmatprep.subr.mxu0 0.0
    %3898 = vmatpush1.msra.mxu0 0.0
    %3899 = vmatprep.subr.mxu0 0.0
    %3900 = vmatpush1.msra.mxu0 0.0
    %3901 = vmatprep.subr.mxu0 0.0
    %3902 = vmatpush1.msra.mxu0 0.0
    %3903 = vmatprep.subr.mxu0 0.0
    %3904 = vmatpush1.msra.mxu0 0.0
    %3905 = vmatprep.subr.mxu0 0.0
    %3906 = vmatpush1.msra.mxu0 0.0
    %3907 = vmatprep.subr.mxu0 0.0
    %3908 = vmatpush1.msra.mxu0 0.0
    %3909 = vmatprep.subr.mxu0 0.0
    %3910 = vmatpush1.msra.mxu0 0.0
    %3911 = vmatprep.subr.mxu0 0.0
    %3912 = vmatpush1.msra.mxu0 0.0
    %3913 = vmatprep.subr.mxu0 0.0
    %3914 = vmatpush1.msra.mxu0 0.0
    %3915 = vmatprep.subr.mxu0 0.0
    %3916 = vmatpush1.msra.mxu0 0.0
    %3917 = vmatprep.subr.mxu0 0.0
    %3918 = vmatpush1.msra.mxu0 0.0
    %3919 = vmatprep.subr.mxu0 0.0
    %3920 = vmatpush1.msra.mxu0 0.0
    %3921 = vmatprep.subr.mxu0 0.0
    %3922 = vmatpush1.msra.mxu0 %v3889
    %3923 = vmatprep.subr.mxu0 0.0
    %3924 = vmatpush2.msra.mxu0 0.0
    %3925 = vmatprep.subr.mxu0 0.0
    %3926 = vmatpush2.msra.mxu0 0.0
    %3927 = vmatprep.subr.mxu0 0.0
    %3928 = vmatpush2.msra.mxu0 0.0
    %3929 = vmatprep.subr.mxu0 0.0
    %3930 = vmatpush2.msra.mxu0 0.0
    %3931 = vmatprep.subr.mxu0 0.0
    %3932 = vmatpush2.msra.mxu0 0.0
    %3933 = vmatprep.subr.mxu0 0.0
    %3934 = vmatpush2.msra.mxu0 0.0
    %3935 = vmatprep.subr.mxu0 0.0
    %3936 = vmatpush2.msra.mxu0 0.0
    %3937 = vmatprep.subr.mxu0 0.0
    %3938 = vmatpush2.msra.mxu0 0.0
    %3939 = vmatprep.subr.mxu0 0.0
    %3940 = vmatpush2.msra.mxu0 0.0
    %3941 = vmatprep.subr.mxu0 0.0
    %3942 = vmatpush2.msra.mxu0 0.0
    %3943 = vmatprep.subr.mxu0 0.0
    %3944 = vmatpush2.msra.mxu0 0.0
    %3945 = vmatprep.subr.mxu0 0.0
    %3946 = vmatpush2.msra.mxu0 0.0
    %3947 = vmatprep.subr.mxu0 0.0
    %3948 = vmatpush2.msra.mxu0 0.0
    %3949 = vmatprep.subr.mxu0 0.0
    %3950 = vmatpush2.msra.mxu0 0.0
    %3951 = vmatprep.subr.mxu0 0.0
    %3952 = vmatpush2.msra.mxu0 0.0
    %3953 = vmatprep.subr.mxu0 0.0
    %3954 = vmatpush2.msra.mxu0 0.0
    %3955 = vmatprep.mubr.f32.mxu0 0.0
    %3956 = vmatmul.mubr.f32.gmra.mxu0 %v122
    %v3957 = vpop.f32.mrf.mxu0
    %v3958 = vadd.f32 0.0, %v3957
    %v3959 = vpop.f32.mrf.mxu0
    %3960 = vdwg.mxu0
    %3961 = vmatprep.subr.mxu0 0.0
    %3962 = vmatpush1.msra.mxu0 0.0
    %3963 = vmatprep.subr.mxu0 0.0
    %3964 = vmatpush1.msra.mxu0 0.0
    %3965 = vmatprep.subr.mxu0 0.0
    %3966 = vmatpush1.msra.mxu0 0.0
    %3967 = vmatprep.subr.mxu0 0.0
    %3968 = vmatpush1.msra.mxu0 0.0
    %3969 = vmatprep.subr.mxu0 0.0
    %3970 = vmatpush1.msra.mxu0 0.0
    %3971 = vmatprep.subr.mxu0 0.0
    %3972 = vmatpush1.msra.mxu0 0.0
    %3973 = vmatprep.subr.mxu0 0.0
    %3974 = vmatpush1.msra.mxu0 0.0
    %3975 = vmatprep.subr.mxu0 0.0
    %3976 = vmatpush1.msra.mxu0 0.0
    %3977 = vmatprep.subr.mxu0 0.0
    %3978 = vmatpush1.msra.mxu0 0.0
    %3979 = vmatprep.subr.mxu0 0.0
    %3980 = vmatpush1.msra.mxu0 0.0
    %3981 = vmatprep.subr.mxu0 0.0
    %3982 = vmatpush1.msra.mxu0 0.0
    %3983 = vmatprep.subr.mxu0 0.0
    %3984 = vmatpush1.msra.mxu0 0.0
    %3985 = vmatprep.subr.mxu0 0.0
    %3986 = vmatpush1.msra.mxu0 0.0
    %3987 = vmatprep.subr.mxu0 0.0
    %3988 = vmatpush1.msra.mxu0 0.0
    %3989 = vmatprep.subr.mxu0 0.0
    %3990 = vmatpush1.msra.mxu0 0.0
    %3991 = vmatprep.subr.mxu0 0.0
    %3992 = vmatpush1.msra.mxu0 %v3890
    %3993 = vmatprep.subr.mxu0 0.0
    %3994 = vmatpush2.msra.mxu0 0.0
    %3995 = vmatprep.subr.mxu0 0.0
    %3996 = vmatpush2.msra.mxu0 0.0
    %3997 = vmatprep.subr.mxu0 0.0
    %3998 = vmatpush2.msra.mxu0 0.0
    %3999 = vmatprep.subr.mxu0 0.0
    %4000 = vmatpush2.msra.mxu0 0.0
    %4001 = vmatprep.subr.mxu0 0.0
    %4002 = vmatpush2.msra.mxu0 0.0
    %4003 = vmatprep.subr.mxu0 0.0
    %4004 = vmatpush2.msra.mxu0 0.0
    %4005 = vmatprep.subr.mxu0 0.0
    %4006 = vmatpush2.msra.mxu0 0.0
    %4007 = vmatprep.subr.mxu0 0.0
    %4008 = vmatpush2.msra.mxu0 0.0
    %4009 = vmatprep.subr.mxu0 0.0
    %4010 = vmatpush2.msra.mxu0 0.0
    %4011 = vmatprep.subr.mxu0 0.0
    %4012 = vmatpush2.msra.mxu0 0.0
    %4013 = vmatprep.subr.mxu0 0.0
    %4014 = vmatpush2.msra.mxu0 0.0
    %4015 = vmatprep.subr.mxu0 0.0
    %4016 = vmatpush2.msra.mxu0 0.0
    %4017 = vmatprep.subr.mxu0 0.0
    %4018 = vmatpush2.msra.mxu0 0.0
    %4019 = vmatprep.subr.mxu0 0.0
    %4020 = vmatpush2.msra.mxu0 0.0
    %4021 = vmatprep.subr.mxu0 0.0
    %4022 = vmatpush2.msra.mxu0 0.0
    %4023 = vmatprep.subr.mxu0 0.0
    %4024 = vmatpush2.msra.mxu0 0.0
    %4025 = vmatprep.mubr.f32.mxu0 0.0
    %4026 = vmatmul.mubr.f32.gmra.mxu0 %v195
    %v4027 = vpop.f32.mrf.mxu0
    %v4028 = vadd.f32 0.0, %v4027
    %v4029 = vpop.f32.mrf.mxu0
    %4030 = vdwg.mxu0
    %s4031 = scalar_lea.vmem %s4, 32
    %v4032 = vld [vmem:[%s4031] sm:$0xff]
    %v4033 = vld [vmem:[%s4031 + $0x8] sm:$0xff]
    %s4034 = scalar_lea.vmem %s5, 64
    %v4035 = vld [vmem:[%s4034] sm:$0xff]
    %v4036 = vld [vmem:[%s4034 + $0x8] sm:$0xff]
    %v4037 = vld [vmem:[%s4034 + $0x10] sm:$0xff]
    %v4038 = vld [vmem:[%s4034 + $0x18] sm:$0xff]
    %s4039 = scalar_lea.vmem %s6, 128
    %v4040 = vld [vmem:[%s4039] sm:$0xff]
    %v4041 = vld [vmem:[%s4039 + $0x8] sm:$0xff]
    %v4042 = vld [vmem:[%s4039 + $0x10] sm:$0xff]
    %v4043 = vld [vmem:[%s4039 + $0x18] sm:$0xff]
    %v4044 = vld [vmem:[%s4039 + $0x20] sm:$0xff]
    %v4045 = vld [vmem:[%s4039 + $0x28] sm:$0xff]
    %v4046 = vld [vmem:[%s4039 + $0x30] sm:$0xff]
    %v4047 = vld [vmem:[%s4039 + $0x38] sm:$0xff]
    %s4048 = scalar_lea.vmem %s7, 32
    %v4049 = vld [vmem:[%s4048] sm:$0xff]
    %v4050 = vld [vmem:[%s4048 + $0x8] sm:$0xff]
    %s4051 = scalar_lea.vmem %s8, 128
    %v4052 = vld [vmem:[%s4051] sm:$0xff]
    %v4053 = vld [vmem:[%s4051 + $0x8] sm:$0xff]
    %v4054 = vld [vmem:[%s4051 + $0x10] sm:$0xff]
    %v4055 = vld [vmem:[%s4051 + $0x18] sm:$0xff]
    %v4056 = vld [vmem:[%s4051 + $0x20] sm:$0xff]
    %v4057 = vld [vmem:[%s4051 + $0x28] sm:$0xff]
    %v4058 = vld [vmem:[%s4051 + $0x30] sm:$0xff]
    %v4059 = vld [vmem:[%s4051 + $0x38] sm:$0xff]
    %v4060 = vadd.f32 %v3869, %v3879
    %v4061 = vadd.f32 %v3870, %v3880
    %v4062 = vsel %vm78, %v4060, 0.0
    %4063 = vadd.xlane.f32.xlu0 %v4062
    %v4064 = vpop.xlane.xlu0 %4063
    %v4065 = vsel %vm78, %v4061, 0.0
    %4066 = vadd.xlane.f32.xlu0 %v4065
    %v4067 = vpop.xlane.xlu0 %4066
    %v4068 = vmul.f32 %v4064, %v85
    %v4069 = vmul.f32 %v4067, %v85
    %v4070 = vsub.f32 %v4060, %v4068
    %v4071 = vsub.f32 %v4061, %v4069
    %v4072 = vmul.f32 %v4070, %v4070
    %v4073 = vmul.f32 %v4071, %v4071
    %v4074 = vsel %vm78, %v4072, 0.0
    %4075 = vadd.xlane.f32.xlu0 %v4074
    %v4076 = vpop.xlane.xlu0 %4075
    %v4077 = vsel %vm78, %v4073, 0.0
    %4078 = vadd.xlane.f32.xlu0 %v4077
    %v4079 = vpop.xlane.xlu0 %4078
    %v4080 = vmul.f32 %v4076, %v85
    %v4081 = vmul.f32 %v4079, %v85
    %v4082 = vadd.f32 %v4080, 1e-05
    %v4083 = vadd.f32 %v4081, 1e-05
    %v4084 = vrsqrt.pop %v4082
    %v4085 = vrsqrt.pop %v4083
    %v4086 = vmul.f32 %v4070, %v4084
    %v4087 = vmul.f32 %v4071, %v4085
    %v4088 = vlaneseq
    %v4089 = vshrl.u32 %v4088, 7
    %v4090 = vsub.s32 0, %v4089
    %v4091 = vrot.slane %v4032, %v4090
    %v4092 = vmul.f32 %v4086, %v4091
    %v4093 = vmul.f32 %v4087, %v4091
    %v4094 = vlaneseq
    %v4095 = vshrl.u32 %v4094, 7
    %v4096 = vsub.s32 1, %v4095
    %v4097 = vrot.slane %v4032, %v4096
    %v4098 = vadd.f32 %v4092, %v4097
    %v4099 = vadd.f32 %v4093, %v4097
    %v4101 = vsel %vm78, %v4098, 0
    %v4104 = vsel %vm78, %v4099, 0
    %4106 = vmatprep.subr.mxu0 0.0
    %4107 = vmatpush1.msra.mxu0 0.0
    %4108 = vmatprep.subr.mxu0 0.0
    %4109 = vmatpush1.msra.mxu0 0.0
    %4110 = vmatprep.subr.mxu0 0.0
    %4111 = vmatpush1.msra.mxu0 0.0
    %4112 = vmatprep.subr.mxu0 0.0
    %4113 = vmatpush1.msra.mxu0 0.0
    %4114 = vmatprep.subr.mxu0 0.0
    %4115 = vmatpush1.msra.mxu0 0.0
    %4116 = vmatprep.subr.mxu0 0.0
    %4117 = vmatpush1.msra.mxu0 0.0
    %4118 = vmatprep.subr.mxu0 0.0
    %4119 = vmatpush1.msra.mxu0 0.0
    %4120 = vmatprep.subr.mxu0 0.0
    %4121 = vmatpush1.msra.mxu0 0.0
    %4122 = vmatprep.subr.mxu0 0.0
    %4123 = vmatpush1.msra.mxu0 0.0
    %4124 = vmatprep.subr.mxu0 0.0
    %4125 = vmatpush1.msra.mxu0 0.0
    %4126 = vmatprep.subr.mxu0 0.0
    %4127 = vmatpush1.msra.mxu0 0.0
    %4128 = vmatprep.subr.mxu0 0.0
    %4129 = vmatpush1.msra.mxu0 0.0
    %4130 = vmatprep.subr.mxu0 0.0
    %4131 = vmatpush1.msra.mxu0 %v4038
    %4132 = vmatprep.subr.mxu0 0.0
    %4133 = vmatpush1.msra.mxu0 %v4037
    %4134 = vmatprep.subr.mxu0 0.0
    %4135 = vmatpush1.msra.mxu0 %v4036
    %4136 = vmatprep.subr.mxu0 0.0
    %4137 = vmatpush1.msra.mxu0 %v4035
    %4138 = vmatprep.subr.mxu0 0.0
    %4139 = vmatpush2.msra.mxu0 0.0
    %4140 = vmatprep.subr.mxu0 0.0
    %4141 = vmatpush2.msra.mxu0 0.0
    %4142 = vmatprep.subr.mxu0 0.0
    %4143 = vmatpush2.msra.mxu0 0.0
    %4144 = vmatprep.subr.mxu0 0.0
    %4145 = vmatpush2.msra.mxu0 0.0
    %4146 = vmatprep.subr.mxu0 0.0
    %4147 = vmatpush2.msra.mxu0 0.0
    %4148 = vmatprep.subr.mxu0 0.0
    %4149 = vmatpush2.msra.mxu0 0.0
    %4150 = vmatprep.subr.mxu0 0.0
    %4151 = vmatpush2.msra.mxu0 0.0
    %4152 = vmatprep.subr.mxu0 0.0
    %4153 = vmatpush2.msra.mxu0 0.0
    %4154 = vmatprep.subr.mxu0 0.0
    %4155 = vmatpush2.msra.mxu0 0.0
    %4156 = vmatprep.subr.mxu0 0.0
    %4157 = vmatpush2.msra.mxu0 0.0
    %4158 = vmatprep.subr.mxu0 0.0
    %4159 = vmatpush2.msra.mxu0 0.0
    %4160 = vmatprep.subr.mxu0 0.0
    %4161 = vmatpush2.msra.mxu0 0.0
    %4162 = vmatprep.subr.mxu0 0.0
    %4163 = vmatpush2.msra.mxu0 0.0
    %4164 = vmatprep.subr.mxu0 0.0
    %4165 = vmatpush2.msra.mxu0 0.0
    %4166 = vmatprep.subr.mxu0 0.0
    %4167 = vmatpush2.msra.mxu0 0.0
    %4168 = vmatprep.subr.mxu0 0.0
    %4169 = vmatpush2.msra.mxu0 0.0
    %4170 = vmatprep.mubr.f32.mxu0 0.0
    %4171 = vmatmul.mubr.f32.gmra.mxu0 %v4101
    %v4172 = vpop.f32.mrf.mxu0
    %v4173 = vadd.f32 0.0, %v4172
    %v4174 = vpop.f32.mrf.mxu0
    %4175 = vmatprep.mubr.f32.mxu0 0.0
    %4176 = vmatmul.mubr.f32.gmra.mxu0 %v4104
    %v4177 = vpop.f32.mrf.mxu0
    %v4178 = vadd.f32 0.0, %v4177
    %v4179 = vpop.f32.mrf.mxu0
    %4180 = vdwg.mxu0
    %v4183 = vrot.slane %v4173, 5
    %v4184 = vrot.slane %v4178, 5
    %v4187 = vsel %vm418, 0.0, %v4183
    %v4188 = vsel %vm418, 0.0, %v4184
    %v4189 = vlaneseq
    %v4190 = vshrl.u32 %v4189, 7
    %v4191 = vsub.s32 5, %v4190
    %v4192 = vrot.slane %v4032, %v4191
    %v4193 = vmul.f32 %v4187, %v4192
    %v4194 = vmul.f32 %v4188, %v4192
    %v4195 = vlaneseq
    %v4196 = vshrl.u32 %v4195, 7
    %v4197 = vsub.s32 2, %v4196
    %v4198 = vrot.slane %v4032, %v4197
    %v4199 = vadd.f32 %v4198, %v4193
    %v4200 = vadd.f32 %v4198, %v4194
    %v4201 = vlaneseq
    %v4202 = vshrl.u32 %v4201, 7
    %v4203 = vsub.s32 6, %v4202
    %v4204 = vrot.slane %v4032, %v4203
    %v4205 = vmul.f32 %v4187, %v4204
    %v4206 = vmul.f32 %v4183, %v4204
    %v4207 = vmul.f32 %v4188, %v4204
    %v4208 = vmul.f32 %v4184, %v4204
    %v4213 = vrot.slane %v4205, 1
    %v4214 = vrot.slane %v4206, 1
    %v4215 = vsel %vm445, %v4213, %v4214
    %v4216 = vrot.slane %v4207, 1
    %v4217 = vrot.slane %v4208, 1
    %v4218 = vsel %vm445, %v4216, %v4217
    %v4221 = vadd.f32 %v4199, %v4215
    %v4222 = vadd.f32 %v4200, %v4218
    %v4223 = vlaneseq
    %v4224 = vshrl.u32 %v4223, 7
    %v4225 = vsub.s32 7, %v4224
    %v4226 = vrot.slane %v4032, %v4225
    %v4227 = vmul.f32 %v4187, %v4226
    %v4228 = vmul.f32 %v4183, %v4226
    %v4229 = vmul.f32 %v4188, %v4226
    %v4230 = vmul.f32 %v4184, %v4226
    %v4235 = vrot.slane %v4227, 2
    %v4236 = vrot.slane %v4228, 2
    %v4237 = vsel %vm468, %v4235, %v4236
    %v4238 = vrot.slane %v4229, 2
    %v4239 = vrot.slane %v4230, 2
    %v4240 = vsel %vm468, %v4238, %v4239
    %v4243 = vadd.f32 %v4221, %v4237
    %v4244 = vadd.f32 %v4222, %v4240
    %v4245 = vlaneseq
    %v4246 = vshrl.u32 %v4245, 7
    %v4247 = vsub.s32 0, %v4246
    %v4248 = vrot.slane %v4033, %v4247
    %v4249 = vmul.f32 %v4187, %v4248
    %v4250 = vmul.f32 %v4183, %v4248
    %v4251 = vmul.f32 %v4188, %v4248
    %v4252 = vmul.f32 %v4184, %v4248
    %v4257 = vrot.slane %v4249, 3
    %v4258 = vrot.slane %v4250, 3
    %v4259 = vsel %vm491, %v4257, %v4258
    %v4260 = vrot.slane %v4251, 3
    %v4261 = vrot.slane %v4252, 3
    %v4262 = vsel %vm491, %v4260, %v4261
    %v4265 = vadd.f32 %v4243, %v4259
    %v4266 = vadd.f32 %v4244, %v4262
    %v4267 = vsub.f32 0.0, %v4265
    %v4268 = vsub.f32 0.0, %v4266
    %v4269 = vmul.f32 %v4267, 1.442695
    %v4270 = vpow.pop %v4269
    %v4271 = vmul.f32 %v4268, 1.442695
    %v4272 = vpow.pop %v4271
    %v4273 = vadd.f32 %v4270, 1.0
    %v4274 = vadd.f32 %v4272, 1.0
    %v4275 = vrcp.pop %v4273
    %v4276 = vmul.f32 1.0, %v4275
    %v4277 = vrcp.pop %v4274
    %v4278 = vmul.f32 1.0, %v4277
    %v4279 = vmul.f32 %v4265, %v4276
    %v4280 = vmul.f32 %v4266, %v4278
    %v4282 = vsel %vm516, %v4279, 0
    %v4285 = vsel %vm516, %v4280, 0
    %4287 = vmatprep.subr.mxu0 0.0
    %4288 = vmatpush1.msra.mxu0 0.0
    %4289 = vmatprep.subr.mxu0 0.0
    %4290 = vmatpush1.msra.mxu0 0.0
    %4291 = vmatprep.subr.mxu0 0.0
    %4292 = vmatpush1.msra.mxu0 0.0
    %4293 = vmatprep.subr.mxu0 0.0
    %4294 = vmatpush1.msra.mxu0 0.0
    %4295 = vmatprep.subr.mxu0 0.0
    %4296 = vmatpush1.msra.mxu0 0.0
    %4297 = vmatprep.subr.mxu0 0.0
    %4298 = vmatpush1.msra.mxu0 0.0
    %4299 = vmatprep.subr.mxu0 0.0
    %4300 = vmatpush1.msra.mxu0 0.0
    %4301 = vmatprep.subr.mxu0 0.0
    %4302 = vmatpush1.msra.mxu0 0.0
    %4303 = vmatprep.subr.mxu0 0.0
    %4304 = vmatpush1.msra.mxu0 %v4047
    %4305 = vmatprep.subr.mxu0 0.0
    %4306 = vmatpush1.msra.mxu0 %v4046
    %4307 = vmatprep.subr.mxu0 0.0
    %4308 = vmatpush1.msra.mxu0 %v4045
    %4309 = vmatprep.subr.mxu0 0.0
    %4310 = vmatpush1.msra.mxu0 %v4044
    %4311 = vmatprep.subr.mxu0 0.0
    %4312 = vmatpush1.msra.mxu0 %v4043
    %4313 = vmatprep.subr.mxu0 0.0
    %4314 = vmatpush1.msra.mxu0 %v4042
    %4315 = vmatprep.subr.mxu0 0.0
    %4316 = vmatpush1.msra.mxu0 %v4041
    %4317 = vmatprep.subr.mxu0 0.0
    %4318 = vmatpush1.msra.mxu0 %v4040
    %4319 = vmatprep.subr.mxu0 0.0
    %4320 = vmatpush2.msra.mxu0 0.0
    %4321 = vmatprep.subr.mxu0 0.0
    %4322 = vmatpush2.msra.mxu0 0.0
    %4323 = vmatprep.subr.mxu0 0.0
    %4324 = vmatpush2.msra.mxu0 0.0
    %4325 = vmatprep.subr.mxu0 0.0
    %4326 = vmatpush2.msra.mxu0 0.0
    %4327 = vmatprep.subr.mxu0 0.0
    %4328 = vmatpush2.msra.mxu0 0.0
    %4329 = vmatprep.subr.mxu0 0.0
    %4330 = vmatpush2.msra.mxu0 0.0
    %4331 = vmatprep.subr.mxu0 0.0
    %4332 = vmatpush2.msra.mxu0 0.0
    %4333 = vmatprep.subr.mxu0 0.0
    %4334 = vmatpush2.msra.mxu0 0.0
    %4335 = vmatprep.subr.mxu0 0.0
    %4336 = vmatpush2.msra.mxu0 0.0
    %4337 = vmatprep.subr.mxu0 0.0
    %4338 = vmatpush2.msra.mxu0 0.0
    %4339 = vmatprep.subr.mxu0 0.0
    %4340 = vmatpush2.msra.mxu0 0.0
    %4341 = vmatprep.subr.mxu0 0.0
    %4342 = vmatpush2.msra.mxu0 0.0
    %4343 = vmatprep.subr.mxu0 0.0
    %4344 = vmatpush2.msra.mxu0 0.0
    %4345 = vmatprep.subr.mxu0 0.0
    %4346 = vmatpush2.msra.mxu0 0.0
    %4347 = vmatprep.subr.mxu0 0.0
    %4348 = vmatpush2.msra.mxu0 0.0
    %4349 = vmatprep.subr.mxu0 0.0
    %4350 = vmatpush2.msra.mxu0 0.0
    %4351 = vmatprep.mubr.f32.mxu0 0.0
    %4352 = vmatmul.mubr.f32.gmra.mxu0 %v4282
    %v4353 = vpop.f32.mrf.mxu0
    %v4354 = vadd.f32 0.0, %v4353
    %v4355 = vpop.f32.mrf.mxu0
    %4356 = vmatprep.mubr.f32.mxu0 0.0
    %4357 = vmatmul.mubr.f32.gmra.mxu0 %v4285
    %v4358 = vpop.f32.mrf.mxu0
    %v4359 = vadd.f32 0.0, %v4358
    %v4360 = vpop.f32.mrf.mxu0
    %4361 = vdwg.mxu0
    %v4362 = vlaneseq
    %v4363 = vshrl.u32 %v4362, 7
    %v4364 = vsub.s32 3, %v4363
    %v4365 = vrot.slane %v4032, %v4364
    %v4367 = vrot.slane %v4033, 1
    %v4369 = vsel %vm604, %v4354, 0
    %v4372 = vsel %vm604, %v4359, 0
    %v4374 = vsel %vm611, %v4367, 0
    %4376 = vmatprep.subr.mxu0 0.0
    %4377 = vmatpush1.msra.mxu0 0.0
    %4378 = vmatprep.subr.mxu0 0.0
    %4379 = vmatpush1.msra.mxu0 0.0
    %4380 = vmatprep.subr.mxu0 0.0
    %4381 = vmatpush1.msra.mxu0 0.0
    %4382 = vmatprep.subr.mxu0 0.0
    %4383 = vmatpush1.msra.mxu0 0.0
    %4384 = vmatprep.subr.mxu0 0.0
    %4385 = vmatpush1.msra.mxu0 0.0
    %4386 = vmatprep.subr.mxu0 0.0
    %4387 = vmatpush1.msra.mxu0 0.0
    %4388 = vmatprep.subr.mxu0 0.0
    %4389 = vmatpush1.msra.mxu0 0.0
    %4390 = vmatprep.subr.mxu0 0.0
    %4391 = vmatpush1.msra.mxu0 0.0
    %4392 = vmatprep.subr.mxu0 0.0
    %4393 = vmatpush1.msra.mxu0 0.0
    %4394 = vmatprep.subr.mxu0 0.0
    %4395 = vmatpush1.msra.mxu0 0.0
    %4396 = vmatprep.subr.mxu0 0.0
    %4397 = vmatpush1.msra.mxu0 0.0
    %4398 = vmatprep.subr.mxu0 0.0
    %4399 = vmatpush1.msra.mxu0 0.0
    %4400 = vmatprep.subr.mxu0 0.0
    %4401 = vmatpush1.msra.mxu0 0.0
    %4402 = vmatprep.subr.mxu0 0.0
    %4403 = vmatpush1.msra.mxu0 0.0
    %4404 = vmatprep.subr.mxu0 0.0
    %4405 = vmatpush1.msra.mxu0 0.0
    %4406 = vmatprep.subr.mxu0 0.0
    %4407 = vmatpush1.msra.mxu0 %v4374
    %4408 = vmatprep.subr.mxu0 0.0
    %4409 = vmatpush2.msra.mxu0 0.0
    %4410 = vmatprep.subr.mxu0 0.0
    %4411 = vmatpush2.msra.mxu0 0.0
    %4412 = vmatprep.subr.mxu0 0.0
    %4413 = vmatpush2.msra.mxu0 0.0
    %4414 = vmatprep.subr.mxu0 0.0
    %4415 = vmatpush2.msra.mxu0 0.0
    %4416 = vmatprep.subr.mxu0 0.0
    %4417 = vmatpush2.msra.mxu0 0.0
    %4418 = vmatprep.subr.mxu0 0.0
    %4419 = vmatpush2.msra.mxu0 0.0
    %4420 = vmatprep.subr.mxu0 0.0
    %4421 = vmatpush2.msra.mxu0 0.0
    %4422 = vmatprep.subr.mxu0 0.0
    %4423 = vmatpush2.msra.mxu0 0.0
    %4424 = vmatprep.subr.mxu0 0.0
    %4425 = vmatpush2.msra.mxu0 0.0
    %4426 = vmatprep.subr.mxu0 0.0
    %4427 = vmatpush2.msra.mxu0 0.0
    %4428 = vmatprep.subr.mxu0 0.0
    %4429 = vmatpush2.msra.mxu0 0.0
    %4430 = vmatprep.subr.mxu0 0.0
    %4431 = vmatpush2.msra.mxu0 0.0
    %4432 = vmatprep.subr.mxu0 0.0
    %4433 = vmatpush2.msra.mxu0 0.0
    %4434 = vmatprep.subr.mxu0 0.0
    %4435 = vmatpush2.msra.mxu0 0.0
    %4436 = vmatprep.subr.mxu0 0.0
    %4437 = vmatpush2.msra.mxu0 0.0
    %4438 = vmatprep.subr.mxu0 0.0
    %4439 = vmatpush2.msra.mxu0 0.0
    %4440 = vmatprep.mubr.f32.mxu0 0.0
    %4441 = vmatmul.mubr.f32.gmra.mxu0 %v4369
    %v4442 = vpop.f32.mrf.mxu0
    %v4443 = vadd.f32 %v4365, %v4442
    %v4444 = vpop.f32.mrf.mxu0
    %4445 = vmatprep.mubr.f32.mxu0 0.0
    %4446 = vmatmul.mubr.f32.gmra.mxu0 %v4372
    %v4447 = vpop.f32.mrf.mxu0
    %v4448 = vadd.f32 %v4365, %v4447
    %v4449 = vpop.f32.mrf.mxu0
    %4450 = vdwg.mxu0
    %vm4451 = vcmp.gt.f32.partialorder %v4443, 20.0
    %vm4452 = vcmp.gt.f32.partialorder %v4448, 20.0
    %v4453 = vmin.f32 %v4443, 20.0
    %v4454 = vmin.f32 %v4448, 20.0
    %v4455 = vmul.f32 %v4453, 1.442695
    %v4456 = vpow.pop %v4455
    %v4457 = vmul.f32 %v4454, 1.442695
    %v4458 = vpow.pop %v4457
    %v4459 = vadd.f32 %v4456, 1.0
    %v4460 = vlog2.pop %v4459
    %v4461 = vmul.f32 %v4460, 0.6931472
    %v4462 = vmul.f32 -0.5, %v4456
    %v4463 = vadd.f32 %v4462, 1.0
    %v4464 = vmul.f32 %v4463, %v4456
    %v4465 = vand.u32 2147483647, %v4456
    %vm4466 = vcmp.lt.f32.partialorder %v4465, 0.0004427343
    %v4467 = vsel %vm4466, %v4464, %v4461
    %v4468 = vadd.f32 %v4458, 1.0
    %v4469 = vlog2.pop %v4468
    %v4470 = vmul.f32 %v4469, 0.6931472
    %v4471 = vmul.f32 -0.5, %v4458
    %v4472 = vadd.f32 %v4471, 1.0
    %v4473 = vmul.f32 %v4472, %v4458
    %v4474 = vand.u32 2147483647, %v4458
    %vm4475 = vcmp.lt.f32.partialorder %v4474, 0.0004427343
    %v4476 = vsel %vm4475, %v4473, %v4470
    %v4477 = vsel %vm4451, %v4443, %v4467
    %v4478 = vsel %vm4452, %v4448, %v4476
    %v4479 = vmul.f32 %v4049, 1.442695
    %v4480 = vpow.pop %v4479
    %v4481 = vmul.f32 %v4050, 1.442695
    %v4482 = vpow.pop %v4481
    %v4483 = vsub.f32 0.0, %v4480
    %v4484 = vsub.f32 0.0, %v4482
    %v4487 = vcombine.high %v4477, %v4477
    %v4489 = vunpack.c.l.s4 1966171168
    %v4490 = vunpack.c.0.s8 %v4489
    %v4491 = vlaneseq
    %v4492 = vshrl.u32 %v4491, 7
    %v4493 = vsub.s32 %v4490, %v4492
    %v4494 = vrot.slane %v4477, %v4493
    %v4496 = vunpack.c.l.s4 1966171168
    %v4497 = vunpack.c.0.s8 %v4496
    %v4498 = vlaneseq
    %v4499 = vshrl.u32 %v4498, 7
    %v4500 = vsub.s32 %v4497, %v4499
    %v4501 = vrot.slane %v4487, %v4500
    %v4502 = vcombine.high %v4494, %v4494
    %v4503 = vcombine.high %v4501, %v4501
    %v4505 = vunpack.c.l.s4 1966171168
    %v4506 = vunpack.c.0.s8 %v4505
    %v4507 = vlaneseq
    %v4508 = vshrl.u32 %v4507, 7
    %v4509 = vsub.s32 %v4506, %v4508
    %v4510 = vrot.slane %v4494, %v4509
    %v4512 = vunpack.c.l.s4 1966171168
    %v4513 = vunpack.c.0.s8 %v4512
    %v4514 = vlaneseq
    %v4515 = vshrl.u32 %v4514, 7
    %v4516 = vsub.s32 %v4513, %v4515
    %v4517 = vrot.slane %v4501, %v4516
    %v4519 = vunpack.c.l.s4 1966171168
    %v4520 = vunpack.c.0.s8 %v4519
    %v4521 = vlaneseq
    %v4522 = vshrl.u32 %v4521, 7
    %v4523 = vsub.s32 %v4520, %v4522
    %v4524 = vrot.slane %v4502, %v4523
    %v4526 = vunpack.c.l.s4 1966171168
    %v4527 = vunpack.c.0.s8 %v4526
    %v4528 = vlaneseq
    %v4529 = vshrl.u32 %v4528, 7
    %v4530 = vsub.s32 %v4527, %v4529
    %v4531 = vrot.slane %v4503, %v4530
    %v4532 = vcombine.high %v4510, %v4510
    %v4533 = vcombine.high %v4517, %v4517
    %v4534 = vcombine.high %v4524, %v4524
    %v4535 = vcombine.high %v4531, %v4531
    %v4536 = vcombine.high %v4478, %v4478
    %v4538 = vunpack.c.l.s4 1966171168
    %v4539 = vunpack.c.0.s8 %v4538
    %v4540 = vlaneseq
    %v4541 = vshrl.u32 %v4540, 7
    %v4542 = vsub.s32 %v4539, %v4541
    %v4543 = vrot.slane %v4478, %v4542
    %v4545 = vunpack.c.l.s4 1966171168
    %v4546 = vunpack.c.0.s8 %v4545
    %v4547 = vlaneseq
    %v4548 = vshrl.u32 %v4547, 7
    %v4549 = vsub.s32 %v4546, %v4548
    %v4550 = vrot.slane %v4536, %v4549
    %v4551 = vcombine.high %v4543, %v4543
    %v4552 = vcombine.high %v4550, %v4550
    %v4554 = vunpack.c.l.s4 1966171168
    %v4555 = vunpack.c.0.s8 %v4554
    %v4556 = vlaneseq
    %v4557 = vshrl.u32 %v4556, 7
    %v4558 = vsub.s32 %v4555, %v4557
    %v4559 = vrot.slane %v4543, %v4558
    %v4561 = vunpack.c.l.s4 1966171168
    %v4562 = vunpack.c.0.s8 %v4561
    %v4563 = vlaneseq
    %v4564 = vshrl.u32 %v4563, 7
    %v4565 = vsub.s32 %v4562, %v4564
    %v4566 = vrot.slane %v4550, %v4565
    %v4568 = vunpack.c.l.s4 1966171168
    %v4569 = vunpack.c.0.s8 %v4568
    %v4570 = vlaneseq
    %v4571 = vshrl.u32 %v4570, 7
    %v4572 = vsub.s32 %v4569, %v4571
    %v4573 = vrot.slane %v4551, %v4572
    %v4575 = vunpack.c.l.s4 1966171168
    %v4576 = vunpack.c.0.s8 %v4575
    %v4577 = vlaneseq
    %v4578 = vshrl.u32 %v4577, 7
    %v4579 = vsub.s32 %v4576, %v4578
    %v4580 = vrot.slane %v4552, %v4579
    %v4581 = vcombine.high %v4559, %v4559
    %v4582 = vcombine.high %v4566, %v4566
    %v4583 = vcombine.high %v4573, %v4573
    %v4584 = vcombine.high %v4580, %v4580
    %v4585 = vlaneseq
    %v4586 = vshrl.u32 %v4585, 7
    %v4587 = vsub.s32 0, %v4586
    %v4588 = vrot.slane %v4510, %v4587
    %v4589 = vlaneseq
    %v4590 = vshrl.u32 %v4589, 7
    %v4591 = vsub.s32 0, %v4590
    %v4592 = vrot.slane %v4524, %v4591
    %v4593 = vlaneseq
    %v4594 = vshrl.u32 %v4593, 7
    %v4595 = vsub.s32 0, %v4594
    %v4596 = vrot.slane %v4532, %v4595
    %v4597 = vlaneseq
    %v4598 = vshrl.u32 %v4597, 7
    %v4599 = vsub.s32 0, %v4598
    %v4600 = vrot.slane %v4534, %v4599
    %v4601 = vlaneseq
    %v4602 = vshrl.u32 %v4601, 7
    %v4603 = vsub.s32 0, %v4602
    %v4604 = vrot.slane %v4517, %v4603
    %v4605 = vlaneseq
    %v4606 = vshrl.u32 %v4605, 7
    %v4607 = vsub.s32 0, %v4606
    %v4608 = vrot.slane %v4531, %v4607
    %v4609 = vlaneseq
    %v4610 = vshrl.u32 %v4609, 7
    %v4611 = vsub.s32 0, %v4610
    %v4612 = vrot.slane %v4533, %v4611
    %v4613 = vlaneseq
    %v4614 = vshrl.u32 %v4613, 7
    %v4615 = vsub.s32 0, %v4614
    %v4616 = vrot.slane %v4535, %v4615
    %v4617 = vlaneseq
    %v4618 = vshrl.u32 %v4617, 7
    %v4619 = vsub.s32 0, %v4618
    %v4620 = vrot.slane %v4559, %v4619
    %v4621 = vlaneseq
    %v4622 = vshrl.u32 %v4621, 7
    %v4623 = vsub.s32 0, %v4622
    %v4624 = vrot.slane %v4573, %v4623
    %v4625 = vlaneseq
    %v4626 = vshrl.u32 %v4625, 7
    %v4627 = vsub.s32 0, %v4626
    %v4628 = vrot.slane %v4581, %v4627
    %v4629 = vlaneseq
    %v4630 = vshrl.u32 %v4629, 7
    %v4631 = vsub.s32 0, %v4630
    %v4632 = vrot.slane %v4583, %v4631
    %v4633 = vlaneseq
    %v4634 = vshrl.u32 %v4633, 7
    %v4635 = vsub.s32 0, %v4634
    %v4636 = vrot.slane %v4566, %v4635
    %v4637 = vlaneseq
    %v4638 = vshrl.u32 %v4637, 7
    %v4639 = vsub.s32 0, %v4638
    %v4640 = vrot.slane %v4580, %v4639
    %v4641 = vlaneseq
    %v4642 = vshrl.u32 %v4641, 7
    %v4643 = vsub.s32 0, %v4642
    %v4644 = vrot.slane %v4582, %v4643
    %v4645 = vlaneseq
    %v4646 = vshrl.u32 %v4645, 7
    %v4647 = vsub.s32 0, %v4646
    %v4648 = vrot.slane %v4584, %v4647
    %v4665 = vmul.f32 %v4588, %v4483
    %v4666 = vmul.f32 %v4588, %v4484
    %v4667 = vmul.f32 %v4592, %v4483
    %v4668 = vmul.f32 %v4592, %v4484
    %v4669 = vmul.f32 %v4596, %v4483
    %v4670 = vmul.f32 %v4596, %v4484
    %v4671 = vmul.f32 %v4600, %v4483
    %v4672 = vmul.f32 %v4600, %v4484
    %v4673 = vmul.f32 %v4604, %v4483
    %v4674 = vmul.f32 %v4604, %v4484
    %v4675 = vmul.f32 %v4608, %v4483
    %v4676 = vmul.f32 %v4608, %v4484
    %v4677 = vmul.f32 %v4612, %v4483
    %v4678 = vmul.f32 %v4612, %v4484
    %v4679 = vmul.f32 %v4616, %v4483
    %v4680 = vmul.f32 %v4616, %v4484
    %v4681 = vmul.f32 %v4620, %v4483
    %v4682 = vmul.f32 %v4620, %v4484
    %v4683 = vmul.f32 %v4624, %v4483
    %v4684 = vmul.f32 %v4624, %v4484
    %v4685 = vmul.f32 %v4628, %v4483
    %v4686 = vmul.f32 %v4628, %v4484
    %v4687 = vmul.f32 %v4632, %v4483
    %v4688 = vmul.f32 %v4632, %v4484
    %v4689 = vmul.f32 %v4636, %v4483
    %v4690 = vmul.f32 %v4636, %v4484
    %v4691 = vmul.f32 %v4640, %v4483
    %v4692 = vmul.f32 %v4640, %v4484
    %v4693 = vmul.f32 %v4644, %v4483
    %v4694 = vmul.f32 %v4644, %v4484
    %v4695 = vmul.f32 %v4648, %v4483
    %v4696 = vmul.f32 %v4648, %v4484
    %v4697 = vmul.f32 %v4665, 1.442695
    %v4698 = vpow.pop %v4697
    %v4699 = vmul.f32 %v4666, 1.442695
    %v4700 = vpow.pop %v4699
    %v4701 = vmul.f32 %v4667, 1.442695
    %v4702 = vpow.pop %v4701
    %v4703 = vmul.f32 %v4668, 1.442695
    %v4704 = vpow.pop %v4703
    %v4705 = vmul.f32 %v4669, 1.442695
    %v4706 = vpow.pop %v4705
    %v4707 = vmul.f32 %v4670, 1.442695
    %v4708 = vpow.pop %v4707
    %v4709 = vmul.f32 %v4671, 1.442695
    %v4710 = vpow.pop %v4709
    %v4711 = vmul.f32 %v4672, 1.442695
    %v4712 = vpow.pop %v4711
    %v4713 = vmul.f32 %v4673, 1.442695
    %v4714 = vpow.pop %v4713
    %v4715 = vmul.f32 %v4674, 1.442695
    %v4716 = vpow.pop %v4715
    %v4717 = vmul.f32 %v4675, 1.442695
    %v4718 = vpow.pop %v4717
    %v4719 = vmul.f32 %v4676, 1.442695
    %v4720 = vpow.pop %v4719
    %v4721 = vmul.f32 %v4677, 1.442695
    %v4722 = vpow.pop %v4721
    %v4723 = vmul.f32 %v4678, 1.442695
    %v4724 = vpow.pop %v4723
    %v4725 = vmul.f32 %v4679, 1.442695
    %v4726 = vpow.pop %v4725
    %v4727 = vmul.f32 %v4680, 1.442695
    %v4728 = vpow.pop %v4727
    %v4729 = vmul.f32 %v4681, 1.442695
    %v4730 = vpow.pop %v4729
    %v4731 = vmul.f32 %v4682, 1.442695
    %v4732 = vpow.pop %v4731
    %v4733 = vmul.f32 %v4683, 1.442695
    %v4734 = vpow.pop %v4733
    %v4735 = vmul.f32 %v4684, 1.442695
    %v4736 = vpow.pop %v4735
    %v4737 = vmul.f32 %v4685, 1.442695
    %v4738 = vpow.pop %v4737
    %v4739 = vmul.f32 %v4686, 1.442695
    %v4740 = vpow.pop %v4739
    %v4741 = vmul.f32 %v4687, 1.442695
    %v4742 = vpow.pop %v4741
    %v4743 = vmul.f32 %v4688, 1.442695
    %v4744 = vpow.pop %v4743
    %v4745 = vmul.f32 %v4689, 1.442695
    %v4746 = vpow.pop %v4745
    %v4747 = vmul.f32 %v4690, 1.442695
    %v4748 = vpow.pop %v4747
    %v4749 = vmul.f32 %v4691, 1.442695
    %v4750 = vpow.pop %v4749
    %v4751 = vmul.f32 %v4692, 1.442695
    %v4752 = vpow.pop %v4751
    %v4753 = vmul.f32 %v4693, 1.442695
    %v4754 = vpow.pop %v4753
    %v4755 = vmul.f32 %v4694, 1.442695
    %v4756 = vpow.pop %v4755
    %v4757 = vmul.f32 %v4695, 1.442695
    %v4758 = vpow.pop %v4757
    %v4759 = vmul.f32 %v4696, 1.442695
    %v4760 = vpow.pop %v4759
    %v4761 = vmul.f32 %v4477, %v4279
    %v4762 = vmul.f32 %v4478, %v4280
    %v4765 = vcombine.high %v4761, %v4761
    %v4767 = vunpack.c.l.s4 1966171168
    %v4768 = vunpack.c.0.s8 %v4767
    %v4769 = vlaneseq
    %v4770 = vshrl.u32 %v4769, 7
    %v4771 = vsub.s32 %v4768, %v4770
    %v4772 = vrot.slane %v4761, %v4771
    %v4774 = vunpack.c.l.s4 1966171168
    %v4775 = vunpack.c.0.s8 %v4774
    %v4776 = vlaneseq
    %v4777 = vshrl.u32 %v4776, 7
    %v4778 = vsub.s32 %v4775, %v4777
    %v4779 = vrot.slane %v4765, %v4778
    %v4780 = vcombine.high %v4772, %v4772
    %v4781 = vcombine.high %v4779, %v4779
    %v4783 = vunpack.c.l.s4 1966171168
    %v4784 = vunpack.c.0.s8 %v4783
    %v4785 = vlaneseq
    %v4786 = vshrl.u32 %v4785, 7
    %v4787 = vsub.s32 %v4784, %v4786
    %v4788 = vrot.slane %v4772, %v4787
    %v4790 = vunpack.c.l.s4 1966171168
    %v4791 = vunpack.c.0.s8 %v4790
    %v4792 = vlaneseq
    %v4793 = vshrl.u32 %v4792, 7
    %v4794 = vsub.s32 %v4791, %v4793
    %v4795 = vrot.slane %v4779, %v4794
    %v4797 = vunpack.c.l.s4 1966171168
    %v4798 = vunpack.c.0.s8 %v4797
    %v4799 = vlaneseq
    %v4800 = vshrl.u32 %v4799, 7
    %v4801 = vsub.s32 %v4798, %v4800
    %v4802 = vrot.slane %v4780, %v4801
    %v4804 = vunpack.c.l.s4 1966171168
    %v4805 = vunpack.c.0.s8 %v4804
    %v4806 = vlaneseq
    %v4807 = vshrl.u32 %v4806, 7
    %v4808 = vsub.s32 %v4805, %v4807
    %v4809 = vrot.slane %v4781, %v4808
    %v4810 = vcombine.high %v4788, %v4788
    %v4811 = vcombine.high %v4795, %v4795
    %v4812 = vcombine.high %v4802, %v4802
    %v4813 = vcombine.high %v4809, %v4809
    %v4814 = vcombine.high %v4762, %v4762
    %v4816 = vunpack.c.l.s4 1966171168
    %v4817 = vunpack.c.0.s8 %v4816
    %v4818 = vlaneseq
    %v4819 = vshrl.u32 %v4818, 7
    %v4820 = vsub.s32 %v4817, %v4819
    %v4821 = vrot.slane %v4762, %v4820
    %v4823 = vunpack.c.l.s4 1966171168
    %v4824 = vunpack.c.0.s8 %v4823
    %v4825 = vlaneseq
    %v4826 = vshrl.u32 %v4825, 7
    %v4827 = vsub.s32 %v4824, %v4826
    %v4828 = vrot.slane %v4814, %v4827
    %v4829 = vcombine.high %v4821, %v4821
    %v4830 = vcombine.high %v4828, %v4828
    %v4832 = vunpack.c.l.s4 1966171168
    %v4833 = vunpack.c.0.s8 %v4832
    %v4834 = vlaneseq
    %v4835 = vshrl.u32 %v4834, 7
    %v4836 = vsub.s32 %v4833, %v4835
    %v4837 = vrot.slane %v4821, %v4836
    %v4839 = vunpack.c.l.s4 1966171168
    %v4840 = vunpack.c.0.s8 %v4839
    %v4841 = vlaneseq
    %v4842 = vshrl.u32 %v4841, 7
    %v4843 = vsub.s32 %v4840, %v4842
    %v4844 = vrot.slane %v4828, %v4843
    %v4846 = vunpack.c.l.s4 1966171168
    %v4847 = vunpack.c.0.s8 %v4846
    %v4848 = vlaneseq
    %v4849 = vshrl.u32 %v4848, 7
    %v4850 = vsub.s32 %v4847, %v4849
    %v4851 = vrot.slane %v4829, %v4850
    %v4853 = vunpack.c.l.s4 1966171168
    %v4854 = vunpack.c.0.s8 %v4853
    %v4855 = vlaneseq
    %v4856 = vshrl.u32 %v4855, 7
    %v4857 = vsub.s32 %v4854, %v4856
    %v4858 = vrot.slane %v4830, %v4857
    %v4859 = vcombine.high %v4837, %v4837
    %v4860 = vcombine.high %v4844, %v4844
    %v4861 = vcombine.high %v4851, %v4851
    %v4862 = vcombine.high %v4858, %v4858
    %v4863 = vlaneseq
    %v4864 = vshrl.u32 %v4863, 7
    %v4865 = vsub.s32 0, %v4864
    %v4866 = vrot.slane %v4354, %v4865
    %s4868 = sor.u32 256, 2
    %4869 = vbcast.lane.b32.xlu0 %v4866, %s4868
    %v4870 = vpop.permute.xlu0 %4869
    %s4872 = sor.u32 256, 10
    %4873 = vbcast.lane.b32.xlu0 %v4866, %s4872
    %v4874 = vpop.permute.xlu0 %4873
    %v4875 = vlaneseq
    %v4876 = vshrl.u32 %v4875, 7
    %v4877 = vsub.s32 1, %v4876
    %v4878 = vrot.slane %v4354, %v4877
    %s4880 = sor.u32 256, 2
    %4881 = vbcast.lane.b32.xlu0 %v4878, %s4880
    %v4882 = vpop.permute.xlu0 %4881
    %s4884 = sor.u32 256, 10
    %4885 = vbcast.lane.b32.xlu0 %v4878, %s4884
    %v4886 = vpop.permute.xlu0 %4885
    %v4887 = vlaneseq
    %v4888 = vshrl.u32 %v4887, 7
    %v4889 = vsub.s32 2, %v4888
    %v4890 = vrot.slane %v4354, %v4889
    %s4892 = sor.u32 256, 2
    %4893 = vbcast.lane.b32.xlu0 %v4890, %s4892
    %v4894 = vpop.permute.xlu0 %4893
    %s4896 = sor.u32 256, 10
    %4897 = vbcast.lane.b32.xlu0 %v4890, %s4896
    %v4898 = vpop.permute.xlu0 %4897
    %v4899 = vlaneseq
    %v4900 = vshrl.u32 %v4899, 7
    %v4901 = vsub.s32 3, %v4900
    %v4902 = vrot.slane %v4354, %v4901
    %s4904 = sor.u32 256, 2
    %4905 = vbcast.lane.b32.xlu0 %v4902, %s4904
    %v4906 = vpop.permute.xlu0 %4905
    %s4908 = sor.u32 256, 10
    %4909 = vbcast.lane.b32.xlu0 %v4902, %s4908
    %v4910 = vpop.permute.xlu0 %4909
    %v4911 = vlaneseq
    %v4912 = vshrl.u32 %v4911, 7
    %v4913 = vsub.s32 4, %v4912
    %v4914 = vrot.slane %v4354, %v4913
    %s4916 = sor.u32 256, 2
    %4917 = vbcast.lane.b32.xlu0 %v4914, %s4916
    %v4918 = vpop.permute.xlu0 %4917
    %s4920 = sor.u32 256, 10
    %4921 = vbcast.lane.b32.xlu0 %v4914, %s4920
    %v4922 = vpop.permute.xlu0 %4921
    %v4923 = vlaneseq
    %v4924 = vshrl.u32 %v4923, 7
    %v4925 = vsub.s32 5, %v4924
    %v4926 = vrot.slane %v4354, %v4925
    %s4928 = sor.u32 256, 2
    %4929 = vbcast.lane.b32.xlu0 %v4926, %s4928
    %v4930 = vpop.permute.xlu0 %4929
    %s4932 = sor.u32 256, 10
    %4933 = vbcast.lane.b32.xlu0 %v4926, %s4932
    %v4934 = vpop.permute.xlu0 %4933
    %v4935 = vlaneseq
    %v4936 = vshrl.u32 %v4935, 7
    %v4937 = vsub.s32 6, %v4936
    %v4938 = vrot.slane %v4354, %v4937
    %s4940 = sor.u32 256, 2
    %4941 = vbcast.lane.b32.xlu0 %v4938, %s4940
    %v4942 = vpop.permute.xlu0 %4941
    %s4944 = sor.u32 256, 10
    %4945 = vbcast.lane.b32.xlu0 %v4938, %s4944
    %v4946 = vpop.permute.xlu0 %4945
    %v4947 = vlaneseq
    %v4948 = vshrl.u32 %v4947, 7
    %v4949 = vsub.s32 7, %v4948
    %v4950 = vrot.slane %v4354, %v4949
    %s4952 = sor.u32 256, 2
    %4953 = vbcast.lane.b32.xlu0 %v4950, %s4952
    %v4954 = vpop.permute.xlu0 %4953
    %s4956 = sor.u32 256, 10
    %4957 = vbcast.lane.b32.xlu0 %v4950, %s4956
    %v4958 = vpop.permute.xlu0 %4957
    %v4959 = vlaneseq
    %v4960 = vshrl.u32 %v4959, 7
    %v4961 = vsub.s32 0, %v4960
    %v4962 = vrot.slane %v4359, %v4961
    %s4964 = sor.u32 256, 2
    %4965 = vbcast.lane.b32.xlu0 %v4962, %s4964
    %v4966 = vpop.permute.xlu0 %4965
    %s4968 = sor.u32 256, 10
    %4969 = vbcast.lane.b32.xlu0 %v4962, %s4968
    %v4970 = vpop.permute.xlu0 %4969
    %v4971 = vlaneseq
    %v4972 = vshrl.u32 %v4971, 7
    %v4973 = vsub.s32 1, %v4972
    %v4974 = vrot.slane %v4359, %v4973
    %s4976 = sor.u32 256, 2
    %4977 = vbcast.lane.b32.xlu0 %v4974, %s4976
    %v4978 = vpop.permute.xlu0 %4977
    %s4980 = sor.u32 256, 10
    %4981 = vbcast.lane.b32.xlu0 %v4974, %s4980
    %v4982 = vpop.permute.xlu0 %4981
    %v4983 = vlaneseq
    %v4984 = vshrl.u32 %v4983, 7
    %v4985 = vsub.s32 2, %v4984
    %v4986 = vrot.slane %v4359, %v4985
    %s4988 = sor.u32 256, 2
    %4989 = vbcast.lane.b32.xlu0 %v4986, %s4988
    %v4990 = vpop.permute.xlu0 %4989
    %s4992 = sor.u32 256, 10
    %4993 = vbcast.lane.b32.xlu0 %v4986, %s4992
    %v4994 = vpop.permute.xlu0 %4993
    %v4995 = vlaneseq
    %v4996 = vshrl.u32 %v4995, 7
    %v4997 = vsub.s32 3, %v4996
    %v4998 = vrot.slane %v4359, %v4997
    %s5000 = sor.u32 256, 2
    %5001 = vbcast.lane.b32.xlu0 %v4998, %s5000
    %v5002 = vpop.permute.xlu0 %5001
    %s5004 = sor.u32 256, 10
    %5005 = vbcast.lane.b32.xlu0 %v4998, %s5004
    %v5006 = vpop.permute.xlu0 %5005
    %v5007 = vlaneseq
    %v5008 = vshrl.u32 %v5007, 7
    %v5009 = vsub.s32 4, %v5008
    %v5010 = vrot.slane %v4359, %v5009
    %s5012 = sor.u32 256, 2
    %5013 = vbcast.lane.b32.xlu0 %v5010, %s5012
    %v5014 = vpop.permute.xlu0 %5013
    %s5016 = sor.u32 256, 10
    %5017 = vbcast.lane.b32.xlu0 %v5010, %s5016
    %v5018 = vpop.permute.xlu0 %5017
    %v5019 = vlaneseq
    %v5020 = vshrl.u32 %v5019, 7
    %v5021 = vsub.s32 5, %v5020
    %v5022 = vrot.slane %v4359, %v5021
    %s5024 = sor.u32 256, 2
    %5025 = vbcast.lane.b32.xlu0 %v5022, %s5024
    %v5026 = vpop.permute.xlu0 %5025
    %s5028 = sor.u32 256, 10
    %5029 = vbcast.lane.b32.xlu0 %v5022, %s5028
    %v5030 = vpop.permute.xlu0 %5029
    %v5031 = vlaneseq
    %v5032 = vshrl.u32 %v5031, 7
    %v5033 = vsub.s32 6, %v5032
    %v5034 = vrot.slane %v4359, %v5033
    %s5036 = sor.u32 256, 2
    %5037 = vbcast.lane.b32.xlu0 %v5034, %s5036
    %v5038 = vpop.permute.xlu0 %5037
    %s5040 = sor.u32 256, 10
    %5041 = vbcast.lane.b32.xlu0 %v5034, %s5040
    %v5042 = vpop.permute.xlu0 %5041
    %v5043 = vlaneseq
    %v5044 = vshrl.u32 %v5043, 7
    %v5045 = vsub.s32 7, %v5044
    %v5046 = vrot.slane %v4359, %v5045
    %s5048 = sor.u32 256, 2
    %5049 = vbcast.lane.b32.xlu0 %v5046, %s5048
    %v5050 = vpop.permute.xlu0 %5049
    %s5052 = sor.u32 256, 10
    %5053 = vbcast.lane.b32.xlu0 %v5046, %s5052
    %v5054 = vpop.permute.xlu0 %5053
    %v5055 = vlaneseq
    %v5056 = vshrl.u32 %v5055, 7
    %v5057 = vsub.s32 0, %v5056
    %v5058 = vrot.slane %v4788, %v5057
    %v5059 = vlaneseq
    %v5060 = vshrl.u32 %v5059, 7
    %v5061 = vsub.s32 0, %v5060
    %v5062 = vrot.slane %v4802, %v5061
    %v5063 = vlaneseq
    %v5064 = vshrl.u32 %v5063, 7
    %v5065 = vsub.s32 0, %v5064
    %v5066 = vrot.slane %v4810, %v5065
    %v5067 = vlaneseq
    %v5068 = vshrl.u32 %v5067, 7
    %v5069 = vsub.s32 0, %v5068
    %v5070 = vrot.slane %v4812, %v5069
    %v5071 = vlaneseq
    %v5072 = vshrl.u32 %v5071, 7
    %v5073 = vsub.s32 0, %v5072
    %v5074 = vrot.slane %v4795, %v5073
    %v5075 = vlaneseq
    %v5076 = vshrl.u32 %v5075, 7
    %v5077 = vsub.s32 0, %v5076
    %v5078 = vrot.slane %v4809, %v5077
    %v5079 = vlaneseq
    %v5080 = vshrl.u32 %v5079, 7
    %v5081 = vsub.s32 0, %v5080
    %v5082 = vrot.slane %v4811, %v5081
    %v5083 = vlaneseq
    %v5084 = vshrl.u32 %v5083, 7
    %v5085 = vsub.s32 0, %v5084
    %v5086 = vrot.slane %v4813, %v5085
    %v5087 = vlaneseq
    %v5088 = vshrl.u32 %v5087, 7
    %v5089 = vsub.s32 0, %v5088
    %v5090 = vrot.slane %v4837, %v5089
    %v5091 = vlaneseq
    %v5092 = vshrl.u32 %v5091, 7
    %v5093 = vsub.s32 0, %v5092
    %v5094 = vrot.slane %v4851, %v5093
    %v5095 = vlaneseq
    %v5096 = vshrl.u32 %v5095, 7
    %v5097 = vsub.s32 0, %v5096
    %v5098 = vrot.slane %v4859, %v5097
    %v5099 = vlaneseq
    %v5100 = vshrl.u32 %v5099, 7
    %v5101 = vsub.s32 0, %v5100
    %v5102 = vrot.slane %v4861, %v5101
    %v5103 = vlaneseq
    %v5104 = vshrl.u32 %v5103, 7
    %v5105 = vsub.s32 0, %v5104
    %v5106 = vrot.slane %v4844, %v5105
    %v5107 = vlaneseq
    %v5108 = vshrl.u32 %v5107, 7
    %v5109 = vsub.s32 0, %v5108
    %v5110 = vrot.slane %v4858, %v5109
    %v5111 = vlaneseq
    %v5112 = vshrl.u32 %v5111, 7
    %v5113 = vsub.s32 0, %v5112
    %v5114 = vrot.slane %v4860, %v5113
    %v5115 = vlaneseq
    %v5116 = vshrl.u32 %v5115, 7
    %v5117 = vsub.s32 0, %v5116
    %v5118 = vrot.slane %v4862, %v5117
    %v5135 = vmul.f32 %v5058, %v4870
    %v5136 = vmul.f32 %v5058, %v4874
    %v5137 = vmul.f32 %v5062, %v4882
    %v5138 = vmul.f32 %v5062, %v4886
    %v5139 = vmul.f32 %v5066, %v4894
    %v5140 = vmul.f32 %v5066, %v4898
    %v5141 = vmul.f32 %v5070, %v4906
    %v5142 = vmul.f32 %v5070, %v4910
    %v5143 = vmul.f32 %v5074, %v4918
    %v5144 = vmul.f32 %v5074, %v4922
    %v5145 = vmul.f32 %v5078, %v4930
    %v5146 = vmul.f32 %v5078, %v4934
    %v5147 = vmul.f32 %v5082, %v4942
    %v5148 = vmul.f32 %v5082, %v4946
    %v5149 = vmul.f32 %v5086, %v4954
    %v5150 = vmul.f32 %v5086, %v4958
    %v5151 = vmul.f32 %v5090, %v4966
    %v5152 = vmul.f32 %v5090, %v4970
    %v5153 = vmul.f32 %v5094, %v4978
    %v5154 = vmul.f32 %v5094, %v4982
    %v5155 = vmul.f32 %v5098, %v4990
    %v5156 = vmul.f32 %v5098, %v4994
    %v5157 = vmul.f32 %v5102, %v5002
    %v5158 = vmul.f32 %v5102, %v5006
    %v5159 = vmul.f32 %v5106, %v5014
    %v5160 = vmul.f32 %v5106, %v5018
    %v5161 = vmul.f32 %v5110, %v5026
    %v5162 = vmul.f32 %v5110, %v5030
    %v5163 = vmul.f32 %v5114, %v5038
    %v5164 = vmul.f32 %v5114, %v5042
    %v5165 = vmul.f32 %v5118, %v5050
    %v5166 = vmul.f32 %v5118, %v5054
    %v5167 = vmul.f32 %v4698, 0.0
    %v5168 = vmul.f32 %v4700, 0.0
    %v5169 = vmul.f32 %v4730, 0.0
    %v5170 = vmul.f32 %v4732, 0.0
    %v5171 = vadd.f32 %v5167, %v5135
    %v5172 = vadd.f32 %v5168, %v5136
    %v5173 = vadd.f32 %v5169, %v5151
    %v5174 = vadd.f32 %v5170, %v5152
    %s5176 = sor.u32 256, 18
    %5177 = vbcast.lane.b32.xlu0 %v4866, %s5176
    %v5178 = vpop.permute.xlu0 %5177
    %s5180 = sor.u32 256, 26
    %5181 = vbcast.lane.b32.xlu0 %v4866, %s5180
    %v5182 = vpop.permute.xlu0 %5181
    %s5184 = sor.u32 256, 18
    %5185 = vbcast.lane.b32.xlu0 %v4962, %s5184
    %v5186 = vpop.permute.xlu0 %5185
    %s5188 = sor.u32 256, 26
    %5189 = vbcast.lane.b32.xlu0 %v4962, %s5188
    %v5190 = vpop.permute.xlu0 %5189
    %v5191 = vmul.f32 %v5171, %v5178
    %v5192 = vmul.f32 %v5172, %v5182
    %v5193 = vmul.f32 %v5173, %v5186
    %v5194 = vmul.f32 %v5174, %v5190
    %v5195 = vsel %vm516, %v5191, 0.0
    %v5196 = vsel %vm516, %v5192, 0.0
    %v5197 = vadd.f32 %v5195, %v5196
    %v5198 = vrot.slane %v5197, 4
    %v5199 = vadd.f32 %v5197, %v5198
    %v5200 = vrot.slane %v5199, 2
    %v5201 = vadd.f32 %v5199, %v5200
    %v5202 = vrot.slane %v5201, 1
    %v5203 = vadd.f32 %v5201, %v5202
    %v5204 = vsel %vm516, %v5193, 0.0
    %v5205 = vsel %vm516, %v5194, 0.0
    %v5206 = vadd.f32 %v5204, %v5205
    %v5207 = vrot.slane %v5206, 4
    %v5208 = vadd.f32 %v5206, %v5207
    %v5209 = vrot.slane %v5208, 2
    %v5210 = vadd.f32 %v5208, %v5209
    %v5211 = vrot.slane %v5210, 1
    %v5212 = vadd.f32 %v5210, %v5211
    %v5213 = vmul.f32 %v4702, %v5171
    %v5214 = vmul.f32 %v4704, %v5172
    %v5215 = vmul.f32 %v4734, %v5173
    %v5216 = vmul.f32 %v4736, %v5174
    %v5217 = vadd.f32 %v5213, %v5137
    %v5218 = vadd.f32 %v5214, %v5138
    %v5219 = vadd.f32 %v5215, %v5153
    %v5220 = vadd.f32 %v5216, %v5154
    %s5222 = sor.u32 256, 18
    %5223 = vbcast.lane.b32.xlu0 %v4878, %s5222
    %v5224 = vpop.permute.xlu0 %5223
    %s5226 = sor.u32 256, 26
    %5227 = vbcast.lane.b32.xlu0 %v4878, %s5226
    %v5228 = vpop.permute.xlu0 %5227
    %s5230 = sor.u32 256, 18
    %5231 = vbcast.lane.b32.xlu0 %v4974, %s5230
    %v5232 = vpop.permute.xlu0 %5231
    %s5234 = sor.u32 256, 26
    %5235 = vbcast.lane.b32.xlu0 %v4974, %s5234
    %v5236 = vpop.permute.xlu0 %5235
    %v5237 = vmul.f32 %v5217, %v5224
    %v5238 = vmul.f32 %v5218, %v5228
    %v5239 = vmul.f32 %v5219, %v5232
    %v5240 = vmul.f32 %v5220, %v5236
    %v5241 = vsel %vm516, %v5237, 0.0
    %v5242 = vsel %vm516, %v5238, 0.0
    %v5243 = vadd.f32 %v5241, %v5242
    %v5244 = vrot.slane %v5243, 4
    %v5245 = vadd.f32 %v5243, %v5244
    %v5246 = vrot.slane %v5245, 2
    %v5247 = vadd.f32 %v5245, %v5246
    %v5248 = vrot.slane %v5247, 1
    %v5249 = vadd.f32 %v5247, %v5248
    %v5250 = vsel %vm516, %v5239, 0.0
    %v5251 = vsel %vm516, %v5240, 0.0
    %v5252 = vadd.f32 %v5250, %v5251
    %v5253 = vrot.slane %v5252, 4
    %v5254 = vadd.f32 %v5252, %v5253
    %v5255 = vrot.slane %v5254, 2
    %v5256 = vadd.f32 %v5254, %v5255
    %v5257 = vrot.slane %v5256, 1
    %v5258 = vadd.f32 %v5256, %v5257
    %v5259 = vmul.f32 %v4706, %v5217
    %v5260 = vmul.f32 %v4708, %v5218
    %v5261 = vmul.f32 %v4738, %v5219
    %v5262 = vmul.f32 %v4740, %v5220
    %v5263 = vadd.f32 %v5259, %v5139
    %v5264 = vadd.f32 %v5260, %v5140
    %v5265 = vadd.f32 %v5261, %v5155
    %v5266 = vadd.f32 %v5262, %v5156
    %s5268 = sor.u32 256, 18
    %5269 = vbcast.lane.b32.xlu0 %v4890, %s5268
    %v5270 = vpop.permute.xlu0 %5269
    %s5272 = sor.u32 256, 26
    %5273 = vbcast.lane.b32.xlu0 %v4890, %s5272
    %v5274 = vpop.permute.xlu0 %5273
    %s5276 = sor.u32 256, 18
    %5277 = vbcast.lane.b32.xlu0 %v4986, %s5276
    %v5278 = vpop.permute.xlu0 %5277
    %s5280 = sor.u32 256, 26
    %5281 = vbcast.lane.b32.xlu0 %v4986, %s5280
    %v5282 = vpop.permute.xlu0 %5281
    %v5283 = vmul.f32 %v5263, %v5270
    %v5284 = vmul.f32 %v5264, %v5274
    %v5285 = vmul.f32 %v5265, %v5278
    %v5286 = vmul.f32 %v5266, %v5282
    %v5287 = vsel %vm516, %v5283, 0.0
    %v5288 = vsel %vm516, %v5284, 0.0
    %v5289 = vadd.f32 %v5287, %v5288
    %v5290 = vrot.slane %v5289, 4
    %v5291 = vadd.f32 %v5289, %v5290
    %v5292 = vrot.slane %v5291, 2
    %v5293 = vadd.f32 %v5291, %v5292
    %v5294 = vrot.slane %v5293, 1
    %v5295 = vadd.f32 %v5293, %v5294
    %v5296 = vsel %vm516, %v5285, 0.0
    %v5297 = vsel %vm516, %v5286, 0.0
    %v5298 = vadd.f32 %v5296, %v5297
    %v5299 = vrot.slane %v5298, 4
    %v5300 = vadd.f32 %v5298, %v5299
    %v5301 = vrot.slane %v5300, 2
    %v5302 = vadd.f32 %v5300, %v5301
    %v5303 = vrot.slane %v5302, 1
    %v5304 = vadd.f32 %v5302, %v5303
    %v5305 = vmul.f32 %v4710, %v5263
    %v5306 = vmul.f32 %v4712, %v5264
    %v5307 = vmul.f32 %v4742, %v5265
    %v5308 = vmul.f32 %v4744, %v5266
    %v5309 = vadd.f32 %v5305, %v5141
    %v5310 = vadd.f32 %v5306, %v5142
    %v5311 = vadd.f32 %v5307, %v5157
    %v5312 = vadd.f32 %v5308, %v5158
    %s5314 = sor.u32 256, 18
    %5315 = vbcast.lane.b32.xlu0 %v4902, %s5314
    %v5316 = vpop.permute.xlu0 %5315
    %s5318 = sor.u32 256, 26
    %5319 = vbcast.lane.b32.xlu0 %v4902, %s5318
    %v5320 = vpop.permute.xlu0 %5319
    %s5322 = sor.u32 256, 18
    %5323 = vbcast.lane.b32.xlu0 %v4998, %s5322
    %v5324 = vpop.permute.xlu0 %5323
    %s5326 = sor.u32 256, 26
    %5327 = vbcast.lane.b32.xlu0 %v4998, %s5326
    %v5328 = vpop.permute.xlu0 %5327
    %v5329 = vmul.f32 %v5309, %v5316
    %v5330 = vmul.f32 %v5310, %v5320
    %v5331 = vmul.f32 %v5311, %v5324
    %v5332 = vmul.f32 %v5312, %v5328
    %v5333 = vsel %vm516, %v5329, 0.0
    %v5334 = vsel %vm516, %v5330, 0.0
    %v5335 = vadd.f32 %v5333, %v5334
    %v5336 = vrot.slane %v5335, 4
    %v5337 = vadd.f32 %v5335, %v5336
    %v5338 = vrot.slane %v5337, 2
    %v5339 = vadd.f32 %v5337, %v5338
    %v5340 = vrot.slane %v5339, 1
    %v5341 = vadd.f32 %v5339, %v5340
    %v5342 = vsel %vm516, %v5331, 0.0
    %v5343 = vsel %vm516, %v5332, 0.0
    %v5344 = vadd.f32 %v5342, %v5343
    %v5345 = vrot.slane %v5344, 4
    %v5346 = vadd.f32 %v5344, %v5345
    %v5347 = vrot.slane %v5346, 2
    %v5348 = vadd.f32 %v5346, %v5347
    %v5349 = vrot.slane %v5348, 1
    %v5350 = vadd.f32 %v5348, %v5349
    %v5351 = vmul.f32 %v4714, %v5309
    %v5352 = vmul.f32 %v4716, %v5310
    %v5353 = vmul.f32 %v4746, %v5311
    %v5354 = vmul.f32 %v4748, %v5312
    %v5355 = vadd.f32 %v5351, %v5143
    %v5356 = vadd.f32 %v5352, %v5144
    %v5357 = vadd.f32 %v5353, %v5159
    %v5358 = vadd.f32 %v5354, %v5160
    %s5360 = sor.u32 256, 18
    %5361 = vbcast.lane.b32.xlu0 %v4914, %s5360
    %v5362 = vpop.permute.xlu0 %5361
    %s5364 = sor.u32 256, 26
    %5365 = vbcast.lane.b32.xlu0 %v4914, %s5364
    %v5366 = vpop.permute.xlu0 %5365
    %s5368 = sor.u32 256, 18
    %5369 = vbcast.lane.b32.xlu0 %v5010, %s5368
    %v5370 = vpop.permute.xlu0 %5369
    %s5372 = sor.u32 256, 26
    %5373 = vbcast.lane.b32.xlu0 %v5010, %s5372
    %v5374 = vpop.permute.xlu0 %5373
    %v5375 = vmul.f32 %v5355, %v5362
    %v5376 = vmul.f32 %v5356, %v5366
    %v5377 = vmul.f32 %v5357, %v5370
    %v5378 = vmul.f32 %v5358, %v5374
    %v5379 = vsel %vm516, %v5375, 0.0
    %v5380 = vsel %vm516, %v5376, 0.0
    %v5381 = vadd.f32 %v5379, %v5380
    %v5382 = vrot.slane %v5381, 4
    %v5383 = vadd.f32 %v5381, %v5382
    %v5384 = vrot.slane %v5383, 2
    %v5385 = vadd.f32 %v5383, %v5384
    %v5386 = vrot.slane %v5385, 1
    %v5387 = vadd.f32 %v5385, %v5386
    %v5388 = vsel %vm516, %v5377, 0.0
    %v5389 = vsel %vm516, %v5378, 0.0
    %v5390 = vadd.f32 %v5388, %v5389
    %v5391 = vrot.slane %v5390, 4
    %v5392 = vadd.f32 %v5390, %v5391
    %v5393 = vrot.slane %v5392, 2
    %v5394 = vadd.f32 %v5392, %v5393
    %v5395 = vrot.slane %v5394, 1
    %v5396 = vadd.f32 %v5394, %v5395
    %v5397 = vmul.f32 %v4718, %v5355
    %v5398 = vmul.f32 %v4720, %v5356
    %v5399 = vmul.f32 %v4750, %v5357
    %v5400 = vmul.f32 %v4752, %v5358
    %v5401 = vadd.f32 %v5397, %v5145
    %v5402 = vadd.f32 %v5398, %v5146
    %v5403 = vadd.f32 %v5399, %v5161
    %v5404 = vadd.f32 %v5400, %v5162
    %s5406 = sor.u32 256, 18
    %5407 = vbcast.lane.b32.xlu0 %v4926, %s5406
    %v5408 = vpop.permute.xlu0 %5407
    %s5410 = sor.u32 256, 26
    %5411 = vbcast.lane.b32.xlu0 %v4926, %s5410
    %v5412 = vpop.permute.xlu0 %5411
    %s5414 = sor.u32 256, 18
    %5415 = vbcast.lane.b32.xlu0 %v5022, %s5414
    %v5416 = vpop.permute.xlu0 %5415
    %s5418 = sor.u32 256, 26
    %5419 = vbcast.lane.b32.xlu0 %v5022, %s5418
    %v5420 = vpop.permute.xlu0 %5419
    %v5421 = vmul.f32 %v5401, %v5408
    %v5422 = vmul.f32 %v5402, %v5412
    %v5423 = vmul.f32 %v5403, %v5416
    %v5424 = vmul.f32 %v5404, %v5420
    %v5425 = vsel %vm516, %v5421, 0.0
    %v5426 = vsel %vm516, %v5422, 0.0
    %v5427 = vadd.f32 %v5425, %v5426
    %v5428 = vrot.slane %v5427, 4
    %v5429 = vadd.f32 %v5427, %v5428
    %v5430 = vrot.slane %v5429, 2
    %v5431 = vadd.f32 %v5429, %v5430
    %v5432 = vrot.slane %v5431, 1
    %v5433 = vadd.f32 %v5431, %v5432
    %v5434 = vsel %vm516, %v5423, 0.0
    %v5435 = vsel %vm516, %v5424, 0.0
    %v5436 = vadd.f32 %v5434, %v5435
    %v5437 = vrot.slane %v5436, 4
    %v5438 = vadd.f32 %v5436, %v5437
    %v5439 = vrot.slane %v5438, 2
    %v5440 = vadd.f32 %v5438, %v5439
    %v5441 = vrot.slane %v5440, 1
    %v5442 = vadd.f32 %v5440, %v5441
    %v5443 = vmul.f32 %v4722, %v5401
    %v5444 = vmul.f32 %v4724, %v5402
    %v5445 = vmul.f32 %v4754, %v5403
    %v5446 = vmul.f32 %v4756, %v5404
    %v5447 = vadd.f32 %v5443, %v5147
    %v5448 = vadd.f32 %v5444, %v5148
    %v5449 = vadd.f32 %v5445, %v5163
    %v5450 = vadd.f32 %v5446, %v5164
    %s5452 = sor.u32 256, 18
    %5453 = vbcast.lane.b32.xlu0 %v4938, %s5452
    %v5454 = vpop.permute.xlu0 %5453
    %s5456 = sor.u32 256, 26
    %5457 = vbcast.lane.b32.xlu0 %v4938, %s5456
    %v5458 = vpop.permute.xlu0 %5457
    %s5460 = sor.u32 256, 18
    %5461 = vbcast.lane.b32.xlu0 %v5034, %s5460
    %v5462 = vpop.permute.xlu0 %5461
    %s5464 = sor.u32 256, 26
    %5465 = vbcast.lane.b32.xlu0 %v5034, %s5464
    %v5466 = vpop.permute.xlu0 %5465
    %v5467 = vmul.f32 %v5447, %v5454
    %v5468 = vmul.f32 %v5448, %v5458
    %v5469 = vmul.f32 %v5449, %v5462
    %v5470 = vmul.f32 %v5450, %v5466
    %v5471 = vsel %vm516, %v5467, 0.0
    %v5472 = vsel %vm516, %v5468, 0.0
    %v5473 = vadd.f32 %v5471, %v5472
    %v5474 = vrot.slane %v5473, 4
    %v5475 = vadd.f32 %v5473, %v5474
    %v5476 = vrot.slane %v5475, 2
    %v5477 = vadd.f32 %v5475, %v5476
    %v5478 = vrot.slane %v5477, 1
    %v5479 = vadd.f32 %v5477, %v5478
    %v5480 = vsel %vm516, %v5469, 0.0
    %v5481 = vsel %vm516, %v5470, 0.0
    %v5482 = vadd.f32 %v5480, %v5481
    %v5483 = vrot.slane %v5482, 4
    %v5484 = vadd.f32 %v5482, %v5483
    %v5485 = vrot.slane %v5484, 2
    %v5486 = vadd.f32 %v5484, %v5485
    %v5487 = vrot.slane %v5486, 1
    %v5488 = vadd.f32 %v5486, %v5487
    %v5489 = vmul.f32 %v4726, %v5447
    %v5490 = vmul.f32 %v4728, %v5448
    %v5491 = vmul.f32 %v4758, %v5449
    %v5492 = vmul.f32 %v4760, %v5450
    %v5493 = vadd.f32 %v5489, %v5149
    %v5494 = vadd.f32 %v5490, %v5150
    %v5495 = vadd.f32 %v5491, %v5165
    %v5496 = vadd.f32 %v5492, %v5166
    %s5498 = sor.u32 256, 18
    %5499 = vbcast.lane.b32.xlu0 %v4950, %s5498
    %v5500 = vpop.permute.xlu0 %5499
    %s5502 = sor.u32 256, 26
    %5503 = vbcast.lane.b32.xlu0 %v4950, %s5502
    %v5504 = vpop.permute.xlu0 %5503
    %s5506 = sor.u32 256, 18
    %5507 = vbcast.lane.b32.xlu0 %v5046, %s5506
    %v5508 = vpop.permute.xlu0 %5507
    %s5510 = sor.u32 256, 26
    %5511 = vbcast.lane.b32.xlu0 %v5046, %s5510
    %v5512 = vpop.permute.xlu0 %5511
    %v5513 = vmul.f32 %v5493, %v5500
    %v5514 = vmul.f32 %v5494, %v5504
    %v5515 = vmul.f32 %v5495, %v5508
    %v5516 = vmul.f32 %v5496, %v5512
    %v5517 = vsel %vm516, %v5513, 0.0
    %v5518 = vsel %vm516, %v5514, 0.0
    %v5519 = vadd.f32 %v5517, %v5518
    %v5520 = vrot.slane %v5519, 4
    %v5521 = vadd.f32 %v5519, %v5520
    %v5522 = vrot.slane %v5521, 2
    %v5523 = vadd.f32 %v5521, %v5522
    %v5524 = vrot.slane %v5523, 1
    %v5525 = vadd.f32 %v5523, %v5524
    %v5526 = vsel %vm516, %v5515, 0.0
    %v5527 = vsel %vm516, %v5516, 0.0
    %v5528 = vadd.f32 %v5526, %v5527
    %v5529 = vrot.slane %v5528, 4
    %v5530 = vadd.f32 %v5528, %v5529
    %v5531 = vrot.slane %v5530, 2
    %v5532 = vadd.f32 %v5530, %v5531
    %v5533 = vrot.slane %v5532, 1
    %v5534 = vadd.f32 %v5532, %v5533
    %v5535 = vsel %vm1773, %v5203, %v5249
    %v5536 = vsel %vm1773, %v5212, %v5258
    %v5537 = vsel %vm611, %v5535, %v5295
    %v5538 = vsel %vm611, %v5536, %v5304
    %v5539 = vsel %vm418, %v5537, %v5341
    %v5540 = vsel %vm418, %v5538, %v5350
    %v5541 = vsel %vm1780, %v5539, %v5387
    %v5542 = vsel %vm1780, %v5540, %v5396
    %v5543 = vsel %vm491, %v5541, %v5433
    %v5544 = vsel %vm491, %v5542, %v5442
    %v5545 = vsel %vm468, %v5543, %v5479
    %v5546 = vsel %vm468, %v5544, %v5488
    %v5547 = vsel %vm445, %v5545, %v5525
    %v5548 = vsel %vm445, %v5546, %v5534
    %v5549 = vlaneseq
    %v5550 = vshrl.u32 %v5549, 7
    %v5551 = vsub.s32 4, %v5550
    %v5552 = vrot.slane %v4032, %v5551
    %v5553 = vmul.f32 %v5552, %v4279
    %v5554 = vmul.f32 %v5552, %v4280
    %v5555 = vadd.f32 %v5547, %v5553
    %v5556 = vadd.f32 %v5548, %v5554
    %v5557 = vsub.f32 0.0, %v4173
    %v5558 = vsub.f32 0.0, %v4178
    %v5559 = vmul.f32 %v5557, 1.442695
    %v5560 = vpow.pop %v5559
    %v5561 = vmul.f32 %v5558, 1.442695
    %v5562 = vpow.pop %v5561
    %v5563 = vadd.f32 %v5560, 1.0
    %v5564 = vadd.f32 %v5562, 1.0
    %v5565 = vrcp.pop %v5563
    %v5566 = vmul.f32 1.0, %v5565
    %v5567 = vrcp.pop %v5564
    %v5568 = vmul.f32 1.0, %v5567
    %v5569 = vmul.f32 %v4173, %v5566
    %v5570 = vmul.f32 %v4178, %v5568
    %5573 = vrot.lane.b32.xlu0 %v5569, 64
    %v5574 = vpop.permute.xlu0 %5573
    %5575 = vrot.lane.b32.xlu0 %v5570, 64
    %v5576 = vpop.permute.xlu0 %5575
    %v5579 = vmul.f32 %v5555, %v5574
    %v5580 = vmul.f32 %v5556, %v5576
    %v5582 = vsel %vm516, %v5579, 0
    %v5585 = vsel %vm516, %v5580, 0
    %5587 = vmatprep.subr.mxu0 0.0
    %5588 = vmatpush1.msra.mxu0 0.0
    %5589 = vmatprep.subr.mxu0 0.0
    %5590 = vmatpush1.msra.mxu0 0.0
    %5591 = vmatprep.subr.mxu0 0.0
    %5592 = vmatpush1.msra.mxu0 0.0
    %5593 = vmatprep.subr.mxu0 0.0
    %5594 = vmatpush1.msra.mxu0 0.0
    %5595 = vmatprep.subr.mxu0 0.0
    %5596 = vmatpush1.msra.mxu0 0.0
    %5597 = vmatprep.subr.mxu0 0.0
    %5598 = vmatpush1.msra.mxu0 0.0
    %5599 = vmatprep.subr.mxu0 0.0
    %5600 = vmatpush1.msra.mxu0 0.0
    %5601 = vmatprep.subr.mxu0 0.0
    %5602 = vmatpush1.msra.mxu0 0.0
    %5603 = vmatprep.subr.mxu0 0.0
    %5604 = vmatpush1.msra.mxu0 %v4059
    %5605 = vmatprep.subr.mxu0 0.0
    %5606 = vmatpush1.msra.mxu0 %v4058
    %5607 = vmatprep.subr.mxu0 0.0
    %5608 = vmatpush1.msra.mxu0 %v4057
    %5609 = vmatprep.subr.mxu0 0.0
    %5610 = vmatpush1.msra.mxu0 %v4056
    %5611 = vmatprep.subr.mxu0 0.0
    %5612 = vmatpush1.msra.mxu0 %v4055
    %5613 = vmatprep.subr.mxu0 0.0
    %5614 = vmatpush1.msra.mxu0 %v4054
    %5615 = vmatprep.subr.mxu0 0.0
    %5616 = vmatpush1.msra.mxu0 %v4053
    %5617 = vmatprep.subr.mxu0 0.0
    %5618 = vmatpush1.msra.mxu0 %v4052
    %5619 = vmatprep.subr.mxu0 0.0
    %5620 = vmatpush2.msra.mxu0 0.0
    %5621 = vmatprep.subr.mxu0 0.0
    %5622 = vmatpush2.msra.mxu0 0.0
    %5623 = vmatprep.subr.mxu0 0.0
    %5624 = vmatpush2.msra.mxu0 0.0
    %5625 = vmatprep.subr.mxu0 0.0
    %5626 = vmatpush2.msra.mxu0 0.0
    %5627 = vmatprep.subr.mxu0 0.0
    %5628 = vmatpush2.msra.mxu0 0.0
    %5629 = vmatprep.subr.mxu0 0.0
    %5630 = vmatpush2.msra.mxu0 0.0
    %5631 = vmatprep.subr.mxu0 0.0
    %5632 = vmatpush2.msra.mxu0 0.0
    %5633 = vmatprep.subr.mxu0 0.0
    %5634 = vmatpush2.msra.mxu0 0.0
    %5635 = vmatprep.subr.mxu0 0.0
    %5636 = vmatpush2.msra.mxu0 0.0
    %5637 = vmatprep.subr.mxu0 0.0
    %5638 = vmatpush2.msra.mxu0 0.0
    %5639 = vmatprep.subr.mxu0 0.0
    %5640 = vmatpush2.msra.mxu0 0.0
    %5641 = vmatprep.subr.mxu0 0.0
    %5642 = vmatpush2.msra.mxu0 0.0
    %5643 = vmatprep.subr.mxu0 0.0
    %5644 = vmatpush2.msra.mxu0 0.0
    %5645 = vmatprep.subr.mxu0 0.0
    %5646 = vmatpush2.msra.mxu0 0.0
    %5647 = vmatprep.subr.mxu0 0.0
    %5648 = vmatpush2.msra.mxu0 0.0
    %5649 = vmatprep.subr.mxu0 0.0
    %5650 = vmatpush2.msra.mxu0 0.0
    %5651 = vmatprep.mubr.f32.mxu0 0.0
    %5652 = vmatmul.mubr.f32.gmra.mxu0 %v5582
    %v5653 = vpop.f32.mrf.mxu0
    %v5654 = vadd.f32 0.0, %v5653
    %v5655 = vpop.f32.mrf.mxu0
    %5656 = vmatprep.mubr.f32.mxu0 0.0
    %5657 = vmatmul.mubr.f32.gmra.mxu0 %v5585
    %v5658 = vpop.f32.mrf.mxu0
    %v5659 = vadd.f32 0.0, %v5658
    %v5660 = vpop.f32.mrf.mxu0
    %5661 = vdwg.mxu0
    %s5662 = scalar_lea.vmem %s4, 48
    %v5663 = vld [vmem:[%s5662] sm:$0xff]
    %v5664 = vld [vmem:[%s5662 + $0x8] sm:$0xff]
    %s5665 = scalar_lea.vmem %s5, 96
    %v5666 = vld [vmem:[%s5665] sm:$0xff]
    %v5667 = vld [vmem:[%s5665 + $0x8] sm:$0xff]
    %v5668 = vld [vmem:[%s5665 + $0x10] sm:$0xff]
    %v5669 = vld [vmem:[%s5665 + $0x18] sm:$0xff]
    %s5670 = scalar_lea.vmem %s6, 192
    %v5671 = vld [vmem:[%s5670] sm:$0xff]
    %v5672 = vld [vmem:[%s5670 + $0x8] sm:$0xff]
    %v5673 = vld [vmem:[%s5670 + $0x10] sm:$0xff]
    %v5674 = vld [vmem:[%s5670 + $0x18] sm:$0xff]
    %v5675 = vld [vmem:[%s5670 + $0x20] sm:$0xff]
    %v5676 = vld [vmem:[%s5670 + $0x28] sm:$0xff]
    %v5677 = vld [vmem:[%s5670 + $0x30] sm:$0xff]
    %v5678 = vld [vmem:[%s5670 + $0x38] sm:$0xff]
    %s5679 = scalar_lea.vmem %s7, 48
    %v5680 = vld [vmem:[%s5679] sm:$0xff]
    %v5681 = vld [vmem:[%s5679 + $0x8] sm:$0xff]
    %s5682 = scalar_lea.vmem %s8, 192
    %v5683 = vld [vmem:[%s5682] sm:$0xff]
    %v5684 = vld [vmem:[%s5682 + $0x8] sm:$0xff]
    %v5685 = vld [vmem:[%s5682 + $0x10] sm:$0xff]
    %v5686 = vld [vmem:[%s5682 + $0x18] sm:$0xff]
    %v5687 = vld [vmem:[%s5682 + $0x20] sm:$0xff]
    %v5688 = vld [vmem:[%s5682 + $0x28] sm:$0xff]
    %v5689 = vld [vmem:[%s5682 + $0x30] sm:$0xff]
    %v5690 = vld [vmem:[%s5682 + $0x38] sm:$0xff]
    %5693 = vrot.lane.b32.xlu0 %v3958, 96
    %v5694 = vpop.permute.xlu0 %5693
    %5695 = vrot.lane.b32.xlu0 %v4028, 96
    %v5696 = vpop.permute.xlu0 %5695
    %v5699 = vadd.f32 %v3958, %v5694
    %v5700 = vadd.f32 %v4028, %v5696
    %v5701 = vsel %vm78, %v5699, 0.0
    %5702 = vadd.xlane.f32.xlu0 %v5701
    %v5703 = vpop.xlane.xlu0 %5702
    %v5704 = vsel %vm78, %v5700, 0.0
    %5705 = vadd.xlane.f32.xlu0 %v5704
    %v5706 = vpop.xlane.xlu0 %5705
    %v5707 = vmul.f32 %v5703, %v85
    %v5708 = vmul.f32 %v5706, %v85
    %v5709 = vsub.f32 %v5699, %v5707
    %v5710 = vsub.f32 %v5700, %v5708
    %v5711 = vmul.f32 %v5709, %v5709
    %v5712 = vmul.f32 %v5710, %v5710
    %v5713 = vsel %vm78, %v5711, 0.0
    %5714 = vadd.xlane.f32.xlu0 %v5713
    %v5715 = vpop.xlane.xlu0 %5714
    %v5716 = vsel %vm78, %v5712, 0.0
    %5717 = vadd.xlane.f32.xlu0 %v5716
    %v5718 = vpop.xlane.xlu0 %5717
    %v5719 = vmul.f32 %v5715, %v85
    %v5720 = vmul.f32 %v5718, %v85
    %v5721 = vadd.f32 %v5719, 1e-05
    %v5722 = vadd.f32 %v5720, 1e-05
    %v5723 = vrsqrt.pop %v5721
    %v5724 = vrsqrt.pop %v5722
    %v5725 = vmul.f32 %v5709, %v5723
    %v5726 = vmul.f32 %v5710, %v5724
    %v5727 = vlaneseq
    %v5728 = vshrl.u32 %v5727, 7
    %v5729 = vsub.s32 0, %v5728
    %v5730 = vrot.slane %v5663, %v5729
    %v5731 = vmul.f32 %v5725, %v5730
    %v5732 = vmul.f32 %v5726, %v5730
    %v5733 = vlaneseq
    %v5734 = vshrl.u32 %v5733, 7
    %v5735 = vsub.s32 1, %v5734
    %v5736 = vrot.slane %v5663, %v5735
    %v5737 = vadd.f32 %v5731, %v5736
    %v5738 = vadd.f32 %v5732, %v5736
    %v5740 = vsel %vm78, %v5737, 0
    %v5743 = vsel %vm78, %v5738, 0
    %5745 = vmatprep.subr.mxu0 0.0
    %5746 = vmatpush1.msra.mxu0 0.0
    %5747 = vmatprep.subr.mxu0 0.0
    %5748 = vmatpush1.msra.mxu0 0.0
    %5749 = vmatprep.subr.mxu0 0.0
    %5750 = vmatpush1.msra.mxu0 0.0
    %5751 = vmatprep.subr.mxu0 0.0
    %5752 = vmatpush1.msra.mxu0 0.0
    %5753 = vmatprep.subr.mxu0 0.0
    %5754 = vmatpush1.msra.mxu0 0.0
    %5755 = vmatprep.subr.mxu0 0.0
    %5756 = vmatpush1.msra.mxu0 0.0
    %5757 = vmatprep.subr.mxu0 0.0
    %5758 = vmatpush1.msra.mxu0 0.0
    %5759 = vmatprep.subr.mxu0 0.0
    %5760 = vmatpush1.msra.mxu0 0.0
    %5761 = vmatprep.subr.mxu0 0.0
    %5762 = vmatpush1.msra.mxu0 0.0
    %5763 = vmatprep.subr.mxu0 0.0
    %5764 = vmatpush1.msra.mxu0 0.0
    %5765 = vmatprep.subr.mxu0 0.0
    %5766 = vmatpush1.msra.mxu0 0.0
    %5767 = vmatprep.subr.mxu0 0.0
    %5768 = vmatpush1.msra.mxu0 0.0
    %5769 = vmatprep.subr.mxu0 0.0
    %5770 = vmatpush1.msra.mxu0 %v5669
    %5771 = vmatprep.subr.mxu0 0.0
    %5772 = vmatpush1.msra.mxu0 %v5668
    %5773 = vmatprep.subr.mxu0 0.0
    %5774 = vmatpush1.msra.mxu0 %v5667
    %5775 = vmatprep.subr.mxu0 0.0
    %5776 = vmatpush1.msra.mxu0 %v5666
    %5777 = vmatprep.subr.mxu0 0.0
    %5778 = vmatpush2.msra.mxu0 0.0
    %5779 = vmatprep.subr.mxu0 0.0
    %5780 = vmatpush2.msra.mxu0 0.0
    %5781 = vmatprep.subr.mxu0 0.0
    %5782 = vmatpush2.msra.mxu0 0.0
    %5783 = vmatprep.subr.mxu0 0.0
    %5784 = vmatpush2.msra.mxu0 0.0
    %5785 = vmatprep.subr.mxu0 0.0
    %5786 = vmatpush2.msra.mxu0 0.0
    %5787 = vmatprep.subr.mxu0 0.0
    %5788 = vmatpush2.msra.mxu0 0.0
    %5789 = vmatprep.subr.mxu0 0.0
    %5790 = vmatpush2.msra.mxu0 0.0
    %5791 = vmatprep.subr.mxu0 0.0
    %5792 = vmatpush2.msra.mxu0 0.0
    %5793 = vmatprep.subr.mxu0 0.0
    %5794 = vmatpush2.msra.mxu0 0.0
    %5795 = vmatprep.subr.mxu0 0.0
    %5796 = vmatpush2.msra.mxu0 0.0
    %5797 = vmatprep.subr.mxu0 0.0
    %5798 = vmatpush2.msra.mxu0 0.0
    %5799 = vmatprep.subr.mxu0 0.0
    %5800 = vmatpush2.msra.mxu0 0.0
    %5801 = vmatprep.subr.mxu0 0.0
    %5802 = vmatpush2.msra.mxu0 0.0
    %5803 = vmatprep.subr.mxu0 0.0
    %5804 = vmatpush2.msra.mxu0 0.0
    %5805 = vmatprep.subr.mxu0 0.0
    %5806 = vmatpush2.msra.mxu0 0.0
    %5807 = vmatprep.subr.mxu0 0.0
    %5808 = vmatpush2.msra.mxu0 0.0
    %5809 = vmatprep.mubr.f32.mxu0 0.0
    %5810 = vmatmul.mubr.f32.gmra.mxu0 %v5740
    %v5811 = vpop.f32.mrf.mxu0
    %v5812 = vadd.f32 0.0, %v5811
    %v5813 = vpop.f32.mrf.mxu0
    %5814 = vmatprep.mubr.f32.mxu0 0.0
    %5815 = vmatmul.mubr.f32.gmra.mxu0 %v5743
    %v5816 = vpop.f32.mrf.mxu0
    %v5817 = vadd.f32 0.0, %v5816
    %v5818 = vpop.f32.mrf.mxu0
    %5819 = vdwg.mxu0
    %v5822 = vrot.slane %v5812, 5
    %v5823 = vrot.slane %v5817, 5
    %v5826 = vsel %vm418, 0.0, %v5822
    %v5827 = vsel %vm418, 0.0, %v5823
    %v5828 = vlaneseq
    %v5829 = vshrl.u32 %v5828, 7
    %v5830 = vsub.s32 5, %v5829
    %v5831 = vrot.slane %v5663, %v5830
    %v5832 = vmul.f32 %v5826, %v5831
    %v5833 = vmul.f32 %v5827, %v5831
    %v5834 = vlaneseq
    %v5835 = vshrl.u32 %v5834, 7
    %v5836 = vsub.s32 2, %v5835
    %v5837 = vrot.slane %v5663, %v5836
    %v5838 = vadd.f32 %v5837, %v5832
    %v5839 = vadd.f32 %v5837, %v5833
    %v5840 = vlaneseq
    %v5841 = vshrl.u32 %v5840, 7
    %v5842 = vsub.s32 6, %v5841
    %v5843 = vrot.slane %v5663, %v5842
    %v5844 = vmul.f32 %v5826, %v5843
    %v5845 = vmul.f32 %v5822, %v5843
    %v5846 = vmul.f32 %v5827, %v5843
    %v5847 = vmul.f32 %v5823, %v5843
    %v5852 = vrot.slane %v5844, 1
    %v5853 = vrot.slane %v5845, 1
    %v5854 = vsel %vm445, %v5852, %v5853
    %v5855 = vrot.slane %v5846, 1
    %v5856 = vrot.slane %v5847, 1
    %v5857 = vsel %vm445, %v5855, %v5856
    %v5860 = vadd.f32 %v5838, %v5854
    %v5861 = vadd.f32 %v5839, %v5857
    %v5862 = vlaneseq
    %v5863 = vshrl.u32 %v5862, 7
    %v5864 = vsub.s32 7, %v5863
    %v5865 = vrot.slane %v5663, %v5864
    %v5866 = vmul.f32 %v5826, %v5865
    %v5867 = vmul.f32 %v5822, %v5865
    %v5868 = vmul.f32 %v5827, %v5865
    %v5869 = vmul.f32 %v5823, %v5865
    %v5874 = vrot.slane %v5866, 2
    %v5875 = vrot.slane %v5867, 2
    %v5876 = vsel %vm468, %v5874, %v5875
    %v5877 = vrot.slane %v5868, 2
    %v5878 = vrot.slane %v5869, 2
    %v5879 = vsel %vm468, %v5877, %v5878
    %v5882 = vadd.f32 %v5860, %v5876
    %v5883 = vadd.f32 %v5861, %v5879
    %v5884 = vlaneseq
    %v5885 = vshrl.u32 %v5884, 7
    %v5886 = vsub.s32 0, %v5885
    %v5887 = vrot.slane %v5664, %v5886
    %v5888 = vmul.f32 %v5826, %v5887
    %v5889 = vmul.f32 %v5822, %v5887
    %v5890 = vmul.f32 %v5827, %v5887
    %v5891 = vmul.f32 %v5823, %v5887
    %v5896 = vrot.slane %v5888, 3
    %v5897 = vrot.slane %v5889, 3
    %v5898 = vsel %vm491, %v5896, %v5897
    %v5899 = vrot.slane %v5890, 3
    %v5900 = vrot.slane %v5891, 3
    %v5901 = vsel %vm491, %v5899, %v5900
    %v5904 = vadd.f32 %v5882, %v5898
    %v5905 = vadd.f32 %v5883, %v5901
    %v5906 = vsub.f32 0.0, %v5904
    %v5907 = vsub.f32 0.0, %v5905
    %v5908 = vmul.f32 %v5906, 1.442695
    %v5909 = vpow.pop %v5908
    %v5910 = vmul.f32 %v5907, 1.442695
    %v5911 = vpow.pop %v5910
    %v5912 = vadd.f32 %v5909, 1.0
    %v5913 = vadd.f32 %v5911, 1.0
    %v5914 = vrcp.pop %v5912
    %v5915 = vmul.f32 1.0, %v5914
    %v5916 = vrcp.pop %v5913
    %v5917 = vmul.f32 1.0, %v5916
    %v5918 = vmul.f32 %v5904, %v5915
    %v5919 = vmul.f32 %v5905, %v5917
    %v5921 = vsel %vm516, %v5918, 0
    %v5924 = vsel %vm516, %v5919, 0
    %5926 = vmatprep.subr.mxu0 0.0
    %5927 = vmatpush1.msra.mxu0 0.0
    %5928 = vmatprep.subr.mxu0 0.0
    %5929 = vmatpush1.msra.mxu0 0.0
    %5930 = vmatprep.subr.mxu0 0.0
    %5931 = vmatpush1.msra.mxu0 0.0
    %5932 = vmatprep.subr.mxu0 0.0
    %5933 = vmatpush1.msra.mxu0 0.0
    %5934 = vmatprep.subr.mxu0 0.0
    %5935 = vmatpush1.msra.mxu0 0.0
    %5936 = vmatprep.subr.mxu0 0.0
    %5937 = vmatpush1.msra.mxu0 0.0
    %5938 = vmatprep.subr.mxu0 0.0
    %5939 = vmatpush1.msra.mxu0 0.0
    %5940 = vmatprep.subr.mxu0 0.0
    %5941 = vmatpush1.msra.mxu0 0.0
    %5942 = vmatprep.subr.mxu0 0.0
    %5943 = vmatpush1.msra.mxu0 %v5678
    %5944 = vmatprep.subr.mxu0 0.0
    %5945 = vmatpush1.msra.mxu0 %v5677
    %5946 = vmatprep.subr.mxu0 0.0
    %5947 = vmatpush1.msra.mxu0 %v5676
    %5948 = vmatprep.subr.mxu0 0.0
    %5949 = vmatpush1.msra.mxu0 %v5675
    %5950 = vmatprep.subr.mxu0 0.0
    %5951 = vmatpush1.msra.mxu0 %v5674
    %5952 = vmatprep.subr.mxu0 0.0
    %5953 = vmatpush1.msra.mxu0 %v5673
    %5954 = vmatprep.subr.mxu0 0.0
    %5955 = vmatpush1.msra.mxu0 %v5672
    %5956 = vmatprep.subr.mxu0 0.0
    %5957 = vmatpush1.msra.mxu0 %v5671
    %5958 = vmatprep.subr.mxu0 0.0
    %5959 = vmatpush2.msra.mxu0 0.0
    %5960 = vmatprep.subr.mxu0 0.0
    %5961 = vmatpush2.msra.mxu0 0.0
    %5962 = vmatprep.subr.mxu0 0.0
    %5963 = vmatpush2.msra.mxu0 0.0
    %5964 = vmatprep.subr.mxu0 0.0
    %5965 = vmatpush2.msra.mxu0 0.0
    %5966 = vmatprep.subr.mxu0 0.0
    %5967 = vmatpush2.msra.mxu0 0.0
    %5968 = vmatprep.subr.mxu0 0.0
    %5969 = vmatpush2.msra.mxu0 0.0
    %5970 = vmatprep.subr.mxu0 0.0
    %5971 = vmatpush2.msra.mxu0 0.0
    %5972 = vmatprep.subr.mxu0 0.0
    %5973 = vmatpush2.msra.mxu0 0.0
    %5974 = vmatprep.subr.mxu0 0.0
    %5975 = vmatpush2.msra.mxu0 0.0
    %5976 = vmatprep.subr.mxu0 0.0
    %5977 = vmatpush2.msra.mxu0 0.0
    %5978 = vmatprep.subr.mxu0 0.0
    %5979 = vmatpush2.msra.mxu0 0.0
    %5980 = vmatprep.subr.mxu0 0.0
    %5981 = vmatpush2.msra.mxu0 0.0
    %5982 = vmatprep.subr.mxu0 0.0
    %5983 = vmatpush2.msra.mxu0 0.0
    %5984 = vmatprep.subr.mxu0 0.0
    %5985 = vmatpush2.msra.mxu0 0.0
    %5986 = vmatprep.subr.mxu0 0.0
    %5987 = vmatpush2.msra.mxu0 0.0
    %5988 = vmatprep.subr.mxu0 0.0
    %5989 = vmatpush2.msra.mxu0 0.0
    %5990 = vmatprep.mubr.f32.mxu0 0.0
    %5991 = vmatmul.mubr.f32.gmra.mxu0 %v5921
    %v5992 = vpop.f32.mrf.mxu0
    %v5993 = vadd.f32 0.0, %v5992
    %v5994 = vpop.f32.mrf.mxu0
    %5995 = vmatprep.mubr.f32.mxu0 0.0
    %5996 = vmatmul.mubr.f32.gmra.mxu0 %v5924
    %v5997 = vpop.f32.mrf.mxu0
    %v5998 = vadd.f32 0.0, %v5997
    %v5999 = vpop.f32.mrf.mxu0
    %6000 = vdwg.mxu0
    %v6001 = vlaneseq
    %v6002 = vshrl.u32 %v6001, 7
    %v6003 = vsub.s32 3, %v6002
    %v6004 = vrot.slane %v5663, %v6003
    %v6006 = vrot.slane %v5664, 1
    %v6008 = vsel %vm604, %v5993, 0
    %v6011 = vsel %vm604, %v5998, 0
    %v6013 = vsel %vm611, %v6006, 0
    %6015 = vmatprep.subr.mxu0 0.0
    %6016 = vmatpush1.msra.mxu0 0.0
    %6017 = vmatprep.subr.mxu0 0.0
    %6018 = vmatpush1.msra.mxu0 0.0
    %6019 = vmatprep.subr.mxu0 0.0
    %6020 = vmatpush1.msra.mxu0 0.0
    %6021 = vmatprep.subr.mxu0 0.0
    %6022 = vmatpush1.msra.mxu0 0.0
    %6023 = vmatprep.subr.mxu0 0.0
    %6024 = vmatpush1.msra.mxu0 0.0
    %6025 = vmatprep.subr.mxu0 0.0
    %6026 = vmatpush1.msra.mxu0 0.0
    %6027 = vmatprep.subr.mxu0 0.0
    %6028 = vmatpush1.msra.mxu0 0.0
    %6029 = vmatprep.subr.mxu0 0.0
    %6030 = vmatpush1.msra.mxu0 0.0
    %6031 = vmatprep.subr.mxu0 0.0
    %6032 = vmatpush1.msra.mxu0 0.0
    %6033 = vmatprep.subr.mxu0 0.0
    %6034 = vmatpush1.msra.mxu0 0.0
    %6035 = vmatprep.subr.mxu0 0.0
    %6036 = vmatpush1.msra.mxu0 0.0
    %6037 = vmatprep.subr.mxu0 0.0
    %6038 = vmatpush1.msra.mxu0 0.0
    %6039 = vmatprep.subr.mxu0 0.0
    %6040 = vmatpush1.msra.mxu0 0.0
    %6041 = vmatprep.subr.mxu0 0.0
    %6042 = vmatpush1.msra.mxu0 0.0
    %6043 = vmatprep.subr.mxu0 0.0
    %6044 = vmatpush1.msra.mxu0 0.0
    %6045 = vmatprep.subr.mxu0 0.0
    %6046 = vmatpush1.msra.mxu0 %v6013
    %6047 = vmatprep.subr.mxu0 0.0
    %6048 = vmatpush2.msra.mxu0 0.0
    %6049 = vmatprep.subr.mxu0 0.0
    %6050 = vmatpush2.msra.mxu0 0.0
    %6051 = vmatprep.subr.mxu0 0.0
    %6052 = vmatpush2.msra.mxu0 0.0
    %6053 = vmatprep.subr.mxu0 0.0
    %6054 = vmatpush2.msra.mxu0 0.0
    %6055 = vmatprep.subr.mxu0 0.0
    %6056 = vmatpush2.msra.mxu0 0.0
    %6057 = vmatprep.subr.mxu0 0.0
    %6058 = vmatpush2.msra.mxu0 0.0
    %6059 = vmatprep.subr.mxu0 0.0
    %6060 = vmatpush2.msra.mxu0 0.0
    %6061 = vmatprep.subr.mxu0 0.0
    %6062 = vmatpush2.msra.mxu0 0.0
    %6063 = vmatprep.subr.mxu0 0.0
    %6064 = vmatpush2.msra.mxu0 0.0
    %6065 = vmatprep.subr.mxu0 0.0
    %6066 = vmatpush2.msra.mxu0 0.0
    %6067 = vmatprep.subr.mxu0 0.0
    %6068 = vmatpush2.msra.mxu0 0.0
    %6069 = vmatprep.subr.mxu0 0.0
    %6070 = vmatpush2.msra.mxu0 0.0
    %6071 = vmatprep.subr.mxu0 0.0
    %6072 = vmatpush2.msra.mxu0 0.0
    %6073 = vmatprep.subr.mxu0 0.0
    %6074 = vmatpush2.msra.mxu0 0.0
    %6075 = vmatprep.subr.mxu0 0.0
    %6076 = vmatpush2.msra.mxu0 0.0
    %6077 = vmatprep.subr.mxu0 0.0
    %6078 = vmatpush2.msra.mxu0 0.0
    %6079 = vmatprep.mubr.f32.mxu0 0.0
    %6080 = vmatmul.mubr.f32.gmra.mxu0 %v6008
    %v6081 = vpop.f32.mrf.mxu0
    %v6082 = vadd.f32 %v6004, %v6081
    %v6083 = vpop.f32.mrf.mxu0
    %6084 = vmatprep.mubr.f32.mxu0 0.0
    %6085 = vmatmul.mubr.f32.gmra.mxu0 %v6011
    %v6086 = vpop.f32.mrf.mxu0
    %v6087 = vadd.f32 %v6004, %v6086
    %v6088 = vpop.f32.mrf.mxu0
    %6089 = vdwg.mxu0
    %vm6090 = vcmp.gt.f32.partialorder %v6082, 20.0
    %vm6091 = vcmp.gt.f32.partialorder %v6087, 20.0
    %v6092 = vmin.f32 %v6082, 20.0
    %v6093 = vmin.f32 %v6087, 20.0
    %v6094 = vmul.f32 %v6092, 1.442695
    %v6095 = vpow.pop %v6094
    %v6096 = vmul.f32 %v6093, 1.442695
    %v6097 = vpow.pop %v6096
    %v6098 = vadd.f32 %v6095, 1.0
    %v6099 = vlog2.pop %v6098
    %v6100 = vmul.f32 %v6099, 0.6931472
    %v6101 = vmul.f32 -0.5, %v6095
    %v6102 = vadd.f32 %v6101, 1.0
    %v6103 = vmul.f32 %v6102, %v6095
    %v6104 = vand.u32 2147483647, %v6095
    %vm6105 = vcmp.lt.f32.partialorder %v6104, 0.0004427343
    %v6106 = vsel %vm6105, %v6103, %v6100
    %v6107 = vadd.f32 %v6097, 1.0
    %v6108 = vlog2.pop %v6107
    %v6109 = vmul.f32 %v6108, 0.6931472
    %v6110 = vmul.f32 -0.5, %v6097
    %v6111 = vadd.f32 %v6110, 1.0
    %v6112 = vmul.f32 %v6111, %v6097
    %v6113 = vand.u32 2147483647, %v6097
    %vm6114 = vcmp.lt.f32.partialorder %v6113, 0.0004427343
    %v6115 = vsel %vm6114, %v6112, %v6109
    %v6116 = vsel %vm6090, %v6082, %v6106
    %v6117 = vsel %vm6091, %v6087, %v6115
    %v6118 = vmul.f32 %v5680, 1.442695
    %v6119 = vpow.pop %v6118
    %v6120 = vmul.f32 %v5681, 1.442695
    %v6121 = vpow.pop %v6120
    %v6122 = vsub.f32 0.0, %v6119
    %v6123 = vsub.f32 0.0, %v6121
    %v6126 = vcombine.high %v6116, %v6116
    %v6128 = vunpack.c.l.s4 1966171168
    %v6129 = vunpack.c.0.s8 %v6128
    %v6130 = vlaneseq
    %v6131 = vshrl.u32 %v6130, 7
    %v6132 = vsub.s32 %v6129, %v6131
    %v6133 = vrot.slane %v6116, %v6132
    %v6135 = vunpack.c.l.s4 1966171168
    %v6136 = vunpack.c.0.s8 %v6135
    %v6137 = vlaneseq
    %v6138 = vshrl.u32 %v6137, 7
    %v6139 = vsub.s32 %v6136, %v6138
    %v6140 = vrot.slane %v6126, %v6139
    %v6141 = vcombine.high %v6133, %v6133
    %v6142 = vcombine.high %v6140, %v6140
    %v6144 = vunpack.c.l.s4 1966171168
    %v6145 = vunpack.c.0.s8 %v6144
    %v6146 = vlaneseq
    %v6147 = vshrl.u32 %v6146, 7
    %v6148 = vsub.s32 %v6145, %v6147
    %v6149 = vrot.slane %v6133, %v6148
    %v6151 = vunpack.c.l.s4 1966171168
    %v6152 = vunpack.c.0.s8 %v6151
    %v6153 = vlaneseq
    %v6154 = vshrl.u32 %v6153, 7
    %v6155 = vsub.s32 %v6152, %v6154
    %v6156 = vrot.slane %v6140, %v6155
    %v6158 = vunpack.c.l.s4 1966171168
    %v6159 = vunpack.c.0.s8 %v6158
    %v6160 = vlaneseq
    %v6161 = vshrl.u32 %v6160, 7
    %v6162 = vsub.s32 %v6159, %v6161
    %v6163 = vrot.slane %v6141, %v6162
    %v6165 = vunpack.c.l.s4 1966171168
    %v6166 = vunpack.c.0.s8 %v6165
    %v6167 = vlaneseq
    %v6168 = vshrl.u32 %v6167, 7
    %v6169 = vsub.s32 %v6166, %v6168
    %v6170 = vrot.slane %v6142, %v6169
    %v6171 = vcombine.high %v6149, %v6149
    %v6172 = vcombine.high %v6156, %v6156
    %v6173 = vcombine.high %v6163, %v6163
    %v6174 = vcombine.high %v6170, %v6170
    %v6175 = vcombine.high %v6117, %v6117
    %v6177 = vunpack.c.l.s4 1966171168
    %v6178 = vunpack.c.0.s8 %v6177
    %v6179 = vlaneseq
    %v6180 = vshrl.u32 %v6179, 7
    %v6181 = vsub.s32 %v6178, %v6180
    %v6182 = vrot.slane %v6117, %v6181
    %v6184 = vunpack.c.l.s4 1966171168
    %v6185 = vunpack.c.0.s8 %v6184
    %v6186 = vlaneseq
    %v6187 = vshrl.u32 %v6186, 7
    %v6188 = vsub.s32 %v6185, %v6187
    %v6189 = vrot.slane %v6175, %v6188
    %v6190 = vcombine.high %v6182, %v6182
    %v6191 = vcombine.high %v6189, %v6189
    %v6193 = vunpack.c.l.s4 1966171168
    %v6194 = vunpack.c.0.s8 %v6193
    %v6195 = vlaneseq
    %v6196 = vshrl.u32 %v6195, 7
    %v6197 = vsub.s32 %v6194, %v6196
    %v6198 = vrot.slane %v6182, %v6197
    %v6200 = vunpack.c.l.s4 1966171168
    %v6201 = vunpack.c.0.s8 %v6200
    %v6202 = vlaneseq
    %v6203 = vshrl.u32 %v6202, 7
    %v6204 = vsub.s32 %v6201, %v6203
    %v6205 = vrot.slane %v6189, %v6204
    %v6207 = vunpack.c.l.s4 1966171168
    %v6208 = vunpack.c.0.s8 %v6207
    %v6209 = vlaneseq
    %v6210 = vshrl.u32 %v6209, 7
    %v6211 = vsub.s32 %v6208, %v6210
    %v6212 = vrot.slane %v6190, %v6211
    %v6214 = vunpack.c.l.s4 1966171168
    %v6215 = vunpack.c.0.s8 %v6214
    %v6216 = vlaneseq
    %v6217 = vshrl.u32 %v6216, 7
    %v6218 = vsub.s32 %v6215, %v6217
    %v6219 = vrot.slane %v6191, %v6218
    %v6220 = vcombine.high %v6198, %v6198
    %v6221 = vcombine.high %v6205, %v6205
    %v6222 = vcombine.high %v6212, %v6212
    %v6223 = vcombine.high %v6219, %v6219
    %v6224 = vlaneseq
    %v6225 = vshrl.u32 %v6224, 7
    %v6226 = vsub.s32 0, %v6225
    %v6227 = vrot.slane %v6149, %v6226
    %v6228 = vlaneseq
    %v6229 = vshrl.u32 %v6228, 7
    %v6230 = vsub.s32 0, %v6229
    %v6231 = vrot.slane %v6163, %v6230
    %v6232 = vlaneseq
    %v6233 = vshrl.u32 %v6232, 7
    %v6234 = vsub.s32 0, %v6233
    %v6235 = vrot.slane %v6171, %v6234
    %v6236 = vlaneseq
    %v6237 = vshrl.u32 %v6236, 7
    %v6238 = vsub.s32 0, %v6237
    %v6239 = vrot.slane %v6173, %v6238
    %v6240 = vlaneseq
    %v6241 = vshrl.u32 %v6240, 7
    %v6242 = vsub.s32 0, %v6241
    %v6243 = vrot.slane %v6156, %v6242
    %v6244 = vlaneseq
    %v6245 = vshrl.u32 %v6244, 7
    %v6246 = vsub.s32 0, %v6245
    %v6247 = vrot.slane %v6170, %v6246
    %v6248 = vlaneseq
    %v6249 = vshrl.u32 %v6248, 7
    %v6250 = vsub.s32 0, %v6249
    %v6251 = vrot.slane %v6172, %v6250
    %v6252 = vlaneseq
    %v6253 = vshrl.u32 %v6252, 7
    %v6254 = vsub.s32 0, %v6253
    %v6255 = vrot.slane %v6174, %v6254
    %v6256 = vlaneseq
    %v6257 = vshrl.u32 %v6256, 7
    %v6258 = vsub.s32 0, %v6257
    %v6259 = vrot.slane %v6198, %v6258
    %v6260 = vlaneseq
    %v6261 = vshrl.u32 %v6260, 7
    %v6262 = vsub.s32 0, %v6261
    %v6263 = vrot.slane %v6212, %v6262
    %v6264 = vlaneseq
    %v6265 = vshrl.u32 %v6264, 7
    %v6266 = vsub.s32 0, %v6265
    %v6267 = vrot.slane %v6220, %v6266
    %v6268 = vlaneseq
    %v6269 = vshrl.u32 %v6268, 7
    %v6270 = vsub.s32 0, %v6269
    %v6271 = vrot.slane %v6222, %v6270
    %v6272 = vlaneseq
    %v6273 = vshrl.u32 %v6272, 7
    %v6274 = vsub.s32 0, %v6273
    %v6275 = vrot.slane %v6205, %v6274
    %v6276 = vlaneseq
    %v6277 = vshrl.u32 %v6276, 7
    %v6278 = vsub.s32 0, %v6277
    %v6279 = vrot.slane %v6219, %v6278
    %v6280 = vlaneseq
    %v6281 = vshrl.u32 %v6280, 7
    %v6282 = vsub.s32 0, %v6281
    %v6283 = vrot.slane %v6221, %v6282
    %v6284 = vlaneseq
    %v6285 = vshrl.u32 %v6284, 7
    %v6286 = vsub.s32 0, %v6285
    %v6287 = vrot.slane %v6223, %v6286
    %v6304 = vmul.f32 %v6227, %v6122
    %v6305 = vmul.f32 %v6227, %v6123
    %v6306 = vmul.f32 %v6231, %v6122
    %v6307 = vmul.f32 %v6231, %v6123
    %v6308 = vmul.f32 %v6235, %v6122
    %v6309 = vmul.f32 %v6235, %v6123
    %v6310 = vmul.f32 %v6239, %v6122
    %v6311 = vmul.f32 %v6239, %v6123
    %v6312 = vmul.f32 %v6243, %v6122
    %v6313 = vmul.f32 %v6243, %v6123
    %v6314 = vmul.f32 %v6247, %v6122
    %v6315 = vmul.f32 %v6247, %v6123
    %v6316 = vmul.f32 %v6251, %v6122
    %v6317 = vmul.f32 %v6251, %v6123
    %v6318 = vmul.f32 %v6255, %v6122
    %v6319 = vmul.f32 %v6255, %v6123
    %v6320 = vmul.f32 %v6259, %v6122
    %v6321 = vmul.f32 %v6259, %v6123
    %v6322 = vmul.f32 %v6263, %v6122
    %v6323 = vmul.f32 %v6263, %v6123
    %v6324 = vmul.f32 %v6267, %v6122
    %v6325 = vmul.f32 %v6267, %v6123
    %v6326 = vmul.f32 %v6271, %v6122
    %v6327 = vmul.f32 %v6271, %v6123
    %v6328 = vmul.f32 %v6275, %v6122
    %v6329 = vmul.f32 %v6275, %v6123
    %v6330 = vmul.f32 %v6279, %v6122
    %v6331 = vmul.f32 %v6279, %v6123
    %v6332 = vmul.f32 %v6283, %v6122
    %v6333 = vmul.f32 %v6283, %v6123
    %v6334 = vmul.f32 %v6287, %v6122
    %v6335 = vmul.f32 %v6287, %v6123
    %v6336 = vmul.f32 %v6304, 1.442695
    %v6337 = vpow.pop %v6336
    %v6338 = vmul.f32 %v6305, 1.442695
    %v6339 = vpow.pop %v6338
    %v6340 = vmul.f32 %v6306, 1.442695
    %v6341 = vpow.pop %v6340
    %v6342 = vmul.f32 %v6307, 1.442695
    %v6343 = vpow.pop %v6342
    %v6344 = vmul.f32 %v6308, 1.442695
    %v6345 = vpow.pop %v6344
    %v6346 = vmul.f32 %v6309, 1.442695
    %v6347 = vpow.pop %v6346
    %v6348 = vmul.f32 %v6310, 1.442695
    %v6349 = vpow.pop %v6348
    %v6350 = vmul.f32 %v6311, 1.442695
    %v6351 = vpow.pop %v6350
    %v6352 = vmul.f32 %v6312, 1.442695
    %v6353 = vpow.pop %v6352
    %v6354 = vmul.f32 %v6313, 1.442695
    %v6355 = vpow.pop %v6354
    %v6356 = vmul.f32 %v6314, 1.442695
    %v6357 = vpow.pop %v6356
    %v6358 = vmul.f32 %v6315, 1.442695
    %v6359 = vpow.pop %v6358
    %v6360 = vmul.f32 %v6316, 1.442695
    %v6361 = vpow.pop %v6360
    %v6362 = vmul.f32 %v6317, 1.442695
    %v6363 = vpow.pop %v6362
    %v6364 = vmul.f32 %v6318, 1.442695
    %v6365 = vpow.pop %v6364
    %v6366 = vmul.f32 %v6319, 1.442695
    %v6367 = vpow.pop %v6366
    %v6368 = vmul.f32 %v6320, 1.442695
    %v6369 = vpow.pop %v6368
    %v6370 = vmul.f32 %v6321, 1.442695
    %v6371 = vpow.pop %v6370
    %v6372 = vmul.f32 %v6322, 1.442695
    %v6373 = vpow.pop %v6372
    %v6374 = vmul.f32 %v6323, 1.442695
    %v6375 = vpow.pop %v6374
    %v6376 = vmul.f32 %v6324, 1.442695
    %v6377 = vpow.pop %v6376
    %v6378 = vmul.f32 %v6325, 1.442695
    %v6379 = vpow.pop %v6378
    %v6380 = vmul.f32 %v6326, 1.442695
    %v6381 = vpow.pop %v6380
    %v6382 = vmul.f32 %v6327, 1.442695
    %v6383 = vpow.pop %v6382
    %v6384 = vmul.f32 %v6328, 1.442695
    %v6385 = vpow.pop %v6384
    %v6386 = vmul.f32 %v6329, 1.442695
    %v6387 = vpow.pop %v6386
    %v6388 = vmul.f32 %v6330, 1.442695
    %v6389 = vpow.pop %v6388
    %v6390 = vmul.f32 %v6331, 1.442695
    %v6391 = vpow.pop %v6390
    %v6392 = vmul.f32 %v6332, 1.442695
    %v6393 = vpow.pop %v6392
    %v6394 = vmul.f32 %v6333, 1.442695
    %v6395 = vpow.pop %v6394
    %v6396 = vmul.f32 %v6334, 1.442695
    %v6397 = vpow.pop %v6396
    %v6398 = vmul.f32 %v6335, 1.442695
    %v6399 = vpow.pop %v6398
    %v6400 = vmul.f32 %v6116, %v5918
    %v6401 = vmul.f32 %v6117, %v5919
    %v6404 = vcombine.high %v6400, %v6400
    %v6406 = vunpack.c.l.s4 1966171168
    %v6407 = vunpack.c.0.s8 %v6406
    %v6408 = vlaneseq
    %v6409 = vshrl.u32 %v6408, 7
    %v6410 = vsub.s32 %v6407, %v6409
    %v6411 = vrot.slane %v6400, %v6410
    %v6413 = vunpack.c.l.s4 1966171168
    %v6414 = vunpack.c.0.s8 %v6413
    %v6415 = vlaneseq
    %v6416 = vshrl.u32 %v6415, 7
    %v6417 = vsub.s32 %v6414, %v6416
    %v6418 = vrot.slane %v6404, %v6417
    %v6419 = vcombine.high %v6411, %v6411
    %v6420 = vcombine.high %v6418, %v6418
    %v6422 = vunpack.c.l.s4 1966171168
    %v6423 = vunpack.c.0.s8 %v6422
    %v6424 = vlaneseq
    %v6425 = vshrl.u32 %v6424, 7
    %v6426 = vsub.s32 %v6423, %v6425
    %v6427 = vrot.slane %v6411, %v6426
    %v6429 = vunpack.c.l.s4 1966171168
    %v6430 = vunpack.c.0.s8 %v6429
    %v6431 = vlaneseq
    %v6432 = vshrl.u32 %v6431, 7
    %v6433 = vsub.s32 %v6430, %v6432
    %v6434 = vrot.slane %v6418, %v6433
    %v6436 = vunpack.c.l.s4 1966171168
    %v6437 = vunpack.c.0.s8 %v6436
    %v6438 = vlaneseq
    %v6439 = vshrl.u32 %v6438, 7
    %v6440 = vsub.s32 %v6437, %v6439
    %v6441 = vrot.slane %v6419, %v6440
    %v6443 = vunpack.c.l.s4 1966171168
    %v6444 = vunpack.c.0.s8 %v6443
    %v6445 = vlaneseq
    %v6446 = vshrl.u32 %v6445, 7
    %v6447 = vsub.s32 %v6444, %v6446
    %v6448 = vrot.slane %v6420, %v6447
    %v6449 = vcombine.high %v6427, %v6427
    %v6450 = vcombine.high %v6434, %v6434
    %v6451 = vcombine.high %v6441, %v6441
    %v6452 = vcombine.high %v6448, %v6448
    %v6453 = vcombine.high %v6401, %v6401
    %v6455 = vunpack.c.l.s4 1966171168
    %v6456 = vunpack.c.0.s8 %v6455
    %v6457 = vlaneseq
    %v6458 = vshrl.u32 %v6457, 7
    %v6459 = vsub.s32 %v6456, %v6458
    %v6460 = vrot.slane %v6401, %v6459
    %v6462 = vunpack.c.l.s4 1966171168
    %v6463 = vunpack.c.0.s8 %v6462
    %v6464 = vlaneseq
    %v6465 = vshrl.u32 %v6464, 7
    %v6466 = vsub.s32 %v6463, %v6465
    %v6467 = vrot.slane %v6453, %v6466
    %v6468 = vcombine.high %v6460, %v6460
    %v6469 = vcombine.high %v6467, %v6467
    %v6471 = vunpack.c.l.s4 1966171168
    %v6472 = vunpack.c.0.s8 %v6471
    %v6473 = vlaneseq
    %v6474 = vshrl.u32 %v6473, 7
    %v6475 = vsub.s32 %v6472, %v6474
    %v6476 = vrot.slane %v6460, %v6475
    %v6478 = vunpack.c.l.s4 1966171168
    %v6479 = vunpack.c.0.s8 %v6478
    %v6480 = vlaneseq
    %v6481 = vshrl.u32 %v6480, 7
    %v6482 = vsub.s32 %v6479, %v6481
    %v6483 = vrot.slane %v6467, %v6482
    %v6485 = vunpack.c.l.s4 1966171168
    %v6486 = vunpack.c.0.s8 %v6485
    %v6487 = vlaneseq
    %v6488 = vshrl.u32 %v6487, 7
    %v6489 = vsub.s32 %v6486, %v6488
    %v6490 = vrot.slane %v6468, %v6489
    %v6492 = vunpack.c.l.s4 1966171168
    %v6493 = vunpack.c.0.s8 %v6492
    %v6494 = vlaneseq
    %v6495 = vshrl.u32 %v6494, 7
    %v6496 = vsub.s32 %v6493, %v6495
    %v6497 = vrot.slane %v6469, %v6496
    %v6498 = vcombine.high %v6476, %v6476
    %v6499 = vcombine.high %v6483, %v6483
    %v6500 = vcombine.high %v6490, %v6490
    %v6501 = vcombine.high %v6497, %v6497
    %v6502 = vlaneseq
    %v6503 = vshrl.u32 %v6502, 7
    %v6504 = vsub.s32 0, %v6503
    %v6505 = vrot.slane %v5993, %v6504
    %s6507 = sor.u32 256, 2
    %6508 = vbcast.lane.b32.xlu0 %v6505, %s6507
    %v6509 = vpop.permute.xlu0 %6508
    %s6511 = sor.u32 256, 10
    %6512 = vbcast.lane.b32.xlu0 %v6505, %s6511
    %v6513 = vpop.permute.xlu0 %6512
    %v6514 = vlaneseq
    %v6515 = vshrl.u32 %v6514, 7
    %v6516 = vsub.s32 1, %v6515
    %v6517 = vrot.slane %v5993, %v6516
    %s6519 = sor.u32 256, 2
    %6520 = vbcast.lane.b32.xlu0 %v6517, %s6519
    %v6521 = vpop.permute.xlu0 %6520
    %s6523 = sor.u32 256, 10
    %6524 = vbcast.lane.b32.xlu0 %v6517, %s6523
    %v6525 = vpop.permute.xlu0 %6524
    %v6526 = vlaneseq
    %v6527 = vshrl.u32 %v6526, 7
    %v6528 = vsub.s32 2, %v6527
    %v6529 = vrot.slane %v5993, %v6528
    %s6531 = sor.u32 256, 2
    %6532 = vbcast.lane.b32.xlu0 %v6529, %s6531
    %v6533 = vpop.permute.xlu0 %6532
    %s6535 = sor.u32 256, 10
    %6536 = vbcast.lane.b32.xlu0 %v6529, %s6535
    %v6537 = vpop.permute.xlu0 %6536
    %v6538 = vlaneseq
    %v6539 = vshrl.u32 %v6538, 7
    %v6540 = vsub.s32 3, %v6539
    %v6541 = vrot.slane %v5993, %v6540
    %s6543 = sor.u32 256, 2
    %6544 = vbcast.lane.b32.xlu0 %v6541, %s6543
    %v6545 = vpop.permute.xlu0 %6544
    %s6547 = sor.u32 256, 10
    %6548 = vbcast.lane.b32.xlu0 %v6541, %s6547
    %v6549 = vpop.permute.xlu0 %6548
    %v6550 = vlaneseq
    %v6551 = vshrl.u32 %v6550, 7
    %v6552 = vsub.s32 4, %v6551
    %v6553 = vrot.slane %v5993, %v6552
    %s6555 = sor.u32 256, 2
    %6556 = vbcast.lane.b32.xlu0 %v6553, %s6555
    %v6557 = vpop.permute.xlu0 %6556
    %s6559 = sor.u32 256, 10
    %6560 = vbcast.lane.b32.xlu0 %v6553, %s6559
    %v6561 = vpop.permute.xlu0 %6560
    %v6562 = vlaneseq
    %v6563 = vshrl.u32 %v6562, 7
    %v6564 = vsub.s32 5, %v6563
    %v6565 = vrot.slane %v5993, %v6564
    %s6567 = sor.u32 256, 2
    %6568 = vbcast.lane.b32.xlu0 %v6565, %s6567
    %v6569 = vpop.permute.xlu0 %6568
    %s6571 = sor.u32 256, 10
    %6572 = vbcast.lane.b32.xlu0 %v6565, %s6571
    %v6573 = vpop.permute.xlu0 %6572
    %v6574 = vlaneseq
    %v6575 = vshrl.u32 %v6574, 7
    %v6576 = vsub.s32 6, %v6575
    %v6577 = vrot.slane %v5993, %v6576
    %s6579 = sor.u32 256, 2
    %6580 = vbcast.lane.b32.xlu0 %v6577, %s6579
    %v6581 = vpop.permute.xlu0 %6580
    %s6583 = sor.u32 256, 10
    %6584 = vbcast.lane.b32.xlu0 %v6577, %s6583
    %v6585 = vpop.permute.xlu0 %6584
    %v6586 = vlaneseq
    %v6587 = vshrl.u32 %v6586, 7
    %v6588 = vsub.s32 7, %v6587
    %v6589 = vrot.slane %v5993, %v6588
    %s6591 = sor.u32 256, 2
    %6592 = vbcast.lane.b32.xlu0 %v6589, %s6591
    %v6593 = vpop.permute.xlu0 %6592
    %s6595 = sor.u32 256, 10
    %6596 = vbcast.lane.b32.xlu0 %v6589, %s6595
    %v6597 = vpop.permute.xlu0 %6596
    %v6598 = vlaneseq
    %v6599 = vshrl.u32 %v6598, 7
    %v6600 = vsub.s32 0, %v6599
    %v6601 = vrot.slane %v5998, %v6600
    %s6603 = sor.u32 256, 2
    %6604 = vbcast.lane.b32.xlu0 %v6601, %s6603
    %v6605 = vpop.permute.xlu0 %6604
    %s6607 = sor.u32 256, 10
    %6608 = vbcast.lane.b32.xlu0 %v6601, %s6607
    %v6609 = vpop.permute.xlu0 %6608
    %v6610 = vlaneseq
    %v6611 = vshrl.u32 %v6610, 7
    %v6612 = vsub.s32 1, %v6611
    %v6613 = vrot.slane %v5998, %v6612
    %s6615 = sor.u32 256, 2
    %6616 = vbcast.lane.b32.xlu0 %v6613, %s6615
    %v6617 = vpop.permute.xlu0 %6616
    %s6619 = sor.u32 256, 10
    %6620 = vbcast.lane.b32.xlu0 %v6613, %s6619
    %v6621 = vpop.permute.xlu0 %6620
    %v6622 = vlaneseq
    %v6623 = vshrl.u32 %v6622, 7
    %v6624 = vsub.s32 2, %v6623
    %v6625 = vrot.slane %v5998, %v6624
    %s6627 = sor.u32 256, 2
    %6628 = vbcast.lane.b32.xlu0 %v6625, %s6627
    %v6629 = vpop.permute.xlu0 %6628
    %s6631 = sor.u32 256, 10
    %6632 = vbcast.lane.b32.xlu0 %v6625, %s6631
    %v6633 = vpop.permute.xlu0 %6632
    %v6634 = vlaneseq
    %v6635 = vshrl.u32 %v6634, 7
    %v6636 = vsub.s32 3, %v6635
    %v6637 = vrot.slane %v5998, %v6636
    %s6639 = sor.u32 256, 2
    %6640 = vbcast.lane.b32.xlu0 %v6637, %s6639
    %v6641 = vpop.permute.xlu0 %6640
    %s6643 = sor.u32 256, 10
    %6644 = vbcast.lane.b32.xlu0 %v6637, %s6643
    %v6645 = vpop.permute.xlu0 %6644
    %v6646 = vlaneseq
    %v6647 = vshrl.u32 %v6646, 7
    %v6648 = vsub.s32 4, %v6647
    %v6649 = vrot.slane %v5998, %v6648
    %s6651 = sor.u32 256, 2
    %6652 = vbcast.lane.b32.xlu0 %v6649, %s6651
    %v6653 = vpop.permute.xlu0 %6652
    %s6655 = sor.u32 256, 10
    %6656 = vbcast.lane.b32.xlu0 %v6649, %s6655
    %v6657 = vpop.permute.xlu0 %6656
    %v6658 = vlaneseq
    %v6659 = vshrl.u32 %v6658, 7
    %v6660 = vsub.s32 5, %v6659
    %v6661 = vrot.slane %v5998, %v6660
    %s6663 = sor.u32 256, 2
    %6664 = vbcast.lane.b32.xlu0 %v6661, %s6663
    %v6665 = vpop.permute.xlu0 %6664
    %s6667 = sor.u32 256, 10
    %6668 = vbcast.lane.b32.xlu0 %v6661, %s6667
    %v6669 = vpop.permute.xlu0 %6668
    %v6670 = vlaneseq
    %v6671 = vshrl.u32 %v6670, 7
    %v6672 = vsub.s32 6, %v6671
    %v6673 = vrot.slane %v5998, %v6672
    %s6675 = sor.u32 256, 2
    %6676 = vbcast.lane.b32.xlu0 %v6673, %s6675
    %v6677 = vpop.permute.xlu0 %6676
    %s6679 = sor.u32 256, 10
    %6680 = vbcast.lane.b32.xlu0 %v6673, %s6679
    %v6681 = vpop.permute.xlu0 %6680
    %v6682 = vlaneseq
    %v6683 = vshrl.u32 %v6682, 7
    %v6684 = vsub.s32 7, %v6683
    %v6685 = vrot.slane %v5998, %v6684
    %s6687 = sor.u32 256, 2
    %6688 = vbcast.lane.b32.xlu0 %v6685, %s6687
    %v6689 = vpop.permute.xlu0 %6688
    %s6691 = sor.u32 256, 10
    %6692 = vbcast.lane.b32.xlu0 %v6685, %s6691
    %v6693 = vpop.permute.xlu0 %6692
    %v6694 = vlaneseq
    %v6695 = vshrl.u32 %v6694, 7
    %v6696 = vsub.s32 0, %v6695
    %v6697 = vrot.slane %v6427, %v6696
    %v6698 = vlaneseq
    %v6699 = vshrl.u32 %v6698, 7
    %v6700 = vsub.s32 0, %v6699
    %v6701 = vrot.slane %v6441, %v6700
    %v6702 = vlaneseq
    %v6703 = vshrl.u32 %v6702, 7
    %v6704 = vsub.s32 0, %v6703
    %v6705 = vrot.slane %v6449, %v6704
    %v6706 = vlaneseq
    %v6707 = vshrl.u32 %v6706, 7
    %v6708 = vsub.s32 0, %v6707
    %v6709 = vrot.slane %v6451, %v6708
    %v6710 = vlaneseq
    %v6711 = vshrl.u32 %v6710, 7
    %v6712 = vsub.s32 0, %v6711
    %v6713 = vrot.slane %v6434, %v6712
    %v6714 = vlaneseq
    %v6715 = vshrl.u32 %v6714, 7
    %v6716 = vsub.s32 0, %v6715
    %v6717 = vrot.slane %v6448, %v6716
    %v6718 = vlaneseq
    %v6719 = vshrl.u32 %v6718, 7
    %v6720 = vsub.s32 0, %v6719
    %v6721 = vrot.slane %v6450, %v6720
    %v6722 = vlaneseq
    %v6723 = vshrl.u32 %v6722, 7
    %v6724 = vsub.s32 0, %v6723
    %v6725 = vrot.slane %v6452, %v6724
    %v6726 = vlaneseq
    %v6727 = vshrl.u32 %v6726, 7
    %v6728 = vsub.s32 0, %v6727
    %v6729 = vrot.slane %v6476, %v6728
    %v6730 = vlaneseq
    %v6731 = vshrl.u32 %v6730, 7
    %v6732 = vsub.s32 0, %v6731
    %v6733 = vrot.slane %v6490, %v6732
    %v6734 = vlaneseq
    %v6735 = vshrl.u32 %v6734, 7
    %v6736 = vsub.s32 0, %v6735
    %v6737 = vrot.slane %v6498, %v6736
    %v6738 = vlaneseq
    %v6739 = vshrl.u32 %v6738, 7
    %v6740 = vsub.s32 0, %v6739
    %v6741 = vrot.slane %v6500, %v6740
    %v6742 = vlaneseq
    %v6743 = vshrl.u32 %v6742, 7
    %v6744 = vsub.s32 0, %v6743
    %v6745 = vrot.slane %v6483, %v6744
    %v6746 = vlaneseq
    %v6747 = vshrl.u32 %v6746, 7
    %v6748 = vsub.s32 0, %v6747
    %v6749 = vrot.slane %v6497, %v6748
    %v6750 = vlaneseq
    %v6751 = vshrl.u32 %v6750, 7
    %v6752 = vsub.s32 0, %v6751
    %v6753 = vrot.slane %v6499, %v6752
    %v6754 = vlaneseq
    %v6755 = vshrl.u32 %v6754, 7
    %v6756 = vsub.s32 0, %v6755
    %v6757 = vrot.slane %v6501, %v6756
    %v6774 = vmul.f32 %v6697, %v6509
    %v6775 = vmul.f32 %v6697, %v6513
    %v6776 = vmul.f32 %v6701, %v6521
    %v6777 = vmul.f32 %v6701, %v6525
    %v6778 = vmul.f32 %v6705, %v6533
    %v6779 = vmul.f32 %v6705, %v6537
    %v6780 = vmul.f32 %v6709, %v6545
    %v6781 = vmul.f32 %v6709, %v6549
    %v6782 = vmul.f32 %v6713, %v6557
    %v6783 = vmul.f32 %v6713, %v6561
    %v6784 = vmul.f32 %v6717, %v6569
    %v6785 = vmul.f32 %v6717, %v6573
    %v6786 = vmul.f32 %v6721, %v6581
    %v6787 = vmul.f32 %v6721, %v6585
    %v6788 = vmul.f32 %v6725, %v6593
    %v6789 = vmul.f32 %v6725, %v6597
    %v6790 = vmul.f32 %v6729, %v6605
    %v6791 = vmul.f32 %v6729, %v6609
    %v6792 = vmul.f32 %v6733, %v6617
    %v6793 = vmul.f32 %v6733, %v6621
    %v6794 = vmul.f32 %v6737, %v6629
    %v6795 = vmul.f32 %v6737, %v6633
    %v6796 = vmul.f32 %v6741, %v6641
    %v6797 = vmul.f32 %v6741, %v6645
    %v6798 = vmul.f32 %v6745, %v6653
    %v6799 = vmul.f32 %v6745, %v6657
    %v6800 = vmul.f32 %v6749, %v6665
    %v6801 = vmul.f32 %v6749, %v6669
    %v6802 = vmul.f32 %v6753, %v6677
    %v6803 = vmul.f32 %v6753, %v6681
    %v6804 = vmul.f32 %v6757, %v6689
    %v6805 = vmul.f32 %v6757, %v6693
    %v6806 = vmul.f32 %v6337, 0.0
    %v6807 = vmul.f32 %v6339, 0.0
    %v6808 = vmul.f32 %v6369, 0.0
    %v6809 = vmul.f32 %v6371, 0.0
    %v6810 = vadd.f32 %v6806, %v6774
    %v6811 = vadd.f32 %v6807, %v6775
    %v6812 = vadd.f32 %v6808, %v6790
    %v6813 = vadd.f32 %v6809, %v6791
    %s6815 = sor.u32 256, 18
    %6816 = vbcast.lane.b32.xlu0 %v6505, %s6815
    %v6817 = vpop.permute.xlu0 %6816
    %s6819 = sor.u32 256, 26
    %6820 = vbcast.lane.b32.xlu0 %v6505, %s6819
    %v6821 = vpop.permute.xlu0 %6820
    %s6823 = sor.u32 256, 18
    %6824 = vbcast.lane.b32.xlu0 %v6601, %s6823
    %v6825 = vpop.permute.xlu0 %6824
    %s6827 = sor.u32 256, 26
    %6828 = vbcast.lane.b32.xlu0 %v6601, %s6827
    %v6829 = vpop.permute.xlu0 %6828
    %v6830 = vmul.f32 %v6810, %v6817
    %v6831 = vmul.f32 %v6811, %v6821
    %v6832 = vmul.f32 %v6812, %v6825
    %v6833 = vmul.f32 %v6813, %v6829
    %v6834 = vsel %vm516, %v6830, 0.0
    %v6835 = vsel %vm516, %v6831, 0.0
    %v6836 = vadd.f32 %v6834, %v6835
    %v6837 = vrot.slane %v6836, 4
    %v6838 = vadd.f32 %v6836, %v6837
    %v6839 = vrot.slane %v6838, 2
    %v6840 = vadd.f32 %v6838, %v6839
    %v6841 = vrot.slane %v6840, 1
    %v6842 = vadd.f32 %v6840, %v6841
    %v6843 = vsel %vm516, %v6832, 0.0
    %v6844 = vsel %vm516, %v6833, 0.0
    %v6845 = vadd.f32 %v6843, %v6844
    %v6846 = vrot.slane %v6845, 4
    %v6847 = vadd.f32 %v6845, %v6846
    %v6848 = vrot.slane %v6847, 2
    %v6849 = vadd.f32 %v6847, %v6848
    %v6850 = vrot.slane %v6849, 1
    %v6851 = vadd.f32 %v6849, %v6850
    %v6852 = vmul.f32 %v6341, %v6810
    %v6853 = vmul.f32 %v6343, %v6811
    %v6854 = vmul.f32 %v6373, %v6812
    %v6855 = vmul.f32 %v6375, %v6813
    %v6856 = vadd.f32 %v6852, %v6776
    %v6857 = vadd.f32 %v6853, %v6777
    %v6858 = vadd.f32 %v6854, %v6792
    %v6859 = vadd.f32 %v6855, %v6793
    %s6861 = sor.u32 256, 18
    %6862 = vbcast.lane.b32.xlu0 %v6517, %s6861
    %v6863 = vpop.permute.xlu0 %6862
    %s6865 = sor.u32 256, 26
    %6866 = vbcast.lane.b32.xlu0 %v6517, %s6865
    %v6867 = vpop.permute.xlu0 %6866
    %s6869 = sor.u32 256, 18
    %6870 = vbcast.lane.b32.xlu0 %v6613, %s6869
    %v6871 = vpop.permute.xlu0 %6870
    %s6873 = sor.u32 256, 26
    %6874 = vbcast.lane.b32.xlu0 %v6613, %s6873
    %v6875 = vpop.permute.xlu0 %6874
    %v6876 = vmul.f32 %v6856, %v6863
    %v6877 = vmul.f32 %v6857, %v6867
    %v6878 = vmul.f32 %v6858, %v6871
    %v6879 = vmul.f32 %v6859, %v6875
    %v6880 = vsel %vm516, %v6876, 0.0
    %v6881 = vsel %vm516, %v6877, 0.0
    %v6882 = vadd.f32 %v6880, %v6881
    %v6883 = vrot.slane %v6882, 4
    %v6884 = vadd.f32 %v6882, %v6883
    %v6885 = vrot.slane %v6884, 2
    %v6886 = vadd.f32 %v6884, %v6885
    %v6887 = vrot.slane %v6886, 1
    %v6888 = vadd.f32 %v6886, %v6887
    %v6889 = vsel %vm516, %v6878, 0.0
    %v6890 = vsel %vm516, %v6879, 0.0
    %v6891 = vadd.f32 %v6889, %v6890
    %v6892 = vrot.slane %v6891, 4
    %v6893 = vadd.f32 %v6891, %v6892
    %v6894 = vrot.slane %v6893, 2
    %v6895 = vadd.f32 %v6893, %v6894
    %v6896 = vrot.slane %v6895, 1
    %v6897 = vadd.f32 %v6895, %v6896
    %v6898 = vmul.f32 %v6345, %v6856
    %v6899 = vmul.f32 %v6347, %v6857
    %v6900 = vmul.f32 %v6377, %v6858
    %v6901 = vmul.f32 %v6379, %v6859
    %v6902 = vadd.f32 %v6898, %v6778
    %v6903 = vadd.f32 %v6899, %v6779
    %v6904 = vadd.f32 %v6900, %v6794
    %v6905 = vadd.f32 %v6901, %v6795
    %s6907 = sor.u32 256, 18
    %6908 = vbcast.lane.b32.xlu0 %v6529, %s6907
    %v6909 = vpop.permute.xlu0 %6908
    %s6911 = sor.u32 256, 26
    %6912 = vbcast.lane.b32.xlu0 %v6529, %s6911
    %v6913 = vpop.permute.xlu0 %6912
    %s6915 = sor.u32 256, 18
    %6916 = vbcast.lane.b32.xlu0 %v6625, %s6915
    %v6917 = vpop.permute.xlu0 %6916
    %s6919 = sor.u32 256, 26
    %6920 = vbcast.lane.b32.xlu0 %v6625, %s6919
    %v6921 = vpop.permute.xlu0 %6920
    %v6922 = vmul.f32 %v6902, %v6909
    %v6923 = vmul.f32 %v6903, %v6913
    %v6924 = vmul.f32 %v6904, %v6917
    %v6925 = vmul.f32 %v6905, %v6921
    %v6926 = vsel %vm516, %v6922, 0.0
    %v6927 = vsel %vm516, %v6923, 0.0
    %v6928 = vadd.f32 %v6926, %v6927
    %v6929 = vrot.slane %v6928, 4
    %v6930 = vadd.f32 %v6928, %v6929
    %v6931 = vrot.slane %v6930, 2
    %v6932 = vadd.f32 %v6930, %v6931
    %v6933 = vrot.slane %v6932, 1
    %v6934 = vadd.f32 %v6932, %v6933
    %v6935 = vsel %vm516, %v6924, 0.0
    %v6936 = vsel %vm516, %v6925, 0.0
    %v6937 = vadd.f32 %v6935, %v6936
    %v6938 = vrot.slane %v6937, 4
    %v6939 = vadd.f32 %v6937, %v6938
    %v6940 = vrot.slane %v6939, 2
    %v6941 = vadd.f32 %v6939, %v6940
    %v6942 = vrot.slane %v6941, 1
    %v6943 = vadd.f32 %v6941, %v6942
    %v6944 = vmul.f32 %v6349, %v6902
    %v6945 = vmul.f32 %v6351, %v6903
    %v6946 = vmul.f32 %v6381, %v6904
    %v6947 = vmul.f32 %v6383, %v6905
    %v6948 = vadd.f32 %v6944, %v6780
    %v6949 = vadd.f32 %v6945, %v6781
    %v6950 = vadd.f32 %v6946, %v6796
    %v6951 = vadd.f32 %v6947, %v6797
    %s6953 = sor.u32 256, 18
    %6954 = vbcast.lane.b32.xlu0 %v6541, %s6953
    %v6955 = vpop.permute.xlu0 %6954
    %s6957 = sor.u32 256, 26
    %6958 = vbcast.lane.b32.xlu0 %v6541, %s6957
    %v6959 = vpop.permute.xlu0 %6958
    %s6961 = sor.u32 256, 18
    %6962 = vbcast.lane.b32.xlu0 %v6637, %s6961
    %v6963 = vpop.permute.xlu0 %6962
    %s6965 = sor.u32 256, 26
    %6966 = vbcast.lane.b32.xlu0 %v6637, %s6965
    %v6967 = vpop.permute.xlu0 %6966
    %v6968 = vmul.f32 %v6948, %v6955
    %v6969 = vmul.f32 %v6949, %v6959
    %v6970 = vmul.f32 %v6950, %v6963
    %v6971 = vmul.f32 %v6951, %v6967
    %v6972 = vsel %vm516, %v6968, 0.0
    %v6973 = vsel %vm516, %v6969, 0.0
    %v6974 = vadd.f32 %v6972, %v6973
    %v6975 = vrot.slane %v6974, 4
    %v6976 = vadd.f32 %v6974, %v6975
    %v6977 = vrot.slane %v6976, 2
    %v6978 = vadd.f32 %v6976, %v6977
    %v6979 = vrot.slane %v6978, 1
    %v6980 = vadd.f32 %v6978, %v6979
    %v6981 = vsel %vm516, %v6970, 0.0
    %v6982 = vsel %vm516, %v6971, 0.0
    %v6983 = vadd.f32 %v6981, %v6982
    %v6984 = vrot.slane %v6983, 4
    %v6985 = vadd.f32 %v6983, %v6984
    %v6986 = vrot.slane %v6985, 2
    %v6987 = vadd.f32 %v6985, %v6986
    %v6988 = vrot.slane %v6987, 1
    %v6989 = vadd.f32 %v6987, %v6988
    %v6990 = vmul.f32 %v6353, %v6948
    %v6991 = vmul.f32 %v6355, %v6949
    %v6992 = vmul.f32 %v6385, %v6950
    %v6993 = vmul.f32 %v6387, %v6951
    %v6994 = vadd.f32 %v6990, %v6782
    %v6995 = vadd.f32 %v6991, %v6783
    %v6996 = vadd.f32 %v6992, %v6798
    %v6997 = vadd.f32 %v6993, %v6799
    %s6999 = sor.u32 256, 18
    %7000 = vbcast.lane.b32.xlu0 %v6553, %s6999
    %v7001 = vpop.permute.xlu0 %7000
    %s7003 = sor.u32 256, 26
    %7004 = vbcast.lane.b32.xlu0 %v6553, %s7003
    %v7005 = vpop.permute.xlu0 %7004
    %s7007 = sor.u32 256, 18
    %7008 = vbcast.lane.b32.xlu0 %v6649, %s7007
    %v7009 = vpop.permute.xlu0 %7008
    %s7011 = sor.u32 256, 26
    %7012 = vbcast.lane.b32.xlu0 %v6649, %s7011
    %v7013 = vpop.permute.xlu0 %7012
    %v7014 = vmul.f32 %v6994, %v7001
    %v7015 = vmul.f32 %v6995, %v7005
    %v7016 = vmul.f32 %v6996, %v7009
    %v7017 = vmul.f32 %v6997, %v7013
    %v7018 = vsel %vm516, %v7014, 0.0
    %v7019 = vsel %vm516, %v7015, 0.0
    %v7020 = vadd.f32 %v7018, %v7019
    %v7021 = vrot.slane %v7020, 4
    %v7022 = vadd.f32 %v7020, %v7021
    %v7023 = vrot.slane %v7022, 2
    %v7024 = vadd.f32 %v7022, %v7023
    %v7025 = vrot.slane %v7024, 1
    %v7026 = vadd.f32 %v7024, %v7025
    %v7027 = vsel %vm516, %v7016, 0.0
    %v7028 = vsel %vm516, %v7017, 0.0
    %v7029 = vadd.f32 %v7027, %v7028
    %v7030 = vrot.slane %v7029, 4
    %v7031 = vadd.f32 %v7029, %v7030
    %v7032 = vrot.slane %v7031, 2
    %v7033 = vadd.f32 %v7031, %v7032
    %v7034 = vrot.slane %v7033, 1
    %v7035 = vadd.f32 %v7033, %v7034
    %v7036 = vmul.f32 %v6357, %v6994
    %v7037 = vmul.f32 %v6359, %v6995
    %v7038 = vmul.f32 %v6389, %v6996
    %v7039 = vmul.f32 %v6391, %v6997
    %v7040 = vadd.f32 %v7036, %v6784
    %v7041 = vadd.f32 %v7037, %v6785
    %v7042 = vadd.f32 %v7038, %v6800
    %v7043 = vadd.f32 %v7039, %v6801
    %s7045 = sor.u32 256, 18
    %7046 = vbcast.lane.b32.xlu0 %v6565, %s7045
    %v7047 = vpop.permute.xlu0 %7046
    %s7049 = sor.u32 256, 26
    %7050 = vbcast.lane.b32.xlu0 %v6565, %s7049
    %v7051 = vpop.permute.xlu0 %7050
    %s7053 = sor.u32 256, 18
    %7054 = vbcast.lane.b32.xlu0 %v6661, %s7053
    %v7055 = vpop.permute.xlu0 %7054
    %s7057 = sor.u32 256, 26
    %7058 = vbcast.lane.b32.xlu0 %v6661, %s7057
    %v7059 = vpop.permute.xlu0 %7058
    %v7060 = vmul.f32 %v7040, %v7047
    %v7061 = vmul.f32 %v7041, %v7051
    %v7062 = vmul.f32 %v7042, %v7055
    %v7063 = vmul.f32 %v7043, %v7059
    %v7064 = vsel %vm516, %v7060, 0.0
    %v7065 = vsel %vm516, %v7061, 0.0
    %v7066 = vadd.f32 %v7064, %v7065
    %v7067 = vrot.slane %v7066, 4
    %v7068 = vadd.f32 %v7066, %v7067
    %v7069 = vrot.slane %v7068, 2
    %v7070 = vadd.f32 %v7068, %v7069
    %v7071 = vrot.slane %v7070, 1
    %v7072 = vadd.f32 %v7070, %v7071
    %v7073 = vsel %vm516, %v7062, 0.0
    %v7074 = vsel %vm516, %v7063, 0.0
    %v7075 = vadd.f32 %v7073, %v7074
    %v7076 = vrot.slane %v7075, 4
    %v7077 = vadd.f32 %v7075, %v7076
    %v7078 = vrot.slane %v7077, 2
    %v7079 = vadd.f32 %v7077, %v7078
    %v7080 = vrot.slane %v7079, 1
    %v7081 = vadd.f32 %v7079, %v7080
    %v7082 = vmul.f32 %v6361, %v7040
    %v7083 = vmul.f32 %v6363, %v7041
    %v7084 = vmul.f32 %v6393, %v7042
    %v7085 = vmul.f32 %v6395, %v7043
    %v7086 = vadd.f32 %v7082, %v6786
    %v7087 = vadd.f32 %v7083, %v6787
    %v7088 = vadd.f32 %v7084, %v6802
    %v7089 = vadd.f32 %v7085, %v6803
    %s7091 = sor.u32 256, 18
    %7092 = vbcast.lane.b32.xlu0 %v6577, %s7091
    %v7093 = vpop.permute.xlu0 %7092
    %s7095 = sor.u32 256, 26
    %7096 = vbcast.lane.b32.xlu0 %v6577, %s7095
    %v7097 = vpop.permute.xlu0 %7096
    %s7099 = sor.u32 256, 18
    %7100 = vbcast.lane.b32.xlu0 %v6673, %s7099
    %v7101 = vpop.permute.xlu0 %7100
    %s7103 = sor.u32 256, 26
    %7104 = vbcast.lane.b32.xlu0 %v6673, %s7103
    %v7105 = vpop.permute.xlu0 %7104
    %v7106 = vmul.f32 %v7086, %v7093
    %v7107 = vmul.f32 %v7087, %v7097
    %v7108 = vmul.f32 %v7088, %v7101
    %v7109 = vmul.f32 %v7089, %v7105
    %v7110 = vsel %vm516, %v7106, 0.0
    %v7111 = vsel %vm516, %v7107, 0.0
    %v7112 = vadd.f32 %v7110, %v7111
    %v7113 = vrot.slane %v7112, 4
    %v7114 = vadd.f32 %v7112, %v7113
    %v7115 = vrot.slane %v7114, 2
    %v7116 = vadd.f32 %v7114, %v7115
    %v7117 = vrot.slane %v7116, 1
    %v7118 = vadd.f32 %v7116, %v7117
    %v7119 = vsel %vm516, %v7108, 0.0
    %v7120 = vsel %vm516, %v7109, 0.0
    %v7121 = vadd.f32 %v7119, %v7120
    %v7122 = vrot.slane %v7121, 4
    %v7123 = vadd.f32 %v7121, %v7122
    %v7124 = vrot.slane %v7123, 2
    %v7125 = vadd.f32 %v7123, %v7124
    %v7126 = vrot.slane %v7125, 1
    %v7127 = vadd.f32 %v7125, %v7126
    %v7128 = vmul.f32 %v6365, %v7086
    %v7129 = vmul.f32 %v6367, %v7087
    %v7130 = vmul.f32 %v6397, %v7088
    %v7131 = vmul.f32 %v6399, %v7089
    %v7132 = vadd.f32 %v7128, %v6788
    %v7133 = vadd.f32 %v7129, %v6789
    %v7134 = vadd.f32 %v7130, %v6804
    %v7135 = vadd.f32 %v7131, %v6805
    %s7137 = sor.u32 256, 18
    %7138 = vbcast.lane.b32.xlu0 %v6589, %s7137
    %v7139 = vpop.permute.xlu0 %7138
    %s7141 = sor.u32 256, 26
    %7142 = vbcast.lane.b32.xlu0 %v6589, %s7141
    %v7143 = vpop.permute.xlu0 %7142
    %s7145 = sor.u32 256, 18
    %7146 = vbcast.lane.b32.xlu0 %v6685, %s7145
    %v7147 = vpop.permute.xlu0 %7146
    %s7149 = sor.u32 256, 26
    %7150 = vbcast.lane.b32.xlu0 %v6685, %s7149
    %v7151 = vpop.permute.xlu0 %7150
    %v7152 = vmul.f32 %v7132, %v7139
    %v7153 = vmul.f32 %v7133, %v7143
    %v7154 = vmul.f32 %v7134, %v7147
    %v7155 = vmul.f32 %v7135, %v7151
    %v7156 = vsel %vm516, %v7152, 0.0
    %v7157 = vsel %vm516, %v7153, 0.0
    %v7158 = vadd.f32 %v7156, %v7157
    %v7159 = vrot.slane %v7158, 4
    %v7160 = vadd.f32 %v7158, %v7159
    %v7161 = vrot.slane %v7160, 2
    %v7162 = vadd.f32 %v7160, %v7161
    %v7163 = vrot.slane %v7162, 1
    %v7164 = vadd.f32 %v7162, %v7163
    %v7165 = vsel %vm516, %v7154, 0.0
    %v7166 = vsel %vm516, %v7155, 0.0
    %v7167 = vadd.f32 %v7165, %v7166
    %v7168 = vrot.slane %v7167, 4
    %v7169 = vadd.f32 %v7167, %v7168
    %v7170 = vrot.slane %v7169, 2
    %v7171 = vadd.f32 %v7169, %v7170
    %v7172 = vrot.slane %v7171, 1
    %v7173 = vadd.f32 %v7171, %v7172
    %v7174 = vsel %vm1773, %v6842, %v6888
    %v7175 = vsel %vm1773, %v6851, %v6897
    %v7176 = vsel %vm611, %v7174, %v6934
    %v7177 = vsel %vm611, %v7175, %v6943
    %v7178 = vsel %vm418, %v7176, %v6980
    %v7179 = vsel %vm418, %v7177, %v6989
    %v7180 = vsel %vm1780, %v7178, %v7026
    %v7181 = vsel %vm1780, %v7179, %v7035
    %v7182 = vsel %vm491, %v7180, %v7072
    %v7183 = vsel %vm491, %v7181, %v7081
    %v7184 = vsel %vm468, %v7182, %v7118
    %v7185 = vsel %vm468, %v7183, %v7127
    %v7186 = vsel %vm445, %v7184, %v7164
    %v7187 = vsel %vm445, %v7185, %v7173
    %v7188 = vlaneseq
    %v7189 = vshrl.u32 %v7188, 7
    %v7190 = vsub.s32 4, %v7189
    %v7191 = vrot.slane %v5663, %v7190
    %v7192 = vmul.f32 %v7191, %v5918
    %v7193 = vmul.f32 %v7191, %v5919
    %v7194 = vadd.f32 %v7186, %v7192
    %v7195 = vadd.f32 %v7187, %v7193
    %v7196 = vsub.f32 0.0, %v5812
    %v7197 = vsub.f32 0.0, %v5817
    %v7198 = vmul.f32 %v7196, 1.442695
    %v7199 = vpow.pop %v7198
    %v7200 = vmul.f32 %v7197, 1.442695
    %v7201 = vpow.pop %v7200
    %v7202 = vadd.f32 %v7199, 1.0
    %v7203 = vadd.f32 %v7201, 1.0
    %v7204 = vrcp.pop %v7202
    %v7205 = vmul.f32 1.0, %v7204
    %v7206 = vrcp.pop %v7203
    %v7207 = vmul.f32 1.0, %v7206
    %v7208 = vmul.f32 %v5812, %v7205
    %v7209 = vmul.f32 %v5817, %v7207
    %7212 = vrot.lane.b32.xlu0 %v7208, 64
    %v7213 = vpop.permute.xlu0 %7212
    %7214 = vrot.lane.b32.xlu0 %v7209, 64
    %v7215 = vpop.permute.xlu0 %7214
    %v7218 = vmul.f32 %v7194, %v7213
    %v7219 = vmul.f32 %v7195, %v7215
    %v7221 = vsel %vm516, %v7218, 0
    %v7224 = vsel %vm516, %v7219, 0
    %7226 = vmatprep.subr.mxu0 0.0
    %7227 = vmatpush1.msra.mxu0 0.0
    %7228 = vmatprep.subr.mxu0 0.0
    %7229 = vmatpush1.msra.mxu0 0.0
    %7230 = vmatprep.subr.mxu0 0.0
    %7231 = vmatpush1.msra.mxu0 0.0
    %7232 = vmatprep.subr.mxu0 0.0
    %7233 = vmatpush1.msra.mxu0 0.0
    %7234 = vmatprep.subr.mxu0 0.0
    %7235 = vmatpush1.msra.mxu0 0.0
    %7236 = vmatprep.subr.mxu0 0.0
    %7237 = vmatpush1.msra.mxu0 0.0
    %7238 = vmatprep.subr.mxu0 0.0
    %7239 = vmatpush1.msra.mxu0 0.0
    %7240 = vmatprep.subr.mxu0 0.0
    %7241 = vmatpush1.msra.mxu0 0.0
    %7242 = vmatprep.subr.mxu0 0.0
    %7243 = vmatpush1.msra.mxu0 %v5690
    %7244 = vmatprep.subr.mxu0 0.0
    %7245 = vmatpush1.msra.mxu0 %v5689
    %7246 = vmatprep.subr.mxu0 0.0
    %7247 = vmatpush1.msra.mxu0 %v5688
    %7248 = vmatprep.subr.mxu0 0.0
    %7249 = vmatpush1.msra.mxu0 %v5687
    %7250 = vmatprep.subr.mxu0 0.0
    %7251 = vmatpush1.msra.mxu0 %v5686
    %7252 = vmatprep.subr.mxu0 0.0
    %7253 = vmatpush1.msra.mxu0 %v5685
    %7254 = vmatprep.subr.mxu0 0.0
    %7255 = vmatpush1.msra.mxu0 %v5684
    %7256 = vmatprep.subr.mxu0 0.0
    %7257 = vmatpush1.msra.mxu0 %v5683
    %7258 = vmatprep.subr.mxu0 0.0
    %7259 = vmatpush2.msra.mxu0 0.0
    %7260 = vmatprep.subr.mxu0 0.0
    %7261 = vmatpush2.msra.mxu0 0.0
    %7262 = vmatprep.subr.mxu0 0.0
    %7263 = vmatpush2.msra.mxu0 0.0
    %7264 = vmatprep.subr.mxu0 0.0
    %7265 = vmatpush2.msra.mxu0 0.0
    %7266 = vmatprep.subr.mxu0 0.0
    %7267 = vmatpush2.msra.mxu0 0.0
    %7268 = vmatprep.subr.mxu0 0.0
    %7269 = vmatpush2.msra.mxu0 0.0
    %7270 = vmatprep.subr.mxu0 0.0
    %7271 = vmatpush2.msra.mxu0 0.0
    %7272 = vmatprep.subr.mxu0 0.0
    %7273 = vmatpush2.msra.mxu0 0.0
    %7274 = vmatprep.subr.mxu0 0.0
    %7275 = vmatpush2.msra.mxu0 0.0
    %7276 = vmatprep.subr.mxu0 0.0
    %7277 = vmatpush2.msra.mxu0 0.0
    %7278 = vmatprep.subr.mxu0 0.0
    %7279 = vmatpush2.msra.mxu0 0.0
    %7280 = vmatprep.subr.mxu0 0.0
    %7281 = vmatpush2.msra.mxu0 0.0
    %7282 = vmatprep.subr.mxu0 0.0
    %7283 = vmatpush2.msra.mxu0 0.0
    %7284 = vmatprep.subr.mxu0 0.0
    %7285 = vmatpush2.msra.mxu0 0.0
    %7286 = vmatprep.subr.mxu0 0.0
    %7287 = vmatpush2.msra.mxu0 0.0
    %7288 = vmatprep.subr.mxu0 0.0
    %7289 = vmatpush2.msra.mxu0 0.0
    %7290 = vmatprep.mubr.f32.mxu0 0.0
    %7291 = vmatmul.mubr.f32.gmra.mxu0 %v7221
    %v7292 = vpop.f32.mrf.mxu0
    %v7293 = vadd.f32 0.0, %v7292
    %v7294 = vpop.f32.mrf.mxu0
    %7295 = vmatprep.mubr.f32.mxu0 0.0
    %7296 = vmatmul.mubr.f32.gmra.mxu0 %v7224
    %v7297 = vpop.f32.mrf.mxu0
    %v7298 = vadd.f32 0.0, %v7297
    %v7299 = vpop.f32.mrf.mxu0
    %7300 = vdwg.mxu0
    %7303 = vrot.lane.b32.xlu0 %v5699, 32
    %v7304 = vpop.permute.xlu0 %7303
    %7305 = vrot.lane.b32.xlu0 %v5700, 32
    %v7306 = vpop.permute.xlu0 %7305
    %v7309 = vsel %vm78, %v7293, %v7304
    %v7310 = vsel %vm78, %v7298, %v7306
    %7311 = vmatprep.subr.mxu0 0.0
    %7312 = vmatpush1.msra.mxu0 0.0
    %7313 = vmatprep.subr.mxu0 0.0
    %7314 = vmatpush1.msra.mxu0 0.0
    %7315 = vmatprep.subr.mxu0 0.0
    %7316 = vmatpush1.msra.mxu0 0.0
    %7317 = vmatprep.subr.mxu0 0.0
    %7318 = vmatpush1.msra.mxu0 0.0
    %7319 = vmatprep.subr.mxu0 0.0
    %7320 = vmatpush1.msra.mxu0 0.0
    %7321 = vmatprep.subr.mxu0 0.0
    %7322 = vmatpush1.msra.mxu0 0.0
    %7323 = vmatprep.subr.mxu0 0.0
    %7324 = vmatpush1.msra.mxu0 0.0
    %7325 = vmatprep.subr.mxu0 0.0
    %7326 = vmatpush1.msra.mxu0 0.0
    %7327 = vmatprep.subr.mxu0 0.0
    %7328 = vmatpush1.msra.mxu0 0.0
    %7329 = vmatprep.subr.mxu0 0.0
    %7330 = vmatpush1.msra.mxu0 0.0
    %7331 = vmatprep.subr.mxu0 0.0
    %7332 = vmatpush1.msra.mxu0 0.0
    %7333 = vmatprep.subr.mxu0 0.0
    %7334 = vmatpush1.msra.mxu0 0.0
    %7335 = vmatprep.subr.mxu0 0.0
    %7336 = vmatpush1.msra.mxu0 0.0
    %7337 = vmatprep.subr.mxu0 0.0
    %7338 = vmatpush1.msra.mxu0 0.0
    %7339 = vmatprep.subr.mxu0 0.0
    %7340 = vmatpush1.msra.mxu0 0.0
    %7341 = vmatprep.subr.mxu0 0.0
    %7342 = vmatpush1.msra.mxu0 %v7309
    %7343 = vmatprep.subr.mxu0 0.0
    %7344 = vmatpush2.msra.mxu0 0.0
    %7345 = vmatprep.subr.mxu0 0.0
    %7346 = vmatpush2.msra.mxu0 0.0
    %7347 = vmatprep.subr.mxu0 0.0
    %7348 = vmatpush2.msra.mxu0 0.0
    %7349 = vmatprep.subr.mxu0 0.0
    %7350 = vmatpush2.msra.mxu0 0.0
    %7351 = vmatprep.subr.mxu0 0.0
    %7352 = vmatpush2.msra.mxu0 0.0
    %7353 = vmatprep.subr.mxu0 0.0
    %7354 = vmatpush2.msra.mxu0 0.0
    %7355 = vmatprep.subr.mxu0 0.0
    %7356 = vmatpush2.msra.mxu0 0.0
    %7357 = vmatprep.subr.mxu0 0.0
    %7358 = vmatpush2.msra.mxu0 0.0
    %7359 = vmatprep.subr.mxu0 0.0
    %7360 = vmatpush2.msra.mxu0 0.0
    %7361 = vmatprep.subr.mxu0 0.0
    %7362 = vmatpush2.msra.mxu0 0.0
    %7363 = vmatprep.subr.mxu0 0.0
    %7364 = vmatpush2.msra.mxu0 0.0
    %7365 = vmatprep.subr.mxu0 0.0
    %7366 = vmatpush2.msra.mxu0 0.0
    %7367 = vmatprep.subr.mxu0 0.0
    %7368 = vmatpush2.msra.mxu0 0.0
    %7369 = vmatprep.subr.mxu0 0.0
    %7370 = vmatpush2.msra.mxu0 0.0
    %7371 = vmatprep.subr.mxu0 0.0
    %7372 = vmatpush2.msra.mxu0 0.0
    %7373 = vmatprep.subr.mxu0 0.0
    %7374 = vmatpush2.msra.mxu0 0.0
    %7375 = vmatprep.mubr.f32.mxu0 0.0
    %7376 = vmatmul.mubr.f32.gmra.mxu0 %v122
    %v7377 = vpop.f32.mrf.mxu0
    %v7378 = vadd.f32 0.0, %v7377
    %v7379 = vpop.f32.mrf.mxu0
    %7380 = vdwg.mxu0
    %7381 = vmatprep.subr.mxu0 0.0
    %7382 = vmatpush1.msra.mxu0 0.0
    %7383 = vmatprep.subr.mxu0 0.0
    %7384 = vmatpush1.msra.mxu0 0.0
    %7385 = vmatprep.subr.mxu0 0.0
    %7386 = vmatpush1.msra.mxu0 0.0
    %7387 = vmatprep.subr.mxu0 0.0
    %7388 = vmatpush1.msra.mxu0 0.0
    %7389 = vmatprep.subr.mxu0 0.0
    %7390 = vmatpush1.msra.mxu0 0.0
    %7391 = vmatprep.subr.mxu0 0.0
    %7392 = vmatpush1.msra.mxu0 0.0
    %7393 = vmatprep.subr.mxu0 0.0
    %7394 = vmatpush1.msra.mxu0 0.0
    %7395 = vmatprep.subr.mxu0 0.0
    %7396 = vmatpush1.msra.mxu0 0.0
    %7397 = vmatprep.subr.mxu0 0.0
    %7398 = vmatpush1.msra.mxu0 0.0
    %7399 = vmatprep.subr.mxu0 0.0
    %7400 = vmatpush1.msra.mxu0 0.0
    %7401 = vmatprep.subr.mxu0 0.0
    %7402 = vmatpush1.msra.mxu0 0.0
    %7403 = vmatprep.subr.mxu0 0.0
    %7404 = vmatpush1.msra.mxu0 0.0
    %7405 = vmatprep.subr.mxu0 0.0
    %7406 = vmatpush1.msra.mxu0 0.0
    %7407 = vmatprep.subr.mxu0 0.0
    %7408 = vmatpush1.msra.mxu0 0.0
    %7409 = vmatprep.subr.mxu0 0.0
    %7410 = vmatpush1.msra.mxu0 0.0
    %7411 = vmatprep.subr.mxu0 0.0
    %7412 = vmatpush1.msra.mxu0 %v7310
    %7413 = vmatprep.subr.mxu0 0.0
    %7414 = vmatpush2.msra.mxu0 0.0
    %7415 = vmatprep.subr.mxu0 0.0
    %7416 = vmatpush2.msra.mxu0 0.0
    %7417 = vmatprep.subr.mxu0 0.0
    %7418 = vmatpush2.msra.mxu0 0.0
    %7419 = vmatprep.subr.mxu0 0.0
    %7420 = vmatpush2.msra.mxu0 0.0
    %7421 = vmatprep.subr.mxu0 0.0
    %7422 = vmatpush2.msra.mxu0 0.0
    %7423 = vmatprep.subr.mxu0 0.0
    %7424 = vmatpush2.msra.mxu0 0.0
    %7425 = vmatprep.subr.mxu0 0.0
    %7426 = vmatpush2.msra.mxu0 0.0
    %7427 = vmatprep.subr.mxu0 0.0
    %7428 = vmatpush2.msra.mxu0 0.0
    %7429 = vmatprep.subr.mxu0 0.0
    %7430 = vmatpush2.msra.mxu0 0.0
    %7431 = vmatprep.subr.mxu0 0.0
    %7432 = vmatpush2.msra.mxu0 0.0
    %7433 = vmatprep.subr.mxu0 0.0
    %7434 = vmatpush2.msra.mxu0 0.0
    %7435 = vmatprep.subr.mxu0 0.0
    %7436 = vmatpush2.msra.mxu0 0.0
    %7437 = vmatprep.subr.mxu0 0.0
    %7438 = vmatpush2.msra.mxu0 0.0
    %7439 = vmatprep.subr.mxu0 0.0
    %7440 = vmatpush2.msra.mxu0 0.0
    %7441 = vmatprep.subr.mxu0 0.0
    %7442 = vmatpush2.msra.mxu0 0.0
    %7443 = vmatprep.subr.mxu0 0.0
    %7444 = vmatpush2.msra.mxu0 0.0
    %7445 = vmatprep.mubr.f32.mxu0 0.0
    %7446 = vmatmul.mubr.f32.gmra.mxu0 %v195
    %v7447 = vpop.f32.mrf.mxu0
    %v7448 = vadd.f32 0.0, %v7447
    %v7449 = vpop.f32.mrf.mxu0
    %7450 = vdwg.mxu0
    %s7451 = scalar_lea.vmem %s9, 64
    %v7452 = vld [vmem:[%s7451] sm:$0xff]
    %v7453 = vld [vmem:[%s7451 + $0x8] sm:$0xff]
    %v7454 = vld [vmem:[%s7451 + $0x10] sm:$0xff]
    %v7455 = vld [vmem:[%s7451 + $0x18] sm:$0xff]
    %s7456 = scalar_lea.vmem %s9, 96
    %v7457 = vld [vmem:[%s7456] sm:$0xff]
    %v7458 = vld [vmem:[%s7456 + $0x8] sm:$0xff]
    %v7459 = vld [vmem:[%s7456 + $0x10] sm:$0xff]
    %v7460 = vld [vmem:[%s7456 + $0x18] sm:$0xff]
    %v7462 = vsel %vm78, %v7378, 0
    %v7465 = vsel %vm78, %v7448, 0
    %7467 = vmatprep.subr.mxu0 0.0
    %7468 = vmatpush1.msra.mxu0 0.0
    %7469 = vmatprep.subr.mxu0 0.0
    %7470 = vmatpush1.msra.mxu0 0.0
    %7471 = vmatprep.subr.mxu0 0.0
    %7472 = vmatpush1.msra.mxu0 0.0
    %7473 = vmatprep.subr.mxu0 0.0
    %7474 = vmatpush1.msra.mxu0 0.0
    %7475 = vmatprep.subr.mxu0 0.0
    %7476 = vmatpush1.msra.mxu0 0.0
    %7477 = vmatprep.subr.mxu0 0.0
    %7478 = vmatpush1.msra.mxu0 0.0
    %7479 = vmatprep.subr.mxu0 0.0
    %7480 = vmatpush1.msra.mxu0 0.0
    %7481 = vmatprep.subr.mxu0 0.0
    %7482 = vmatpush1.msra.mxu0 0.0
    %7483 = vmatprep.subr.mxu0 0.0
    %7484 = vmatpush1.msra.mxu0 0.0
    %7485 = vmatprep.subr.mxu0 0.0
    %7486 = vmatpush1.msra.mxu0 0.0
    %7487 = vmatprep.subr.mxu0 0.0
    %7488 = vmatpush1.msra.mxu0 0.0
    %7489 = vmatprep.subr.mxu0 0.0
    %7490 = vmatpush1.msra.mxu0 0.0
    %7491 = vmatprep.subr.mxu0 0.0
    %7492 = vmatpush1.msra.mxu0 %v7460
    %7493 = vmatprep.subr.mxu0 0.0
    %7494 = vmatpush1.msra.mxu0 %v7459
    %7495 = vmatprep.subr.mxu0 0.0
    %7496 = vmatpush1.msra.mxu0 %v7458
    %7497 = vmatprep.subr.mxu0 0.0
    %7498 = vmatpush1.msra.mxu0 %v7457
    %7499 = vmatprep.subr.mxu0 0.0
    %7500 = vmatpush2.msra.mxu0 0.0
    %7501 = vmatprep.subr.mxu0 0.0
    %7502 = vmatpush2.msra.mxu0 0.0
    %7503 = vmatprep.subr.mxu0 0.0
    %7504 = vmatpush2.msra.mxu0 0.0
    %7505 = vmatprep.subr.mxu0 0.0
    %7506 = vmatpush2.msra.mxu0 0.0
    %7507 = vmatprep.subr.mxu0 0.0
    %7508 = vmatpush2.msra.mxu0 0.0
    %7509 = vmatprep.subr.mxu0 0.0
    %7510 = vmatpush2.msra.mxu0 0.0
    %7511 = vmatprep.subr.mxu0 0.0
    %7512 = vmatpush2.msra.mxu0 0.0
    %7513 = vmatprep.subr.mxu0 0.0
    %7514 = vmatpush2.msra.mxu0 0.0
    %7515 = vmatprep.subr.mxu0 0.0
    %7516 = vmatpush2.msra.mxu0 0.0
    %7517 = vmatprep.subr.mxu0 0.0
    %7518 = vmatpush2.msra.mxu0 0.0
    %7519 = vmatprep.subr.mxu0 0.0
    %7520 = vmatpush2.msra.mxu0 0.0
    %7521 = vmatprep.subr.mxu0 0.0
    %7522 = vmatpush2.msra.mxu0 0.0
    %7523 = vmatprep.subr.mxu0 0.0
    %7524 = vmatpush2.msra.mxu0 0.0
    %7525 = vmatprep.subr.mxu0 0.0
    %7526 = vmatpush2.msra.mxu0 0.0
    %7527 = vmatprep.subr.mxu0 0.0
    %7528 = vmatpush2.msra.mxu0 0.0
    %7529 = vmatprep.subr.mxu0 0.0
    %7530 = vmatpush2.msra.mxu0 0.0
    %7531 = vmatprep.mubr.f32.mxu0 0.0
    %7532 = vmatmul.mubr.f32.gmra.mxu0 %v7462
    %v7533 = vpop.f32.mrf.mxu0
    %v7534 = vadd.f32 0.0, %v7533
    %v7535 = vpop.f32.mrf.mxu0
    %7536 = vmatprep.mubr.f32.mxu0 0.0
    %7537 = vmatmul.mubr.f32.gmra.mxu0 %v7465
    %v7538 = vpop.f32.mrf.mxu0
    %v7539 = vadd.f32 0.0, %v7538
    %v7540 = vpop.f32.mrf.mxu0
    %7541 = vdwg.mxu0
    %v7543 = vsel %vm78, %v5654, 0
    %v7546 = vsel %vm78, %v5659, 0
    %7548 = vmatprep.subr.mxu0 0.0
    %7549 = vmatpush1.msra.mxu0 0.0
    %7550 = vmatprep.subr.mxu0 0.0
    %7551 = vmatpush1.msra.mxu0 0.0
    %7552 = vmatprep.subr.mxu0 0.0
    %7553 = vmatpush1.msra.mxu0 0.0
    %7554 = vmatprep.subr.mxu0 0.0
    %7555 = vmatpush1.msra.mxu0 0.0
    %7556 = vmatprep.subr.mxu0 0.0
    %7557 = vmatpush1.msra.mxu0 0.0
    %7558 = vmatprep.subr.mxu0 0.0
    %7559 = vmatpush1.msra.mxu0 0.0
    %7560 = vmatprep.subr.mxu0 0.0
    %7561 = vmatpush1.msra.mxu0 0.0
    %7562 = vmatprep.subr.mxu0 0.0
    %7563 = vmatpush1.msra.mxu0 0.0
    %7564 = vmatprep.subr.mxu0 0.0
    %7565 = vmatpush1.msra.mxu0 0.0
    %7566 = vmatprep.subr.mxu0 0.0
    %7567 = vmatpush1.msra.mxu0 0.0
    %7568 = vmatprep.subr.mxu0 0.0
    %7569 = vmatpush1.msra.mxu0 0.0
    %7570 = vmatprep.subr.mxu0 0.0
    %7571 = vmatpush1.msra.mxu0 0.0
    %7572 = vmatprep.subr.mxu0 0.0
    %7573 = vmatpush1.msra.mxu0 %v7455
    %7574 = vmatprep.subr.mxu0 0.0
    %7575 = vmatpush1.msra.mxu0 %v7454
    %7576 = vmatprep.subr.mxu0 0.0
    %7577 = vmatpush1.msra.mxu0 %v7453
    %7578 = vmatprep.subr.mxu0 0.0
    %7579 = vmatpush1.msra.mxu0 %v7452
    %7580 = vmatprep.subr.mxu0 0.0
    %7581 = vmatpush2.msra.mxu0 0.0
    %7582 = vmatprep.subr.mxu0 0.0
    %7583 = vmatpush2.msra.mxu0 0.0
    %7584 = vmatprep.subr.mxu0 0.0
    %7585 = vmatpush2.msra.mxu0 0.0
    %7586 = vmatprep.subr.mxu0 0.0
    %7587 = vmatpush2.msra.mxu0 0.0
    %7588 = vmatprep.subr.mxu0 0.0
    %7589 = vmatpush2.msra.mxu0 0.0
    %7590 = vmatprep.subr.mxu0 0.0
    %7591 = vmatpush2.msra.mxu0 0.0
    %7592 = vmatprep.subr.mxu0 0.0
    %7593 = vmatpush2.msra.mxu0 0.0
    %7594 = vmatprep.subr.mxu0 0.0
    %7595 = vmatpush2.msra.mxu0 0.0
    %7596 = vmatprep.subr.mxu0 0.0
    %7597 = vmatpush2.msra.mxu0 0.0
    %7598 = vmatprep.subr.mxu0 0.0
    %7599 = vmatpush2.msra.mxu0 0.0
    %7600 = vmatprep.subr.mxu0 0.0
    %7601 = vmatpush2.msra.mxu0 0.0
    %7602 = vmatprep.subr.mxu0 0.0
    %7603 = vmatpush2.msra.mxu0 0.0
    %7604 = vmatprep.subr.mxu0 0.0
    %7605 = vmatpush2.msra.mxu0 0.0
    %7606 = vmatprep.subr.mxu0 0.0
    %7607 = vmatpush2.msra.mxu0 0.0
    %7608 = vmatprep.subr.mxu0 0.0
    %7609 = vmatpush2.msra.mxu0 0.0
    %7610 = vmatprep.subr.mxu0 0.0
    %7611 = vmatpush2.msra.mxu0 0.0
    %7612 = vmatprep.mubr.f32.mxu0 0.0
    %7613 = vmatmul.mubr.f32.gmra.mxu0 %v7543
    %v7614 = vpop.f32.mrf.mxu0
    %v7615 = vadd.f32 %v7534, %v7614
    %v7616 = vpop.f32.mrf.mxu0
    %7617 = vmatprep.mubr.f32.mxu0 0.0
    %7618 = vmatmul.mubr.f32.gmra.mxu0 %v7546
    %v7619 = vpop.f32.mrf.mxu0
    %v7620 = vadd.f32 %v7539, %v7619
    %v7621 = vpop.f32.mrf.mxu0
    %7622 = vdwg.mxu0
    %s7623 = scalar_lea.vmem %s10, 1
    %v7624 = vld [vmem:[%s7623] sm:$0x1]
    %v7626 = vlaneseq
    %v7627 = vshrl.u32 %v7626, 7
    %v7628 = vsub.s32 0, %v7627
    %v7629 = vrot.slane %v7624, %v7628
    %v7631 = vadd.f32 %v7615, %v7629
    %v7632 = vadd.f32 %v7620, %v7629
    %7633 = vrot.lane.b32.xlu0 %v7378, 96
    %v7634 = vpop.permute.xlu0 %7633
    %7635 = vrot.lane.b32.xlu0 %v7448, 96
    %v7636 = vpop.permute.xlu0 %7635
    %v7639 = vadd.f32 %v4060, %v7634
    %v7640 = vadd.f32 %v4061, %v7636
    %v7641 = vmul.f32 %v7639, 0.5
    %v7642 = vmul.f32 %v7640, 0.5
    %v7643 = vadd.f32 %v7631, %v7641
    %v7644 = vadd.f32 %v7632, %v7642
    %v7645 = vld [vmem:[%s3] sm:$0x1]
    %v7646 = vld [vmem:[%s3 + $0x1] sm:$0x1]
    %v7647 = vsel %vm78, %v7643, 0.0
    %7648 = vadd.xlane.f32.xlu0 %v7647
    %v7649 = vpop.xlane.xlu0 %7648
    %v7650 = vsel %vm78, %v7644, 0.0
    %7651 = vadd.xlane.f32.xlu0 %v7650
    %v7652 = vpop.xlane.xlu0 %7651
    %v7653 = vmul.f32 %v7649, %v85
    %v7654 = vmul.f32 %v7652, %v85
    %v7655 = vsub.f32 %v7643, %v7653
    %v7656 = vsub.f32 %v7644, %v7654
    %v7657 = vmul.f32 %v7655, %v7655
    %v7658 = vmul.f32 %v7656, %v7656
    %v7659 = vsel %vm78, %v7657, 0.0
    %7660 = vadd.xlane.f32.xlu0 %v7659
    %v7661 = vpop.xlane.xlu0 %7660
    %v7662 = vsel %vm78, %v7658, 0.0
    %7663 = vadd.xlane.f32.xlu0 %v7662
    %v7664 = vpop.xlane.xlu0 %7663
    %v7665 = vmul.f32 %v7661, %v85
    %v7666 = vmul.f32 %v7664, %v85
    %v7667 = vadd.f32 %v7665, 1e-05
    %v7668 = vadd.f32 %v7666, 1e-05
    %v7669 = vrsqrt.pop %v7667
    %v7670 = vrsqrt.pop %v7668
    %v7671 = vmul.f32 %v7655, %v7669
    %v7672 = vmul.f32 %v7656, %v7670
    %v7673 = vlaneseq
    %v7674 = vshrl.u32 %v7673, 7
    %v7675 = vsub.s32 0, %v7674
    %v7676 = vrot.slane %v7645, %v7675
    %v7677 = vmul.f32 %v7671, %v7676
    %v7678 = vmul.f32 %v7672, %v7676
    %v7679 = vlaneseq
    %v7680 = vshrl.u32 %v7679, 7
    %v7681 = vsub.s32 0, %v7680
    %v7682 = vrot.slane %v7646, %v7681
    %v7683 = vadd.f32 %v7677, %v7682
    %v7684 = vadd.f32 %v7678, %v7682
    %7685 = vst.msk [vmem:[#allocation5] sm:$0xff] %vm78, %v7683
    %7686 = vst.msk [vmem:[#allocation5 + $0x8] sm:$0xff] %vm78, %v7684
    // Predicated region
    $region50: #{forward.1} parent=1 // pred_check
      _
    $region51: #{forward.1} parent=1 // pred_check_branch
      %7688 = sbr.rel (0) target = $region53
    $region52: #{forward.1} parent=1 // pred_region
      %s7690 = ssub.s32 256, 256
      %7691 = vsyncadd [#allocation3], %s7690
      %s7692 = sshll.u32 [#allocation5], 4
      %s7693 = int_to_ptr.vmem [resolvable:$true] %s7692
      %7698 = dma.vmem_to_hbm [thread:$0]  %s7693, 256, %s11, [#allocation3], 128, 128, 8
    $region53: #{forward.1} parent=1 // pred_fallthru
      _
    // Predicated region
    $region54: #{forward.1} parent=1 // pred_check
      _
    $region55: #{forward.1} parent=1 // pred_check_branch
      %7700 = sbr.rel (0) target = $region57
    $region56: #{forward.1} parent=1 // pred_region
      %7701 = dma.done [#allocation3], 256
    $region57: #{forward.1} parent=1 // pred_fallthru
      _
    %7702 = vsyncpa [#allocation3], 1
    %7703 = vsyncpa [#allocation4], 1

</llo_original>
